<compile_context>
chip_gen: v7x
topology: tpu7x:2x2x1
jax: 0.10.0
libtpu: 0.0.40
codegen_flags: <defaults>
</compile_context>

<pallas_src>
import jax
import jax.numpy as jnp
from jax.experimental import pallas as pl
from jax.experimental.pallas import tpu as pltpu


# ----------------------------------------------------------------------------
# In-kernel per-level compute (channel-major, lane = spatial)
# ----------------------------------------------------------------------------
def _level_compute(xp_ref, w1_ref, b1_ref, bns_ref, bnb_ref, w2_ref, b2_ref,
                   wh_ref, ww_ref, out_ref, ch_off):
    """conv3x3 -> ReLU -> BN(affine) -> conv3x3 -> bilinear upsample -> write
    channel slice [ch_off, ch_off+Cout) of the fused output block."""
    Cin, nb, Hp, Wp = xp_ref.shape          # nb == 1 when gridded over batch
    H, W = Hp - 2, Wp - 2
    Cmid = w1_ref.shape[0]
    Cout = w2_ref.shape[0]
    Sh = wh_ref.shape[0]
    Sw = ww_ref.shape[0]
    L = nb * H * W

    # ---- conv1: im2col along the K (sublane) axis, spatial stays on lanes -> one MXU matmul ----
    xp = xp_ref[...]                                               # bf16 (Cin, nb, H+2, W+2), pre-padded
    taps = [xp[:, :, dy:dy + H, dx:dx + W].reshape(Cin, L)
            for dy in range(3) for dx in range(3)]
    p1 = jnp.concatenate(taps, axis=0)                             # (9*Cin, L)
    y = jnp.dot(w1_ref[...], p1, preferred_element_type=jnp.float32)   # (Cmid, L) f32

    # bias + ReLU + eval-mode BN as a full per-channel affine (f32; no division by gamma)
    y = jnp.maximum(y + b1_ref[...], 0.0)
    y = y * bns_ref[...] + bnb_ref[...]

    # ---- conv2: value-level zero pad, then one im2col matmul ----
    y4 = y.astype(jnp.bfloat16).reshape(Cmid, nb, H, W)
    zr = jnp.zeros((Cmid, nb, 1, W), jnp.bfloat16)
    y4 = jnp.concatenate([zr, y4, zr], axis=2)                     # pad H
    zc = jnp.zeros((Cmid, nb, H + 2, 1), jnp.bfloat16)
    y4 = jnp.concatenate([zc, y4, zc], axis=3)                     # pad W
    taps2 = [y4[:, :, dy:dy + H, dx:dx + W].reshape(Cmid, L)
             for dy in range(3) for dx in range(3)]
    p2 = jnp.concatenate(taps2, axis=0)                            # (9*Cmid, L)
    z = jnp.dot(w2_ref[...], p2, preferred_element_type=jnp.float32) + b2_ref[...]   # (Cout, L)

    # ---- separable bilinear upsample (align_corners=False): two batched bf16 MXU matmuls ----
    # Result lands directly as (Cout, nb, Sh*Sw) in row-major spatial order -> no transposes.
    # Only the tiny (Sh,H)/(Sw,W) bf16 interp matrices get broadcast over B = Cout*nb (a few KiB).
    B = Cout * nb
    zb = z.astype(jnp.bfloat16).reshape(B, H, W)
    whb = jnp.broadcast_to(wh_ref[...], (B, Sh, H))
    t1 = jnp.einsum('bih,bhw->biw', whb, zb,
                    preferred_element_type=jnp.float32)            # (B, Sh, W)
    wwb = jnp.broadcast_to(ww_ref[...], (B, Sw, W))
    t2 = jnp.einsum('biw,bjw->bij', t1.astype(jnp.bfloat16), wwb,
                    preferred_element_type=jnp.float32)            # (B, Sh, Sw)
    res = t2.reshape(Cout, nb, Sh * Sw)

    # ---- lane-dense store: lanes = Sh*Sw (multiple of 128), no transpose ----
    for n in range(nb):                                            # nb is 1 (static)
        out_ref[n, ch_off:ch_off + Cout, :] = res[:, n, :]


def _make_fpn_kernel(n_levels, ch_offsets, c_last):
    n_per = 9

    def kernel(*refs):
        n_in = n_levels * n_per + 1
        last_ref = refs[n_in - 1]          # HBM (pl.ANY)
        out_ref = refs[n_in]               # VMEM output block (1, C_total, Sh*Sw)
        copy_sem = refs[n_in + 1]          # DMA semaphore scratch

        # last_layer pass-through: async HBM -> output-slice DMA, overlapped with level compute.
        n = pl.program_id(0)
        last_off = ch_offsets[n_levels]
        cp = pltpu.make_async_copy(
            last_ref.at[pl.ds(n, 1)],
            out_ref.at[:, last_off:last_off + c_last, :],
            copy_sem)
        cp.start()

        for lvl in range(n_levels):
            (xp_ref, w1_ref, b1_ref, bns_ref, bnb_ref,
             w2_ref, b2_ref, wh_ref, ww_ref) = refs[lvl * n_per:(lvl + 1) * n_per]
            _level_compute(xp_ref, w1_ref, b1_ref, bns_ref, bnb_ref,
                           w2_ref, b2_ref, wh_ref, ww_ref, out_ref, ch_offsets[lvl])

        cp.wait()

    return kernel


# ----------------------------------------------------------------------------
# Glue (plain JAX): bilinear matrices, layout prep, pallas_call
# ----------------------------------------------------------------------------
def _bilinear_matrix(in_size, out_size):
    """Interpolation matrix matching F.interpolate(mode='bilinear',
    align_corners=False): out = W @ x, W of shape (out_size, in_size)."""
    scale = in_size / out_size
    i = jnp.arange(out_size, dtype=jnp.float32)
    src = jnp.maximum(scale * (i + 0.5) - 0.5, 0.0)
    idx0 = jnp.minimum(jnp.floor(src).astype(jnp.int32), in_size - 1)
    idx1 = jnp.minimum(idx0 + 1, in_size - 1)
    lam1 = src - idx0.astype(jnp.float32)
    lam0 = 1.0 - lam1
    Wm = jnp.zeros((out_size, in_size), jnp.float32)
    rows = jnp.arange(out_size)
    Wm = Wm.at[rows, idx0].add(lam0)
    Wm = Wm.at[rows, idx1].add(lam1)
    return Wm


def fpn_forward(xs_nchw, last_layer_nchw, torch_params, eps=1e-5):
    """Matches FPN.forward(xs, last_layer) (eval-mode BatchNorm). NCHW in/out."""
    n_levels = len(xs_nchw)
    N, c_last, Sh, Sw = last_layer_nchw.shape
    SS = Sh * Sw

    inputs = []
    in_specs = []
    couts = []
    for i, (x, p) in enumerate(zip(xs_nchw, torch_params)):
        w1_t, b1, gamma, beta, rmean, rvar, w2_t, b2 = p
        cmid, cin = w1_t.shape[0], w1_t.shape[1]
        cout = w2_t.shape[0]
        H, W = x.shape[2], x.shape[3]
        r = 2 ** (n_levels - i)
        assert H * r == Sh and W * r == Sw

        # Eval-mode BN as a per-channel affine on the activation (no division by gamma).
        s = gamma * jax.lax.rsqrt(rvar + eps)
        bn_scale = s.reshape(cmid, 1).astype(jnp.float32)
        bn_shift = (beta - s * rmean).reshape(cmid, 1).astype(jnp.float32)

        # Channel-major, zero-padded input: (Cin, N, H+2, W+2), bf16.
        x_p = jnp.pad(jnp.transpose(x, (1, 0, 2, 3)),
                      ((0, 0), (0, 0), (1, 1), (1, 1))).astype(jnp.bfloat16)

        # PyTorch conv weight (Cout, Cin, ky, kx) -> (Cout, ky, kx, Cin) -> (Cout, 9*Cin);
        # matches the kernel's tap order (dy, dx, ci).
        w1 = jnp.transpose(w1_t, (0, 2, 3, 1)).reshape(cmid, 9 * cin).astype(jnp.bfloat16)
        w2 = jnp.transpose(w2_t, (0, 2, 3, 1)).reshape(cout, 9 * cmid).astype(jnp.bfloat16)

        wh = _bilinear_matrix(H, Sh).astype(jnp.bfloat16)            # (Sh, H), exact in bf16
        ww = _bilinear_matrix(W, Sw).astype(jnp.bfloat16)            # (Sw, W)

        lvl = [x_p, w1,
               b1.reshape(cmid, 1).astype(jnp.float32),
               bn_scale, bn_shift,
               w2,
               b2.reshape(cout, 1).astype(jnp.float32),
               wh, ww]
        inputs += lvl
        # x is blocked over batch N; all small per-level operands use a constant index_map so
        # they stay VMEM-resident across grid steps (no re-DMA).
        in_specs.append(pl.BlockSpec((cin, 1, H + 2, W + 2), lambda n: (0, n, 0, 0)))
        for a in lvl[1:]:
            in_specs.append(pl.BlockSpec(a.shape, lambda n, _d=a.ndim: (0,) * _d))
        couts.append(cout)

    ch_offsets = []
    off = 0
    for c in couts:
        ch_offsets.append(off)
        off += c
    ch_offsets.append(off)                                           # offset of last_layer
    c_total = off + c_last

    # last_layer stays in HBM; the kernel DMAs it asynchronously into its output slice.
    inputs.append(last_layer_nchw.reshape(N, c_last, SS).astype(jnp.float32))
    in_specs.append(pl.BlockSpec(memory_space=pl.ANY))

    out = pl.pallas_call(
        _make_fpn_kernel(n_levels, ch_offsets, c_last),
        out_shape=jax.ShapeDtypeStruct((N, c_total, SS), jnp.float32),
        grid=(N,),
        in_specs=in_specs,
        out_specs=pl.BlockSpec((1, c_total, SS), lambda n: (n, 0, 0)),
        scratch_shapes=[pltpu.SemaphoreType.DMA],
        compiler_params=pltpu.CompilerParams(
            dimension_semantics=("parallel",),
            vmem_limit_bytes=32 * 1024 * 1024),
    )(*inputs)
    return out.reshape(N, c_total, Sh, Sw)


# ----------------------------------------------------------------------------
# Deterministic synthetic parameters + example run
# ----------------------------------------------------------------------------
if __name__ == "__main__":
    key = jax.random.PRNGKey(0)
    keys = iter(jax.random.split(key, 32))

    input_channels = [8, 16]
    output_channels = [8, 8]
    n_levels = len(input_channels)
    N = 2
    base = 16            # last_layer / final spatial size
    last_ch = 16

    # xs[i] spatial size is base / 2**(n_levels - i) so everything aligns after upsampling
    xs = []
    for i, cin in enumerate(input_channels):
        s = base // (2 ** (n_levels - i))
        xs.append(jax.random.normal(next(keys), (N, cin, s, s), jnp.float32))
    last_layer = jax.random.normal(next(keys), (N, last_ch, base, base), jnp.float32)

    params = []
    for cin, cout in zip(input_channels, output_channels):
        cmid = cout * 2
        w1 = jax.random.normal(next(keys), (cmid, cin, 3, 3), jnp.float32) * 0.1
        b1 = jax.random.normal(next(keys), (cmid,), jnp.float32) * 0.1
        w2 = jax.random.normal(next(keys), (cout, cmid, 3, 3), jnp.float32) * 0.1
        b2 = jax.random.normal(next(keys), (cout,), jnp.float32) * 0.1
        gamma = jnp.ones((cmid,), jnp.float32) * 1.1
        beta = jnp.zeros((cmid,), jnp.float32) + 0.05
        rmean = jnp.zeros((cmid,), jnp.float32) + 0.02
        rvar = jnp.ones((cmid,), jnp.float32) * 0.9
        params.append((w1, b1, gamma, beta, rmean, rvar, w2, b2))

    out = jax.jit(fpn_forward)(xs, last_layer, params)
    out = jax.block_until_ready(out)

    expected = (N, sum(output_channels) + last_ch, base, base)
    assert out.shape == expected, (out.shape, expected)
    assert bool(jnp.all(jnp.isfinite(out)))
    print("KERNEL_OK")
</pallas_src>

<mosaic_0001>
module attributes {stable_mosaic.version = 11 : i64} {
  func.func private @main(%arg0: i32) attributes {dimension_semantics = [#tpu.dimension_semantics<core_parallel>], iteration_bounds = array<i64: 2>, tpu.core_type = #tpu.core_type<sc_scalar_subcore>, window_params = []} {
    return
  }
}

module attributes {stable_mosaic.version = 11 : i64} {
  func.func private @main(%arg0: i32) attributes {dimension_semantics = [#tpu.dimension_semantics<core_parallel>], iteration_bounds = array<i64: 2>, tpu.core_type = #tpu.core_type<sc_scalar_subcore>, window_params = []} {
    return
  }
}

module attributes {stable_mosaic.version = 11 : i64} {
  func.func @kernel(%arg0: i32, %arg1: memref<8x1x6x6xbf16, #tpu.memory_space<vmem>>, %arg2: memref<16x72xbf16, #tpu.memory_space<vmem>>, %arg3: memref<16x1xf32, #tpu.memory_space<vmem>>, %arg4: memref<16x1xf32, #tpu.memory_space<vmem>>, %arg5: memref<16x1xf32, #tpu.memory_space<vmem>>, %arg6: memref<8x144xbf16, #tpu.memory_space<vmem>>, %arg7: memref<8x1xf32, #tpu.memory_space<vmem>>, %arg8: memref<16x4xbf16, #tpu.memory_space<vmem>>, %arg9: memref<16x4xbf16, #tpu.memory_space<vmem>>, %arg10: memref<16x1x10x10xbf16, #tpu.memory_space<vmem>>, %arg11: memref<16x144xbf16, #tpu.memory_space<vmem>>, %arg12: memref<16x1xf32, #tpu.memory_space<vmem>>, %arg13: memref<16x1xf32, #tpu.memory_space<vmem>>, %arg14: memref<16x1xf32, #tpu.memory_space<vmem>>, %arg15: memref<8x144xbf16, #tpu.memory_space<vmem>>, %arg16: memref<8x1xf32, #tpu.memory_space<vmem>>, %arg17: memref<16x8xbf16, #tpu.memory_space<vmem>>, %arg18: memref<16x8xbf16, #tpu.memory_space<vmem>>, %arg19: memref<2x16x256xf32, #tpu.memory_space<any>>, %arg20: memref<1x32x256xf32, #tpu.memory_space<vmem>>, %arg21: memref<!tpu.dma_semaphore, #tpu.memory_space<semaphore_mem>>) attributes {dimension_semantics = [#tpu.dimension_semantics<parallel>], iteration_bounds = array<i64: 2>, scalar_prefetch = 0 : i64, scratch_operands = 1 : i64, tpu.core_type = #tpu.core_type<tc>, window_params = [{transform_indices = @transform_0, window_bounds = array<i64: 8, 1, 6, 6>}, {pipeline_mode = #tpu.pipeline_mode<synchronous>, transform_indices = @transform_1, window_bounds = array<i64: 16, 72>}, {pipeline_mode = #tpu.pipeline_mode<synchronous>, transform_indices = @transform_2, window_bounds = array<i64: 16, 1>}, {pipeline_mode = #tpu.pipeline_mode<synchronous>, transform_indices = @transform_3, window_bounds = array<i64: 16, 1>}, {pipeline_mode = #tpu.pipeline_mode<synchronous>, transform_indices = @transform_4, window_bounds = array<i64: 16, 1>}, {pipeline_mode = #tpu.pipeline_mode<synchronous>, transform_indices = @transform_5, window_bounds = array<i64: 8, 144>}, {pipeline_mode = #tpu.pipeline_mode<synchronous>, transform_indices = @transform_6, window_bounds = array<i64: 8, 1>}, {pipeline_mode = #tpu.pipeline_mode<synchronous>, transform_indices = @transform_7, window_bounds = array<i64: 16, 4>}, {pipeline_mode = #tpu.pipeline_mode<synchronous>, transform_indices = @transform_8, window_bounds = array<i64: 16, 4>}, {transform_indices = @transform_9, window_bounds = array<i64: 16, 1, 10, 10>}, {pipeline_mode = #tpu.pipeline_mode<synchronous>, transform_indices = @transform_10, window_bounds = array<i64: 16, 144>}, {pipeline_mode = #tpu.pipeline_mode<synchronous>, transform_indices = @transform_11, window_bounds = array<i64: 16, 1>}, {pipeline_mode = #tpu.pipeline_mode<synchronous>, transform_indices = @transform_12, window_bounds = array<i64: 16, 1>}, {pipeline_mode = #tpu.pipeline_mode<synchronous>, transform_indices = @transform_13, window_bounds = array<i64: 16, 1>}, {pipeline_mode = #tpu.pipeline_mode<synchronous>, transform_indices = @transform_14, window_bounds = array<i64: 8, 144>}, {pipeline_mode = #tpu.pipeline_mode<synchronous>, transform_indices = @transform_15, window_bounds = array<i64: 8, 1>}, {pipeline_mode = #tpu.pipeline_mode<synchronous>, transform_indices = @transform_16, window_bounds = array<i64: 16, 8>}, {pipeline_mode = #tpu.pipeline_mode<synchronous>, transform_indices = @transform_17, window_bounds = array<i64: 16, 8>}, {}, {transform_indices = @transform_19, window_bounds = array<i64: 1, 32, 256>}]} {
    %c0_i32 = arith.constant 0 : i32
    %c0_i32_0 = arith.constant 0 : i32
    %0 = tpu.memref_slice %arg19[%arg0, %c0_i32, %c0_i32_0] : memref<2x16x256xf32, #tpu.memory_space<any>> -> memref<1x16x256xf32, #tpu.memory_space<any>>
    %c0_i32_1 = arith.constant 0 : i32
    %c16_i32 = arith.constant 16 : i32
    %c0_i32_2 = arith.constant 0 : i32
    %1 = tpu.memref_slice %arg20[%c0_i32_1, %c16_i32, %c0_i32_2] : memref<1x32x256xf32, #tpu.memory_space<vmem>> -> memref<1x16x256xf32, #tpu.memory_space<vmem>>
    tpu.enqueue_dma source(%0 : memref<1x16x256xf32, #tpu.memory_space<any>>) target(%1 : memref<1x16x256xf32, #tpu.memory_space<vmem>>) target_semaphore(%arg21 : memref<!tpu.dma_semaphore, #tpu.memory_space<semaphore_mem>>)
    %c0 = arith.constant 0 : index
    %c0_3 = arith.constant 0 : index
    %c0_4 = arith.constant 0 : index
    %c0_5 = arith.constant 0 : index
    %2 = vector.load %arg1[%c0, %c0_3, %c0_4, %c0_5] : memref<8x1x6x6xbf16, #tpu.memory_space<vmem>>, vector<8x1x6x6xbf16>
    %3 = vector.extract_strided_slice %2 {offsets = [0, 0, 0, 0], sizes = [8, 1, 4, 4], strides = [1, 1, 1, 1]} : vector<8x1x6x6xbf16> to vector<8x1x4x4xbf16>
    %4 = vector.shape_cast %3 : vector<8x1x4x4xbf16> to vector<8x16xbf16>
    %5 = vector.extract_strided_slice %2 {offsets = [0, 0, 0, 1], sizes = [8, 1, 4, 4], strides = [1, 1, 1, 1]} : vector<8x1x6x6xbf16> to vector<8x1x4x4xbf16>
    %6 = vector.shape_cast %5 : vector<8x1x4x4xbf16> to vector<8x16xbf16>
    %7 = vector.extract_strided_slice %2 {offsets = [0, 0, 0, 2], sizes = [8, 1, 4, 4], strides = [1, 1, 1, 1]} : vector<8x1x6x6xbf16> to vector<8x1x4x4xbf16>
    %8 = vector.shape_cast %7 : vector<8x1x4x4xbf16> to vector<8x16xbf16>
    %9 = vector.extract_strided_slice %2 {offsets = [0, 0, 1, 0], sizes = [8, 1, 4, 4], strides = [1, 1, 1, 1]} : vector<8x1x6x6xbf16> to vector<8x1x4x4xbf16>
    %10 = vector.shape_cast %9 : vector<8x1x4x4xbf16> to vector<8x16xbf16>
    %11 = vector.extract_strided_slice %2 {offsets = [0, 0, 1, 1], sizes = [8, 1, 4, 4], strides = [1, 1, 1, 1]} : vector<8x1x6x6xbf16> to vector<8x1x4x4xbf16>
    %12 = vector.shape_cast %11 : vector<8x1x4x4xbf16> to vector<8x16xbf16>
    %13 = vector.extract_strided_slice %2 {offsets = [0, 0, 1, 2], sizes = [8, 1, 4, 4], strides = [1, 1, 1, 1]} : vector<8x1x6x6xbf16> to vector<8x1x4x4xbf16>
    %14 = vector.shape_cast %13 : vector<8x1x4x4xbf16> to vector<8x16xbf16>
    %15 = vector.extract_strided_slice %2 {offsets = [0, 0, 2, 0], sizes = [8, 1, 4, 4], strides = [1, 1, 1, 1]} : vector<8x1x6x6xbf16> to vector<8x1x4x4xbf16>
    %16 = vector.shape_cast %15 : vector<8x1x4x4xbf16> to vector<8x16xbf16>
    %17 = vector.extract_strided_slice %2 {offsets = [0, 0, 2, 1], sizes = [8, 1, 4, 4], strides = [1, 1, 1, 1]} : vector<8x1x6x6xbf16> to vector<8x1x4x4xbf16>
    %18 = vector.shape_cast %17 : vector<8x1x4x4xbf16> to vector<8x16xbf16>
    %19 = vector.extract_strided_slice %2 {offsets = [0, 0, 2, 2], sizes = [8, 1, 4, 4], strides = [1, 1, 1, 1]} : vector<8x1x6x6xbf16> to vector<8x1x4x4xbf16>
    %20 = vector.shape_cast %19 : vector<8x1x4x4xbf16> to vector<8x16xbf16>
    %21 = tpu.concatenate %4, %6, %8, %10, %12, %14, %16, %18, %20 in 0 : vector<8x16xbf16>, vector<8x16xbf16>, vector<8x16xbf16>, vector<8x16xbf16>, vector<8x16xbf16>, vector<8x16xbf16>, vector<8x16xbf16>, vector<8x16xbf16>, vector<8x16xbf16> -> vector<72x16xbf16>
    %c0_6 = arith.constant 0 : index
    %c0_7 = arith.constant 0 : index
    %22 = vector.load %arg2[%c0_6, %c0_7] : memref<16x72xbf16, #tpu.memory_space<vmem>>, vector<16x72xbf16>
    %cst = arith.constant dense<0.000000e+00> : vector<16x16xf32>
    %23 = tpu.matmul %22, %21, %cst {dimension_numbers = #tpu.dot_dimension_numbers<[1], [0], [0], [1], [0, 0, 1, 1], [], []>} : vector<16x72xbf16>, vector<72x16xbf16>, vector<16x16xf32> -> vector<16x16xf32>
    %c0_8 = arith.constant 0 : index
    %c0_9 = arith.constant 0 : index
    %24 = vector.load %arg3[%c0_8, %c0_9] : memref<16x1xf32, #tpu.memory_space<vmem>>, vector<16x1xf32>
    %25 = vector.broadcast %24 : vector<16x1xf32> to vector<16x16xf32>
    %26 = arith.addf %23, %25 : vector<16x16xf32>
    %cst_10 = arith.constant 0.000000e+00 : f32
    %27 = vector.broadcast %cst_10 : f32 to vector<16x16xf32>
    %28 = arith.maximumf %26, %27 : vector<16x16xf32>
    %c0_11 = arith.constant 0 : index
    %c0_12 = arith.constant 0 : index
    %29 = vector.load %arg4[%c0_11, %c0_12] : memref<16x1xf32, #tpu.memory_space<vmem>>, vector<16x1xf32>
    %30 = vector.broadcast %29 : vector<16x1xf32> to vector<16x16xf32>
    %31 = arith.mulf %28, %30 : vector<16x16xf32>
    %c0_13 = arith.constant 0 : index
    %c0_14 = arith.constant 0 : index
    %32 = vector.load %arg5[%c0_13, %c0_14] : memref<16x1xf32, #tpu.memory_space<vmem>>, vector<16x1xf32>
    %33 = vector.broadcast %32 : vector<16x1xf32> to vector<16x16xf32>
    %34 = arith.addf %31, %33 : vector<16x16xf32>
    %35 = arith.truncf %34 : vector<16x16xf32> to vector<16x16xbf16>
    %36 = vector.shape_cast %35 : vector<16x16xbf16> to vector<16x1x4x4xbf16>
    %cst_15 = arith.constant 0.000000e+00 : bf16
    %37 = vector.broadcast %cst_15 : bf16 to vector<16x1x1x4xbf16>
    %38 = tpu.concatenate %37, %36, %37 in 2 : vector<16x1x1x4xbf16>, vector<16x1x4x4xbf16>, vector<16x1x1x4xbf16> -> vector<16x1x6x4xbf16>
    %cst_16 = arith.constant 0.000000e+00 : bf16
    %39 = vector.broadcast %cst_16 : bf16 to vector<16x1x6x1xbf16>
    %40 = tpu.concatenate %39, %38, %39 in 3 : vector<16x1x6x1xbf16>, vector<16x1x6x4xbf16>, vector<16x1x6x1xbf16> -> vector<16x1x6x6xbf16>
    %41 = vector.extract_strided_slice %40 {offsets = [0, 0, 0, 0], sizes = [16, 1, 4, 4], strides = [1, 1, 1, 1]} : vector<16x1x6x6xbf16> to vector<16x1x4x4xbf16>
    %42 = vector.shape_cast %41 : vector<16x1x4x4xbf16> to vector<16x16xbf16>
    %43 = vector.extract_strided_slice %40 {offsets = [0, 0, 0, 1], sizes = [16, 1, 4, 4], strides = [1, 1, 1, 1]} : vector<16x1x6x6xbf16> to vector<16x1x4x4xbf16>
    %44 = vector.shape_cast %43 : vector<16x1x4x4xbf16> to vector<16x16xbf16>
    %45 = vector.extract_strided_slice %40 {offsets = [0, 0, 0, 2], sizes = [16, 1, 4, 4], strides = [1, 1, 1, 1]} : vector<16x1x6x6xbf16> to vector<16x1x4x4xbf16>
    %46 = vector.shape_cast %45 : vector<16x1x4x4xbf16> to vector<16x16xbf16>
    %47 = vector.extract_strided_slice %40 {offsets = [0, 0, 1, 0], sizes = [16, 1, 4, 4], strides = [1, 1, 1, 1]} : vector<16x1x6x6xbf16> to vector<16x1x4x4xbf16>
    %48 = vector.shape_cast %47 : vector<16x1x4x4xbf16> to vector<16x16xbf16>
    %49 = vector.extract_strided_slice %40 {offsets = [0, 0, 1, 1], sizes = [16, 1, 4, 4], strides = [1, 1, 1, 1]} : vector<16x1x6x6xbf16> to vector<16x1x4x4xbf16>
    %50 = vector.shape_cast %49 : vector<16x1x4x4xbf16> to vector<16x16xbf16>
    %51 = vector.extract_strided_slice %40 {offsets = [0, 0, 1, 2], sizes = [16, 1, 4, 4], strides = [1, 1, 1, 1]} : vector<16x1x6x6xbf16> to vector<16x1x4x4xbf16>
    %52 = vector.shape_cast %51 : vector<16x1x4x4xbf16> to vector<16x16xbf16>
    %53 = vector.extract_strided_slice %40 {offsets = [0, 0, 2, 0], sizes = [16, 1, 4, 4], strides = [1, 1, 1, 1]} : vector<16x1x6x6xbf16> to vector<16x1x4x4xbf16>
    %54 = vector.shape_cast %53 : vector<16x1x4x4xbf16> to vector<16x16xbf16>
    %55 = vector.extract_strided_slice %40 {offsets = [0, 0, 2, 1], sizes = [16, 1, 4, 4], strides = [1, 1, 1, 1]} : vector<16x1x6x6xbf16> to vector<16x1x4x4xbf16>
    %56 = vector.shape_cast %55 : vector<16x1x4x4xbf16> to vector<16x16xbf16>
    %57 = vector.extract_strided_slice %40 {offsets = [0, 0, 2, 2], sizes = [16, 1, 4, 4], strides = [1, 1, 1, 1]} : vector<16x1x6x6xbf16> to vector<16x1x4x4xbf16>
    %58 = vector.shape_cast %57 : vector<16x1x4x4xbf16> to vector<16x16xbf16>
    %59 = tpu.concatenate %42, %44, %46, %48, %50, %52, %54, %56, %58 in 0 : vector<16x16xbf16>, vector<16x16xbf16>, vector<16x16xbf16>, vector<16x16xbf16>, vector<16x16xbf16>, vector<16x16xbf16>, vector<16x16xbf16>, vector<16x16xbf16>, vector<16x16xbf16> -> vector<144x16xbf16>
    %c0_17 = arith.constant 0 : index
    %c0_18 = arith.constant 0 : index
    %60 = vector.load %arg6[%c0_17, %c0_18] : memref<8x144xbf16, #tpu.memory_space<vmem>>, vector<8x144xbf16>
    %cst_19 = arith.constant dense<0.000000e+00> : vector<8x16xf32>
    %61 = tpu.matmul %60, %59, %cst_19 {dimension_numbers = #tpu.dot_dimension_numbers<[1], [0], [0], [1], [0, 0, 1, 1], [], []>} : vector<8x144xbf16>, vector<144x16xbf16>, vector<8x16xf32> -> vector<8x16xf32>
    %c0_20 = arith.constant 0 : index
    %c0_21 = arith.constant 0 : index
    %62 = vector.load %arg7[%c0_20, %c0_21] : memref<8x1xf32, #tpu.memory_space<vmem>>, vector<8x1xf32>
    %63 = vector.broadcast %62 : vector<8x1xf32> to vector<8x16xf32>
    %64 = arith.addf %61, %63 : vector<8x16xf32>
    %65 = arith.truncf %64 : vector<8x16xf32> to vector<8x16xbf16>
    %66 = vector.shape_cast %65 : vector<8x16xbf16> to vector<8x4x4xbf16>
    %c0_22 = arith.constant 0 : index
    %c0_23 = arith.constant 0 : index
    %67 = vector.load %arg8[%c0_22, %c0_23] : memref<16x4xbf16, #tpu.memory_space<vmem>>, vector<16x4xbf16>
    %68 = vector.shape_cast %67 : vector<16x4xbf16> to vector<1x16x4xbf16>
    %69 = vector.broadcast %68 : vector<1x16x4xbf16> to vector<8x16x4xbf16>
    "tpu.trace_start"() <{level = 10 : i32, message = "bih,bhw->biw"}> : () -> ()
    %cst_24 = arith.constant dense<0.000000e+00> : vector<8x16x4xf32>
    %70 = tpu.matmul %69, %66, %cst_24 {dimension_numbers = #tpu.dot_dimension_numbers<[2], [1], [1], [2], [0, 0, 0, 1, 1, 2], [0], [0]>} : vector<8x16x4xbf16>, vector<8x4x4xbf16>, vector<8x16x4xf32> -> vector<8x16x4xf32>
    "tpu.trace_stop"() : () -> ()
    %c0_25 = arith.constant 0 : index
    %c0_26 = arith.constant 0 : index
    %71 = vector.load %arg9[%c0_25, %c0_26] : memref<16x4xbf16, #tpu.memory_space<vmem>>, vector<16x4xbf16>
    %72 = vector.shape_cast %71 : vector<16x4xbf16> to vector<1x16x4xbf16>
    %73 = vector.broadcast %72 : vector<1x16x4xbf16> to vector<8x16x4xbf16>
    %74 = arith.truncf %70 : vector<8x16x4xf32> to vector<8x16x4xbf16>
    "tpu.trace_start"() <{level = 10 : i32, message = "biw,bjw->bij"}> : () -> ()
    %cst_27 = arith.constant dense<0.000000e+00> : vector<8x16x16xf32>
    %75 = tpu.matmul %74, %73, %cst_27 {dimension_numbers = #tpu.dot_dimension_numbers<[2], [2], [1], [1], [0, 0, 0, 1, 1, 1], [0], [0]>} : vector<8x16x4xbf16>, vector<8x16x4xbf16>, vector<8x16x16xf32> -> vector<8x16x16xf32>
    "tpu.trace_stop"() : () -> ()
    %76 = vector.shape_cast %75 : vector<8x16x16xf32> to vector<8x1x256xf32>
    %77 = vector.shape_cast %76 : vector<8x1x256xf32> to vector<8x256xf32>
    %c0_28 = arith.constant 0 : index
    %c0_29 = arith.constant 0 : index
    %c0_30 = arith.constant 0 : index
    %78 = vector.load %arg20[%c0_28, %c0_29, %c0_30] : memref<1x32x256xf32, #tpu.memory_space<vmem>>, vector<1x8x256xf32>
    %79 = vector.shape_cast %78 : vector<1x8x256xf32> to vector<8x256xf32>
    %80 = vector.shape_cast %77 : vector<8x256xf32> to vector<1x8x256xf32>
    tpu.vector_store %arg20[%c0_28, %c0_29, %c0_30], %80 {strides = array<i32>} : memref<1x32x256xf32, #tpu.memory_space<vmem>>, vector<1x8x256xf32>,
    %c0_31 = arith.constant 0 : index
    %c0_32 = arith.constant 0 : index
    %c0_33 = arith.constant 0 : index
    %c0_34 = arith.constant 0 : index
    %81 = vector.load %arg10[%c0_31, %c0_32, %c0_33, %c0_34] : memref<16x1x10x10xbf16, #tpu.memory_space<vmem>>, vector<16x1x10x10xbf16>
    %82 = vector.extract_strided_slice %81 {offsets = [0, 0, 0, 0], sizes = [16, 1, 8, 8], strides = [1, 1, 1, 1]} : vector<16x1x10x10xbf16> to vector<16x1x8x8xbf16>
    %83 = vector.shape_cast %82 : vector<16x1x8x8xbf16> to vector<16x64xbf16>
    %84 = vector.extract_strided_slice %81 {offsets = [0, 0, 0, 1], sizes = [16, 1, 8, 8], strides = [1, 1, 1, 1]} : vector<16x1x10x10xbf16> to vector<16x1x8x8xbf16>
    %85 = vector.shape_cast %84 : vector<16x1x8x8xbf16> to vector<16x64xbf16>
    %86 = vector.extract_strided_slice %81 {offsets = [0, 0, 0, 2], sizes = [16, 1, 8, 8], strides = [1, 1, 1, 1]} : vector<16x1x10x10xbf16> to vector<16x1x8x8xbf16>
    %87 = vector.shape_cast %86 : vector<16x1x8x8xbf16> to vector<16x64xbf16>
    %88 = vector.extract_strided_slice %81 {offsets = [0, 0, 1, 0], sizes = [16, 1, 8, 8], strides = [1, 1, 1, 1]} : vector<16x1x10x10xbf16> to vector<16x1x8x8xbf16>
    %89 = vector.shape_cast %88 : vector<16x1x8x8xbf16> to vector<16x64xbf16>
    %90 = vector.extract_strided_slice %81 {offsets = [0, 0, 1, 1], sizes = [16, 1, 8, 8], strides = [1, 1, 1, 1]} : vector<16x1x10x10xbf16> to vector<16x1x8x8xbf16>
    %91 = vector.shape_cast %90 : vector<16x1x8x8xbf16> to vector<16x64xbf16>
    %92 = vector.extract_strided_slice %81 {offsets = [0, 0, 1, 2], sizes = [16, 1, 8, 8], strides = [1, 1, 1, 1]} : vector<16x1x10x10xbf16> to vector<16x1x8x8xbf16>
    %93 = vector.shape_cast %92 : vector<16x1x8x8xbf16> to vector<16x64xbf16>
    %94 = vector.extract_strided_slice %81 {offsets = [0, 0, 2, 0], sizes = [16, 1, 8, 8], strides = [1, 1, 1, 1]} : vector<16x1x10x10xbf16> to vector<16x1x8x8xbf16>
    %95 = vector.shape_cast %94 : vector<16x1x8x8xbf16> to vector<16x64xbf16>
    %96 = vector.extract_strided_slice %81 {offsets = [0, 0, 2, 1], sizes = [16, 1, 8, 8], strides = [1, 1, 1, 1]} : vector<16x1x10x10xbf16> to vector<16x1x8x8xbf16>
    %97 = vector.shape_cast %96 : vector<16x1x8x8xbf16> to vector<16x64xbf16>
    %98 = vector.extract_strided_slice %81 {offsets = [0, 0, 2, 2], sizes = [16, 1, 8, 8], strides = [1, 1, 1, 1]} : vector<16x1x10x10xbf16> to vector<16x1x8x8xbf16>
    %99 = vector.shape_cast %98 : vector<16x1x8x8xbf16> to vector<16x64xbf16>
    %100 = tpu.concatenate %83, %85, %87, %89, %91, %93, %95, %97, %99 in 0 : vector<16x64xbf16>, vector<16x64xbf16>, vector<16x64xbf16>, vector<16x64xbf16>, vector<16x64xbf16>, vector<16x64xbf16>, vector<16x64xbf16>, vector<16x64xbf16>, vector<16x64xbf16> -> vector<144x64xbf16>
    %c0_35 = arith.constant 0 : index
    %c0_36 = arith.constant 0 : index
    %101 = vector.load %arg11[%c0_35, %c0_36] : memref<16x144xbf16, #tpu.memory_space<vmem>>, vector<16x144xbf16>
    %cst_37 = arith.constant dense<0.000000e+00> : vector<16x64xf32>
    %102 = tpu.matmul %101, %100, %cst_37 {dimension_numbers = #tpu.dot_dimension_numbers<[1], [0], [0], [1], [0, 0, 1, 1], [], []>} : vector<16x144xbf16>, vector<144x64xbf16>, vector<16x64xf32> -> vector<16x64xf32>
    %c0_38 = arith.constant 0 : index
    %c0_39 = arith.constant 0 : index
    %103 = vector.load %arg12[%c0_38, %c0_39] : memref<16x1xf32, #tpu.memory_space<vmem>>, vector<16x1xf32>
    %104 = vector.broadcast %103 : vector<16x1xf32> to vector<16x64xf32>
    %105 = arith.addf %102, %104 : vector<16x64xf32>
    %cst_40 = arith.constant 0.000000e+00 : f32
    %106 = vector.broadcast %cst_40 : f32 to vector<16x64xf32>
    %107 = arith.maximumf %105, %106 : vector<16x64xf32>
    %c0_41 = arith.constant 0 : index
    %c0_42 = arith.constant 0 : index
    %108 = vector.load %arg13[%c0_41, %c0_42] : memref<16x1xf32, #tpu.memory_space<vmem>>, vector<16x1xf32>
    %109 = vector.broadcast %108 : vector<16x1xf32> to vector<16x64xf32>
    %110 = arith.mulf %107, %109 : vector<16x64xf32>
    %c0_43 = arith.constant 0 : index
    %c0_44 = arith.constant 0 : index
    %111 = vector.load %arg14[%c0_43, %c0_44] : memref<16x1xf32, #tpu.memory_space<vmem>>, vector<16x1xf32>
    %112 = vector.broadcast %111 : vector<16x1xf32> to vector<16x64xf32>
    %113 = arith.addf %110, %112 : vector<16x64xf32>
    %114 = arith.truncf %113 : vector<16x64xf32> to vector<16x64xbf16>
    %115 = vector.shape_cast %114 : vector<16x64xbf16> to vector<16x1x8x8xbf16>
    %cst_45 = arith.constant 0.000000e+00 : bf16
    %116 = vector.broadcast %cst_45 : bf16 to vector<16x1x1x8xbf16>
    %117 = tpu.concatenate %116, %115, %116 in 2 : vector<16x1x1x8xbf16>, vector<16x1x8x8xbf16>, vector<16x1x1x8xbf16> -> vector<16x1x10x8xbf16>
    %cst_46 = arith.constant 0.000000e+00 : bf16
    %118 = vector.broadcast %cst_46 : bf16 to vector<16x1x10x1xbf16>
    %119 = tpu.concatenate %118, %117, %118 in 3 : vector<16x1x10x1xbf16>, vector<16x1x10x8xbf16>, vector<16x1x10x1xbf16> -> vector<16x1x10x10xbf16>
    %120 = vector.extract_strided_slice %119 {offsets = [0, 0, 0, 0], sizes = [16, 1, 8, 8], strides = [1, 1, 1, 1]} : vector<16x1x10x10xbf16> to vector<16x1x8x8xbf16>
    %121 = vector.shape_cast %120 : vector<16x1x8x8xbf16> to vector<16x64xbf16>
    %122 = vector.extract_strided_slice %119 {offsets = [0, 0, 0, 1], sizes = [16, 1, 8, 8], strides = [1, 1, 1, 1]} : vector<16x1x10x10xbf16> to vector<16x1x8x8xbf16>
    %123 = vector.shape_cast %122 : vector<16x1x8x8xbf16> to vector<16x64xbf16>
    %124 = vector.extract_strided_slice %119 {offsets = [0, 0, 0, 2], sizes = [16, 1, 8, 8], strides = [1, 1, 1, 1]} : vector<16x1x10x10xbf16> to vector<16x1x8x8xbf16>
    %125 = vector.shape_cast %124 : vector<16x1x8x8xbf16> to vector<16x64xbf16>
    %126 = vector.extract_strided_slice %119 {offsets = [0, 0, 1, 0], sizes = [16, 1, 8, 8], strides = [1, 1, 1, 1]} : vector<16x1x10x10xbf16> to vector<16x1x8x8xbf16>
    %127 = vector.shape_cast %126 : vector<16x1x8x8xbf16> to vector<16x64xbf16>
    %128 = vector.extract_strided_slice %119 {offsets = [0, 0, 1, 1], sizes = [16, 1, 8, 8], strides = [1, 1, 1, 1]} : vector<16x1x10x10xbf16> to vector<16x1x8x8xbf16>
    %129 = vector.shape_cast %128 : vector<16x1x8x8xbf16> to vector<16x64xbf16>
    %130 = vector.extract_strided_slice %119 {offsets = [0, 0, 1, 2], sizes = [16, 1, 8, 8], strides = [1, 1, 1, 1]} : vector<16x1x10x10xbf16> to vector<16x1x8x8xbf16>
    %131 = vector.shape_cast %130 : vector<16x1x8x8xbf16> to vector<16x64xbf16>
    %132 = vector.extract_strided_slice %119 {offsets = [0, 0, 2, 0], sizes = [16, 1, 8, 8], strides = [1, 1, 1, 1]} : vector<16x1x10x10xbf16> to vector<16x1x8x8xbf16>
    %133 = vector.shape_cast %132 : vector<16x1x8x8xbf16> to vector<16x64xbf16>
    %134 = vector.extract_strided_slice %119 {offsets = [0, 0, 2, 1], sizes = [16, 1, 8, 8], strides = [1, 1, 1, 1]} : vector<16x1x10x10xbf16> to vector<16x1x8x8xbf16>
    %135 = vector.shape_cast %134 : vector<16x1x8x8xbf16> to vector<16x64xbf16>
    %136 = vector.extract_strided_slice %119 {offsets = [0, 0, 2, 2], sizes = [16, 1, 8, 8], strides = [1, 1, 1, 1]} : vector<16x1x10x10xbf16> to vector<16x1x8x8xbf16>
    %137 = vector.shape_cast %136 : vector<16x1x8x8xbf16> to vector<16x64xbf16>
    %138 = tpu.concatenate %121, %123, %125, %127, %129, %131, %133, %135, %137 in 0 : vector<16x64xbf16>, vector<16x64xbf16>, vector<16x64xbf16>, vector<16x64xbf16>, vector<16x64xbf16>, vector<16x64xbf16>, vector<16x64xbf16>, vector<16x64xbf16>, vector<16x64xbf16> -> vector<144x64xbf16>
    %c0_47 = arith.constant 0 : index
    %c0_48 = arith.constant 0 : index
    %139 = vector.load %arg15[%c0_47, %c0_48] : memref<8x144xbf16, #tpu.memory_space<vmem>>, vector<8x144xbf16>
    %cst_49 = arith.constant dense<0.000000e+00> : vector<8x64xf32>
    %140 = tpu.matmul %139, %138, %cst_49 {dimension_numbers = #tpu.dot_dimension_numbers<[1], [0], [0], [1], [0, 0, 1, 1], [], []>} : vector<8x144xbf16>, vector<144x64xbf16>, vector<8x64xf32> -> vector<8x64xf32>
    %c0_50 = arith.constant 0 : index
    %c0_51 = arith.constant 0 : index
    %141 = vector.load %arg16[%c0_50, %c0_51] : memref<8x1xf32, #tpu.memory_space<vmem>>, vector<8x1xf32>
    %142 = vector.broadcast %141 : vector<8x1xf32> to vector<8x64xf32>
    %143 = arith.addf %140, %142 : vector<8x64xf32>
    %144 = arith.truncf %143 : vector<8x64xf32> to vector<8x64xbf16>
    %145 = vector.shape_cast %144 : vector<8x64xbf16> to vector<8x8x8xbf16>
    %c0_52 = arith.constant 0 : index
    %c0_53 = arith.constant 0 : index
    %146 = vector.load %arg17[%c0_52, %c0_53] : memref<16x8xbf16, #tpu.memory_space<vmem>>, vector<16x8xbf16>
    %147 = vector.shape_cast %146 : vector<16x8xbf16> to vector<1x16x8xbf16>
    %148 = vector.broadcast %147 : vector<1x16x8xbf16> to vector<8x16x8xbf16>
    "tpu.trace_start"() <{level = 10 : i32, message = "bih,bhw->biw"}> : () -> ()
    %cst_54 = arith.constant dense<0.000000e+00> : vector<8x16x8xf32>
    %149 = tpu.matmul %148, %145, %cst_54 {dimension_numbers = #tpu.dot_dimension_numbers<[2], [1], [1], [2], [0, 0, 0, 1, 1, 2], [0], [0]>} : vector<8x16x8xbf16>, vector<8x8x8xbf16>, vector<8x16x8xf32> -> vector<8x16x8xf32>
    "tpu.trace_stop"() : () -> ()
    %c0_55 = arith.constant 0 : index
    %c0_56 = arith.constant 0 : index
    %150 = vector.load %arg18[%c0_55, %c0_56] : memref<16x8xbf16, #tpu.memory_space<vmem>>, vector<16x8xbf16>
    %151 = vector.shape_cast %150 : vector<16x8xbf16> to vector<1x16x8xbf16>
    %152 = vector.broadcast %151 : vector<1x16x8xbf16> to vector<8x16x8xbf16>
    %153 = arith.truncf %149 : vector<8x16x8xf32> to vector<8x16x8xbf16>
    "tpu.trace_start"() <{level = 10 : i32, message = "biw,bjw->bij"}> : () -> ()
    %cst_57 = arith.constant dense<0.000000e+00> : vector<8x16x16xf32>
    %154 = tpu.matmul %153, %152, %cst_57 {dimension_numbers = #tpu.dot_dimension_numbers<[2], [2], [1], [1], [0, 0, 0, 1, 1, 1], [0], [0]>} : vector<8x16x8xbf16>, vector<8x16x8xbf16>, vector<8x16x16xf32> -> vector<8x16x16xf32>
    "tpu.trace_stop"() : () -> ()
    %155 = vector.shape_cast %154 : vector<8x16x16xf32> to vector<8x1x256xf32>
    %156 = vector.shape_cast %155 : vector<8x1x256xf32> to vector<8x256xf32>
    %c0_58 = arith.constant 0 : index
    %c8 = arith.constant 8 : index
    %c0_59 = arith.constant 0 : index
    %157 = vector.load %arg20[%c0_58, %c8, %c0_59] : memref<1x32x256xf32, #tpu.memory_space<vmem>>, vector<1x8x256xf32>
    %158 = vector.shape_cast %157 : vector<1x8x256xf32> to vector<8x256xf32>
    %159 = vector.shape_cast %156 : vector<8x256xf32> to vector<1x8x256xf32>
    tpu.vector_store %arg20[%c0_58, %c8, %c0_59], %159 {strides = array<i32>} : memref<1x32x256xf32, #tpu.memory_space<vmem>>, vector<1x8x256xf32>,
    %c0_i32_60 = arith.constant 0 : i32
    %c0_i32_61 = arith.constant 0 : i32
    %160 = tpu.memref_slice %arg19[%arg0, %c0_i32_60, %c0_i32_61] : memref<2x16x256xf32, #tpu.memory_space<any>> -> memref<1x16x256xf32, #tpu.memory_space<any>>
    %c0_i32_62 = arith.constant 0 : i32
    %c16_i32_63 = arith.constant 16 : i32
    %c0_i32_64 = arith.constant 0 : i32
    %161 = tpu.memref_slice %arg20[%c0_i32_62, %c16_i32_63, %c0_i32_64] : memref<1x32x256xf32, #tpu.memory_space<vmem>> -> memref<1x16x256xf32, #tpu.memory_space<vmem>>
    tpu.wait_dma2 semaphore(%arg21 : memref<!tpu.dma_semaphore, #tpu.memory_space<semaphore_mem>>) src(%160 : memref<1x16x256xf32, #tpu.memory_space<any>>) dst(%161 : memref<1x16x256xf32, #tpu.memory_space<vmem>>)
    return
  }
  func.func @transform_0(%arg0: i32) -> (i32, i32, i32, i32) {
    %c0_i32 = arith.constant 0 : i32
    %c0_i32_0 = arith.constant 0 : i32
    %c0_i32_1 = arith.constant 0 : i32
    %c0_i32_2 = arith.constant 0 : i32
    return %c0_i32, %arg0, %c0_i32_0, %c0_i32_1 : i32, i32, i32, i32
  }
  func.func @transform_1(%arg0: i32) -> (i32, i32) {
    %c0_i32 = arith.constant 0 : i32
    %c0_i32_0 = arith.constant 0 : i32
    %c0_i32_1 = arith.constant 0 : i32
    return %c0_i32, %c0_i32_0 : i32, i32
  }
  func.func @transform_2(%arg0: i32) -> (i32, i32) {
    %c0_i32 = arith.constant 0 : i32
    %c0_i32_0 = arith.constant 0 : i32
    %c0_i32_1 = arith.constant 0 : i32
    return %c0_i32, %c0_i32_0 : i32, i32
  }
  func.func @transform_3(%arg0: i32) -> (i32, i32) {
    %c0_i32 = arith.constant 0 : i32
    %c0_i32_0 = arith.constant 0 : i32
    %c0_i32_1 = arith.constant 0 : i32
    return %c0_i32, %c0_i32_0 : i32, i32
  }
  func.func @transform_4(%arg0: i32) -> (i32, i32) {
    %c0_i32 = arith.constant 0 : i32
    %c0_i32_0 = arith.constant 0 : i32
    %c0_i32_1 = arith.constant 0 : i32
    return %c0_i32, %c0_i32_0 : i32, i32
  }
  func.func @transform_5(%arg0: i32) -> (i32, i32) {
    %c0_i32 = arith.constant 0 : i32
    %c0_i32_0 = arith.constant 0 : i32
    %c0_i32_1 = arith.constant 0 : i32
    return %c0_i32, %c0_i32_0 : i32, i32
  }
  func.func @transform_6(%arg0: i32) -> (i32, i32) {
    %c0_i32 = arith.constant 0 : i32
    %c0_i32_0 = arith.constant 0 : i32
    %c0_i32_1 = arith.constant 0 : i32
    return %c0_i32, %c0_i32_0 : i32, i32
  }
  func.func @transform_7(%arg0: i32) -> (i32, i32) {
    %c0_i32 = arith.constant 0 : i32
    %c0_i32_0 = arith.constant 0 : i32
    %c0_i32_1 = arith.constant 0 : i32
    return %c0_i32, %c0_i32_0 : i32, i32
  }
  func.func @transform_8(%arg0: i32) -> (i32, i32) {
    %c0_i32 = arith.constant 0 : i32
    %c0_i32_0 = arith.constant 0 : i32
    %c0_i32_1 = arith.constant 0 : i32
    return %c0_i32, %c0_i32_0 : i32, i32
  }
  func.func @transform_9(%arg0: i32) -> (i32, i32, i32, i32) {
    %c0_i32 = arith.constant 0 : i32
    %c0_i32_0 = arith.constant 0 : i32
    %c0_i32_1 = arith.constant 0 : i32
    %c0_i32_2 = arith.constant 0 : i32
    return %c0_i32, %arg0, %c0_i32_0, %c0_i32_1 : i32, i32, i32, i32
  }
  func.func @transform_10(%arg0: i32) -> (i32, i32) {
    %c0_i32 = arith.constant 0 : i32
    %c0_i32_0 = arith.constant 0 : i32
    %c0_i32_1 = arith.constant 0 : i32
    return %c0_i32, %c0_i32_0 : i32, i32
  }
  func.func @transform_11(%arg0: i32) -> (i32, i32) {
    %c0_i32 = arith.constant 0 : i32
    %c0_i32_0 = arith.constant 0 : i32
    %c0_i32_1 = arith.constant 0 : i32
    return %c0_i32, %c0_i32_0 : i32, i32
  }
  func.func @transform_12(%arg0: i32) -> (i32, i32) {
    %c0_i32 = arith.constant 0 : i32
    %c0_i32_0 = arith.constant 0 : i32
    %c0_i32_1 = arith.constant 0 : i32
    return %c0_i32, %c0_i32_0 : i32, i32
  }
  func.func @transform_13(%arg0: i32) -> (i32, i32) {
    %c0_i32 = arith.constant 0 : i32
    %c0_i32_0 = arith.constant 0 : i32
    %c0_i32_1 = arith.constant 0 : i32
    return %c0_i32, %c0_i32_0 : i32, i32
  }
  func.func @transform_14(%arg0: i32) -> (i32, i32) {
    %c0_i32 = arith.constant 0 : i32
    %c0_i32_0 = arith.constant 0 : i32
    %c0_i32_1 = arith.constant 0 : i32
    return %c0_i32, %c0_i32_0 : i32, i32
  }
  func.func @transform_15(%arg0: i32) -> (i32, i32) {
    %c0_i32 = arith.constant 0 : i32
    %c0_i32_0 = arith.constant 0 : i32
    %c0_i32_1 = arith.constant 0 : i32
    return %c0_i32, %c0_i32_0 : i32, i32
  }
  func.func @transform_16(%arg0: i32) -> (i32, i32) {
    %c0_i32 = arith.constant 0 : i32
    %c0_i32_0 = arith.constant 0 : i32
    %c0_i32_1 = arith.constant 0 : i32
    return %c0_i32, %c0_i32_0 : i32, i32
  }
  func.func @transform_17(%arg0: i32) -> (i32, i32) {
    %c0_i32 = arith.constant 0 : i32
    %c0_i32_0 = arith.constant 0 : i32
    %c0_i32_1 = arith.constant 0 : i32
    return %c0_i32, %c0_i32_0 : i32, i32
  }
  func.func @transform_19(%arg0: i32) -> (i32, i32, i32) {
    %c0_i32 = arith.constant 0 : i32
    %c0_i32_0 = arith.constant 0 : i32
    %c0_i32_1 = arith.constant 0 : i32
    return %arg0, %c0_i32, %c0_i32_0 : i32, i32, i32
  }
}

</mosaic_0001>

<llo_original>
// kernel: fpn_forward.1
$region0: #{fpn_forward.1}
  #allocation0 [shape = 'u32[]', space=smem, size = 0x4, offset = 0x4, fixed_abs, tag = 'smem constant byte address 0x4 - core index']
  #allocation1 [shape = 'u32[144,128]{1,0:T(1,128)}', space=vmem, size = 0x12000, scoped, tag = 'internal scratch']
  #allocation2 [shape = 's32[1]{0}', space=sflag, size = 0x4, scoped, tag = 'scratch operand']
  #allocation5 [shape = 's32[]', space=sflag, size = 0x4, offset = 0, fixed_abs, tag = 'sflag constant byte address 0x0 - dummy sync flag']
  %s0 = inlined_call_operand.vmem [shape: bf16[8,2,6,6], index: 0, kind: input, shape index: {}]
  %s1 = inlined_call_operand.vmem [shape: bf16[16,72], index: 1, kind: input, shape index: {}]
  %s2 = inlined_call_operand.vmem [shape: f32[16,1], index: 2, kind: input, shape index: {}]
  %s3 = inlined_call_operand.vmem [shape: f32[16,1], index: 3, kind: input, shape index: {}]
  %s4 = inlined_call_operand.vmem [shape: f32[16,1], index: 4, kind: input, shape index: {}]
  %s5 = inlined_call_operand.vmem [shape: bf16[8,144], index: 5, kind: input, shape index: {}]
  %s6 = inlined_call_operand.vmem [shape: f32[8,1], index: 6, kind: input, shape index: {}]
  %s7 = inlined_call_operand.vmem [shape: bf16[16,4], index: 7, kind: input, shape index: {}, may-alias: {7,8}]
  %s8 = inlined_call_operand.vmem [shape: bf16[16,4], index: 8, kind: input, shape index: {}, may-alias: {7,8}]
  %s9 = inlined_call_operand.vmem [shape: bf16[16,2,10,10], index: 9, kind: input, shape index: {}]
  %s10 = inlined_call_operand.vmem [shape: bf16[16,144], index: 10, kind: input, shape index: {}]
  %s11 = inlined_call_operand.vmem [shape: f32[16,1], index: 11, kind: input, shape index: {}]
  %s12 = inlined_call_operand.vmem [shape: f32[16,1], index: 12, kind: input, shape index: {}]
  %s13 = inlined_call_operand.vmem [shape: f32[16,1], index: 13, kind: input, shape index: {}]
  %s14 = inlined_call_operand.vmem [shape: bf16[8,144], index: 14, kind: input, shape index: {}]
  %s15 = inlined_call_operand.vmem [shape: f32[8,1], index: 15, kind: input, shape index: {}]
  %s16 = inlined_call_operand.vmem [shape: bf16[16,8], index: 16, kind: input, shape index: {}, may-alias: {16,17}]
  %s17 = inlined_call_operand.vmem [shape: bf16[16,8], index: 17, kind: input, shape index: {}, may-alias: {16,17}]
  %s18 = inlined_call_operand.vmem [shape: f32[2,16,256], index: 18, kind: input, shape index: {}]
  %s19 = inlined_call_operand.vmem [shape: f32[2,32,256], index: 19, kind: output, shape index: {}]
  %s20 = sld [smem:[#allocation0]]
  $region221: #{fpn_forward.1} parent=0
    _
  %s22 = ssub.s32 1, %s20
  %s23 = scalar_select 0, %s22, %s20
  $region1: #{fpn_forward.1} parent=0
    #allocation3 [shape = 'u8[32768]{0}', space=vmem, size = 0x8000, scoped, tag = 'input window, operand 0']
    #allocation4 [shape = 'u8[131072]{0}', space=vmem, size = 0x20000, scoped, tag = 'input window, operand 9']
    loop: start=0, step=1, limit=4
    $region2: #{fpn_forward.1} parent=1 // loop_pre_header
      _
    $region3: #{fpn_forward.1} parent=1 // loop_header
      %s25 = sphi 0, %s29
      %p26 = scmp.ge.s32.totalorder %s25, 4
      %s35 = sphi 0, %s37
      %s38 = sphi 0, %s35
      %s39 = sphi 0, %s38
      %s55 = sphi 0, %s39
      %s59 = sphi 0, %s59
      %s61 = sphi 0, %s59
      %s62 = sphi 0, %s61
      %s76 = sphi 0, %s62
      %s80 = sphi 0, %s80
      %s82 = sphi 0, %s80
      %s83 = sphi 0, %s82
      %s97 = sphi 0, %s83
      %s101 = sphi 0, %s101
      %s103 = sphi 0, %s101
      %s104 = sphi 0, %s103
      %s118 = sphi 0, %s104
      %s122 = sphi 0, %s122
      %s124 = sphi 0, %s122
      %s125 = sphi 0, %s124
      %s139 = sphi 0, %s125
      %s143 = sphi 0, %s143
      %s145 = sphi 0, %s143
      %s146 = sphi 0, %s145
      %s160 = sphi 0, %s146
      %s164 = sphi 0, %s164
      %s166 = sphi 0, %s164
      %s167 = sphi 0, %s166
      %s181 = sphi 0, %s167
      %s185 = sphi 0, %s185
      %s187 = sphi 0, %s185
      %s188 = sphi 0, %s187
      %s202 = sphi 0, %s188
      %s206 = sphi 0, %s206
      %s208 = sphi 0, %s206
      %s209 = sphi 0, %s208
      %s223 = sphi 0, %s209
      %s229 = sphi 0, %s231
      %s232 = sphi 0, %s229
      %s233 = sphi 0, %s232
      %s249 = sphi 0, %s233
      %s253 = sphi 0, %s253
      %s255 = sphi 0, %s253
      %s256 = sphi 0, %s255
      %s270 = sphi 0, %s256
      %s274 = sphi 0, %s274
      %s276 = sphi 0, %s274
      %s277 = sphi 0, %s276
      %s291 = sphi 0, %s277
      %s295 = sphi 0, %s295
      %s297 = sphi 0, %s295
      %s298 = sphi 0, %s297
      %s312 = sphi 0, %s298
      %s316 = sphi 0, %s316
      %s318 = sphi 0, %s316
      %s319 = sphi 0, %s318
      %s333 = sphi 0, %s319
      %s337 = sphi 0, %s337
      %s339 = sphi 0, %s337
      %s340 = sphi 0, %s339
      %s354 = sphi 0, %s340
      %s358 = sphi 0, %s358
      %s360 = sphi 0, %s358
      %s361 = sphi 0, %s360
      %s375 = sphi 0, %s361
      %s379 = sphi 0, %s379
      %s381 = sphi 0, %s379
      %s382 = sphi 0, %s381
      %s396 = sphi 0, %s382
      %s400 = sphi 0, %s400
      %s402 = sphi 0, %s400
      %s403 = sphi 0, %s402
      %s417 = sphi 0, %s403
      %s423 = sphi 0, %s425
      %s426 = sphi 0, %s423
      %s427 = sphi 0, %s426
      %s443 = sphi 0, %s427
    $region4: #{fpn_forward.1} parent=1 // loop_header_branch
      %28 = sbr.rel (%p26) target = $region8
    $region5: #{fpn_forward.1} parent=1 // loop_body
      %s30 = ssub.s32 %s25, 1
      %s31 = ssub.s32 %s25, 2
      %s32 = sadd.s32 %s25, 1
      %s33 = ssub.s32 %s25, %s32
      %p34 = scmp.eq.s32.totalorder %s33, 0
      %s36 = sadd.s32 %s35, 1
      %s37 = scalar_select %p34, %s35, %s36
      %p40 = pneg %p34
      %p41 = scmp.eq.s32.totalorder %s25, 1
      %p42 = por %p40, %p41
      %p43 = scmp.ne.s32.totalorder %s35, %s38
      %p44 = scmp.eq.s32.totalorder %s25, 0
      %p45 = por %p43, %p44
      %p46 = scmp.ne.s32.totalorder %s35, %s38
      %p47 = scmp.eq.s32.totalorder %s30, 1
      %p48 = por %p46, %p47
      %p49 = scmp.ne.s32.totalorder %s38, %s39
      %p50 = scmp.eq.s32.totalorder %s30, 0
      %p51 = por %p49, %p50
      %p52 = scmp.ne.s32.totalorder %s38, %s39
      %p53 = scmp.eq.s32.totalorder %s31, 1
      %p54 = por %p52, %p53
      %p56 = scmp.ne.s32.totalorder %s39, %s55
      %p57 = scmp.eq.s32.totalorder %s31, 0
      %p58 = por %p56, %p57
      %s60 = sadd.s32 %s59, 1
      %p63 = scmp.eq.s32.totalorder %s25, 1
      %p64 = scmp.ne.s32.totalorder %s59, %s61
      %p65 = scmp.eq.s32.totalorder %s25, 0
      %p66 = por %p64, %p65
      %p67 = scmp.ne.s32.totalorder %s59, %s61
      %p68 = scmp.eq.s32.totalorder %s30, 1
      %p69 = por %p67, %p68
      %p70 = scmp.ne.s32.totalorder %s61, %s62
      %p71 = scmp.eq.s32.totalorder %s30, 0
      %p72 = por %p70, %p71
      %p73 = scmp.ne.s32.totalorder %s61, %s62
      %p74 = scmp.eq.s32.totalorder %s31, 1
      %p75 = por %p73, %p74
      %p77 = scmp.ne.s32.totalorder %s62, %s76
      %p78 = scmp.eq.s32.totalorder %s31, 0
      %p79 = por %p77, %p78
      %s81 = sadd.s32 %s80, 1
      %p84 = scmp.eq.s32.totalorder %s25, 1
      %p85 = scmp.ne.s32.totalorder %s80, %s82
      %p86 = scmp.eq.s32.totalorder %s25, 0
      %p87 = por %p85, %p86
      %p88 = scmp.ne.s32.totalorder %s80, %s82
      %p89 = scmp.eq.s32.totalorder %s30, 1
      %p90 = por %p88, %p89
      %p91 = scmp.ne.s32.totalorder %s82, %s83
      %p92 = scmp.eq.s32.totalorder %s30, 0
      %p93 = por %p91, %p92
      %p94 = scmp.ne.s32.totalorder %s82, %s83
      %p95 = scmp.eq.s32.totalorder %s31, 1
      %p96 = por %p94, %p95
      %p98 = scmp.ne.s32.totalorder %s83, %s97
      %p99 = scmp.eq.s32.totalorder %s31, 0
      %p100 = por %p98, %p99
      %s102 = sadd.s32 %s101, 1
      %p105 = scmp.eq.s32.totalorder %s25, 1
      %p106 = scmp.ne.s32.totalorder %s101, %s103
      %p107 = scmp.eq.s32.totalorder %s25, 0
      %p108 = por %p106, %p107
      %p109 = scmp.ne.s32.totalorder %s101, %s103
      %p110 = scmp.eq.s32.totalorder %s30, 1
      %p111 = por %p109, %p110
      %p112 = scmp.ne.s32.totalorder %s103, %s104
      %p113 = scmp.eq.s32.totalorder %s30, 0
      %p114 = por %p112, %p113
      %p115 = scmp.ne.s32.totalorder %s103, %s104
      %p116 = scmp.eq.s32.totalorder %s31, 1
      %p117 = por %p115, %p116
      %p119 = scmp.ne.s32.totalorder %s104, %s118
      %p120 = scmp.eq.s32.totalorder %s31, 0
      %p121 = por %p119, %p120
      %s123 = sadd.s32 %s122, 1
      %p126 = scmp.eq.s32.totalorder %s25, 1
      %p127 = scmp.ne.s32.totalorder %s122, %s124
      %p128 = scmp.eq.s32.totalorder %s25, 0
      %p129 = por %p127, %p128
      %p130 = scmp.ne.s32.totalorder %s122, %s124
      %p131 = scmp.eq.s32.totalorder %s30, 1
      %p132 = por %p130, %p131
      %p133 = scmp.ne.s32.totalorder %s124, %s125
      %p134 = scmp.eq.s32.totalorder %s30, 0
      %p135 = por %p133, %p134
      %p136 = scmp.ne.s32.totalorder %s124, %s125
      %p137 = scmp.eq.s32.totalorder %s31, 1
      %p138 = por %p136, %p137
      %p140 = scmp.ne.s32.totalorder %s125, %s139
      %p141 = scmp.eq.s32.totalorder %s31, 0
      %p142 = por %p140, %p141
      %s144 = sadd.s32 %s143, 1
      %p147 = scmp.eq.s32.totalorder %s25, 1
      %p148 = scmp.ne.s32.totalorder %s143, %s145
      %p149 = scmp.eq.s32.totalorder %s25, 0
      %p150 = por %p148, %p149
      %p151 = scmp.ne.s32.totalorder %s143, %s145
      %p152 = scmp.eq.s32.totalorder %s30, 1
      %p153 = por %p151, %p152
      %p154 = scmp.ne.s32.totalorder %s145, %s146
      %p155 = scmp.eq.s32.totalorder %s30, 0
      %p156 = por %p154, %p155
      %p157 = scmp.ne.s32.totalorder %s145, %s146
      %p158 = scmp.eq.s32.totalorder %s31, 1
      %p159 = por %p157, %p158
      %p161 = scmp.ne.s32.totalorder %s146, %s160
      %p162 = scmp.eq.s32.totalorder %s31, 0
      %p163 = por %p161, %p162
      %s165 = sadd.s32 %s164, 1
      %p168 = scmp.eq.s32.totalorder %s25, 1
      %p169 = scmp.ne.s32.totalorder %s164, %s166
      %p170 = scmp.eq.s32.totalorder %s25, 0
      %p171 = por %p169, %p170
      %p172 = scmp.ne.s32.totalorder %s164, %s166
      %p173 = scmp.eq.s32.totalorder %s30, 1
      %p174 = por %p172, %p173
      %p175 = scmp.ne.s32.totalorder %s166, %s167
      %p176 = scmp.eq.s32.totalorder %s30, 0
      %p177 = por %p175, %p176
      %p178 = scmp.ne.s32.totalorder %s166, %s167
      %p179 = scmp.eq.s32.totalorder %s31, 1
      %p180 = por %p178, %p179
      %p182 = scmp.ne.s32.totalorder %s167, %s181
      %p183 = scmp.eq.s32.totalorder %s31, 0
      %p184 = por %p182, %p183
      %s186 = sadd.s32 %s185, 1
      %p189 = scmp.eq.s32.totalorder %s25, 1
      %p190 = scmp.ne.s32.totalorder %s185, %s187
      %p191 = scmp.eq.s32.totalorder %s25, 0
      %p192 = por %p190, %p191
      %p193 = scmp.ne.s32.totalorder %s185, %s187
      %p194 = scmp.eq.s32.totalorder %s30, 1
      %p195 = por %p193, %p194
      %p196 = scmp.ne.s32.totalorder %s187, %s188
      %p197 = scmp.eq.s32.totalorder %s30, 0
      %p198 = por %p196, %p197
      %p199 = scmp.ne.s32.totalorder %s187, %s188
      %p200 = scmp.eq.s32.totalorder %s31, 1
      %p201 = por %p199, %p200
      %p203 = scmp.ne.s32.totalorder %s188, %s202
      %p204 = scmp.eq.s32.totalorder %s31, 0
      %p205 = por %p203, %p204
      %s207 = sadd.s32 %s206, 1
      %p210 = scmp.eq.s32.totalorder %s25, 1
      %p211 = scmp.ne.s32.totalorder %s206, %s208
      %p212 = scmp.eq.s32.totalorder %s25, 0
      %p213 = por %p211, %p212
      %p214 = scmp.ne.s32.totalorder %s206, %s208
      %p215 = scmp.eq.s32.totalorder %s30, 1
      %p216 = por %p214, %p215
      %p217 = scmp.ne.s32.totalorder %s208, %s209
      %p218 = scmp.eq.s32.totalorder %s30, 0
      %p219 = por %p217, %p218
      %p220 = scmp.ne.s32.totalorder %s208, %s209
      %p221 = scmp.eq.s32.totalorder %s31, 1
      %p222 = por %p220, %p221
      %p224 = scmp.ne.s32.totalorder %s209, %s223
      %p225 = scmp.eq.s32.totalorder %s31, 0
      %p226 = por %p224, %p225
      %s227 = ssub.s32 %s25, %s32
      %p228 = scmp.eq.s32.totalorder %s227, 0
      %s230 = sadd.s32 %s229, 1
      %s231 = scalar_select %p228, %s229, %s230
      %p234 = pneg %p228
      %p235 = scmp.eq.s32.totalorder %s25, 1
      %p236 = por %p234, %p235
      %p237 = scmp.ne.s32.totalorder %s229, %s232
      %p238 = scmp.eq.s32.totalorder %s25, 0
      %p239 = por %p237, %p238
      %p240 = scmp.ne.s32.totalorder %s229, %s232
      %p241 = scmp.eq.s32.totalorder %s30, 1
      %p242 = por %p240, %p241
      %p243 = scmp.ne.s32.totalorder %s232, %s233
      %p244 = scmp.eq.s32.totalorder %s30, 0
      %p245 = por %p243, %p244
      %p246 = scmp.ne.s32.totalorder %s232, %s233
      %p247 = scmp.eq.s32.totalorder %s31, 1
      %p248 = por %p246, %p247
      %p250 = scmp.ne.s32.totalorder %s233, %s249
      %p251 = scmp.eq.s32.totalorder %s31, 0
      %p252 = por %p250, %p251
      %s254 = sadd.s32 %s253, 1
      %p257 = scmp.eq.s32.totalorder %s25, 1
      %p258 = scmp.ne.s32.totalorder %s253, %s255
      %p259 = scmp.eq.s32.totalorder %s25, 0
      %p260 = por %p258, %p259
      %p261 = scmp.ne.s32.totalorder %s253, %s255
      %p262 = scmp.eq.s32.totalorder %s30, 1
      %p263 = por %p261, %p262
      %p264 = scmp.ne.s32.totalorder %s255, %s256
      %p265 = scmp.eq.s32.totalorder %s30, 0
      %p266 = por %p264, %p265
      %p267 = scmp.ne.s32.totalorder %s255, %s256
      %p268 = scmp.eq.s32.totalorder %s31, 1
      %p269 = por %p267, %p268
      %p271 = scmp.ne.s32.totalorder %s256, %s270
      %p272 = scmp.eq.s32.totalorder %s31, 0
      %p273 = por %p271, %p272
      %s275 = sadd.s32 %s274, 1
      %p278 = scmp.eq.s32.totalorder %s25, 1
      %p279 = scmp.ne.s32.totalorder %s274, %s276
      %p280 = scmp.eq.s32.totalorder %s25, 0
      %p281 = por %p279, %p280
      %p282 = scmp.ne.s32.totalorder %s274, %s276
      %p283 = scmp.eq.s32.totalorder %s30, 1
      %p284 = por %p282, %p283
      %p285 = scmp.ne.s32.totalorder %s276, %s277
      %p286 = scmp.eq.s32.totalorder %s30, 0
      %p287 = por %p285, %p286
      %p288 = scmp.ne.s32.totalorder %s276, %s277
      %p289 = scmp.eq.s32.totalorder %s31, 1
      %p290 = por %p288, %p289
      %p292 = scmp.ne.s32.totalorder %s277, %s291
      %p293 = scmp.eq.s32.totalorder %s31, 0
      %p294 = por %p292, %p293
      %s296 = sadd.s32 %s295, 1
      %p299 = scmp.eq.s32.totalorder %s25, 1
      %p300 = scmp.ne.s32.totalorder %s295, %s297
      %p301 = scmp.eq.s32.totalorder %s25, 0
      %p302 = por %p300, %p301
      %p303 = scmp.ne.s32.totalorder %s295, %s297
      %p304 = scmp.eq.s32.totalorder %s30, 1
      %p305 = por %p303, %p304
      %p306 = scmp.ne.s32.totalorder %s297, %s298
      %p307 = scmp.eq.s32.totalorder %s30, 0
      %p308 = por %p306, %p307
      %p309 = scmp.ne.s32.totalorder %s297, %s298
      %p310 = scmp.eq.s32.totalorder %s31, 1
      %p311 = por %p309, %p310
      %p313 = scmp.ne.s32.totalorder %s298, %s312
      %p314 = scmp.eq.s32.totalorder %s31, 0
      %p315 = por %p313, %p314
      %s317 = sadd.s32 %s316, 1
      %p320 = scmp.eq.s32.totalorder %s25, 1
      %p321 = scmp.ne.s32.totalorder %s316, %s318
      %p322 = scmp.eq.s32.totalorder %s25, 0
      %p323 = por %p321, %p322
      %p324 = scmp.ne.s32.totalorder %s316, %s318
      %p325 = scmp.eq.s32.totalorder %s30, 1
      %p326 = por %p324, %p325
      %p327 = scmp.ne.s32.totalorder %s318, %s319
      %p328 = scmp.eq.s32.totalorder %s30, 0
      %p329 = por %p327, %p328
      %p330 = scmp.ne.s32.totalorder %s318, %s319
      %p331 = scmp.eq.s32.totalorder %s31, 1
      %p332 = por %p330, %p331
      %p334 = scmp.ne.s32.totalorder %s319, %s333
      %p335 = scmp.eq.s32.totalorder %s31, 0
      %p336 = por %p334, %p335
      %s338 = sadd.s32 %s337, 1
      %p341 = scmp.eq.s32.totalorder %s25, 1
      %p342 = scmp.ne.s32.totalorder %s337, %s339
      %p343 = scmp.eq.s32.totalorder %s25, 0
      %p344 = por %p342, %p343
      %p345 = scmp.ne.s32.totalorder %s337, %s339
      %p346 = scmp.eq.s32.totalorder %s30, 1
      %p347 = por %p345, %p346
      %p348 = scmp.ne.s32.totalorder %s339, %s340
      %p349 = scmp.eq.s32.totalorder %s30, 0
      %p350 = por %p348, %p349
      %p351 = scmp.ne.s32.totalorder %s339, %s340
      %p352 = scmp.eq.s32.totalorder %s31, 1
      %p353 = por %p351, %p352
      %p355 = scmp.ne.s32.totalorder %s340, %s354
      %p356 = scmp.eq.s32.totalorder %s31, 0
      %p357 = por %p355, %p356
      %s359 = sadd.s32 %s358, 1
      %p362 = scmp.eq.s32.totalorder %s25, 1
      %p363 = scmp.ne.s32.totalorder %s358, %s360
      %p364 = scmp.eq.s32.totalorder %s25, 0
      %p365 = por %p363, %p364
      %p366 = scmp.ne.s32.totalorder %s358, %s360
      %p367 = scmp.eq.s32.totalorder %s30, 1
      %p368 = por %p366, %p367
      %p369 = scmp.ne.s32.totalorder %s360, %s361
      %p370 = scmp.eq.s32.totalorder %s30, 0
      %p371 = por %p369, %p370
      %p372 = scmp.ne.s32.totalorder %s360, %s361
      %p373 = scmp.eq.s32.totalorder %s31, 1
      %p374 = por %p372, %p373
      %p376 = scmp.ne.s32.totalorder %s361, %s375
      %p377 = scmp.eq.s32.totalorder %s31, 0
      %p378 = por %p376, %p377
      %s380 = sadd.s32 %s379, 1
      %p383 = scmp.eq.s32.totalorder %s25, 1
      %p384 = scmp.ne.s32.totalorder %s379, %s381
      %p385 = scmp.eq.s32.totalorder %s25, 0
      %p386 = por %p384, %p385
      %p387 = scmp.ne.s32.totalorder %s379, %s381
      %p388 = scmp.eq.s32.totalorder %s30, 1
      %p389 = por %p387, %p388
      %p390 = scmp.ne.s32.totalorder %s381, %s382
      %p391 = scmp.eq.s32.totalorder %s30, 0
      %p392 = por %p390, %p391
      %p393 = scmp.ne.s32.totalorder %s381, %s382
      %p394 = scmp.eq.s32.totalorder %s31, 1
      %p395 = por %p393, %p394
      %p397 = scmp.ne.s32.totalorder %s382, %s396
      %p398 = scmp.eq.s32.totalorder %s31, 0
      %p399 = por %p397, %p398
      %s401 = sadd.s32 %s400, 1
      %p404 = scmp.eq.s32.totalorder %s25, 1
      %p405 = scmp.ne.s32.totalorder %s400, %s402
      %p406 = scmp.eq.s32.totalorder %s25, 0
      %p407 = por %p405, %p406
      %p408 = scmp.ne.s32.totalorder %s400, %s402
      %p409 = scmp.eq.s32.totalorder %s30, 1
      %p410 = por %p408, %p409
      %p411 = scmp.ne.s32.totalorder %s402, %s403
      %p412 = scmp.eq.s32.totalorder %s30, 0
      %p413 = por %p411, %p412
      %p414 = scmp.ne.s32.totalorder %s402, %s403
      %p415 = scmp.eq.s32.totalorder %s31, 1
      %p416 = por %p414, %p415
      %p418 = scmp.ne.s32.totalorder %s403, %s417
      %p419 = scmp.eq.s32.totalorder %s31, 0
      %p420 = por %p418, %p419
      %s421 = ssub.s32 %s25, %s32
      %p422 = scmp.eq.s32.totalorder %s421, 0
      %s424 = sadd.s32 %s423, 1
      %s425 = scalar_select %p422, %s423, %s424
      %p428 = pneg %p422
      %p429 = scmp.eq.s32.totalorder %s25, 1
      %p430 = por %p428, %p429
      %p431 = scmp.ne.s32.totalorder %s423, %s426
      %p432 = scmp.eq.s32.totalorder %s25, 0
      %p433 = por %p431, %p432
      %p434 = scmp.ne.s32.totalorder %s423, %s426
      %p435 = scmp.eq.s32.totalorder %s30, 1
      %p436 = por %p434, %p435
      %p437 = scmp.ne.s32.totalorder %s426, %s427
      %p438 = scmp.eq.s32.totalorder %s30, 0
      %p439 = por %p437, %p438
      %p440 = scmp.ne.s32.totalorder %s426, %s427
      %p441 = scmp.eq.s32.totalorder %s31, 1
      %p442 = por %p440, %p441
      %p444 = scmp.ne.s32.totalorder %s427, %s443
      %p445 = scmp.eq.s32.totalorder %s31, 0
      %p446 = por %p444, %p445
      %p447 = scmp.le.s32.totalorder 1, %s25
      %p448 = scmp.lt.s32.totalorder %s25, 3
      %p449 = pnand %p447, %p448
      %p450 = pneg %p449
      // Predicated region
      $region9: #{fpn_forward.1} parent=5 // pred_check
        _
      $region10: #{fpn_forward.1} parent=5 // pred_check_branch
        %452 = sbr.rel (%p449) target = $region12
      $region11: #{fpn_forward.1} parent=5 // pred_region
        %s453 = ssub.s32 %s25, 1
        // Predicated region
        $region13: #{fpn_forward.1} parent=11 // pred_check
          %p454 = pneg %p72
        $region14: #{fpn_forward.1} parent=11 // pred_check_branch
          %456 = sbr.rel (%p454) target = $region16
        $region15: #{fpn_forward.1} parent=11 // pred_region
          _
        $region16: #{fpn_forward.1} parent=11 // pred_fallthru
          _
        // Predicated region
        $region17: #{fpn_forward.1} parent=11 // pred_check
          %p457 = pneg %p93
        $region18: #{fpn_forward.1} parent=11 // pred_check_branch
          %459 = sbr.rel (%p457) target = $region20
        $region19: #{fpn_forward.1} parent=11 // pred_region
          _
        $region20: #{fpn_forward.1} parent=11 // pred_fallthru
          _
        // Predicated region
        $region21: #{fpn_forward.1} parent=11 // pred_check
          %p460 = pneg %p114
        $region22: #{fpn_forward.1} parent=11 // pred_check_branch
          %462 = sbr.rel (%p460) target = $region24
        $region23: #{fpn_forward.1} parent=11 // pred_region
          _
        $region24: #{fpn_forward.1} parent=11 // pred_fallthru
          _
        // Predicated region
        $region25: #{fpn_forward.1} parent=11 // pred_check
          %p463 = pneg %p135
        $region26: #{fpn_forward.1} parent=11 // pred_check_branch
          %465 = sbr.rel (%p463) target = $region28
        $region27: #{fpn_forward.1} parent=11 // pred_region
          _
        $region28: #{fpn_forward.1} parent=11 // pred_fallthru
          _
        // Predicated region
        $region29: #{fpn_forward.1} parent=11 // pred_check
          %p466 = pneg %p156
        $region30: #{fpn_forward.1} parent=11 // pred_check_branch
          %468 = sbr.rel (%p466) target = $region32
        $region31: #{fpn_forward.1} parent=11 // pred_region
          _
        $region32: #{fpn_forward.1} parent=11 // pred_fallthru
          _
        // Predicated region
        $region33: #{fpn_forward.1} parent=11 // pred_check
          %p469 = pneg %p177
        $region34: #{fpn_forward.1} parent=11 // pred_check_branch
          %471 = sbr.rel (%p469) target = $region36
        $region35: #{fpn_forward.1} parent=11 // pred_region
          _
        $region36: #{fpn_forward.1} parent=11 // pred_fallthru
          _
        // Predicated region
        $region37: #{fpn_forward.1} parent=11 // pred_check
          %p472 = pneg %p198
        $region38: #{fpn_forward.1} parent=11 // pred_check_branch
          %474 = sbr.rel (%p472) target = $region40
        $region39: #{fpn_forward.1} parent=11 // pred_region
          _
        $region40: #{fpn_forward.1} parent=11 // pred_fallthru
          _
        // Predicated region
        $region41: #{fpn_forward.1} parent=11 // pred_check
          %p475 = pneg %p219
        $region42: #{fpn_forward.1} parent=11 // pred_check_branch
          %477 = sbr.rel (%p475) target = $region44
        $region43: #{fpn_forward.1} parent=11 // pred_region
          _
        $region44: #{fpn_forward.1} parent=11 // pred_fallthru
          _
        // Predicated region
        $region45: #{fpn_forward.1} parent=11 // pred_check
          %p478 = pneg %p266
        $region46: #{fpn_forward.1} parent=11 // pred_check_branch
          %480 = sbr.rel (%p478) target = $region48
        $region47: #{fpn_forward.1} parent=11 // pred_region
          _
        $region48: #{fpn_forward.1} parent=11 // pred_fallthru
          _
        // Predicated region
        $region49: #{fpn_forward.1} parent=11 // pred_check
          %p481 = pneg %p287
        $region50: #{fpn_forward.1} parent=11 // pred_check_branch
          %483 = sbr.rel (%p481) target = $region52
        $region51: #{fpn_forward.1} parent=11 // pred_region
          _
        $region52: #{fpn_forward.1} parent=11 // pred_fallthru
          _
        // Predicated region
        $region53: #{fpn_forward.1} parent=11 // pred_check
          %p484 = pneg %p308
        $region54: #{fpn_forward.1} parent=11 // pred_check_branch
          %486 = sbr.rel (%p484) target = $region56
        $region55: #{fpn_forward.1} parent=11 // pred_region
          _
        $region56: #{fpn_forward.1} parent=11 // pred_fallthru
          _
        // Predicated region
        $region57: #{fpn_forward.1} parent=11 // pred_check
          %p487 = pneg %p329
        $region58: #{fpn_forward.1} parent=11 // pred_check_branch
          %489 = sbr.rel (%p487) target = $region60
        $region59: #{fpn_forward.1} parent=11 // pred_region
          _
        $region60: #{fpn_forward.1} parent=11 // pred_fallthru
          _
        // Predicated region
        $region61: #{fpn_forward.1} parent=11 // pred_check
          %p490 = pneg %p350
        $region62: #{fpn_forward.1} parent=11 // pred_check_branch
          %492 = sbr.rel (%p490) target = $region64
        $region63: #{fpn_forward.1} parent=11 // pred_region
          _
        $region64: #{fpn_forward.1} parent=11 // pred_fallthru
          _
        // Predicated region
        $region65: #{fpn_forward.1} parent=11 // pred_check
          %p493 = pneg %p371
        $region66: #{fpn_forward.1} parent=11 // pred_check_branch
          %495 = sbr.rel (%p493) target = $region68
        $region67: #{fpn_forward.1} parent=11 // pred_region
          _
        $region68: #{fpn_forward.1} parent=11 // pred_fallthru
          _
        // Predicated region
        $region69: #{fpn_forward.1} parent=11 // pred_check
          %p496 = pneg %p392
        $region70: #{fpn_forward.1} parent=11 // pred_check_branch
          %498 = sbr.rel (%p496) target = $region72
        $region71: #{fpn_forward.1} parent=11 // pred_region
          _
        $region72: #{fpn_forward.1} parent=11 // pred_fallthru
          _
        // Predicated region
        $region73: #{fpn_forward.1} parent=11 // pred_check
          %p499 = pneg %p413
        $region74: #{fpn_forward.1} parent=11 // pred_check_branch
          %501 = sbr.rel (%p499) target = $region76
        $region75: #{fpn_forward.1} parent=11 // pred_region
          _
        $region76: #{fpn_forward.1} parent=11 // pred_fallthru
          _
      $region12: #{fpn_forward.1} parent=5 // pred_fallthru
        _
      %p502 = scmp.lt.s32.totalorder %s25, 2
      // Predicated region
      $region77: #{fpn_forward.1} parent=5 // pred_check
        %p503 = pneg %p502
      $region78: #{fpn_forward.1} parent=5 // pred_check_branch
        %505 = sbr.rel (%p503) target = $region80
      $region79: #{fpn_forward.1} parent=5 // pred_region
        // Predicated region
        $region81: #{fpn_forward.1} parent=79 // pred_check
          %p506 = pneg %p45
        $region82: #{fpn_forward.1} parent=79 // pred_check_branch
          %508 = sbr.rel (%p506) target = $region84
        $region83: #{fpn_forward.1} parent=79 // pred_region
          %s509 = sand.u32 %s35, 1
          %s510 = sand.u32 %s35, 1
          %s511 = smul.addr %s510, 32
          %s512 = scalar_lea.vmem [#allocation3], %s511
          %s513 = smul.addr %s25, 4
          %s514 = scalar_lea.vmem %s0, %s513
          // Predicated region
          $region85: #{fpn_forward.1} parent=83 // pred_check
            _
          $region86: #{fpn_forward.1} parent=83 // pred_check_branch
            %516 = sbr.rel (0) target = $region88
          $region87: #{fpn_forward.1} parent=83 // pred_region
            // Predicated region
            $region89: #{fpn_forward.1} parent=87 // pred_check
              _
            $region90: #{fpn_forward.1} parent=87 // pred_check_branch
              %518 = sbr.rel target = $region92
            $region91: #{fpn_forward.1} parent=87 // pred_region
              // Predicated region
              $region104: #{fpn_forward.1} parent=91 // pred_check
                _
              $region105: #{fpn_forward.1} parent=91 // pred_check_branch
                %547 = sbr.rel (0) target = $region107
              $region106: #{fpn_forward.1} parent=91 // pred_region
                loop: start=0, step=1, limit=1
                $region108: #{fpn_forward.1} parent=106 // loop_pre_header
                  _
                $region109: #{fpn_forward.1} parent=106 // loop_header
                  %s549 = sphi 0, %s553
                  %p550 = scmp.ge.s32.totalorder %s549, 1
                  %s554 = sphi %s514, %s514
                  %s555 = sphi %s512, %s512
                $region110: #{fpn_forward.1} parent=106 // loop_header_branch
                  %552 = sbr.rel (%p550) target = $region114
                $region111: #{fpn_forward.1} parent=106 // loop_body
                  _
                $region112: #{fpn_forward.1} parent=106 // loop_footer
                  %s553 = sadd.s32 1, %s549
                $region113: #{fpn_forward.1} parent=106 // loop_footer_branch
                  %548 = sbr.rel target = $region109
                $region114: #{fpn_forward.1} parent=106 // loop_exit
                  _
                loop: start=0, step=1, limit=1
                $region115: #{fpn_forward.1} parent=106 // loop_pre_header
                  _
                $region116: #{fpn_forward.1} parent=106 // loop_header
                  %s558 = sphi 0, %s562
                  %p559 = scmp.ge.s32.totalorder %s558, 1
                  %s563 = sphi %s514, %s514
                  %s564 = sphi %s512, %s512
                $region117: #{fpn_forward.1} parent=106 // loop_header_branch
                  %561 = sbr.rel (%p559) target = $region121
                $region118: #{fpn_forward.1} parent=106 // loop_body
                  %v565 = vld [vmem:[%s563] sm:$0xf]
                  %566 = vst [vmem:[%s564] sm:$0xf] %v565
                  %v567 = vld [vmem:[%s563 + $0x8] sm:$0xf]
                  %568 = vst [vmem:[%s564 + $0x4] sm:$0xf] %v567
                  %v569 = vld [vmem:[%s563 + $0x10] sm:$0xf]
                  %570 = vst [vmem:[%s564 + $0x8] sm:$0xf] %v569
                  %v571 = vld [vmem:[%s563 + $0x18] sm:$0xf]
                  %572 = vst [vmem:[%s564 + $0xc] sm:$0xf] %v571
                  %v573 = vld [vmem:[%s563 + $0x20] sm:$0xf]
                  %574 = vst [vmem:[%s564 + $0x10] sm:$0xf] %v573
                  %v575 = vld [vmem:[%s563 + $0x28] sm:$0xf]
                  %576 = vst [vmem:[%s564 + $0x14] sm:$0xf] %v575
                  %v577 = vld [vmem:[%s563 + $0x30] sm:$0xf]
                  %578 = vst [vmem:[%s564 + $0x18] sm:$0xf] %v577
                  %v579 = vld [vmem:[%s563 + $0x38] sm:$0xf]
                  %580 = vst [vmem:[%s564 + $0x1c] sm:$0xf] %v579
                $region119: #{fpn_forward.1} parent=106 // loop_footer
                  %s562 = sadd.s32 1, %s558
                $region120: #{fpn_forward.1} parent=106 // loop_footer_branch
                  %557 = sbr.rel target = $region116
                $region121: #{fpn_forward.1} parent=106 // loop_exit
                  _
              $region107: #{fpn_forward.1} parent=91 // pred_fallthru
                _
            $region92: #{fpn_forward.1} parent=87 // pred_fallthru
              _
            // Predicated region
            $region93: #{fpn_forward.1} parent=87 // pred_check
              _
            $region94: #{fpn_forward.1} parent=87 // pred_check_branch
              %520 = sbr.rel (0) target = $region96
            $region95: #{fpn_forward.1} parent=87 // pred_region
              loop: start=0, step=1, limit=1
              $region97: #{fpn_forward.1} parent=95 // loop_pre_header
                _
              $region98: #{fpn_forward.1} parent=95 // loop_header
                %s523 = sphi 0, %s527
                %p524 = scmp.ge.s32.totalorder %s523, 1
                %s528 = sphi %s514, %s514
                %s529 = sphi %s512, %s512
              $region99: #{fpn_forward.1} parent=95 // loop_header_branch
                %526 = sbr.rel (%p524) target = $region103
              $region100: #{fpn_forward.1} parent=95 // loop_body
                %v530 = vld [vmem:[%s528] sm:$0xf]
                %531 = vst [vmem:[%s529] sm:$0xf] %v530
                %v532 = vld [vmem:[%s528 + $0x8] sm:$0xf]
                %533 = vst [vmem:[%s529 + $0x4] sm:$0xf] %v532
                %v534 = vld [vmem:[%s528 + $0x10] sm:$0xf]
                %535 = vst [vmem:[%s529 + $0x8] sm:$0xf] %v534
                %v536 = vld [vmem:[%s528 + $0x18] sm:$0xf]
                %537 = vst [vmem:[%s529 + $0xc] sm:$0xf] %v536
                %v538 = vld [vmem:[%s528 + $0x20] sm:$0xf]
                %539 = vst [vmem:[%s529 + $0x10] sm:$0xf] %v538
                %v540 = vld [vmem:[%s528 + $0x28] sm:$0xf]
                %541 = vst [vmem:[%s529 + $0x14] sm:$0xf] %v540
                %v542 = vld [vmem:[%s528 + $0x30] sm:$0xf]
                %543 = vst [vmem:[%s529 + $0x18] sm:$0xf] %v542
                %v544 = vld [vmem:[%s528 + $0x38] sm:$0xf]
                %545 = vst [vmem:[%s529 + $0x1c] sm:$0xf] %v544
              $region101: #{fpn_forward.1} parent=95 // loop_footer
                %s527 = sadd.s32 1, %s523
              $region102: #{fpn_forward.1} parent=95 // loop_footer_branch
                %522 = sbr.rel target = $region98
              $region103: #{fpn_forward.1} parent=95 // loop_exit
                _
            $region96: #{fpn_forward.1} parent=87 // pred_fallthru
              _
          $region88: #{fpn_forward.1} parent=83 // pred_fallthru
            _
          %581 = vnop
        $region84: #{fpn_forward.1} parent=79 // pred_fallthru
          _
        // Predicated region
        $region122: #{fpn_forward.1} parent=79 // pred_check
          %p582 = pneg %p239
        $region123: #{fpn_forward.1} parent=79 // pred_check_branch
          %584 = sbr.rel (%p582) target = $region125
        $region124: #{fpn_forward.1} parent=79 // pred_region
          %s585 = sand.u32 %s229, 1
          %s586 = sand.u32 %s229, 1
          %s587 = smul.addr %s586, 128
          %s588 = scalar_lea.vmem [#allocation4], %s587
          %s589 = smul.addr %s25, 2
          %s590 = smul.addr %s589, 4
          %s591 = scalar_lea.vmem %s9, %s590
          // Predicated region
          $region126: #{fpn_forward.1} parent=124 // pred_check
            _
          $region127: #{fpn_forward.1} parent=124 // pred_check_branch
            %593 = sbr.rel (0) target = $region129
          $region128: #{fpn_forward.1} parent=124 // pred_region
            // Predicated region
            $region130: #{fpn_forward.1} parent=128 // pred_check
              _
            $region131: #{fpn_forward.1} parent=128 // pred_check_branch
              %595 = sbr.rel target = $region133
            $region132: #{fpn_forward.1} parent=128 // pred_region
              // Predicated region
              $region145: #{fpn_forward.1} parent=132 // pred_check
                _
              $region146: #{fpn_forward.1} parent=132 // pred_check_branch
                %672 = sbr.rel (0) target = $region148
              $region147: #{fpn_forward.1} parent=132 // pred_region
                loop: start=0, step=1, limit=1
                $region149: #{fpn_forward.1} parent=147 // loop_pre_header
                  _
                $region150: #{fpn_forward.1} parent=147 // loop_header
                  %s674 = sphi 0, %s678
                  %p675 = scmp.ge.s32.totalorder %s674, 1
                  %s679 = sphi %s591, %s591
                  %s680 = sphi %s588, %s588
                $region151: #{fpn_forward.1} parent=147 // loop_header_branch
                  %677 = sbr.rel (%p675) target = $region155
                $region152: #{fpn_forward.1} parent=147 // loop_body
                  _
                $region153: #{fpn_forward.1} parent=147 // loop_footer
                  %s678 = sadd.s32 1, %s674
                $region154: #{fpn_forward.1} parent=147 // loop_footer_branch
                  %673 = sbr.rel target = $region150
                $region155: #{fpn_forward.1} parent=147 // loop_exit
                  _
                loop: start=0, step=1, limit=1
                $region156: #{fpn_forward.1} parent=147 // loop_pre_header
                  _
                $region157: #{fpn_forward.1} parent=147 // loop_header
                  %s683 = sphi 0, %s687
                  %p684 = scmp.ge.s32.totalorder %s683, 1
                  %s688 = sphi %s591, %s591
                  %s689 = sphi %s588, %s588
                $region158: #{fpn_forward.1} parent=147 // loop_header_branch
                  %686 = sbr.rel (%p684) target = $region162
                $region159: #{fpn_forward.1} parent=147 // loop_body
                  %v690 = vld [vmem:[%s688] sm:$0xf]
                  %691 = vst [vmem:[%s689] sm:$0xf] %v690
                  %v692 = vld [vmem:[%s688 + $0x4] sm:$0xf]
                  %693 = vst [vmem:[%s689 + $0x4] sm:$0xf] %v692
                  %v694 = vld [vmem:[%s688 + $0x10] sm:$0xf]
                  %695 = vst [vmem:[%s689 + $0x8] sm:$0xf] %v694
                  %v696 = vld [vmem:[%s688 + $0x14] sm:$0xf]
                  %697 = vst [vmem:[%s689 + $0xc] sm:$0xf] %v696
                  %v698 = vld [vmem:[%s688 + $0x20] sm:$0xf]
                  %699 = vst [vmem:[%s689 + $0x10] sm:$0xf] %v698
                  %v700 = vld [vmem:[%s688 + $0x24] sm:$0xf]
                  %701 = vst [vmem:[%s689 + $0x14] sm:$0xf] %v700
                  %v702 = vld [vmem:[%s688 + $0x30] sm:$0xf]
                  %703 = vst [vmem:[%s689 + $0x18] sm:$0xf] %v702
                  %v704 = vld [vmem:[%s688 + $0x34] sm:$0xf]
                  %705 = vst [vmem:[%s689 + $0x1c] sm:$0xf] %v704
                  %v706 = vld [vmem:[%s688 + $0x40] sm:$0xf]
                  %707 = vst [vmem:[%s689 + $0x20] sm:$0xf] %v706
                  %v708 = vld [vmem:[%s688 + $0x44] sm:$0xf]
                  %709 = vst [vmem:[%s689 + $0x24] sm:$0xf] %v708
                  %v710 = vld [vmem:[%s688 + $0x50] sm:$0xf]
                  %711 = vst [vmem:[%s689 + $0x28] sm:$0xf] %v710
                  %v712 = vld [vmem:[%s688 + $0x54] sm:$0xf]
                  %713 = vst [vmem:[%s689 + $0x2c] sm:$0xf] %v712
                  %v714 = vld [vmem:[%s688 + $0x60] sm:$0xf]
                  %715 = vst [vmem:[%s689 + $0x30] sm:$0xf] %v714
                  %v716 = vld [vmem:[%s688 + $0x64] sm:$0xf]
                  %717 = vst [vmem:[%s689 + $0x34] sm:$0xf] %v716
                  %v718 = vld [vmem:[%s688 + $0x70] sm:$0xf]
                  %719 = vst [vmem:[%s689 + $0x38] sm:$0xf] %v718
                  %v720 = vld [vmem:[%s688 + $0x74] sm:$0xf]
                  %721 = vst [vmem:[%s689 + $0x3c] sm:$0xf] %v720
                  %v722 = vld [vmem:[%s688 + $0x80] sm:$0xf]
                  %723 = vst [vmem:[%s689 + $0x40] sm:$0xf] %v722
                  %v724 = vld [vmem:[%s688 + $0x84] sm:$0xf]
                  %725 = vst [vmem:[%s689 + $0x44] sm:$0xf] %v724
                  %v726 = vld [vmem:[%s688 + $0x90] sm:$0xf]
                  %727 = vst [vmem:[%s689 + $0x48] sm:$0xf] %v726
                  %v728 = vld [vmem:[%s688 + $0x94] sm:$0xf]
                  %729 = vst [vmem:[%s689 + $0x4c] sm:$0xf] %v728
                  %v730 = vld [vmem:[%s688 + $0xa0] sm:$0xf]
                  %731 = vst [vmem:[%s689 + $0x50] sm:$0xf] %v730
                  %v732 = vld [vmem:[%s688 + $0xa4] sm:$0xf]
                  %733 = vst [vmem:[%s689 + $0x54] sm:$0xf] %v732
                  %v734 = vld [vmem:[%s688 + $0xb0] sm:$0xf]
                  %735 = vst [vmem:[%s689 + $0x58] sm:$0xf] %v734
                  %v736 = vld [vmem:[%s688 + $0xb4] sm:$0xf]
                  %737 = vst [vmem:[%s689 + $0x5c] sm:$0xf] %v736
                  %v738 = vld [vmem:[%s688 + $0xc0] sm:$0xf]
                  %739 = vst [vmem:[%s689 + $0x60] sm:$0xf] %v738
                  %v740 = vld [vmem:[%s688 + $0xc4] sm:$0xf]
                  %741 = vst [vmem:[%s689 + $0x64] sm:$0xf] %v740
                  %v742 = vld [vmem:[%s688 + $0xd0] sm:$0xf]
                  %743 = vst [vmem:[%s689 + $0x68] sm:$0xf] %v742
                  %v744 = vld [vmem:[%s688 + $0xd4] sm:$0xf]
                  %745 = vst [vmem:[%s689 + $0x6c] sm:$0xf] %v744
                  %v746 = vld [vmem:[%s688 + $0xe0] sm:$0xf]
                  %747 = vst [vmem:[%s689 + $0x70] sm:$0xf] %v746
                  %v748 = vld [vmem:[%s688 + $0xe4] sm:$0xf]
                  %749 = vst [vmem:[%s689 + $0x74] sm:$0xf] %v748
                  %v750 = vld [vmem:[%s688 + $0xf0] sm:$0xf]
                  %751 = vst [vmem:[%s689 + $0x78] sm:$0xf] %v750
                  %v752 = vld [vmem:[%s688 + $0xf4] sm:$0xf]
                  %753 = vst [vmem:[%s689 + $0x7c] sm:$0xf] %v752
                $region160: #{fpn_forward.1} parent=147 // loop_footer
                  %s687 = sadd.s32 1, %s683
                $region161: #{fpn_forward.1} parent=147 // loop_footer_branch
                  %682 = sbr.rel target = $region157
                $region162: #{fpn_forward.1} parent=147 // loop_exit
                  _
              $region148: #{fpn_forward.1} parent=132 // pred_fallthru
                _
            $region133: #{fpn_forward.1} parent=128 // pred_fallthru
              _
            // Predicated region
            $region134: #{fpn_forward.1} parent=128 // pred_check
              _
            $region135: #{fpn_forward.1} parent=128 // pred_check_branch
              %597 = sbr.rel (0) target = $region137
            $region136: #{fpn_forward.1} parent=128 // pred_region
              loop: start=0, step=1, limit=1
              $region138: #{fpn_forward.1} parent=136 // loop_pre_header
                _
              $region139: #{fpn_forward.1} parent=136 // loop_header
                %s600 = sphi 0, %s604
                %p601 = scmp.ge.s32.totalorder %s600, 1
                %s605 = sphi %s591, %s591
                %s606 = sphi %s588, %s588
              $region140: #{fpn_forward.1} parent=136 // loop_header_branch
                %603 = sbr.rel (%p601) target = $region144
              $region141: #{fpn_forward.1} parent=136 // loop_body
                %v607 = vld [vmem:[%s605] sm:$0xf]
                %608 = vst [vmem:[%s606] sm:$0xf] %v607
                %v609 = vld [vmem:[%s605 + $0x4] sm:$0xf]
                %610 = vst [vmem:[%s606 + $0x4] sm:$0xf] %v609
                %v611 = vld [vmem:[%s605 + $0x10] sm:$0xf]
                %612 = vst [vmem:[%s606 + $0x8] sm:$0xf] %v611
                %v613 = vld [vmem:[%s605 + $0x14] sm:$0xf]
                %614 = vst [vmem:[%s606 + $0xc] sm:$0xf] %v613
                %v615 = vld [vmem:[%s605 + $0x20] sm:$0xf]
                %616 = vst [vmem:[%s606 + $0x10] sm:$0xf] %v615
                %v617 = vld [vmem:[%s605 + $0x24] sm:$0xf]
                %618 = vst [vmem:[%s606 + $0x14] sm:$0xf] %v617
                %v619 = vld [vmem:[%s605 + $0x30] sm:$0xf]
                %620 = vst [vmem:[%s606 + $0x18] sm:$0xf] %v619
                %v621 = vld [vmem:[%s605 + $0x34] sm:$0xf]
                %622 = vst [vmem:[%s606 + $0x1c] sm:$0xf] %v621
                %v623 = vld [vmem:[%s605 + $0x40] sm:$0xf]
                %624 = vst [vmem:[%s606 + $0x20] sm:$0xf] %v623
                %v625 = vld [vmem:[%s605 + $0x44] sm:$0xf]
                %626 = vst [vmem:[%s606 + $0x24] sm:$0xf] %v625
                %v627 = vld [vmem:[%s605 + $0x50] sm:$0xf]
                %628 = vst [vmem:[%s606 + $0x28] sm:$0xf] %v627
                %v629 = vld [vmem:[%s605 + $0x54] sm:$0xf]
                %630 = vst [vmem:[%s606 + $0x2c] sm:$0xf] %v629
                %v631 = vld [vmem:[%s605 + $0x60] sm:$0xf]
                %632 = vst [vmem:[%s606 + $0x30] sm:$0xf] %v631
                %v633 = vld [vmem:[%s605 + $0x64] sm:$0xf]
                %634 = vst [vmem:[%s606 + $0x34] sm:$0xf] %v633
                %v635 = vld [vmem:[%s605 + $0x70] sm:$0xf]
                %636 = vst [vmem:[%s606 + $0x38] sm:$0xf] %v635
                %v637 = vld [vmem:[%s605 + $0x74] sm:$0xf]
                %638 = vst [vmem:[%s606 + $0x3c] sm:$0xf] %v637
                %v639 = vld [vmem:[%s605 + $0x80] sm:$0xf]
                %640 = vst [vmem:[%s606 + $0x40] sm:$0xf] %v639
                %v641 = vld [vmem:[%s605 + $0x84] sm:$0xf]
                %642 = vst [vmem:[%s606 + $0x44] sm:$0xf] %v641
                %v643 = vld [vmem:[%s605 + $0x90] sm:$0xf]
                %644 = vst [vmem:[%s606 + $0x48] sm:$0xf] %v643
                %v645 = vld [vmem:[%s605 + $0x94] sm:$0xf]
                %646 = vst [vmem:[%s606 + $0x4c] sm:$0xf] %v645
                %v647 = vld [vmem:[%s605 + $0xa0] sm:$0xf]
                %648 = vst [vmem:[%s606 + $0x50] sm:$0xf] %v647
                %v649 = vld [vmem:[%s605 + $0xa4] sm:$0xf]
                %650 = vst [vmem:[%s606 + $0x54] sm:$0xf] %v649
                %v651 = vld [vmem:[%s605 + $0xb0] sm:$0xf]
                %652 = vst [vmem:[%s606 + $0x58] sm:$0xf] %v651
                %v653 = vld [vmem:[%s605 + $0xb4] sm:$0xf]
                %654 = vst [vmem:[%s606 + $0x5c] sm:$0xf] %v653
                %v655 = vld [vmem:[%s605 + $0xc0] sm:$0xf]
                %656 = vst [vmem:[%s606 + $0x60] sm:$0xf] %v655
                %v657 = vld [vmem:[%s605 + $0xc4] sm:$0xf]
                %658 = vst [vmem:[%s606 + $0x64] sm:$0xf] %v657
                %v659 = vld [vmem:[%s605 + $0xd0] sm:$0xf]
                %660 = vst [vmem:[%s606 + $0x68] sm:$0xf] %v659
                %v661 = vld [vmem:[%s605 + $0xd4] sm:$0xf]
                %662 = vst [vmem:[%s606 + $0x6c] sm:$0xf] %v661
                %v663 = vld [vmem:[%s605 + $0xe0] sm:$0xf]
                %664 = vst [vmem:[%s606 + $0x70] sm:$0xf] %v663
                %v665 = vld [vmem:[%s605 + $0xe4] sm:$0xf]
                %666 = vst [vmem:[%s606 + $0x74] sm:$0xf] %v665
                %v667 = vld [vmem:[%s605 + $0xf0] sm:$0xf]
                %668 = vst [vmem:[%s606 + $0x78] sm:$0xf] %v667
                %v669 = vld [vmem:[%s605 + $0xf4] sm:$0xf]
                %670 = vst [vmem:[%s606 + $0x7c] sm:$0xf] %v669
              $region142: #{fpn_forward.1} parent=136 // loop_footer
                %s604 = sadd.s32 1, %s600
              $region143: #{fpn_forward.1} parent=136 // loop_footer_branch
                %599 = sbr.rel target = $region139
              $region144: #{fpn_forward.1} parent=136 // loop_exit
                _
            $region137: #{fpn_forward.1} parent=128 // pred_fallthru
              _
          $region129: #{fpn_forward.1} parent=124 // pred_fallthru
            _
          %754 = vnop
        $region125: #{fpn_forward.1} parent=79 // pred_fallthru
          _
      $region80: #{fpn_forward.1} parent=5 // pred_fallthru
        _
      %p755 = scmp.le.s32.totalorder 1, %s25
      %p756 = scmp.lt.s32.totalorder %s25, 3
      %p757 = pnand %p755, %p756
      %p758 = pneg %p757
      // Predicated region
      $region163: #{fpn_forward.1} parent=5 // pred_check
        _
      $region164: #{fpn_forward.1} parent=5 // pred_check_branch
        %760 = sbr.rel (%p757) target = $region166
      $region165: #{fpn_forward.1} parent=5 // pred_region
        %s761 = ssub.s32 %s25, 1
        %s762 = sand.u32 %s38, 1
        %s763 = sand.u32 %s38, 1
        %s764 = smul.addr %s763, 32
        %s765 = scalar_lea.vmem [#allocation3], %s764
        // Predicated region
        $region167: #{fpn_forward.1} parent=165 // pred_check
          %p766 = pneg %p51
        $region168: #{fpn_forward.1} parent=165 // pred_check_branch
          %768 = sbr.rel (%p766) target = $region170
        $region169: #{fpn_forward.1} parent=165 // pred_region
          _
        $region170: #{fpn_forward.1} parent=165 // pred_fallthru
          _
        %s769 = sand.u32 %s232, 1
        %s770 = sand.u32 %s232, 1
        %s771 = smul.addr %s770, 128
        %s772 = scalar_lea.vmem [#allocation4], %s771
        // Predicated region
        $region171: #{fpn_forward.1} parent=165 // pred_check
          %p773 = pneg %p245
        $region172: #{fpn_forward.1} parent=165 // pred_check_branch
          %775 = sbr.rel (%p773) target = $region174
        $region173: #{fpn_forward.1} parent=165 // pred_region
          _
        $region174: #{fpn_forward.1} parent=165 // pred_fallthru
          _
        %s776 = sand.u32 %s38, 1
        %s777 = sand.u32 %s38, 1
        %s778 = smul.addr %s777, 32
        %s779 = scalar_lea.vmem [#allocation3], %s778
        %p780 = pneg %p51
        %p781 = pneg %p48
        %p782 = pneg %p72
        %p783 = pneg %p69
        %p784 = pneg %p93
        %p785 = pneg %p90
        %p786 = pneg %p114
        %p787 = pneg %p111
        %p788 = pneg %p135
        %p789 = pneg %p132
        %p790 = pneg %p156
        %p791 = pneg %p153
        %p792 = pneg %p177
        %p793 = pneg %p174
        %p794 = pneg %p198
        %p795 = pneg %p195
        %p796 = pneg %p219
        %p797 = pneg %p216
        %s798 = sand.u32 %s232, 1
        %s799 = sand.u32 %s232, 1
        %s800 = smul.addr %s799, 128
        %s801 = scalar_lea.vmem [#allocation4], %s800
        %p802 = pneg %p245
        %p803 = pneg %p242
        %p804 = pneg %p266
        %p805 = pneg %p263
        %p806 = pneg %p287
        %p807 = pneg %p284
        %p808 = pneg %p308
        %p809 = pneg %p305
        %p810 = pneg %p329
        %p811 = pneg %p326
        %p812 = pneg %p350
        %p813 = pneg %p347
        %p814 = pneg %p371
        %p815 = pneg %p368
        %p816 = pneg %p392
        %p817 = pneg %p389
        %p818 = pneg %p413
        %p819 = pneg %p410
        %p820 = pneg %p439
        %p821 = pneg %p436
        %p822 = scmp.lt.s32.totalorder %s30, 1
        %s823 = scalar_select %p822, %s30, 1
        %s824 = smul.addr %s823, 8
        %s825 = smul.addr %s824, 8
        %s826 = scalar_lea.vmem %s19, %s825
        %p827 = scmp.lt.s32.totalorder %s30, 1
        %s828 = scalar_select %p827, %s30, 1
        %s829 = smul.addr %s828, 8
        %s830 = smul.addr %s829, 8
        %s831 = scalar_lea.vmem %s19, %s830
        %s833 = smul.u32 %s30, 4
        %s834 = smul.addr %s833, 8
        %s835 = scalar_lea.vmem %s18, %s834
        %s836 = scalar_lea.vmem %s831, 32
        %p838 = scmp.lt.u32.totalorder 32, 8
        %p839 = pneg %p838
        // Predicated region
        $region175: #{fpn_forward.1} parent=165 // pred_check
          _
        $region176: #{fpn_forward.1} parent=165 // pred_check_branch
          %841 = sbr.rel (%p838) target = $region178
        $region177: #{fpn_forward.1} parent=165 // pred_region
          %s856 = sand.u32 32, 7
          %p857 = scmp.eq.s32.totalorder %s856, 0
          // Predicated region
          $region190: #{fpn_forward.1} parent=177 // pred_check
            %p858 = pneg %p857
          $region191: #{fpn_forward.1} parent=177 // pred_check_branch
            %860 = sbr.rel (%p858) target = $region193
          $region192: #{fpn_forward.1} parent=177 // pred_region
            loop: start=0, step=1, limit=1
            $region194: #{fpn_forward.1} parent=192 // loop_pre_header
              _
            $region195: #{fpn_forward.1} parent=192 // loop_header
              %s862 = sphi 0, %s866
              %p863 = scmp.ge.s32.totalorder %s862, 1
              %s867 = sphi %s835, %s835
              %s868 = sphi %s836, %s836
            $region196: #{fpn_forward.1} parent=192 // loop_header_branch
              %865 = sbr.rel (%p863) target = $region200
            $region197: #{fpn_forward.1} parent=192 // loop_body
              %v869 = vld [vmem:[%s867] sm:$0xff]
              %870 = vst [vmem:[%s868] sm:$0xff] %v869
              %v871 = vld [vmem:[%s867 + $0x8] sm:$0xff]
              %872 = vst [vmem:[%s868 + $0x8] sm:$0xff] %v871
              %v873 = vld [vmem:[%s867 + $0x10] sm:$0xff]
              %874 = vst [vmem:[%s868 + $0x10] sm:$0xff] %v873
              %v875 = vld [vmem:[%s867 + $0x18] sm:$0xff]
              %876 = vst [vmem:[%s868 + $0x18] sm:$0xff] %v875
            $region198: #{fpn_forward.1} parent=192 // loop_footer
              %s866 = sadd.s32 1, %s862
            $region199: #{fpn_forward.1} parent=192 // loop_footer_branch
              %861 = sbr.rel target = $region195
            $region200: #{fpn_forward.1} parent=192 // loop_exit
              _
          $region193: #{fpn_forward.1} parent=177 // pred_fallthru
            _
          %p877 = pneg %p857
          // Predicated region
          $region201: #{fpn_forward.1} parent=177 // pred_check
            _
          $region202: #{fpn_forward.1} parent=177 // pred_check_branch
            %879 = sbr.rel (%p857) target = $region204
          $region203: #{fpn_forward.1} parent=177 // pred_region
            %s880 = sand.u32 32, 7
          $region204: #{fpn_forward.1} parent=177 // pred_fallthru
            _
        $region178: #{fpn_forward.1} parent=165 // pred_fallthru
          _
        // Predicated region
        $region179: #{fpn_forward.1} parent=165 // pred_check
          %p842 = pneg %p838
        $region180: #{fpn_forward.1} parent=165 // pred_check_branch
          %844 = sbr.rel (%p842) target = $region182
        $region181: #{fpn_forward.1} parent=165 // pred_region
          %s845 = sshllo.u32 0, 32
          loop: start=0, step=1, limit=1
          $region183: #{fpn_forward.1} parent=181 // loop_pre_header
            _
          $region184: #{fpn_forward.1} parent=181 // loop_header
            %s847 = sphi 0, %s851
            %p848 = scmp.ge.s32.totalorder %s847, 1
            %s852 = sphi %s835, %s835
            %s853 = sphi %s836, %s836
          $region185: #{fpn_forward.1} parent=181 // loop_header_branch
            %850 = sbr.rel (%p848) target = $region189
          $region186: #{fpn_forward.1} parent=181 // loop_body
            %v854 = vld [vmem:[%s852] sm:%s845]
            %855 = vst [vmem:[%s853] sm:%s845] %v854
          $region187: #{fpn_forward.1} parent=181 // loop_footer
            %s851 = sadd.s32 1, %s847
          $region188: #{fpn_forward.1} parent=181 // loop_footer_branch
            %846 = sbr.rel target = $region184
          $region189: #{fpn_forward.1} parent=181 // loop_exit
            _
        $region182: #{fpn_forward.1} parent=165 // pred_fallthru
          _
        // Predicated region
        $region205: #{fpn_forward.1} parent=165 // pred_check
          _
        $region206: #{fpn_forward.1} parent=165 // pred_check_branch
          %883 = sbr.rel (0) target = $region208
        $region207: #{fpn_forward.1} parent=165 // pred_region
          %884 = vsyncadd [#allocation2], 512
        $region208: #{fpn_forward.1} parent=165 // pred_fallthru
          _
        %v885 = vld [vmem:[%s765] sm:$0x7]
        %v886 = vld [vmem:[%s765 + $0x4] sm:$0x7]
        %v887 = vld [vmem:[%s765 + $0x8] sm:$0x7]
        %v888 = vld [vmem:[%s765 + $0xc] sm:$0x7]
        %v889 = vld [vmem:[%s765 + $0x10] sm:$0x7]
        %v890 = vld [vmem:[%s765 + $0x14] sm:$0x7]
        %v891 = vld [vmem:[%s765 + $0x18] sm:$0x7]
        %v892 = vld [vmem:[%s765 + $0x1c] sm:$0x7]
        %v893 = vcombine.low %v885, %v889
        %v895 = vunpack.c.l.s4 1983009808
        %v896 = vunpack.c.0.s8 %v895
        %v897 = vlaneseq
        %v898 = vshrl.u32 %v897, 7
        %v899 = vsub.s32 %v896, %v898
        %v900 = vrot.slane %v893, %v899
        %v901 = vcombine.low %v887, %v891
        %v903 = vunpack.c.l.s4 1983009808
        %v904 = vunpack.c.0.s8 %v903
        %v905 = vlaneseq
        %v906 = vshrl.u32 %v905, 7
        %v907 = vsub.s32 %v904, %v906
        %v908 = vrot.slane %v901, %v907
        %v909 = vcombine.low %v900, %v908
        %v911 = vunpack.c.l.s4 1934713408
        %v912 = vunpack.c.0.s8 %v911
        %v913 = vlaneseq
        %v914 = vshrl.u32 %v913, 7
        %v915 = vsub.s32 %v912, %v914
        %v916 = vrot.slane %v909, %v915
        %v917 = vcombine.high %v916, 0
        %v918 = vcombine.low %v886, %v890
        %v920 = vunpack.c.l.s4 1983009808
        %v921 = vunpack.c.0.s8 %v920
        %v922 = vlaneseq
        %v923 = vshrl.u32 %v922, 7
        %v924 = vsub.s32 %v921, %v923
        %v925 = vrot.slane %v918, %v924
        %v926 = vcombine.low %v888, %v892
        %v928 = vunpack.c.l.s4 1983009808
        %v929 = vunpack.c.0.s8 %v928
        %v930 = vlaneseq
        %v931 = vshrl.u32 %v930, 7
        %v932 = vsub.s32 %v929, %v931
        %v933 = vrot.slane %v926, %v932
        %v934 = vcombine.low %v925, %v933
        %v936 = vunpack.c.l.s4 1934713408
        %v937 = vunpack.c.0.s8 %v936
        %v938 = vlaneseq
        %v939 = vshrl.u32 %v938, 7
        %v940 = vsub.s32 %v937, %v939
        %v941 = vrot.slane %v934, %v940
        %v942 = vcombine.high %v941, 0
        %v945 = vpack.i.b16 %v941, %v916
        %v946 = vshrl.u32 %v916, 16
        %v947 = vshrl.u32 %v941, 16
        %v948 = vpack.i.b16 %v947, %v946
        %v951 = vpack.i.b16 %v942, %v917
        %v952 = vshrl.u32 %v917, 16
        %v953 = vshrl.u32 %v942, 16
        %v954 = vpack.i.b16 %v953, %v952
        %v955 = vunpack.c.l.b16 %v948
        %v956 = vpack.c.b16 %v955, %v955
        %957 = vrot.lane.b32.xlu0 %v956, 4
        %v958 = vpop.permute.xlu0 %957
        %v959 = vunpack.c.l.b16 %v951
        %v960 = vpack.c.b16 %v959, %v959
        %961 = vrot.lane.b32.xlu0 %v960, 8
        %v962 = vpop.permute.xlu0 %961
        %v963 = vunpack.c.l.b16 %v954
        %v964 = vpack.c.b16 %v963, %v963
        %965 = vrot.lane.b32.xlu0 %v964, 12
        %v966 = vpop.permute.xlu0 %965
        %vm967 = vcmask 31744
        %v970 = vsel %vm967, %v945, %v958
        %vm971 = vcmask 64512
        %v973 = vsel %vm971, %v970, %v962
        %vm974 = vcmask 97280
        %v976 = vsel %vm974, %v973, %v966
        %985 = vrot.lane.b32.xlu0 %v885, 127
        %v986 = vpop.permute.xlu0 %985
        %987 = vrot.lane.b32.xlu0 %v886, 127
        %v988 = vpop.permute.xlu0 %987
        %989 = vrot.lane.b32.xlu0 %v887, 127
        %v990 = vpop.permute.xlu0 %989
        %991 = vrot.lane.b32.xlu0 %v888, 127
        %v992 = vpop.permute.xlu0 %991
        %993 = vrot.lane.b32.xlu0 %v889, 127
        %v994 = vpop.permute.xlu0 %993
        %995 = vrot.lane.b32.xlu0 %v890, 127
        %v996 = vpop.permute.xlu0 %995
        %997 = vrot.lane.b32.xlu0 %v891, 127
        %v998 = vpop.permute.xlu0 %997
        %999 = vrot.lane.b32.xlu0 %v892, 127
        %v1000 = vpop.permute.xlu0 %999
        %v1009 = vcombine.low %v986, %v994
        %v1011 = vunpack.c.l.s4 1983009808
        %v1012 = vunpack.c.0.s8 %v1011
        %v1013 = vlaneseq
        %v1014 = vshrl.u32 %v1013, 7
        %v1015 = vsub.s32 %v1012, %v1014
        %v1016 = vrot.slane %v1009, %v1015
        %v1017 = vcombine.low %v990, %v998
        %v1019 = vunpack.c.l.s4 1983009808
        %v1020 = vunpack.c.0.s8 %v1019
        %v1021 = vlaneseq
        %v1022 = vshrl.u32 %v1021, 7
        %v1023 = vsub.s32 %v1020, %v1022
        %v1024 = vrot.slane %v1017, %v1023
        %v1025 = vcombine.low %v1016, %v1024
        %v1027 = vunpack.c.l.s4 1934713408
        %v1028 = vunpack.c.0.s8 %v1027
        %v1029 = vlaneseq
        %v1030 = vshrl.u32 %v1029, 7
        %v1031 = vsub.s32 %v1028, %v1030
        %v1032 = vrot.slane %v1025, %v1031
        %v1033 = vcombine.high %v1032, 0
        %v1034 = vcombine.low %v988, %v996
        %v1036 = vunpack.c.l.s4 1983009808
        %v1037 = vunpack.c.0.s8 %v1036
        %v1038 = vlaneseq
        %v1039 = vshrl.u32 %v1038, 7
        %v1040 = vsub.s32 %v1037, %v1039
        %v1041 = vrot.slane %v1034, %v1040
        %v1042 = vcombine.low %v992, %v1000
        %v1044 = vunpack.c.l.s4 1983009808
        %v1045 = vunpack.c.0.s8 %v1044
        %v1046 = vlaneseq
        %v1047 = vshrl.u32 %v1046, 7
        %v1048 = vsub.s32 %v1045, %v1047
        %v1049 = vrot.slane %v1042, %v1048
        %v1050 = vcombine.low %v1041, %v1049
        %v1052 = vunpack.c.l.s4 1934713408
        %v1053 = vunpack.c.0.s8 %v1052
        %v1054 = vlaneseq
        %v1055 = vshrl.u32 %v1054, 7
        %v1056 = vsub.s32 %v1053, %v1055
        %v1057 = vrot.slane %v1050, %v1056
        %v1058 = vcombine.high %v1057, 0
        %v1061 = vpack.i.b16 %v1057, %v1032
        %v1062 = vshrl.u32 %v1032, 16
        %v1063 = vshrl.u32 %v1057, 16
        %v1064 = vpack.i.b16 %v1063, %v1062
        %v1067 = vpack.i.b16 %v1058, %v1033
        %v1068 = vshrl.u32 %v1033, 16
        %v1069 = vshrl.u32 %v1058, 16
        %v1070 = vpack.i.b16 %v1069, %v1068
        %v1071 = vunpack.c.l.b16 %v1064
        %v1072 = vpack.c.b16 %v1071, %v1071
        %1073 = vrot.lane.b32.xlu0 %v1072, 4
        %v1074 = vpop.permute.xlu0 %1073
        %v1075 = vunpack.c.l.b16 %v1067
        %v1076 = vpack.c.b16 %v1075, %v1075
        %1077 = vrot.lane.b32.xlu0 %v1076, 8
        %v1078 = vpop.permute.xlu0 %1077
        %v1079 = vunpack.c.l.b16 %v1070
        %v1080 = vpack.c.b16 %v1079, %v1079
        %1081 = vrot.lane.b32.xlu0 %v1080, 12
        %v1082 = vpop.permute.xlu0 %1081
        %v1085 = vsel %vm967, %v1061, %v1074
        %v1087 = vsel %vm971, %v1085, %v1078
        %v1089 = vsel %vm974, %v1087, %v1082
        %1090 = vrot.lane.b32.xlu0 %v885, 126
        %v1091 = vpop.permute.xlu0 %1090
        %1092 = vrot.lane.b32.xlu0 %v886, 126
        %v1093 = vpop.permute.xlu0 %1092
        %1094 = vrot.lane.b32.xlu0 %v887, 126
        %v1095 = vpop.permute.xlu0 %1094
        %1096 = vrot.lane.b32.xlu0 %v888, 126
        %v1097 = vpop.permute.xlu0 %1096
        %1098 = vrot.lane.b32.xlu0 %v889, 126
        %v1099 = vpop.permute.xlu0 %1098
        %1100 = vrot.lane.b32.xlu0 %v890, 126
        %v1101 = vpop.permute.xlu0 %1100
        %1102 = vrot.lane.b32.xlu0 %v891, 126
        %v1103 = vpop.permute.xlu0 %1102
        %1104 = vrot.lane.b32.xlu0 %v892, 126
        %v1105 = vpop.permute.xlu0 %1104
        %v1114 = vcombine.low %v1091, %v1099
        %v1116 = vunpack.c.l.s4 1983009808
        %v1117 = vunpack.c.0.s8 %v1116
        %v1118 = vlaneseq
        %v1119 = vshrl.u32 %v1118, 7
        %v1120 = vsub.s32 %v1117, %v1119
        %v1121 = vrot.slane %v1114, %v1120
        %v1122 = vcombine.low %v1095, %v1103
        %v1124 = vunpack.c.l.s4 1983009808
        %v1125 = vunpack.c.0.s8 %v1124
        %v1126 = vlaneseq
        %v1127 = vshrl.u32 %v1126, 7
        %v1128 = vsub.s32 %v1125, %v1127
        %v1129 = vrot.slane %v1122, %v1128
        %v1130 = vcombine.low %v1121, %v1129
        %v1132 = vunpack.c.l.s4 1934713408
        %v1133 = vunpack.c.0.s8 %v1132
        %v1134 = vlaneseq
        %v1135 = vshrl.u32 %v1134, 7
        %v1136 = vsub.s32 %v1133, %v1135
        %v1137 = vrot.slane %v1130, %v1136
        %v1138 = vcombine.high %v1137, 0
        %v1139 = vcombine.low %v1093, %v1101
        %v1141 = vunpack.c.l.s4 1983009808
        %v1142 = vunpack.c.0.s8 %v1141
        %v1143 = vlaneseq
        %v1144 = vshrl.u32 %v1143, 7
        %v1145 = vsub.s32 %v1142, %v1144
        %v1146 = vrot.slane %v1139, %v1145
        %v1147 = vcombine.low %v1097, %v1105
        %v1149 = vunpack.c.l.s4 1983009808
        %v1150 = vunpack.c.0.s8 %v1149
        %v1151 = vlaneseq
        %v1152 = vshrl.u32 %v1151, 7
        %v1153 = vsub.s32 %v1150, %v1152
        %v1154 = vrot.slane %v1147, %v1153
        %v1155 = vcombine.low %v1146, %v1154
        %v1157 = vunpack.c.l.s4 1934713408
        %v1158 = vunpack.c.0.s8 %v1157
        %v1159 = vlaneseq
        %v1160 = vshrl.u32 %v1159, 7
        %v1161 = vsub.s32 %v1158, %v1160
        %v1162 = vrot.slane %v1155, %v1161
        %v1163 = vcombine.high %v1162, 0
        %v1166 = vpack.i.b16 %v1162, %v1137
        %v1167 = vshrl.u32 %v1137, 16
        %v1168 = vshrl.u32 %v1162, 16
        %v1169 = vpack.i.b16 %v1168, %v1167
        %v1172 = vpack.i.b16 %v1163, %v1138
        %v1173 = vshrl.u32 %v1138, 16
        %v1174 = vshrl.u32 %v1163, 16
        %v1175 = vpack.i.b16 %v1174, %v1173
        %v1176 = vunpack.c.l.b16 %v1169
        %v1177 = vpack.c.b16 %v1176, %v1176
        %1178 = vrot.lane.b32.xlu0 %v1177, 4
        %v1179 = vpop.permute.xlu0 %1178
        %v1180 = vunpack.c.l.b16 %v1172
        %v1181 = vpack.c.b16 %v1180, %v1180
        %1182 = vrot.lane.b32.xlu0 %v1181, 8
        %v1183 = vpop.permute.xlu0 %1182
        %v1184 = vunpack.c.l.b16 %v1175
        %v1185 = vpack.c.b16 %v1184, %v1184
        %1186 = vrot.lane.b32.xlu0 %v1185, 12
        %v1187 = vpop.permute.xlu0 %1186
        %v1190 = vsel %vm967, %v1166, %v1179
        %v1192 = vsel %vm971, %v1190, %v1183
        %v1194 = vsel %vm974, %v1192, %v1187
        %v1196 = vshrl.u32 %v885, 16
        %v1198 = vrot.slane %v1196, 4
        %v1199 = vshll.u32 %v885, 16
        %v1201 = vrot.slane %v1199, 5
        %v1202 = vor.u32 %v1198, %v1201
        %v1203 = vrot.slane %v1202, 4
        %v1205 = vshrl.u32 %v886, 16
        %v1207 = vrot.slane %v1205, 4
        %v1208 = vshll.u32 %v886, 16
        %v1210 = vrot.slane %v1208, 5
        %v1211 = vor.u32 %v1207, %v1210
        %v1212 = vrot.slane %v1211, 4
        %v1214 = vshrl.u32 %v887, 16
        %v1216 = vrot.slane %v1214, 4
        %v1217 = vshll.u32 %v887, 16
        %v1219 = vrot.slane %v1217, 5
        %v1220 = vor.u32 %v1216, %v1219
        %v1221 = vrot.slane %v1220, 4
        %v1223 = vshrl.u32 %v888, 16
        %v1225 = vrot.slane %v1223, 4
        %v1226 = vshll.u32 %v888, 16
        %v1228 = vrot.slane %v1226, 5
        %v1229 = vor.u32 %v1225, %v1228
        %v1230 = vrot.slane %v1229, 4
        %v1232 = vshrl.u32 %v889, 16
        %v1234 = vrot.slane %v1232, 4
        %v1235 = vshll.u32 %v889, 16
        %v1237 = vrot.slane %v1235, 5
        %v1238 = vor.u32 %v1234, %v1237
        %v1239 = vrot.slane %v1238, 4
        %v1241 = vshrl.u32 %v890, 16
        %v1243 = vrot.slane %v1241, 4
        %v1244 = vshll.u32 %v890, 16
        %v1246 = vrot.slane %v1244, 5
        %v1247 = vor.u32 %v1243, %v1246
        %v1248 = vrot.slane %v1247, 4
        %v1250 = vshrl.u32 %v891, 16
        %v1252 = vrot.slane %v1250, 4
        %v1253 = vshll.u32 %v891, 16
        %v1255 = vrot.slane %v1253, 5
        %v1256 = vor.u32 %v1252, %v1255
        %v1257 = vrot.slane %v1256, 4
        %v1259 = vshrl.u32 %v892, 16
        %v1261 = vrot.slane %v1259, 4
        %v1262 = vshll.u32 %v892, 16
        %v1264 = vrot.slane %v1262, 5
        %v1265 = vor.u32 %v1261, %v1264
        %v1266 = vrot.slane %v1265, 4
        %v1275 = vcombine.low %v1203, %v1239
        %v1277 = vunpack.c.l.s4 1983009808
        %v1278 = vunpack.c.0.s8 %v1277
        %v1279 = vlaneseq
        %v1280 = vshrl.u32 %v1279, 7
        %v1281 = vsub.s32 %v1278, %v1280
        %v1282 = vrot.slane %v1275, %v1281
        %v1283 = vcombine.low %v1221, %v1257
        %v1285 = vunpack.c.l.s4 1983009808
        %v1286 = vunpack.c.0.s8 %v1285
        %v1287 = vlaneseq
        %v1288 = vshrl.u32 %v1287, 7
        %v1289 = vsub.s32 %v1286, %v1288
        %v1290 = vrot.slane %v1283, %v1289
        %v1291 = vcombine.low %v1282, %v1290
        %v1293 = vunpack.c.l.s4 1934713408
        %v1294 = vunpack.c.0.s8 %v1293
        %v1295 = vlaneseq
        %v1296 = vshrl.u32 %v1295, 7
        %v1297 = vsub.s32 %v1294, %v1296
        %v1298 = vrot.slane %v1291, %v1297
        %v1299 = vcombine.high %v1298, 0
        %v1300 = vcombine.low %v1212, %v1248
        %v1302 = vunpack.c.l.s4 1983009808
        %v1303 = vunpack.c.0.s8 %v1302
        %v1304 = vlaneseq
        %v1305 = vshrl.u32 %v1304, 7
        %v1306 = vsub.s32 %v1303, %v1305
        %v1307 = vrot.slane %v1300, %v1306
        %v1308 = vcombine.low %v1230, %v1266
        %v1310 = vunpack.c.l.s4 1983009808
        %v1311 = vunpack.c.0.s8 %v1310
        %v1312 = vlaneseq
        %v1313 = vshrl.u32 %v1312, 7
        %v1314 = vsub.s32 %v1311, %v1313
        %v1315 = vrot.slane %v1308, %v1314
        %v1316 = vcombine.low %v1307, %v1315
        %v1318 = vunpack.c.l.s4 1934713408
        %v1319 = vunpack.c.0.s8 %v1318
        %v1320 = vlaneseq
        %v1321 = vshrl.u32 %v1320, 7
        %v1322 = vsub.s32 %v1319, %v1321
        %v1323 = vrot.slane %v1316, %v1322
        %v1324 = vcombine.high %v1323, 0
        %v1327 = vpack.i.b16 %v1323, %v1298
        %v1328 = vshrl.u32 %v1298, 16
        %v1329 = vshrl.u32 %v1323, 16
        %v1330 = vpack.i.b16 %v1329, %v1328
        %v1333 = vpack.i.b16 %v1324, %v1299
        %v1334 = vshrl.u32 %v1299, 16
        %v1335 = vshrl.u32 %v1324, 16
        %v1336 = vpack.i.b16 %v1335, %v1334
        %v1337 = vunpack.c.l.b16 %v1330
        %v1338 = vpack.c.b16 %v1337, %v1337
        %1339 = vrot.lane.b32.xlu0 %v1338, 4
        %v1340 = vpop.permute.xlu0 %1339
        %v1341 = vunpack.c.l.b16 %v1333
        %v1342 = vpack.c.b16 %v1341, %v1341
        %1343 = vrot.lane.b32.xlu0 %v1342, 8
        %v1344 = vpop.permute.xlu0 %1343
        %v1345 = vunpack.c.l.b16 %v1336
        %v1346 = vpack.c.b16 %v1345, %v1345
        %1347 = vrot.lane.b32.xlu0 %v1346, 12
        %v1348 = vpop.permute.xlu0 %1347
        %v1351 = vsel %vm967, %v1327, %v1340
        %v1353 = vsel %vm971, %v1351, %v1344
        %v1355 = vsel %vm974, %v1353, %v1348
        %1356 = vrot.lane.b32.xlu0 %v1203, 127
        %v1357 = vpop.permute.xlu0 %1356
        %1358 = vrot.lane.b32.xlu0 %v1212, 127
        %v1359 = vpop.permute.xlu0 %1358
        %1360 = vrot.lane.b32.xlu0 %v1221, 127
        %v1361 = vpop.permute.xlu0 %1360
        %1362 = vrot.lane.b32.xlu0 %v1230, 127
        %v1363 = vpop.permute.xlu0 %1362
        %1364 = vrot.lane.b32.xlu0 %v1239, 127
        %v1365 = vpop.permute.xlu0 %1364
        %1366 = vrot.lane.b32.xlu0 %v1248, 127
        %v1367 = vpop.permute.xlu0 %1366
        %1368 = vrot.lane.b32.xlu0 %v1257, 127
        %v1369 = vpop.permute.xlu0 %1368
        %1370 = vrot.lane.b32.xlu0 %v1266, 127
        %v1371 = vpop.permute.xlu0 %1370
        %v1380 = vcombine.low %v1357, %v1365
        %v1382 = vunpack.c.l.s4 1983009808
        %v1383 = vunpack.c.0.s8 %v1382
        %v1384 = vlaneseq
        %v1385 = vshrl.u32 %v1384, 7
        %v1386 = vsub.s32 %v1383, %v1385
        %v1387 = vrot.slane %v1380, %v1386
        %v1388 = vcombine.low %v1361, %v1369
        %v1390 = vunpack.c.l.s4 1983009808
        %v1391 = vunpack.c.0.s8 %v1390
        %v1392 = vlaneseq
        %v1393 = vshrl.u32 %v1392, 7
        %v1394 = vsub.s32 %v1391, %v1393
        %v1395 = vrot.slane %v1388, %v1394
        %v1396 = vcombine.low %v1387, %v1395
        %v1398 = vunpack.c.l.s4 1934713408
        %v1399 = vunpack.c.0.s8 %v1398
        %v1400 = vlaneseq
        %v1401 = vshrl.u32 %v1400, 7
        %v1402 = vsub.s32 %v1399, %v1401
        %v1403 = vrot.slane %v1396, %v1402
        %v1404 = vcombine.high %v1403, 0
        %v1405 = vcombine.low %v1359, %v1367
        %v1407 = vunpack.c.l.s4 1983009808
        %v1408 = vunpack.c.0.s8 %v1407
        %v1409 = vlaneseq
        %v1410 = vshrl.u32 %v1409, 7
        %v1411 = vsub.s32 %v1408, %v1410
        %v1412 = vrot.slane %v1405, %v1411
        %v1413 = vcombine.low %v1363, %v1371
        %v1415 = vunpack.c.l.s4 1983009808
        %v1416 = vunpack.c.0.s8 %v1415
        %v1417 = vlaneseq
        %v1418 = vshrl.u32 %v1417, 7
        %v1419 = vsub.s32 %v1416, %v1418
        %v1420 = vrot.slane %v1413, %v1419
        %v1421 = vcombine.low %v1412, %v1420
        %v1423 = vunpack.c.l.s4 1934713408
        %v1424 = vunpack.c.0.s8 %v1423
        %v1425 = vlaneseq
        %v1426 = vshrl.u32 %v1425, 7
        %v1427 = vsub.s32 %v1424, %v1426
        %v1428 = vrot.slane %v1421, %v1427
        %v1429 = vcombine.high %v1428, 0
        %v1432 = vpack.i.b16 %v1428, %v1403
        %v1433 = vshrl.u32 %v1403, 16
        %v1434 = vshrl.u32 %v1428, 16
        %v1435 = vpack.i.b16 %v1434, %v1433
        %v1438 = vpack.i.b16 %v1429, %v1404
        %v1439 = vshrl.u32 %v1404, 16
        %v1440 = vshrl.u32 %v1429, 16
        %v1441 = vpack.i.b16 %v1440, %v1439
        %v1442 = vunpack.c.l.b16 %v1435
        %v1443 = vpack.c.b16 %v1442, %v1442
        %1444 = vrot.lane.b32.xlu0 %v1443, 4
        %v1445 = vpop.permute.xlu0 %1444
        %v1446 = vunpack.c.l.b16 %v1438
        %v1447 = vpack.c.b16 %v1446, %v1446
        %1448 = vrot.lane.b32.xlu0 %v1447, 8
        %v1449 = vpop.permute.xlu0 %1448
        %v1450 = vunpack.c.l.b16 %v1441
        %v1451 = vpack.c.b16 %v1450, %v1450
        %1452 = vrot.lane.b32.xlu0 %v1451, 12
        %v1453 = vpop.permute.xlu0 %1452
        %v1456 = vsel %vm967, %v1432, %v1445
        %v1458 = vsel %vm971, %v1456, %v1449
        %v1460 = vsel %vm974, %v1458, %v1453
        %1461 = vrot.lane.b32.xlu0 %v1203, 126
        %v1462 = vpop.permute.xlu0 %1461
        %1463 = vrot.lane.b32.xlu0 %v1212, 126
        %v1464 = vpop.permute.xlu0 %1463
        %1465 = vrot.lane.b32.xlu0 %v1221, 126
        %v1466 = vpop.permute.xlu0 %1465
        %1467 = vrot.lane.b32.xlu0 %v1230, 126
        %v1468 = vpop.permute.xlu0 %1467
        %1469 = vrot.lane.b32.xlu0 %v1239, 126
        %v1470 = vpop.permute.xlu0 %1469
        %1471 = vrot.lane.b32.xlu0 %v1248, 126
        %v1472 = vpop.permute.xlu0 %1471
        %1473 = vrot.lane.b32.xlu0 %v1257, 126
        %v1474 = vpop.permute.xlu0 %1473
        %1475 = vrot.lane.b32.xlu0 %v1266, 126
        %v1476 = vpop.permute.xlu0 %1475
        %v1485 = vcombine.low %v1462, %v1470
        %v1487 = vunpack.c.l.s4 1983009808
        %v1488 = vunpack.c.0.s8 %v1487
        %v1489 = vlaneseq
        %v1490 = vshrl.u32 %v1489, 7
        %v1491 = vsub.s32 %v1488, %v1490
        %v1492 = vrot.slane %v1485, %v1491
        %v1493 = vcombine.low %v1466, %v1474
        %v1495 = vunpack.c.l.s4 1983009808
        %v1496 = vunpack.c.0.s8 %v1495
        %v1497 = vlaneseq
        %v1498 = vshrl.u32 %v1497, 7
        %v1499 = vsub.s32 %v1496, %v1498
        %v1500 = vrot.slane %v1493, %v1499
        %v1501 = vcombine.low %v1492, %v1500
        %v1503 = vunpack.c.l.s4 1934713408
        %v1504 = vunpack.c.0.s8 %v1503
        %v1505 = vlaneseq
        %v1506 = vshrl.u32 %v1505, 7
        %v1507 = vsub.s32 %v1504, %v1506
        %v1508 = vrot.slane %v1501, %v1507
        %v1509 = vcombine.high %v1508, 0
        %v1510 = vcombine.low %v1464, %v1472
        %v1512 = vunpack.c.l.s4 1983009808
        %v1513 = vunpack.c.0.s8 %v1512
        %v1514 = vlaneseq
        %v1515 = vshrl.u32 %v1514, 7
        %v1516 = vsub.s32 %v1513, %v1515
        %v1517 = vrot.slane %v1510, %v1516
        %v1518 = vcombine.low %v1468, %v1476
        %v1520 = vunpack.c.l.s4 1983009808
        %v1521 = vunpack.c.0.s8 %v1520
        %v1522 = vlaneseq
        %v1523 = vshrl.u32 %v1522, 7
        %v1524 = vsub.s32 %v1521, %v1523
        %v1525 = vrot.slane %v1518, %v1524
        %v1526 = vcombine.low %v1517, %v1525
        %v1528 = vunpack.c.l.s4 1934713408
        %v1529 = vunpack.c.0.s8 %v1528
        %v1530 = vlaneseq
        %v1531 = vshrl.u32 %v1530, 7
        %v1532 = vsub.s32 %v1529, %v1531
        %v1533 = vrot.slane %v1526, %v1532
        %v1534 = vcombine.high %v1533, 0
        %v1537 = vpack.i.b16 %v1533, %v1508
        %v1538 = vshrl.u32 %v1508, 16
        %v1539 = vshrl.u32 %v1533, 16
        %v1540 = vpack.i.b16 %v1539, %v1538
        %v1543 = vpack.i.b16 %v1534, %v1509
        %v1544 = vshrl.u32 %v1509, 16
        %v1545 = vshrl.u32 %v1534, 16
        %v1546 = vpack.i.b16 %v1545, %v1544
        %v1547 = vunpack.c.l.b16 %v1540
        %v1548 = vpack.c.b16 %v1547, %v1547
        %1549 = vrot.lane.b32.xlu0 %v1548, 4
        %v1550 = vpop.permute.xlu0 %1549
        %v1551 = vunpack.c.l.b16 %v1543
        %v1552 = vpack.c.b16 %v1551, %v1551
        %1553 = vrot.lane.b32.xlu0 %v1552, 8
        %v1554 = vpop.permute.xlu0 %1553
        %v1555 = vunpack.c.l.b16 %v1546
        %v1556 = vpack.c.b16 %v1555, %v1555
        %1557 = vrot.lane.b32.xlu0 %v1556, 12
        %v1558 = vpop.permute.xlu0 %1557
        %v1561 = vsel %vm967, %v1537, %v1550
        %v1563 = vsel %vm971, %v1561, %v1554
        %v1565 = vsel %vm974, %v1563, %v1558
        %v1566 = vrot.slane %v885, 5
        %v1567 = vrot.slane %v1566, 4
        %v1568 = vrot.slane %v886, 5
        %v1569 = vrot.slane %v1568, 4
        %v1570 = vrot.slane %v887, 5
        %v1571 = vrot.slane %v1570, 4
        %v1572 = vrot.slane %v888, 5
        %v1573 = vrot.slane %v1572, 4
        %v1574 = vrot.slane %v889, 5
        %v1575 = vrot.slane %v1574, 4
        %v1576 = vrot.slane %v890, 5
        %v1577 = vrot.slane %v1576, 4
        %v1578 = vrot.slane %v891, 5
        %v1579 = vrot.slane %v1578, 4
        %v1580 = vrot.slane %v892, 5
        %v1581 = vrot.slane %v1580, 4
        %v1590 = vcombine.low %v1567, %v1575
        %v1592 = vunpack.c.l.s4 1983009808
        %v1593 = vunpack.c.0.s8 %v1592
        %v1594 = vlaneseq
        %v1595 = vshrl.u32 %v1594, 7
        %v1596 = vsub.s32 %v1593, %v1595
        %v1597 = vrot.slane %v1590, %v1596
        %v1598 = vcombine.low %v1571, %v1579
        %v1600 = vunpack.c.l.s4 1983009808
        %v1601 = vunpack.c.0.s8 %v1600
        %v1602 = vlaneseq
        %v1603 = vshrl.u32 %v1602, 7
        %v1604 = vsub.s32 %v1601, %v1603
        %v1605 = vrot.slane %v1598, %v1604
        %v1606 = vcombine.low %v1597, %v1605
        %v1608 = vunpack.c.l.s4 1934713408
        %v1609 = vunpack.c.0.s8 %v1608
        %v1610 = vlaneseq
        %v1611 = vshrl.u32 %v1610, 7
        %v1612 = vsub.s32 %v1609, %v1611
        %v1613 = vrot.slane %v1606, %v1612
        %v1614 = vcombine.high %v1613, 0
        %v1615 = vcombine.low %v1569, %v1577
        %v1617 = vunpack.c.l.s4 1983009808
        %v1618 = vunpack.c.0.s8 %v1617
        %v1619 = vlaneseq
        %v1620 = vshrl.u32 %v1619, 7
        %v1621 = vsub.s32 %v1618, %v1620
        %v1622 = vrot.slane %v1615, %v1621
        %v1623 = vcombine.low %v1573, %v1581
        %v1625 = vunpack.c.l.s4 1983009808
        %v1626 = vunpack.c.0.s8 %v1625
        %v1627 = vlaneseq
        %v1628 = vshrl.u32 %v1627, 7
        %v1629 = vsub.s32 %v1626, %v1628
        %v1630 = vrot.slane %v1623, %v1629
        %v1631 = vcombine.low %v1622, %v1630
        %v1633 = vunpack.c.l.s4 1934713408
        %v1634 = vunpack.c.0.s8 %v1633
        %v1635 = vlaneseq
        %v1636 = vshrl.u32 %v1635, 7
        %v1637 = vsub.s32 %v1634, %v1636
        %v1638 = vrot.slane %v1631, %v1637
        %v1639 = vcombine.high %v1638, 0
        %v1642 = vpack.i.b16 %v1638, %v1613
        %v1643 = vshrl.u32 %v1613, 16
        %v1644 = vshrl.u32 %v1638, 16
        %v1645 = vpack.i.b16 %v1644, %v1643
        %v1648 = vpack.i.b16 %v1639, %v1614
        %v1649 = vshrl.u32 %v1614, 16
        %v1650 = vshrl.u32 %v1639, 16
        %v1651 = vpack.i.b16 %v1650, %v1649
        %v1652 = vunpack.c.l.b16 %v1645
        %v1653 = vpack.c.b16 %v1652, %v1652
        %1654 = vrot.lane.b32.xlu0 %v1653, 4
        %v1655 = vpop.permute.xlu0 %1654
        %v1656 = vunpack.c.l.b16 %v1648
        %v1657 = vpack.c.b16 %v1656, %v1656
        %1658 = vrot.lane.b32.xlu0 %v1657, 8
        %v1659 = vpop.permute.xlu0 %1658
        %v1660 = vunpack.c.l.b16 %v1651
        %v1661 = vpack.c.b16 %v1660, %v1660
        %1662 = vrot.lane.b32.xlu0 %v1661, 12
        %v1663 = vpop.permute.xlu0 %1662
        %v1666 = vsel %vm967, %v1642, %v1655
        %v1668 = vsel %vm971, %v1666, %v1659
        %v1670 = vsel %vm974, %v1668, %v1663
        %1671 = vrot.lane.b32.xlu0 %v1567, 127
        %v1672 = vpop.permute.xlu0 %1671
        %1673 = vrot.lane.b32.xlu0 %v1569, 127
        %v1674 = vpop.permute.xlu0 %1673
        %1675 = vrot.lane.b32.xlu0 %v1571, 127
        %v1676 = vpop.permute.xlu0 %1675
        %1677 = vrot.lane.b32.xlu0 %v1573, 127
        %v1678 = vpop.permute.xlu0 %1677
        %1679 = vrot.lane.b32.xlu0 %v1575, 127
        %v1680 = vpop.permute.xlu0 %1679
        %1681 = vrot.lane.b32.xlu0 %v1577, 127
        %v1682 = vpop.permute.xlu0 %1681
        %1683 = vrot.lane.b32.xlu0 %v1579, 127
        %v1684 = vpop.permute.xlu0 %1683
        %1685 = vrot.lane.b32.xlu0 %v1581, 127
        %v1686 = vpop.permute.xlu0 %1685
        %v1695 = vcombine.low %v1672, %v1680
        %v1697 = vunpack.c.l.s4 1983009808
        %v1698 = vunpack.c.0.s8 %v1697
        %v1699 = vlaneseq
        %v1700 = vshrl.u32 %v1699, 7
        %v1701 = vsub.s32 %v1698, %v1700
        %v1702 = vrot.slane %v1695, %v1701
        %v1703 = vcombine.low %v1676, %v1684
        %v1705 = vunpack.c.l.s4 1983009808
        %v1706 = vunpack.c.0.s8 %v1705
        %v1707 = vlaneseq
        %v1708 = vshrl.u32 %v1707, 7
        %v1709 = vsub.s32 %v1706, %v1708
        %v1710 = vrot.slane %v1703, %v1709
        %v1711 = vcombine.low %v1702, %v1710
        %v1713 = vunpack.c.l.s4 1934713408
        %v1714 = vunpack.c.0.s8 %v1713
        %v1715 = vlaneseq
        %v1716 = vshrl.u32 %v1715, 7
        %v1717 = vsub.s32 %v1714, %v1716
        %v1718 = vrot.slane %v1711, %v1717
        %v1719 = vcombine.high %v1718, 0
        %v1720 = vcombine.low %v1674, %v1682
        %v1722 = vunpack.c.l.s4 1983009808
        %v1723 = vunpack.c.0.s8 %v1722
        %v1724 = vlaneseq
        %v1725 = vshrl.u32 %v1724, 7
        %v1726 = vsub.s32 %v1723, %v1725
        %v1727 = vrot.slane %v1720, %v1726
        %v1728 = vcombine.low %v1678, %v1686
        %v1730 = vunpack.c.l.s4 1983009808
        %v1731 = vunpack.c.0.s8 %v1730
        %v1732 = vlaneseq
        %v1733 = vshrl.u32 %v1732, 7
        %v1734 = vsub.s32 %v1731, %v1733
        %v1735 = vrot.slane %v1728, %v1734
        %v1736 = vcombine.low %v1727, %v1735
        %v1738 = vunpack.c.l.s4 1934713408
        %v1739 = vunpack.c.0.s8 %v1738
        %v1740 = vlaneseq
        %v1741 = vshrl.u32 %v1740, 7
        %v1742 = vsub.s32 %v1739, %v1741
        %v1743 = vrot.slane %v1736, %v1742
        %v1744 = vcombine.high %v1743, 0
        %v1747 = vpack.i.b16 %v1743, %v1718
        %v1748 = vshrl.u32 %v1718, 16
        %v1749 = vshrl.u32 %v1743, 16
        %v1750 = vpack.i.b16 %v1749, %v1748
        %v1753 = vpack.i.b16 %v1744, %v1719
        %v1754 = vshrl.u32 %v1719, 16
        %v1755 = vshrl.u32 %v1744, 16
        %v1756 = vpack.i.b16 %v1755, %v1754
        %v1757 = vunpack.c.l.b16 %v1750
        %v1758 = vpack.c.b16 %v1757, %v1757
        %1759 = vrot.lane.b32.xlu0 %v1758, 4
        %v1760 = vpop.permute.xlu0 %1759
        %v1761 = vunpack.c.l.b16 %v1753
        %v1762 = vpack.c.b16 %v1761, %v1761
        %1763 = vrot.lane.b32.xlu0 %v1762, 8
        %v1764 = vpop.permute.xlu0 %1763
        %v1765 = vunpack.c.l.b16 %v1756
        %v1766 = vpack.c.b16 %v1765, %v1765
        %1767 = vrot.lane.b32.xlu0 %v1766, 12
        %v1768 = vpop.permute.xlu0 %1767
        %v1771 = vsel %vm967, %v1747, %v1760
        %v1773 = vsel %vm971, %v1771, %v1764
        %v1775 = vsel %vm974, %v1773, %v1768
        %1776 = vrot.lane.b32.xlu0 %v1567, 126
        %v1777 = vpop.permute.xlu0 %1776
        %1778 = vrot.lane.b32.xlu0 %v1569, 126
        %v1779 = vpop.permute.xlu0 %1778
        %1780 = vrot.lane.b32.xlu0 %v1571, 126
        %v1781 = vpop.permute.xlu0 %1780
        %1782 = vrot.lane.b32.xlu0 %v1573, 126
        %v1783 = vpop.permute.xlu0 %1782
        %1784 = vrot.lane.b32.xlu0 %v1575, 126
        %v1785 = vpop.permute.xlu0 %1784
        %1786 = vrot.lane.b32.xlu0 %v1577, 126
        %v1787 = vpop.permute.xlu0 %1786
        %1788 = vrot.lane.b32.xlu0 %v1579, 126
        %v1789 = vpop.permute.xlu0 %1788
        %1790 = vrot.lane.b32.xlu0 %v1581, 126
        %v1791 = vpop.permute.xlu0 %1790
        %v1800 = vcombine.low %v1777, %v1785
        %v1802 = vunpack.c.l.s4 1983009808
        %v1803 = vunpack.c.0.s8 %v1802
        %v1804 = vlaneseq
        %v1805 = vshrl.u32 %v1804, 7
        %v1806 = vsub.s32 %v1803, %v1805
        %v1807 = vrot.slane %v1800, %v1806
        %v1808 = vcombine.low %v1781, %v1789
        %v1810 = vunpack.c.l.s4 1983009808
        %v1811 = vunpack.c.0.s8 %v1810
        %v1812 = vlaneseq
        %v1813 = vshrl.u32 %v1812, 7
        %v1814 = vsub.s32 %v1811, %v1813
        %v1815 = vrot.slane %v1808, %v1814
        %v1816 = vcombine.low %v1807, %v1815
        %v1818 = vunpack.c.l.s4 1934713408
        %v1819 = vunpack.c.0.s8 %v1818
        %v1820 = vlaneseq
        %v1821 = vshrl.u32 %v1820, 7
        %v1822 = vsub.s32 %v1819, %v1821
        %v1823 = vrot.slane %v1816, %v1822
        %v1824 = vcombine.high %v1823, 0
        %v1825 = vcombine.low %v1779, %v1787
        %v1827 = vunpack.c.l.s4 1983009808
        %v1828 = vunpack.c.0.s8 %v1827
        %v1829 = vlaneseq
        %v1830 = vshrl.u32 %v1829, 7
        %v1831 = vsub.s32 %v1828, %v1830
        %v1832 = vrot.slane %v1825, %v1831
        %v1833 = vcombine.low %v1783, %v1791
        %v1835 = vunpack.c.l.s4 1983009808
        %v1836 = vunpack.c.0.s8 %v1835
        %v1837 = vlaneseq
        %v1838 = vshrl.u32 %v1837, 7
        %v1839 = vsub.s32 %v1836, %v1838
        %v1840 = vrot.slane %v1833, %v1839
        %v1841 = vcombine.low %v1832, %v1840
        %v1843 = vunpack.c.l.s4 1934713408
        %v1844 = vunpack.c.0.s8 %v1843
        %v1845 = vlaneseq
        %v1846 = vshrl.u32 %v1845, 7
        %v1847 = vsub.s32 %v1844, %v1846
        %v1848 = vrot.slane %v1841, %v1847
        %v1849 = vcombine.high %v1848, 0
        %v1852 = vpack.i.b16 %v1848, %v1823
        %v1853 = vshrl.u32 %v1823, 16
        %v1854 = vshrl.u32 %v1848, 16
        %v1855 = vpack.i.b16 %v1854, %v1853
        %v1858 = vpack.i.b16 %v1849, %v1824
        %v1859 = vshrl.u32 %v1824, 16
        %v1860 = vshrl.u32 %v1849, 16
        %v1861 = vpack.i.b16 %v1860, %v1859
        %v1862 = vunpack.c.l.b16 %v1855
        %v1863 = vpack.c.b16 %v1862, %v1862
        %1864 = vrot.lane.b32.xlu0 %v1863, 4
        %v1865 = vpop.permute.xlu0 %1864
        %v1866 = vunpack.c.l.b16 %v1858
        %v1867 = vpack.c.b16 %v1866, %v1866
        %1868 = vrot.lane.b32.xlu0 %v1867, 8
        %v1869 = vpop.permute.xlu0 %1868
        %v1870 = vunpack.c.l.b16 %v1861
        %v1871 = vpack.c.b16 %v1870, %v1870
        %1872 = vrot.lane.b32.xlu0 %v1871, 12
        %v1873 = vpop.permute.xlu0 %1872
        %v1876 = vsel %vm967, %v1852, %v1865
        %v1878 = vsel %vm971, %v1876, %v1869
        %v1880 = vsel %vm974, %v1878, %v1873
        %v1882 = vrot.slane %v1089, 4
        %v1884 = vrot.slane %v1355, 4
        %v1886 = vrot.slane %v1565, 4
        %v1888 = vrot.slane %v1775, 4
        %vm1889 = vcmask 1043456
        %v1891 = vsel %vm1889, %v976, %v1882
        %v1894 = vsel %vm1889, %v1194, %v1884
        %v1897 = vsel %vm1889, %v1460, %v1886
        %v1900 = vsel %vm1889, %v1670, %v1888
        %v1902 = vld [vmem:[%s1] sm:$0xf]
        %v1903 = vld [vmem:[%s1 + $0x4] sm:$0xf]
        %v1904 = vld [vmem:[%s2] sm:$0xff]
        %v1905 = vld [vmem:[%s2 + $0x8] sm:$0xff]
        %1907 = vset.pattern.permute.xlu0 0
        %1908 = vperm.xlu0 %1907, %v1904
        %v1909 = vpop.permute.xlu0 %1908
        %1912 = vset.pattern.permute.xlu0 0
        %1913 = vperm.xlu0 %1912, %v1905
        %v1914 = vpop.permute.xlu0 %1913
        %v1918 = vunpack.c.l.b16 %v1902
        %v1919 = vunpack.c.l.b16 %v1903
        %v1920 = vpack.c.b16 %v1919, %v1918
        %vm1921 = vcmask 588800
        %v1923 = vsel %vm1921, %v1920, 0
        %v1925 = vsel %vm1889, %v1880, 0
        %1927 = vmatprep.subr.bf16.mxu0 0
        %1928 = vmatpush1.bf16.msra.mxu0 %v1891
        %1929 = vmatprep.subr.bf16.mxu0 0
        %1930 = vmatpush1.bf16.msra.mxu0 %v1894
        %1931 = vmatprep.subr.bf16.mxu0 0
        %1932 = vmatpush1.bf16.msra.mxu0 %v1897
        %1933 = vmatprep.subr.bf16.mxu0 0
        %1934 = vmatpush1.bf16.msra.mxu0 %v1900
        %1935 = vmatprep.subr.bf16.mxu0 0
        %1936 = vmatpush1.bf16.msra.mxu0 %v1925
        %1937 = vmatprep.subr.bf16.mxu0 0
        %1938 = vmatpush1.bf16.msra.mxu0 0
        %1939 = vmatprep.subr.bf16.mxu0 0
        %1940 = vmatpush1.bf16.msra.mxu0 0
        %1941 = vmatprep.subr.bf16.mxu0 0
        %1942 = vmatpush1.bf16.msra.mxu0 0
        %1943 = vmatprep.subr.bf16.mxu0 0
        %1944 = vmatpush1.bf16.msra.mxu0 0
        %1945 = vmatprep.subr.bf16.mxu0 0
        %1946 = vmatpush1.bf16.msra.mxu0 0
        %1947 = vmatprep.subr.bf16.mxu0 0
        %1948 = vmatpush1.bf16.msra.mxu0 0
        %1949 = vmatprep.subr.bf16.mxu0 0
        %1950 = vmatpush1.bf16.msra.mxu0 0
        %1951 = vmatprep.subr.bf16.mxu0 0
        %1952 = vmatpush1.bf16.msra.mxu0 0
        %1953 = vmatprep.subr.bf16.mxu0 0
        %1954 = vmatpush1.bf16.msra.mxu0 0
        %1955 = vmatprep.subr.bf16.mxu0 0
        %1956 = vmatpush1.bf16.msra.mxu0 0
        %1957 = vmatprep.subr.bf16.mxu0 0
        %1958 = vmatpush1.bf16.msra.mxu0 0
        %1959 = vmatprep.mubr.bf16.mxu0 0
        %1960 = vmatmul.mubr.bf16.gmra.mrb[0].mxu0 %v1923
        %v1961 = vpop.f32.mrb[0].mxu0
        %v1962 = vadd.f32 %v1909, %v1961
        %v1963 = vpop.f32.mrb[0].mxu0
        %v1964 = vpop.f32.mrb[0].mxu0
        %v1965 = vadd.f32 %v1914, %v1964
        %v1966 = vpop.f32.mrb[0].mxu0
        %1967 = vdwg.mxu0
        %v1968 = vmax.f32 %v1962, 0.0
        %v1969 = vmax.f32 %v1965, 0.0
        %v1970 = vld [vmem:[%s3] sm:$0xff]
        %v1971 = vld [vmem:[%s3 + $0x8] sm:$0xff]
        %1973 = vset.pattern.permute.xlu0 0
        %1974 = vperm.xlu0 %1973, %v1970
        %v1975 = vpop.permute.xlu0 %1974
        %1978 = vset.pattern.permute.xlu0 0
        %1979 = vperm.xlu0 %1978, %v1971
        %v1980 = vpop.permute.xlu0 %1979
        %v1982 = vmul.f32 %v1968, %v1975
        %v1983 = vmul.f32 %v1969, %v1980
        %v1984 = vld [vmem:[%s4] sm:$0xff]
        %v1985 = vld [vmem:[%s4 + $0x8] sm:$0xff]
        %1987 = vset.pattern.permute.xlu0 0
        %1988 = vperm.xlu0 %1987, %v1984
        %v1989 = vpop.permute.xlu0 %1988
        %1992 = vset.pattern.permute.xlu0 0
        %1993 = vperm.xlu0 %1992, %v1985
        %v1994 = vpop.permute.xlu0 %1993
        %v1996 = vadd.f32 %v1982, %v1989
        %v1997 = vadd.f32 %v1983, %v1994
        %v1998 = vpack.c.bf16 %v1997, %v1996
        %2000 = vrot.lane.b32.xlu0 %v1998, 124
        %v2001 = vpop.permute.xlu0 %2000
        %2002 = vrot.lane.b32.xlu0 %v1998, 120
        %v2003 = vpop.permute.xlu0 %2002
        %2004 = vrot.lane.b32.xlu0 %v1998, 116
        %v2005 = vpop.permute.xlu0 %2004
        %v2008 = vpack.i.b16 %v2001, %v1998
        %v2010 = vshrl.u32 %v1998, 16
        %v2011 = vshrl.u32 %v2001, 16
        %v2012 = vpack.i.b16 %v2011, %v2010
        %v2016 = vpack.i.b16 %v2005, %v2003
        %v2018 = vshrl.u32 %v2003, 16
        %v2019 = vshrl.u32 %v2005, 16
        %v2020 = vpack.i.b16 %v2019, %v2018
        %v2023 = vpack.i.b16 0, 0
        %v2025 = vshrl.u32 0, 16
        %v2026 = vpack.i.b16 %v2025, %v2025
        %v2028 = vcombine.high %v2008, %v2023
        %v2030 = vunpack.c.l.s4 1983009808
        %v2031 = vunpack.c.0.s8 %v2030
        %v2032 = vlaneseq
        %v2033 = vshrl.u32 %v2032, 7
        %v2034 = vsub.s32 %v2031, %v2033
        %v2035 = vrot.slane %v2008, %v2034
        %v2037 = vunpack.c.l.s4 1983009808
        %v2038 = vunpack.c.0.s8 %v2037
        %v2039 = vlaneseq
        %v2040 = vshrl.u32 %v2039, 7
        %v2041 = vsub.s32 %v2038, %v2040
        %v2042 = vrot.slane %v2028, %v2041
        %v2043 = vcombine.high %v2016, %v2023
        %v2045 = vunpack.c.l.s4 1983009808
        %v2046 = vunpack.c.0.s8 %v2045
        %v2047 = vlaneseq
        %v2048 = vshrl.u32 %v2047, 7
        %v2049 = vsub.s32 %v2046, %v2048
        %v2050 = vrot.slane %v2016, %v2049
        %v2052 = vunpack.c.l.s4 1983009808
        %v2053 = vunpack.c.0.s8 %v2052
        %v2054 = vlaneseq
        %v2055 = vshrl.u32 %v2054, 7
        %v2056 = vsub.s32 %v2053, %v2055
        %v2057 = vrot.slane %v2043, %v2056
        %v2058 = vcombine.low %v2035, %v2050
        %v2059 = vcombine.high %v2035, %v2050
        %v2061 = vunpack.c.l.s4 1934713408
        %v2062 = vunpack.c.0.s8 %v2061
        %v2063 = vlaneseq
        %v2064 = vshrl.u32 %v2063, 7
        %v2065 = vsub.s32 %v2062, %v2064
        %v2066 = vrot.slane %v2058, %v2065
        %v2068 = vunpack.c.l.s4 1934713408
        %v2069 = vunpack.c.0.s8 %v2068
        %v2070 = vlaneseq
        %v2071 = vshrl.u32 %v2070, 7
        %v2072 = vsub.s32 %v2069, %v2071
        %v2073 = vrot.slane %v2059, %v2072
        %v2074 = vcombine.low %v2042, %v2057
        %v2075 = vcombine.high %v2042, %v2057
        %v2077 = vunpack.c.l.s4 1934713408
        %v2078 = vunpack.c.0.s8 %v2077
        %v2079 = vlaneseq
        %v2080 = vshrl.u32 %v2079, 7
        %v2081 = vsub.s32 %v2078, %v2080
        %v2082 = vrot.slane %v2074, %v2081
        %v2084 = vunpack.c.l.s4 1934713408
        %v2085 = vunpack.c.0.s8 %v2084
        %v2086 = vlaneseq
        %v2087 = vshrl.u32 %v2086, 7
        %v2088 = vsub.s32 %v2085, %v2087
        %v2089 = vrot.slane %v2075, %v2088
        %v2090 = vcombine.high %v2066, 0
        %v2091 = vcombine.high %v2073, 0
        %v2092 = vcombine.high %v2082, 0
        %v2093 = vcombine.high %v2089, 0
        %v2094 = vcombine.high %v2012, %v2026
        %v2096 = vunpack.c.l.s4 1983009808
        %v2097 = vunpack.c.0.s8 %v2096
        %v2098 = vlaneseq
        %v2099 = vshrl.u32 %v2098, 7
        %v2100 = vsub.s32 %v2097, %v2099
        %v2101 = vrot.slane %v2012, %v2100
        %v2103 = vunpack.c.l.s4 1983009808
        %v2104 = vunpack.c.0.s8 %v2103
        %v2105 = vlaneseq
        %v2106 = vshrl.u32 %v2105, 7
        %v2107 = vsub.s32 %v2104, %v2106
        %v2108 = vrot.slane %v2094, %v2107
        %v2109 = vcombine.high %v2020, %v2026
        %v2111 = vunpack.c.l.s4 1983009808
        %v2112 = vunpack.c.0.s8 %v2111
        %v2113 = vlaneseq
        %v2114 = vshrl.u32 %v2113, 7
        %v2115 = vsub.s32 %v2112, %v2114
        %v2116 = vrot.slane %v2020, %v2115
        %v2118 = vunpack.c.l.s4 1983009808
        %v2119 = vunpack.c.0.s8 %v2118
        %v2120 = vlaneseq
        %v2121 = vshrl.u32 %v2120, 7
        %v2122 = vsub.s32 %v2119, %v2121
        %v2123 = vrot.slane %v2109, %v2122
        %v2124 = vcombine.low %v2101, %v2116
        %v2125 = vcombine.high %v2101, %v2116
        %v2127 = vunpack.c.l.s4 1934713408
        %v2128 = vunpack.c.0.s8 %v2127
        %v2129 = vlaneseq
        %v2130 = vshrl.u32 %v2129, 7
        %v2131 = vsub.s32 %v2128, %v2130
        %v2132 = vrot.slane %v2124, %v2131
        %v2134 = vunpack.c.l.s4 1934713408
        %v2135 = vunpack.c.0.s8 %v2134
        %v2136 = vlaneseq
        %v2137 = vshrl.u32 %v2136, 7
        %v2138 = vsub.s32 %v2135, %v2137
        %v2139 = vrot.slane %v2125, %v2138
        %v2140 = vcombine.low %v2108, %v2123
        %v2141 = vcombine.high %v2108, %v2123
        %v2143 = vunpack.c.l.s4 1934713408
        %v2144 = vunpack.c.0.s8 %v2143
        %v2145 = vlaneseq
        %v2146 = vshrl.u32 %v2145, 7
        %v2147 = vsub.s32 %v2144, %v2146
        %v2148 = vrot.slane %v2140, %v2147
        %v2150 = vunpack.c.l.s4 1934713408
        %v2151 = vunpack.c.0.s8 %v2150
        %v2152 = vlaneseq
        %v2153 = vshrl.u32 %v2152, 7
        %v2154 = vsub.s32 %v2151, %v2153
        %v2155 = vrot.slane %v2141, %v2154
        %v2156 = vcombine.high %v2132, 0
        %v2157 = vcombine.high %v2139, 0
        %v2158 = vcombine.high %v2148, 0
        %v2159 = vcombine.high %v2155, 0
        %v2161 = vshrl.u32 %v2066, 16
        %v2163 = vrot.slane %v2161, 7
        %v2164 = vshll.u32 %v2066, 16
        %v2166 = vor.u32 %v2163, %v2164
        %v2168 = vshrl.u32 %v2132, 16
        %v2170 = vrot.slane %v2168, 7
        %v2171 = vshll.u32 %v2132, 16
        %v2173 = vor.u32 %v2170, %v2171
        %v2175 = vshrl.u32 %v2090, 16
        %v2177 = vrot.slane %v2175, 7
        %v2178 = vshll.u32 %v2090, 16
        %v2180 = vor.u32 %v2177, %v2178
        %v2182 = vshrl.u32 %v2156, 16
        %v2184 = vrot.slane %v2182, 7
        %v2185 = vshll.u32 %v2156, 16
        %v2187 = vor.u32 %v2184, %v2185
        %v2189 = vshrl.u32 %v2073, 16
        %v2191 = vrot.slane %v2189, 7
        %v2192 = vshll.u32 %v2073, 16
        %v2194 = vor.u32 %v2191, %v2192
        %v2196 = vshrl.u32 %v2139, 16
        %v2198 = vrot.slane %v2196, 7
        %v2199 = vshll.u32 %v2139, 16
        %v2201 = vor.u32 %v2198, %v2199
        %v2203 = vshrl.u32 %v2091, 16
        %v2205 = vrot.slane %v2203, 7
        %v2206 = vshll.u32 %v2091, 16
        %v2208 = vor.u32 %v2205, %v2206
        %v2210 = vshrl.u32 %v2157, 16
        %v2212 = vrot.slane %v2210, 7
        %v2213 = vshll.u32 %v2157, 16
        %v2215 = vor.u32 %v2212, %v2213
        %v2217 = vshrl.u32 %v2082, 16
        %v2219 = vrot.slane %v2217, 7
        %v2220 = vshll.u32 %v2082, 16
        %v2222 = vor.u32 %v2219, %v2220
        %v2224 = vshrl.u32 %v2148, 16
        %v2226 = vrot.slane %v2224, 7
        %v2227 = vshll.u32 %v2148, 16
        %v2229 = vor.u32 %v2226, %v2227
        %v2231 = vshrl.u32 %v2092, 16
        %v2233 = vrot.slane %v2231, 7
        %v2234 = vshll.u32 %v2092, 16
        %v2236 = vor.u32 %v2233, %v2234
        %v2238 = vshrl.u32 %v2158, 16
        %v2240 = vrot.slane %v2238, 7
        %v2241 = vshll.u32 %v2158, 16
        %v2243 = vor.u32 %v2240, %v2241
        %v2245 = vshrl.u32 %v2089, 16
        %v2247 = vrot.slane %v2245, 7
        %v2248 = vshll.u32 %v2089, 16
        %v2250 = vor.u32 %v2247, %v2248
        %v2252 = vshrl.u32 %v2155, 16
        %v2254 = vrot.slane %v2252, 7
        %v2255 = vshll.u32 %v2155, 16
        %v2257 = vor.u32 %v2254, %v2255
        %v2259 = vshrl.u32 %v2093, 16
        %v2261 = vrot.slane %v2259, 7
        %v2262 = vshll.u32 %v2093, 16
        %v2264 = vor.u32 %v2261, %v2262
        %v2266 = vshrl.u32 %v2159, 16
        %v2268 = vrot.slane %v2266, 7
        %v2269 = vshll.u32 %v2159, 16
        %v2271 = vor.u32 %v2268, %v2269
        %vm2288 = vcmask 1040384
        %vm2289 = vsmask.f32 256
        %vm2290 = vmand %vm2288, %vm2289
        %v2291 = vsel %vm2290, 0, %v2166
        %v2292 = vsel %vm2290, 0, %v2173
        %v2293 = vsel %vm2290, 0, %v2180
        %v2294 = vsel %vm2290, 0, %v2187
        %v2295 = vsel %vm2290, 0, %v2194
        %v2296 = vsel %vm2290, 0, %v2201
        %v2297 = vsel %vm2290, 0, %v2208
        %v2298 = vsel %vm2290, 0, %v2215
        %v2299 = vsel %vm2290, 0, %v2222
        %v2300 = vsel %vm2290, 0, %v2229
        %v2301 = vsel %vm2290, 0, %v2236
        %v2302 = vsel %vm2290, 0, %v2243
        %v2303 = vsel %vm2290, 0, %v2250
        %v2304 = vsel %vm2290, 0, %v2257
        %v2305 = vsel %vm2290, 0, %v2264
        %v2306 = vsel %vm2290, 0, %v2271
        %vm2307 = vcmask 1042432
        %vm2308 = vsmask.f32 2304
        %vm2309 = vmand %vm2307, %vm2308
        %v2310 = vsel %vm2309, %v2291, 0
        %v2311 = vsel %vm2309, %v2292, 0
        %v2312 = vsel %vm2309, %v2293, 0
        %v2313 = vsel %vm2309, %v2294, 0
        %v2314 = vsel %vm2309, %v2295, 0
        %v2315 = vsel %vm2309, %v2296, 0
        %v2316 = vsel %vm2309, %v2297, 0
        %v2317 = vsel %vm2309, %v2298, 0
        %v2318 = vsel %vm2309, %v2299, 0
        %v2319 = vsel %vm2309, %v2300, 0
        %v2320 = vsel %vm2309, %v2301, 0
        %v2321 = vsel %vm2309, %v2302, 0
        %v2322 = vsel %vm2309, %v2303, 0
        %v2323 = vsel %vm2309, %v2304, 0
        %v2324 = vsel %vm2309, %v2305, 0
        %v2325 = vsel %vm2309, %v2306, 0
        %2342 = vrot.lane.b32.xlu0 %v2310, 1
        %v2343 = vpop.permute.xlu0 %2342
        %2344 = vrot.lane.b32.xlu0 %v2311, 1
        %v2345 = vpop.permute.xlu0 %2344
        %2346 = vrot.lane.b32.xlu0 %v2312, 1
        %v2347 = vpop.permute.xlu0 %2346
        %2348 = vrot.lane.b32.xlu0 %v2313, 1
        %v2349 = vpop.permute.xlu0 %2348
        %2350 = vrot.lane.b32.xlu0 %v2314, 1
        %v2351 = vpop.permute.xlu0 %2350
        %2352 = vrot.lane.b32.xlu0 %v2315, 1
        %v2353 = vpop.permute.xlu0 %2352
        %2354 = vrot.lane.b32.xlu0 %v2316, 1
        %v2355 = vpop.permute.xlu0 %2354
        %2356 = vrot.lane.b32.xlu0 %v2317, 1
        %v2357 = vpop.permute.xlu0 %2356
        %2358 = vrot.lane.b32.xlu0 %v2318, 1
        %v2359 = vpop.permute.xlu0 %2358
        %2360 = vrot.lane.b32.xlu0 %v2319, 1
        %v2361 = vpop.permute.xlu0 %2360
        %2362 = vrot.lane.b32.xlu0 %v2320, 1
        %v2363 = vpop.permute.xlu0 %2362
        %2364 = vrot.lane.b32.xlu0 %v2321, 1
        %v2365 = vpop.permute.xlu0 %2364
        %2366 = vrot.lane.b32.xlu0 %v2322, 1
        %v2367 = vpop.permute.xlu0 %2366
        %2368 = vrot.lane.b32.xlu0 %v2323, 1
        %v2369 = vpop.permute.xlu0 %2368
        %2370 = vrot.lane.b32.xlu0 %v2324, 1
        %v2371 = vpop.permute.xlu0 %2370
        %2372 = vrot.lane.b32.xlu0 %v2325, 1
        %v2373 = vpop.permute.xlu0 %2372
        %vm2374 = vcmask 7168
        %v2376 = vsel %vm2374, 0, %v2343
        %v2378 = vsel %vm2374, 0, %v2345
        %v2380 = vsel %vm2374, 0, %v2347
        %v2382 = vsel %vm2374, 0, %v2349
        %v2384 = vsel %vm2374, 0, %v2351
        %v2386 = vsel %vm2374, 0, %v2353
        %v2388 = vsel %vm2374, 0, %v2355
        %v2390 = vsel %vm2374, 0, %v2357
        %v2392 = vsel %vm2374, 0, %v2359
        %v2394 = vsel %vm2374, 0, %v2361
        %v2396 = vsel %vm2374, 0, %v2363
        %v2398 = vsel %vm2374, 0, %v2365
        %v2400 = vsel %vm2374, 0, %v2367
        %v2402 = vsel %vm2374, 0, %v2369
        %v2404 = vsel %vm2374, 0, %v2371
        %v2406 = vsel %vm2374, 0, %v2373
        %vm2407 = vcmask 39936
        %v2408 = vsel %vm2407, %v2376, 0
        %v2410 = vsel %vm2407, %v2378, 0
        %v2412 = vsel %vm2407, %v2380, 0
        %v2414 = vsel %vm2407, %v2382, 0
        %v2416 = vsel %vm2407, %v2384, 0
        %v2418 = vsel %vm2407, %v2386, 0
        %v2420 = vsel %vm2407, %v2388, 0
        %v2422 = vsel %vm2407, %v2390, 0
        %v2424 = vsel %vm2407, %v2392, 0
        %v2426 = vsel %vm2407, %v2394, 0
        %v2428 = vsel %vm2407, %v2396, 0
        %v2430 = vsel %vm2407, %v2398, 0
        %v2432 = vsel %vm2407, %v2400, 0
        %v2434 = vsel %vm2407, %v2402, 0
        %v2436 = vsel %vm2407, %v2404, 0
        %v2438 = vsel %vm2407, %v2406, 0
        %v2440 = vcombine.low %v2408, %v2416
        %v2442 = vunpack.c.l.s4 1983009808
        %v2443 = vunpack.c.0.s8 %v2442
        %v2444 = vlaneseq
        %v2445 = vshrl.u32 %v2444, 7
        %v2446 = vsub.s32 %v2443, %v2445
        %v2447 = vrot.slane %v2440, %v2446
        %v2448 = vcombine.low %v2412, %v2420
        %v2450 = vunpack.c.l.s4 1983009808
        %v2451 = vunpack.c.0.s8 %v2450
        %v2452 = vlaneseq
        %v2453 = vshrl.u32 %v2452, 7
        %v2454 = vsub.s32 %v2451, %v2453
        %v2455 = vrot.slane %v2448, %v2454
        %v2456 = vcombine.low %v2424, %v2432
        %v2458 = vunpack.c.l.s4 1983009808
        %v2459 = vunpack.c.0.s8 %v2458
        %v2460 = vlaneseq
        %v2461 = vshrl.u32 %v2460, 7
        %v2462 = vsub.s32 %v2459, %v2461
        %v2463 = vrot.slane %v2456, %v2462
        %v2464 = vcombine.low %v2428, %v2436
        %v2466 = vunpack.c.l.s4 1983009808
        %v2467 = vunpack.c.0.s8 %v2466
        %v2468 = vlaneseq
        %v2469 = vshrl.u32 %v2468, 7
        %v2470 = vsub.s32 %v2467, %v2469
        %v2471 = vrot.slane %v2464, %v2470
        %v2472 = vcombine.low %v2447, %v2455
        %v2474 = vunpack.c.l.s4 1934713408
        %v2475 = vunpack.c.0.s8 %v2474
        %v2476 = vlaneseq
        %v2477 = vshrl.u32 %v2476, 7
        %v2478 = vsub.s32 %v2475, %v2477
        %v2479 = vrot.slane %v2472, %v2478
        %v2480 = vcombine.low %v2463, %v2471
        %v2482 = vunpack.c.l.s4 1934713408
        %v2483 = vunpack.c.0.s8 %v2482
        %v2484 = vlaneseq
        %v2485 = vshrl.u32 %v2484, 7
        %v2486 = vsub.s32 %v2483, %v2485
        %v2487 = vrot.slane %v2480, %v2486
        %v2488 = vcombine.low %v2479, %v2487
        %v2489 = vcombine.high %v2479, %v2487
        %v2490 = vcombine.low %v2410, %v2418
        %v2492 = vunpack.c.l.s4 1983009808
        %v2493 = vunpack.c.0.s8 %v2492
        %v2494 = vlaneseq
        %v2495 = vshrl.u32 %v2494, 7
        %v2496 = vsub.s32 %v2493, %v2495
        %v2497 = vrot.slane %v2490, %v2496
        %v2498 = vcombine.low %v2414, %v2422
        %v2500 = vunpack.c.l.s4 1983009808
        %v2501 = vunpack.c.0.s8 %v2500
        %v2502 = vlaneseq
        %v2503 = vshrl.u32 %v2502, 7
        %v2504 = vsub.s32 %v2501, %v2503
        %v2505 = vrot.slane %v2498, %v2504
        %v2506 = vcombine.low %v2426, %v2434
        %v2508 = vunpack.c.l.s4 1983009808
        %v2509 = vunpack.c.0.s8 %v2508
        %v2510 = vlaneseq
        %v2511 = vshrl.u32 %v2510, 7
        %v2512 = vsub.s32 %v2509, %v2511
        %v2513 = vrot.slane %v2506, %v2512
        %v2514 = vcombine.low %v2430, %v2438
        %v2516 = vunpack.c.l.s4 1983009808
        %v2517 = vunpack.c.0.s8 %v2516
        %v2518 = vlaneseq
        %v2519 = vshrl.u32 %v2518, 7
        %v2520 = vsub.s32 %v2517, %v2519
        %v2521 = vrot.slane %v2514, %v2520
        %v2522 = vcombine.low %v2497, %v2505
        %v2524 = vunpack.c.l.s4 1934713408
        %v2525 = vunpack.c.0.s8 %v2524
        %v2526 = vlaneseq
        %v2527 = vshrl.u32 %v2526, 7
        %v2528 = vsub.s32 %v2525, %v2527
        %v2529 = vrot.slane %v2522, %v2528
        %v2530 = vcombine.low %v2513, %v2521
        %v2532 = vunpack.c.l.s4 1934713408
        %v2533 = vunpack.c.0.s8 %v2532
        %v2534 = vlaneseq
        %v2535 = vshrl.u32 %v2534, 7
        %v2536 = vsub.s32 %v2533, %v2535
        %v2537 = vrot.slane %v2530, %v2536
        %v2538 = vcombine.low %v2529, %v2537
        %v2539 = vcombine.high %v2529, %v2537
        %v2542 = vpack.i.b16 %v2538, %v2488
        %v2543 = vshrl.u32 %v2488, 16
        %v2544 = vshrl.u32 %v2538, 16
        %v2545 = vpack.i.b16 %v2544, %v2543
        %v2548 = vpack.i.b16 %v2539, %v2489
        %v2549 = vshrl.u32 %v2489, 16
        %v2550 = vshrl.u32 %v2539, 16
        %v2551 = vpack.i.b16 %v2550, %v2549
        %2552 = vrot.lane.b32.xlu0 %v2545, 4
        %v2553 = vpop.permute.xlu0 %2552
        %2554 = vrot.lane.b32.xlu0 %v2548, 8
        %v2555 = vpop.permute.xlu0 %2554
        %2556 = vrot.lane.b32.xlu0 %v2551, 12
        %v2557 = vpop.permute.xlu0 %2556
        %v2560 = vsel %vm967, %v2542, %v2553
        %v2562 = vsel %vm971, %v2560, %v2555
        %v2564 = vsel %vm974, %v2562, %v2557
        %2582 = vrot.lane.b32.xlu0 %v2408, 127
        %v2583 = vpop.permute.xlu0 %2582
        %2584 = vrot.lane.b32.xlu0 %v2410, 127
        %v2585 = vpop.permute.xlu0 %2584
        %2586 = vrot.lane.b32.xlu0 %v2412, 127
        %v2587 = vpop.permute.xlu0 %2586
        %2588 = vrot.lane.b32.xlu0 %v2414, 127
        %v2589 = vpop.permute.xlu0 %2588
        %2590 = vrot.lane.b32.xlu0 %v2416, 127
        %v2591 = vpop.permute.xlu0 %2590
        %2592 = vrot.lane.b32.xlu0 %v2418, 127
        %v2593 = vpop.permute.xlu0 %2592
        %2594 = vrot.lane.b32.xlu0 %v2420, 127
        %v2595 = vpop.permute.xlu0 %2594
        %2596 = vrot.lane.b32.xlu0 %v2422, 127
        %v2597 = vpop.permute.xlu0 %2596
        %2598 = vrot.lane.b32.xlu0 %v2424, 127
        %v2599 = vpop.permute.xlu0 %2598
        %2600 = vrot.lane.b32.xlu0 %v2426, 127
        %v2601 = vpop.permute.xlu0 %2600
        %2602 = vrot.lane.b32.xlu0 %v2428, 127
        %v2603 = vpop.permute.xlu0 %2602
        %2604 = vrot.lane.b32.xlu0 %v2430, 127
        %v2605 = vpop.permute.xlu0 %2604
        %2606 = vrot.lane.b32.xlu0 %v2432, 127
        %v2607 = vpop.permute.xlu0 %2606
        %2608 = vrot.lane.b32.xlu0 %v2434, 127
        %v2609 = vpop.permute.xlu0 %2608
        %2610 = vrot.lane.b32.xlu0 %v2436, 127
        %v2611 = vpop.permute.xlu0 %2610
        %2612 = vrot.lane.b32.xlu0 %v2438, 127
        %v2613 = vpop.permute.xlu0 %2612
        %v2630 = vcombine.low %v2583, %v2591
        %v2632 = vunpack.c.l.s4 1983009808
        %v2633 = vunpack.c.0.s8 %v2632
        %v2634 = vlaneseq
        %v2635 = vshrl.u32 %v2634, 7
        %v2636 = vsub.s32 %v2633, %v2635
        %v2637 = vrot.slane %v2630, %v2636
        %v2638 = vcombine.low %v2587, %v2595
        %v2640 = vunpack.c.l.s4 1983009808
        %v2641 = vunpack.c.0.s8 %v2640
        %v2642 = vlaneseq
        %v2643 = vshrl.u32 %v2642, 7
        %v2644 = vsub.s32 %v2641, %v2643
        %v2645 = vrot.slane %v2638, %v2644
        %v2646 = vcombine.low %v2599, %v2607
        %v2648 = vunpack.c.l.s4 1983009808
        %v2649 = vunpack.c.0.s8 %v2648
        %v2650 = vlaneseq
        %v2651 = vshrl.u32 %v2650, 7
        %v2652 = vsub.s32 %v2649, %v2651
        %v2653 = vrot.slane %v2646, %v2652
        %v2654 = vcombine.low %v2603, %v2611
        %v2656 = vunpack.c.l.s4 1983009808
        %v2657 = vunpack.c.0.s8 %v2656
        %v2658 = vlaneseq
        %v2659 = vshrl.u32 %v2658, 7
        %v2660 = vsub.s32 %v2657, %v2659
        %v2661 = vrot.slane %v2654, %v2660
        %v2662 = vcombine.low %v2637, %v2645
        %v2664 = vunpack.c.l.s4 1934713408
        %v2665 = vunpack.c.0.s8 %v2664
        %v2666 = vlaneseq
        %v2667 = vshrl.u32 %v2666, 7
        %v2668 = vsub.s32 %v2665, %v2667
        %v2669 = vrot.slane %v2662, %v2668
        %v2670 = vcombine.low %v2653, %v2661
        %v2672 = vunpack.c.l.s4 1934713408
        %v2673 = vunpack.c.0.s8 %v2672
        %v2674 = vlaneseq
        %v2675 = vshrl.u32 %v2674, 7
        %v2676 = vsub.s32 %v2673, %v2675
        %v2677 = vrot.slane %v2670, %v2676
        %v2678 = vcombine.low %v2669, %v2677
        %v2679 = vcombine.high %v2669, %v2677
        %v2680 = vcombine.low %v2585, %v2593
        %v2682 = vunpack.c.l.s4 1983009808
        %v2683 = vunpack.c.0.s8 %v2682
        %v2684 = vlaneseq
        %v2685 = vshrl.u32 %v2684, 7
        %v2686 = vsub.s32 %v2683, %v2685
        %v2687 = vrot.slane %v2680, %v2686
        %v2688 = vcombine.low %v2589, %v2597
        %v2690 = vunpack.c.l.s4 1983009808
        %v2691 = vunpack.c.0.s8 %v2690
        %v2692 = vlaneseq
        %v2693 = vshrl.u32 %v2692, 7
        %v2694 = vsub.s32 %v2691, %v2693
        %v2695 = vrot.slane %v2688, %v2694
        %v2696 = vcombine.low %v2601, %v2609
        %v2698 = vunpack.c.l.s4 1983009808
        %v2699 = vunpack.c.0.s8 %v2698
        %v2700 = vlaneseq
        %v2701 = vshrl.u32 %v2700, 7
        %v2702 = vsub.s32 %v2699, %v2701
        %v2703 = vrot.slane %v2696, %v2702
        %v2704 = vcombine.low %v2605, %v2613
        %v2706 = vunpack.c.l.s4 1983009808
        %v2707 = vunpack.c.0.s8 %v2706
        %v2708 = vlaneseq
        %v2709 = vshrl.u32 %v2708, 7
        %v2710 = vsub.s32 %v2707, %v2709
        %v2711 = vrot.slane %v2704, %v2710
        %v2712 = vcombine.low %v2687, %v2695
        %v2714 = vunpack.c.l.s4 1934713408
        %v2715 = vunpack.c.0.s8 %v2714
        %v2716 = vlaneseq
        %v2717 = vshrl.u32 %v2716, 7
        %v2718 = vsub.s32 %v2715, %v2717
        %v2719 = vrot.slane %v2712, %v2718
        %v2720 = vcombine.low %v2703, %v2711
        %v2722 = vunpack.c.l.s4 1934713408
        %v2723 = vunpack.c.0.s8 %v2722
        %v2724 = vlaneseq
        %v2725 = vshrl.u32 %v2724, 7
        %v2726 = vsub.s32 %v2723, %v2725
        %v2727 = vrot.slane %v2720, %v2726
        %v2728 = vcombine.low %v2719, %v2727
        %v2729 = vcombine.high %v2719, %v2727
        %v2732 = vpack.i.b16 %v2728, %v2678
        %v2733 = vshrl.u32 %v2678, 16
        %v2734 = vshrl.u32 %v2728, 16
        %v2735 = vpack.i.b16 %v2734, %v2733
        %v2738 = vpack.i.b16 %v2729, %v2679
        %v2739 = vshrl.u32 %v2679, 16
        %v2740 = vshrl.u32 %v2729, 16
        %v2741 = vpack.i.b16 %v2740, %v2739
        %2742 = vrot.lane.b32.xlu0 %v2735, 4
        %v2743 = vpop.permute.xlu0 %2742
        %2744 = vrot.lane.b32.xlu0 %v2738, 8
        %v2745 = vpop.permute.xlu0 %2744
        %2746 = vrot.lane.b32.xlu0 %v2741, 12
        %v2747 = vpop.permute.xlu0 %2746
        %v2750 = vsel %vm967, %v2732, %v2743
        %v2752 = vsel %vm971, %v2750, %v2745
        %v2754 = vsel %vm974, %v2752, %v2747
        %2756 = vrot.lane.b32.xlu0 %v2408, 126
        %v2757 = vpop.permute.xlu0 %2756
        %2758 = vrot.lane.b32.xlu0 %v2410, 126
        %v2759 = vpop.permute.xlu0 %2758
        %2760 = vrot.lane.b32.xlu0 %v2412, 126
        %v2761 = vpop.permute.xlu0 %2760
        %2762 = vrot.lane.b32.xlu0 %v2414, 126
        %v2763 = vpop.permute.xlu0 %2762
        %2764 = vrot.lane.b32.xlu0 %v2416, 126
        %v2765 = vpop.permute.xlu0 %2764
        %2766 = vrot.lane.b32.xlu0 %v2418, 126
        %v2767 = vpop.permute.xlu0 %2766
        %2768 = vrot.lane.b32.xlu0 %v2420, 126
        %v2769 = vpop.permute.xlu0 %2768
        %2770 = vrot.lane.b32.xlu0 %v2422, 126
        %v2771 = vpop.permute.xlu0 %2770
        %2772 = vrot.lane.b32.xlu0 %v2424, 126
        %v2773 = vpop.permute.xlu0 %2772
        %2774 = vrot.lane.b32.xlu0 %v2426, 126
        %v2775 = vpop.permute.xlu0 %2774
        %2776 = vrot.lane.b32.xlu0 %v2428, 126
        %v2777 = vpop.permute.xlu0 %2776
        %2778 = vrot.lane.b32.xlu0 %v2430, 126
        %v2779 = vpop.permute.xlu0 %2778
        %2780 = vrot.lane.b32.xlu0 %v2432, 126
        %v2781 = vpop.permute.xlu0 %2780
        %2782 = vrot.lane.b32.xlu0 %v2434, 126
        %v2783 = vpop.permute.xlu0 %2782
        %2784 = vrot.lane.b32.xlu0 %v2436, 126
        %v2785 = vpop.permute.xlu0 %2784
        %2786 = vrot.lane.b32.xlu0 %v2438, 126
        %v2787 = vpop.permute.xlu0 %2786
        %v2804 = vcombine.low %v2757, %v2765
        %v2806 = vunpack.c.l.s4 1983009808
        %v2807 = vunpack.c.0.s8 %v2806
        %v2808 = vlaneseq
        %v2809 = vshrl.u32 %v2808, 7
        %v2810 = vsub.s32 %v2807, %v2809
        %v2811 = vrot.slane %v2804, %v2810
        %v2812 = vcombine.low %v2761, %v2769
        %v2814 = vunpack.c.l.s4 1983009808
        %v2815 = vunpack.c.0.s8 %v2814
        %v2816 = vlaneseq
        %v2817 = vshrl.u32 %v2816, 7
        %v2818 = vsub.s32 %v2815, %v2817
        %v2819 = vrot.slane %v2812, %v2818
        %v2820 = vcombine.low %v2773, %v2781
        %v2822 = vunpack.c.l.s4 1983009808
        %v2823 = vunpack.c.0.s8 %v2822
        %v2824 = vlaneseq
        %v2825 = vshrl.u32 %v2824, 7
        %v2826 = vsub.s32 %v2823, %v2825
        %v2827 = vrot.slane %v2820, %v2826
        %v2828 = vcombine.low %v2777, %v2785
        %v2830 = vunpack.c.l.s4 1983009808
        %v2831 = vunpack.c.0.s8 %v2830
        %v2832 = vlaneseq
        %v2833 = vshrl.u32 %v2832, 7
        %v2834 = vsub.s32 %v2831, %v2833
        %v2835 = vrot.slane %v2828, %v2834
        %v2836 = vcombine.low %v2811, %v2819
        %v2838 = vunpack.c.l.s4 1934713408
        %v2839 = vunpack.c.0.s8 %v2838
        %v2840 = vlaneseq
        %v2841 = vshrl.u32 %v2840, 7
        %v2842 = vsub.s32 %v2839, %v2841
        %v2843 = vrot.slane %v2836, %v2842
        %v2844 = vcombine.low %v2827, %v2835
        %v2846 = vunpack.c.l.s4 1934713408
        %v2847 = vunpack.c.0.s8 %v2846
        %v2848 = vlaneseq
        %v2849 = vshrl.u32 %v2848, 7
        %v2850 = vsub.s32 %v2847, %v2849
        %v2851 = vrot.slane %v2844, %v2850
        %v2852 = vcombine.low %v2843, %v2851
        %v2853 = vcombine.high %v2843, %v2851
        %v2854 = vcombine.low %v2759, %v2767
        %v2856 = vunpack.c.l.s4 1983009808
        %v2857 = vunpack.c.0.s8 %v2856
        %v2858 = vlaneseq
        %v2859 = vshrl.u32 %v2858, 7
        %v2860 = vsub.s32 %v2857, %v2859
        %v2861 = vrot.slane %v2854, %v2860
        %v2862 = vcombine.low %v2763, %v2771
        %v2864 = vunpack.c.l.s4 1983009808
        %v2865 = vunpack.c.0.s8 %v2864
        %v2866 = vlaneseq
        %v2867 = vshrl.u32 %v2866, 7
        %v2868 = vsub.s32 %v2865, %v2867
        %v2869 = vrot.slane %v2862, %v2868
        %v2870 = vcombine.low %v2775, %v2783
        %v2872 = vunpack.c.l.s4 1983009808
        %v2873 = vunpack.c.0.s8 %v2872
        %v2874 = vlaneseq
        %v2875 = vshrl.u32 %v2874, 7
        %v2876 = vsub.s32 %v2873, %v2875
        %v2877 = vrot.slane %v2870, %v2876
        %v2878 = vcombine.low %v2779, %v2787
        %v2880 = vunpack.c.l.s4 1983009808
        %v2881 = vunpack.c.0.s8 %v2880
        %v2882 = vlaneseq
        %v2883 = vshrl.u32 %v2882, 7
        %v2884 = vsub.s32 %v2881, %v2883
        %v2885 = vrot.slane %v2878, %v2884
        %v2886 = vcombine.low %v2861, %v2869
        %v2888 = vunpack.c.l.s4 1934713408
        %v2889 = vunpack.c.0.s8 %v2888
        %v2890 = vlaneseq
        %v2891 = vshrl.u32 %v2890, 7
        %v2892 = vsub.s32 %v2889, %v2891
        %v2893 = vrot.slane %v2886, %v2892
        %v2894 = vcombine.low %v2877, %v2885
        %v2896 = vunpack.c.l.s4 1934713408
        %v2897 = vunpack.c.0.s8 %v2896
        %v2898 = vlaneseq
        %v2899 = vshrl.u32 %v2898, 7
        %v2900 = vsub.s32 %v2897, %v2899
        %v2901 = vrot.slane %v2894, %v2900
        %v2902 = vcombine.low %v2893, %v2901
        %v2903 = vcombine.high %v2893, %v2901
        %v2906 = vpack.i.b16 %v2902, %v2852
        %v2907 = vshrl.u32 %v2852, 16
        %v2908 = vshrl.u32 %v2902, 16
        %v2909 = vpack.i.b16 %v2908, %v2907
        %v2912 = vpack.i.b16 %v2903, %v2853
        %v2913 = vshrl.u32 %v2853, 16
        %v2914 = vshrl.u32 %v2903, 16
        %v2915 = vpack.i.b16 %v2914, %v2913
        %2916 = vrot.lane.b32.xlu0 %v2909, 4
        %v2917 = vpop.permute.xlu0 %2916
        %2918 = vrot.lane.b32.xlu0 %v2912, 8
        %v2919 = vpop.permute.xlu0 %2918
        %2920 = vrot.lane.b32.xlu0 %v2915, 12
        %v2921 = vpop.permute.xlu0 %2920
        %v2924 = vsel %vm967, %v2906, %v2917
        %v2926 = vsel %vm971, %v2924, %v2919
        %v2928 = vsel %vm974, %v2926, %v2921
        %v2930 = vshrl.u32 %v2408, 16
        %v2932 = vshll.u32 %v2408, 16
        %v2934 = vrot.slane %v2932, 1
        %v2935 = vor.u32 %v2930, %v2934
        %v2936 = vshrl.u32 %v2410, 16
        %v2938 = vshll.u32 %v2410, 16
        %v2940 = vrot.slane %v2938, 1
        %v2941 = vor.u32 %v2936, %v2940
        %v2942 = vshrl.u32 %v2412, 16
        %v2944 = vshll.u32 %v2412, 16
        %v2946 = vrot.slane %v2944, 1
        %v2947 = vor.u32 %v2942, %v2946
        %v2948 = vshrl.u32 %v2414, 16
        %v2950 = vshll.u32 %v2414, 16
        %v2952 = vrot.slane %v2950, 1
        %v2953 = vor.u32 %v2948, %v2952
        %v2954 = vshrl.u32 %v2416, 16
        %v2956 = vshll.u32 %v2416, 16
        %v2958 = vrot.slane %v2956, 1
        %v2959 = vor.u32 %v2954, %v2958
        %v2960 = vshrl.u32 %v2418, 16
        %v2962 = vshll.u32 %v2418, 16
        %v2964 = vrot.slane %v2962, 1
        %v2965 = vor.u32 %v2960, %v2964
        %v2966 = vshrl.u32 %v2420, 16
        %v2968 = vshll.u32 %v2420, 16
        %v2970 = vrot.slane %v2968, 1
        %v2971 = vor.u32 %v2966, %v2970
        %v2972 = vshrl.u32 %v2422, 16
        %v2974 = vshll.u32 %v2422, 16
        %v2976 = vrot.slane %v2974, 1
        %v2977 = vor.u32 %v2972, %v2976
        %v2978 = vshrl.u32 %v2424, 16
        %v2980 = vshll.u32 %v2424, 16
        %v2982 = vrot.slane %v2980, 1
        %v2983 = vor.u32 %v2978, %v2982
        %v2984 = vshrl.u32 %v2426, 16
        %v2986 = vshll.u32 %v2426, 16
        %v2988 = vrot.slane %v2986, 1
        %v2989 = vor.u32 %v2984, %v2988
        %v2990 = vshrl.u32 %v2428, 16
        %v2992 = vshll.u32 %v2428, 16
        %v2994 = vrot.slane %v2992, 1
        %v2995 = vor.u32 %v2990, %v2994
        %v2996 = vshrl.u32 %v2430, 16
        %v2998 = vshll.u32 %v2430, 16
        %v3000 = vrot.slane %v2998, 1
        %v3001 = vor.u32 %v2996, %v3000
        %v3002 = vshrl.u32 %v2432, 16
        %v3004 = vshll.u32 %v2432, 16
        %v3006 = vrot.slane %v3004, 1
        %v3007 = vor.u32 %v3002, %v3006
        %v3008 = vshrl.u32 %v2434, 16
        %v3010 = vshll.u32 %v2434, 16
        %v3012 = vrot.slane %v3010, 1
        %v3013 = vor.u32 %v3008, %v3012
        %v3014 = vshrl.u32 %v2436, 16
        %v3016 = vshll.u32 %v2436, 16
        %v3018 = vrot.slane %v3016, 1
        %v3019 = vor.u32 %v3014, %v3018
        %v3020 = vshrl.u32 %v2438, 16
        %v3022 = vshll.u32 %v2438, 16
        %v3024 = vrot.slane %v3022, 1
        %v3025 = vor.u32 %v3020, %v3024
        %v3042 = vcombine.low %v2935, %v2959
        %v3044 = vunpack.c.l.s4 1983009808
        %v3045 = vunpack.c.0.s8 %v3044
        %v3046 = vlaneseq
        %v3047 = vshrl.u32 %v3046, 7
        %v3048 = vsub.s32 %v3045, %v3047
        %v3049 = vrot.slane %v3042, %v3048
        %v3050 = vcombine.low %v2947, %v2971
        %v3052 = vunpack.c.l.s4 1983009808
        %v3053 = vunpack.c.0.s8 %v3052
        %v3054 = vlaneseq
        %v3055 = vshrl.u32 %v3054, 7
        %v3056 = vsub.s32 %v3053, %v3055
        %v3057 = vrot.slane %v3050, %v3056
        %v3058 = vcombine.low %v2983, %v3007
        %v3060 = vunpack.c.l.s4 1983009808
        %v3061 = vunpack.c.0.s8 %v3060
        %v3062 = vlaneseq
        %v3063 = vshrl.u32 %v3062, 7
        %v3064 = vsub.s32 %v3061, %v3063
        %v3065 = vrot.slane %v3058, %v3064
        %v3066 = vcombine.low %v2995, %v3019
        %v3068 = vunpack.c.l.s4 1983009808
        %v3069 = vunpack.c.0.s8 %v3068
        %v3070 = vlaneseq
        %v3071 = vshrl.u32 %v3070, 7
        %v3072 = vsub.s32 %v3069, %v3071
        %v3073 = vrot.slane %v3066, %v3072
        %v3074 = vcombine.low %v3049, %v3057
        %v3076 = vunpack.c.l.s4 1934713408
        %v3077 = vunpack.c.0.s8 %v3076
        %v3078 = vlaneseq
        %v3079 = vshrl.u32 %v3078, 7
        %v3080 = vsub.s32 %v3077, %v3079
        %v3081 = vrot.slane %v3074, %v3080
        %v3082 = vcombine.low %v3065, %v3073
        %v3084 = vunpack.c.l.s4 1934713408
        %v3085 = vunpack.c.0.s8 %v3084
        %v3086 = vlaneseq
        %v3087 = vshrl.u32 %v3086, 7
        %v3088 = vsub.s32 %v3085, %v3087
        %v3089 = vrot.slane %v3082, %v3088
        %v3090 = vcombine.low %v3081, %v3089
        %v3091 = vcombine.high %v3081, %v3089
        %v3092 = vcombine.low %v2941, %v2965
        %v3094 = vunpack.c.l.s4 1983009808
        %v3095 = vunpack.c.0.s8 %v3094
        %v3096 = vlaneseq
        %v3097 = vshrl.u32 %v3096, 7
        %v3098 = vsub.s32 %v3095, %v3097
        %v3099 = vrot.slane %v3092, %v3098
        %v3100 = vcombine.low %v2953, %v2977
        %v3102 = vunpack.c.l.s4 1983009808
        %v3103 = vunpack.c.0.s8 %v3102
        %v3104 = vlaneseq
        %v3105 = vshrl.u32 %v3104, 7
        %v3106 = vsub.s32 %v3103, %v3105
        %v3107 = vrot.slane %v3100, %v3106
        %v3108 = vcombine.low %v2989, %v3013
        %v3110 = vunpack.c.l.s4 1983009808
        %v3111 = vunpack.c.0.s8 %v3110
        %v3112 = vlaneseq
        %v3113 = vshrl.u32 %v3112, 7
        %v3114 = vsub.s32 %v3111, %v3113
        %v3115 = vrot.slane %v3108, %v3114
        %v3116 = vcombine.low %v3001, %v3025
        %v3118 = vunpack.c.l.s4 1983009808
        %v3119 = vunpack.c.0.s8 %v3118
        %v3120 = vlaneseq
        %v3121 = vshrl.u32 %v3120, 7
        %v3122 = vsub.s32 %v3119, %v3121
        %v3123 = vrot.slane %v3116, %v3122
        %v3124 = vcombine.low %v3099, %v3107
        %v3126 = vunpack.c.l.s4 1934713408
        %v3127 = vunpack.c.0.s8 %v3126
        %v3128 = vlaneseq
        %v3129 = vshrl.u32 %v3128, 7
        %v3130 = vsub.s32 %v3127, %v3129
        %v3131 = vrot.slane %v3124, %v3130
        %v3132 = vcombine.low %v3115, %v3123
        %v3134 = vunpack.c.l.s4 1934713408
        %v3135 = vunpack.c.0.s8 %v3134
        %v3136 = vlaneseq
        %v3137 = vshrl.u32 %v3136, 7
        %v3138 = vsub.s32 %v3135, %v3137
        %v3139 = vrot.slane %v3132, %v3138
        %v3140 = vcombine.low %v3131, %v3139
        %v3141 = vcombine.high %v3131, %v3139
        %v3144 = vpack.i.b16 %v3140, %v3090
        %v3145 = vshrl.u32 %v3090, 16
        %v3146 = vshrl.u32 %v3140, 16
        %v3147 = vpack.i.b16 %v3146, %v3145
        %v3150 = vpack.i.b16 %v3141, %v3091
        %v3151 = vshrl.u32 %v3091, 16
        %v3152 = vshrl.u32 %v3141, 16
        %v3153 = vpack.i.b16 %v3152, %v3151
        %3154 = vrot.lane.b32.xlu0 %v3147, 4
        %v3155 = vpop.permute.xlu0 %3154
        %3156 = vrot.lane.b32.xlu0 %v3150, 8
        %v3157 = vpop.permute.xlu0 %3156
        %3158 = vrot.lane.b32.xlu0 %v3153, 12
        %v3159 = vpop.permute.xlu0 %3158
        %v3162 = vsel %vm967, %v3144, %v3155
        %v3164 = vsel %vm971, %v3162, %v3157
        %v3166 = vsel %vm974, %v3164, %v3159
        %3168 = vrot.lane.b32.xlu0 %v2935, 127
        %v3169 = vpop.permute.xlu0 %3168
        %3170 = vrot.lane.b32.xlu0 %v2941, 127
        %v3171 = vpop.permute.xlu0 %3170
        %3172 = vrot.lane.b32.xlu0 %v2947, 127
        %v3173 = vpop.permute.xlu0 %3172
        %3174 = vrot.lane.b32.xlu0 %v2953, 127
        %v3175 = vpop.permute.xlu0 %3174
        %3176 = vrot.lane.b32.xlu0 %v2959, 127
        %v3177 = vpop.permute.xlu0 %3176
        %3178 = vrot.lane.b32.xlu0 %v2965, 127
        %v3179 = vpop.permute.xlu0 %3178
        %3180 = vrot.lane.b32.xlu0 %v2971, 127
        %v3181 = vpop.permute.xlu0 %3180
        %3182 = vrot.lane.b32.xlu0 %v2977, 127
        %v3183 = vpop.permute.xlu0 %3182
        %3184 = vrot.lane.b32.xlu0 %v2983, 127
        %v3185 = vpop.permute.xlu0 %3184
        %3186 = vrot.lane.b32.xlu0 %v2989, 127
        %v3187 = vpop.permute.xlu0 %3186
        %3188 = vrot.lane.b32.xlu0 %v2995, 127
        %v3189 = vpop.permute.xlu0 %3188
        %3190 = vrot.lane.b32.xlu0 %v3001, 127
        %v3191 = vpop.permute.xlu0 %3190
        %3192 = vrot.lane.b32.xlu0 %v3007, 127
        %v3193 = vpop.permute.xlu0 %3192
        %3194 = vrot.lane.b32.xlu0 %v3013, 127
        %v3195 = vpop.permute.xlu0 %3194
        %3196 = vrot.lane.b32.xlu0 %v3019, 127
        %v3197 = vpop.permute.xlu0 %3196
        %3198 = vrot.lane.b32.xlu0 %v3025, 127
        %v3199 = vpop.permute.xlu0 %3198
        %v3216 = vcombine.low %v3169, %v3177
        %v3218 = vunpack.c.l.s4 1983009808
        %v3219 = vunpack.c.0.s8 %v3218
        %v3220 = vlaneseq
        %v3221 = vshrl.u32 %v3220, 7
        %v3222 = vsub.s32 %v3219, %v3221
        %v3223 = vrot.slane %v3216, %v3222
        %v3224 = vcombine.low %v3173, %v3181
        %v3226 = vunpack.c.l.s4 1983009808
        %v3227 = vunpack.c.0.s8 %v3226
        %v3228 = vlaneseq
        %v3229 = vshrl.u32 %v3228, 7
        %v3230 = vsub.s32 %v3227, %v3229
        %v3231 = vrot.slane %v3224, %v3230
        %v3232 = vcombine.low %v3185, %v3193
        %v3234 = vunpack.c.l.s4 1983009808
        %v3235 = vunpack.c.0.s8 %v3234
        %v3236 = vlaneseq
        %v3237 = vshrl.u32 %v3236, 7
        %v3238 = vsub.s32 %v3235, %v3237
        %v3239 = vrot.slane %v3232, %v3238
        %v3240 = vcombine.low %v3189, %v3197
        %v3242 = vunpack.c.l.s4 1983009808
        %v3243 = vunpack.c.0.s8 %v3242
        %v3244 = vlaneseq
        %v3245 = vshrl.u32 %v3244, 7
        %v3246 = vsub.s32 %v3243, %v3245
        %v3247 = vrot.slane %v3240, %v3246
        %v3248 = vcombine.low %v3223, %v3231
        %v3250 = vunpack.c.l.s4 1934713408
        %v3251 = vunpack.c.0.s8 %v3250
        %v3252 = vlaneseq
        %v3253 = vshrl.u32 %v3252, 7
        %v3254 = vsub.s32 %v3251, %v3253
        %v3255 = vrot.slane %v3248, %v3254
        %v3256 = vcombine.low %v3239, %v3247
        %v3258 = vunpack.c.l.s4 1934713408
        %v3259 = vunpack.c.0.s8 %v3258
        %v3260 = vlaneseq
        %v3261 = vshrl.u32 %v3260, 7
        %v3262 = vsub.s32 %v3259, %v3261
        %v3263 = vrot.slane %v3256, %v3262
        %v3264 = vcombine.low %v3255, %v3263
        %v3265 = vcombine.high %v3255, %v3263
        %v3266 = vcombine.low %v3171, %v3179
        %v3268 = vunpack.c.l.s4 1983009808
        %v3269 = vunpack.c.0.s8 %v3268
        %v3270 = vlaneseq
        %v3271 = vshrl.u32 %v3270, 7
        %v3272 = vsub.s32 %v3269, %v3271
        %v3273 = vrot.slane %v3266, %v3272
        %v3274 = vcombine.low %v3175, %v3183
        %v3276 = vunpack.c.l.s4 1983009808
        %v3277 = vunpack.c.0.s8 %v3276
        %v3278 = vlaneseq
        %v3279 = vshrl.u32 %v3278, 7
        %v3280 = vsub.s32 %v3277, %v3279
        %v3281 = vrot.slane %v3274, %v3280
        %v3282 = vcombine.low %v3187, %v3195
        %v3284 = vunpack.c.l.s4 1983009808
        %v3285 = vunpack.c.0.s8 %v3284
        %v3286 = vlaneseq
        %v3287 = vshrl.u32 %v3286, 7
        %v3288 = vsub.s32 %v3285, %v3287
        %v3289 = vrot.slane %v3282, %v3288
        %v3290 = vcombine.low %v3191, %v3199
        %v3292 = vunpack.c.l.s4 1983009808
        %v3293 = vunpack.c.0.s8 %v3292
        %v3294 = vlaneseq
        %v3295 = vshrl.u32 %v3294, 7
        %v3296 = vsub.s32 %v3293, %v3295
        %v3297 = vrot.slane %v3290, %v3296
        %v3298 = vcombine.low %v3273, %v3281
        %v3300 = vunpack.c.l.s4 1934713408
        %v3301 = vunpack.c.0.s8 %v3300
        %v3302 = vlaneseq
        %v3303 = vshrl.u32 %v3302, 7
        %v3304 = vsub.s32 %v3301, %v3303
        %v3305 = vrot.slane %v3298, %v3304
        %v3306 = vcombine.low %v3289, %v3297
        %v3308 = vunpack.c.l.s4 1934713408
        %v3309 = vunpack.c.0.s8 %v3308
        %v3310 = vlaneseq
        %v3311 = vshrl.u32 %v3310, 7
        %v3312 = vsub.s32 %v3309, %v3311
        %v3313 = vrot.slane %v3306, %v3312
        %v3314 = vcombine.low %v3305, %v3313
        %v3315 = vcombine.high %v3305, %v3313
        %v3318 = vpack.i.b16 %v3314, %v3264
        %v3319 = vshrl.u32 %v3264, 16
        %v3320 = vshrl.u32 %v3314, 16
        %v3321 = vpack.i.b16 %v3320, %v3319
        %v3324 = vpack.i.b16 %v3315, %v3265
        %v3325 = vshrl.u32 %v3265, 16
        %v3326 = vshrl.u32 %v3315, 16
        %v3327 = vpack.i.b16 %v3326, %v3325
        %3328 = vrot.lane.b32.xlu0 %v3321, 4
        %v3329 = vpop.permute.xlu0 %3328
        %3330 = vrot.lane.b32.xlu0 %v3324, 8
        %v3331 = vpop.permute.xlu0 %3330
        %3332 = vrot.lane.b32.xlu0 %v3327, 12
        %v3333 = vpop.permute.xlu0 %3332
        %v3336 = vsel %vm967, %v3318, %v3329
        %v3338 = vsel %vm971, %v3336, %v3331
        %v3340 = vsel %vm974, %v3338, %v3333
        %3342 = vrot.lane.b32.xlu0 %v2935, 126
        %v3343 = vpop.permute.xlu0 %3342
        %3344 = vrot.lane.b32.xlu0 %v2941, 126
        %v3345 = vpop.permute.xlu0 %3344
        %3346 = vrot.lane.b32.xlu0 %v2947, 126
        %v3347 = vpop.permute.xlu0 %3346
        %3348 = vrot.lane.b32.xlu0 %v2953, 126
        %v3349 = vpop.permute.xlu0 %3348
        %3350 = vrot.lane.b32.xlu0 %v2959, 126
        %v3351 = vpop.permute.xlu0 %3350
        %3352 = vrot.lane.b32.xlu0 %v2965, 126
        %v3353 = vpop.permute.xlu0 %3352
        %3354 = vrot.lane.b32.xlu0 %v2971, 126
        %v3355 = vpop.permute.xlu0 %3354
        %3356 = vrot.lane.b32.xlu0 %v2977, 126
        %v3357 = vpop.permute.xlu0 %3356
        %3358 = vrot.lane.b32.xlu0 %v2983, 126
        %v3359 = vpop.permute.xlu0 %3358
        %3360 = vrot.lane.b32.xlu0 %v2989, 126
        %v3361 = vpop.permute.xlu0 %3360
        %3362 = vrot.lane.b32.xlu0 %v2995, 126
        %v3363 = vpop.permute.xlu0 %3362
        %3364 = vrot.lane.b32.xlu0 %v3001, 126
        %v3365 = vpop.permute.xlu0 %3364
        %3366 = vrot.lane.b32.xlu0 %v3007, 126
        %v3367 = vpop.permute.xlu0 %3366
        %3368 = vrot.lane.b32.xlu0 %v3013, 126
        %v3369 = vpop.permute.xlu0 %3368
        %3370 = vrot.lane.b32.xlu0 %v3019, 126
        %v3371 = vpop.permute.xlu0 %3370
        %3372 = vrot.lane.b32.xlu0 %v3025, 126
        %v3373 = vpop.permute.xlu0 %3372
        %v3390 = vcombine.low %v3343, %v3351
        %v3392 = vunpack.c.l.s4 1983009808
        %v3393 = vunpack.c.0.s8 %v3392
        %v3394 = vlaneseq
        %v3395 = vshrl.u32 %v3394, 7
        %v3396 = vsub.s32 %v3393, %v3395
        %v3397 = vrot.slane %v3390, %v3396
        %v3398 = vcombine.low %v3347, %v3355
        %v3400 = vunpack.c.l.s4 1983009808
        %v3401 = vunpack.c.0.s8 %v3400
        %v3402 = vlaneseq
        %v3403 = vshrl.u32 %v3402, 7
        %v3404 = vsub.s32 %v3401, %v3403
        %v3405 = vrot.slane %v3398, %v3404
        %v3406 = vcombine.low %v3359, %v3367
        %v3408 = vunpack.c.l.s4 1983009808
        %v3409 = vunpack.c.0.s8 %v3408
        %v3410 = vlaneseq
        %v3411 = vshrl.u32 %v3410, 7
        %v3412 = vsub.s32 %v3409, %v3411
        %v3413 = vrot.slane %v3406, %v3412
        %v3414 = vcombine.low %v3363, %v3371
        %v3416 = vunpack.c.l.s4 1983009808
        %v3417 = vunpack.c.0.s8 %v3416
        %v3418 = vlaneseq
        %v3419 = vshrl.u32 %v3418, 7
        %v3420 = vsub.s32 %v3417, %v3419
        %v3421 = vrot.slane %v3414, %v3420
        %v3422 = vcombine.low %v3397, %v3405
        %v3424 = vunpack.c.l.s4 1934713408
        %v3425 = vunpack.c.0.s8 %v3424
        %v3426 = vlaneseq
        %v3427 = vshrl.u32 %v3426, 7
        %v3428 = vsub.s32 %v3425, %v3427
        %v3429 = vrot.slane %v3422, %v3428
        %v3430 = vcombine.low %v3413, %v3421
        %v3432 = vunpack.c.l.s4 1934713408
        %v3433 = vunpack.c.0.s8 %v3432
        %v3434 = vlaneseq
        %v3435 = vshrl.u32 %v3434, 7
        %v3436 = vsub.s32 %v3433, %v3435
        %v3437 = vrot.slane %v3430, %v3436
        %v3438 = vcombine.low %v3429, %v3437
        %v3439 = vcombine.high %v3429, %v3437
        %v3440 = vcombine.low %v3345, %v3353
        %v3442 = vunpack.c.l.s4 1983009808
        %v3443 = vunpack.c.0.s8 %v3442
        %v3444 = vlaneseq
        %v3445 = vshrl.u32 %v3444, 7
        %v3446 = vsub.s32 %v3443, %v3445
        %v3447 = vrot.slane %v3440, %v3446
        %v3448 = vcombine.low %v3349, %v3357
        %v3450 = vunpack.c.l.s4 1983009808
        %v3451 = vunpack.c.0.s8 %v3450
        %v3452 = vlaneseq
        %v3453 = vshrl.u32 %v3452, 7
        %v3454 = vsub.s32 %v3451, %v3453
        %v3455 = vrot.slane %v3448, %v3454
        %v3456 = vcombine.low %v3361, %v3369
        %v3458 = vunpack.c.l.s4 1983009808
        %v3459 = vunpack.c.0.s8 %v3458
        %v3460 = vlaneseq
        %v3461 = vshrl.u32 %v3460, 7
        %v3462 = vsub.s32 %v3459, %v3461
        %v3463 = vrot.slane %v3456, %v3462
        %v3464 = vcombine.low %v3365, %v3373
        %v3466 = vunpack.c.l.s4 1983009808
        %v3467 = vunpack.c.0.s8 %v3466
        %v3468 = vlaneseq
        %v3469 = vshrl.u32 %v3468, 7
        %v3470 = vsub.s32 %v3467, %v3469
        %v3471 = vrot.slane %v3464, %v3470
        %v3472 = vcombine.low %v3447, %v3455
        %v3474 = vunpack.c.l.s4 1934713408
        %v3475 = vunpack.c.0.s8 %v3474
        %v3476 = vlaneseq
        %v3477 = vshrl.u32 %v3476, 7
        %v3478 = vsub.s32 %v3475, %v3477
        %v3479 = vrot.slane %v3472, %v3478
        %v3480 = vcombine.low %v3463, %v3471
        %v3482 = vunpack.c.l.s4 1934713408
        %v3483 = vunpack.c.0.s8 %v3482
        %v3484 = vlaneseq
        %v3485 = vshrl.u32 %v3484, 7
        %v3486 = vsub.s32 %v3483, %v3485
        %v3487 = vrot.slane %v3480, %v3486
        %v3488 = vcombine.low %v3479, %v3487
        %v3489 = vcombine.high %v3479, %v3487
        %v3492 = vpack.i.b16 %v3488, %v3438
        %v3493 = vshrl.u32 %v3438, 16
        %v3494 = vshrl.u32 %v3488, 16
        %v3495 = vpack.i.b16 %v3494, %v3493
        %v3498 = vpack.i.b16 %v3489, %v3439
        %v3499 = vshrl.u32 %v3439, 16
        %v3500 = vshrl.u32 %v3489, 16
        %v3501 = vpack.i.b16 %v3500, %v3499
        %3502 = vrot.lane.b32.xlu0 %v3495, 4
        %v3503 = vpop.permute.xlu0 %3502
        %3504 = vrot.lane.b32.xlu0 %v3498, 8
        %v3505 = vpop.permute.xlu0 %3504
        %3506 = vrot.lane.b32.xlu0 %v3501, 12
        %v3507 = vpop.permute.xlu0 %3506
        %v3510 = vsel %vm967, %v3492, %v3503
        %v3512 = vsel %vm971, %v3510, %v3505
        %v3514 = vsel %vm974, %v3512, %v3507
        %v3516 = vrot.slane %v2408, 1
        %v3517 = vrot.slane %v2410, 1
        %v3518 = vrot.slane %v2412, 1
        %v3519 = vrot.slane %v2414, 1
        %v3520 = vrot.slane %v2416, 1
        %v3521 = vrot.slane %v2418, 1
        %v3522 = vrot.slane %v2420, 1
        %v3523 = vrot.slane %v2422, 1
        %v3524 = vrot.slane %v2424, 1
        %v3525 = vrot.slane %v2426, 1
        %v3526 = vrot.slane %v2428, 1
        %v3527 = vrot.slane %v2430, 1
        %v3528 = vrot.slane %v2432, 1
        %v3529 = vrot.slane %v2434, 1
        %v3530 = vrot.slane %v2436, 1
        %v3531 = vrot.slane %v2438, 1
        %v3548 = vcombine.low %v3516, %v3520
        %v3550 = vunpack.c.l.s4 1983009808
        %v3551 = vunpack.c.0.s8 %v3550
        %v3552 = vlaneseq
        %v3553 = vshrl.u32 %v3552, 7
        %v3554 = vsub.s32 %v3551, %v3553
        %v3555 = vrot.slane %v3548, %v3554
        %v3556 = vcombine.low %v3518, %v3522
        %v3558 = vunpack.c.l.s4 1983009808
        %v3559 = vunpack.c.0.s8 %v3558
        %v3560 = vlaneseq
        %v3561 = vshrl.u32 %v3560, 7
        %v3562 = vsub.s32 %v3559, %v3561
        %v3563 = vrot.slane %v3556, %v3562
        %v3564 = vcombine.low %v3524, %v3528
        %v3566 = vunpack.c.l.s4 1983009808
        %v3567 = vunpack.c.0.s8 %v3566
        %v3568 = vlaneseq
        %v3569 = vshrl.u32 %v3568, 7
        %v3570 = vsub.s32 %v3567, %v3569
        %v3571 = vrot.slane %v3564, %v3570
        %v3572 = vcombine.low %v3526, %v3530
        %v3574 = vunpack.c.l.s4 1983009808
        %v3575 = vunpack.c.0.s8 %v3574
        %v3576 = vlaneseq
        %v3577 = vshrl.u32 %v3576, 7
        %v3578 = vsub.s32 %v3575, %v3577
        %v3579 = vrot.slane %v3572, %v3578
        %v3580 = vcombine.low %v3555, %v3563
        %v3582 = vunpack.c.l.s4 1934713408
        %v3583 = vunpack.c.0.s8 %v3582
        %v3584 = vlaneseq
        %v3585 = vshrl.u32 %v3584, 7
        %v3586 = vsub.s32 %v3583, %v3585
        %v3587 = vrot.slane %v3580, %v3586
        %v3588 = vcombine.low %v3571, %v3579
        %v3590 = vunpack.c.l.s4 1934713408
        %v3591 = vunpack.c.0.s8 %v3590
        %v3592 = vlaneseq
        %v3593 = vshrl.u32 %v3592, 7
        %v3594 = vsub.s32 %v3591, %v3593
        %v3595 = vrot.slane %v3588, %v3594
        %v3596 = vcombine.low %v3587, %v3595
        %v3597 = vcombine.high %v3587, %v3595
        %v3598 = vcombine.low %v3517, %v3521
        %v3600 = vunpack.c.l.s4 1983009808
        %v3601 = vunpack.c.0.s8 %v3600
        %v3602 = vlaneseq
        %v3603 = vshrl.u32 %v3602, 7
        %v3604 = vsub.s32 %v3601, %v3603
        %v3605 = vrot.slane %v3598, %v3604
        %v3606 = vcombine.low %v3519, %v3523
        %v3608 = vunpack.c.l.s4 1983009808
        %v3609 = vunpack.c.0.s8 %v3608
        %v3610 = vlaneseq
        %v3611 = vshrl.u32 %v3610, 7
        %v3612 = vsub.s32 %v3609, %v3611
        %v3613 = vrot.slane %v3606, %v3612
        %v3614 = vcombine.low %v3525, %v3529
        %v3616 = vunpack.c.l.s4 1983009808
        %v3617 = vunpack.c.0.s8 %v3616
        %v3618 = vlaneseq
        %v3619 = vshrl.u32 %v3618, 7
        %v3620 = vsub.s32 %v3617, %v3619
        %v3621 = vrot.slane %v3614, %v3620
        %v3622 = vcombine.low %v3527, %v3531
        %v3624 = vunpack.c.l.s4 1983009808
        %v3625 = vunpack.c.0.s8 %v3624
        %v3626 = vlaneseq
        %v3627 = vshrl.u32 %v3626, 7
        %v3628 = vsub.s32 %v3625, %v3627
        %v3629 = vrot.slane %v3622, %v3628
        %v3630 = vcombine.low %v3605, %v3613
        %v3632 = vunpack.c.l.s4 1934713408
        %v3633 = vunpack.c.0.s8 %v3632
        %v3634 = vlaneseq
        %v3635 = vshrl.u32 %v3634, 7
        %v3636 = vsub.s32 %v3633, %v3635
        %v3637 = vrot.slane %v3630, %v3636
        %v3638 = vcombine.low %v3621, %v3629
        %v3640 = vunpack.c.l.s4 1934713408
        %v3641 = vunpack.c.0.s8 %v3640
        %v3642 = vlaneseq
        %v3643 = vshrl.u32 %v3642, 7
        %v3644 = vsub.s32 %v3641, %v3643
        %v3645 = vrot.slane %v3638, %v3644
        %v3646 = vcombine.low %v3637, %v3645
        %v3647 = vcombine.high %v3637, %v3645
        %v3650 = vpack.i.b16 %v3646, %v3596
        %v3651 = vshrl.u32 %v3596, 16
        %v3652 = vshrl.u32 %v3646, 16
        %v3653 = vpack.i.b16 %v3652, %v3651
        %v3656 = vpack.i.b16 %v3647, %v3597
        %v3657 = vshrl.u32 %v3597, 16
        %v3658 = vshrl.u32 %v3647, 16
        %v3659 = vpack.i.b16 %v3658, %v3657
        %3660 = vrot.lane.b32.xlu0 %v3653, 4
        %v3661 = vpop.permute.xlu0 %3660
        %3662 = vrot.lane.b32.xlu0 %v3656, 8
        %v3663 = vpop.permute.xlu0 %3662
        %3664 = vrot.lane.b32.xlu0 %v3659, 12
        %v3665 = vpop.permute.xlu0 %3664
        %v3668 = vsel %vm967, %v3650, %v3661
        %v3670 = vsel %vm971, %v3668, %v3663
        %v3672 = vsel %vm974, %v3670, %v3665
        %3674 = vrot.lane.b32.xlu0 %v3516, 127
        %v3675 = vpop.permute.xlu0 %3674
        %3676 = vrot.lane.b32.xlu0 %v3517, 127
        %v3677 = vpop.permute.xlu0 %3676
        %3678 = vrot.lane.b32.xlu0 %v3518, 127
        %v3679 = vpop.permute.xlu0 %3678
        %3680 = vrot.lane.b32.xlu0 %v3519, 127
        %v3681 = vpop.permute.xlu0 %3680
        %3682 = vrot.lane.b32.xlu0 %v3520, 127
        %v3683 = vpop.permute.xlu0 %3682
        %3684 = vrot.lane.b32.xlu0 %v3521, 127
        %v3685 = vpop.permute.xlu0 %3684
        %3686 = vrot.lane.b32.xlu0 %v3522, 127
        %v3687 = vpop.permute.xlu0 %3686
        %3688 = vrot.lane.b32.xlu0 %v3523, 127
        %v3689 = vpop.permute.xlu0 %3688
        %3690 = vrot.lane.b32.xlu0 %v3524, 127
        %v3691 = vpop.permute.xlu0 %3690
        %3692 = vrot.lane.b32.xlu0 %v3525, 127
        %v3693 = vpop.permute.xlu0 %3692
        %3694 = vrot.lane.b32.xlu0 %v3526, 127
        %v3695 = vpop.permute.xlu0 %3694
        %3696 = vrot.lane.b32.xlu0 %v3527, 127
        %v3697 = vpop.permute.xlu0 %3696
        %3698 = vrot.lane.b32.xlu0 %v3528, 127
        %v3699 = vpop.permute.xlu0 %3698
        %3700 = vrot.lane.b32.xlu0 %v3529, 127
        %v3701 = vpop.permute.xlu0 %3700
        %3702 = vrot.lane.b32.xlu0 %v3530, 127
        %v3703 = vpop.permute.xlu0 %3702
        %3704 = vrot.lane.b32.xlu0 %v3531, 127
        %v3705 = vpop.permute.xlu0 %3704
        %v3722 = vcombine.low %v3675, %v3683
        %v3724 = vunpack.c.l.s4 1983009808
        %v3725 = vunpack.c.0.s8 %v3724
        %v3726 = vlaneseq
        %v3727 = vshrl.u32 %v3726, 7
        %v3728 = vsub.s32 %v3725, %v3727
        %v3729 = vrot.slane %v3722, %v3728
        %v3730 = vcombine.low %v3679, %v3687
        %v3732 = vunpack.c.l.s4 1983009808
        %v3733 = vunpack.c.0.s8 %v3732
        %v3734 = vlaneseq
        %v3735 = vshrl.u32 %v3734, 7
        %v3736 = vsub.s32 %v3733, %v3735
        %v3737 = vrot.slane %v3730, %v3736
        %v3738 = vcombine.low %v3691, %v3699
        %v3740 = vunpack.c.l.s4 1983009808
        %v3741 = vunpack.c.0.s8 %v3740
        %v3742 = vlaneseq
        %v3743 = vshrl.u32 %v3742, 7
        %v3744 = vsub.s32 %v3741, %v3743
        %v3745 = vrot.slane %v3738, %v3744
        %v3746 = vcombine.low %v3695, %v3703
        %v3748 = vunpack.c.l.s4 1983009808
        %v3749 = vunpack.c.0.s8 %v3748
        %v3750 = vlaneseq
        %v3751 = vshrl.u32 %v3750, 7
        %v3752 = vsub.s32 %v3749, %v3751
        %v3753 = vrot.slane %v3746, %v3752
        %v3754 = vcombine.low %v3729, %v3737
        %v3756 = vunpack.c.l.s4 1934713408
        %v3757 = vunpack.c.0.s8 %v3756
        %v3758 = vlaneseq
        %v3759 = vshrl.u32 %v3758, 7
        %v3760 = vsub.s32 %v3757, %v3759
        %v3761 = vrot.slane %v3754, %v3760
        %v3762 = vcombine.low %v3745, %v3753
        %v3764 = vunpack.c.l.s4 1934713408
        %v3765 = vunpack.c.0.s8 %v3764
        %v3766 = vlaneseq
        %v3767 = vshrl.u32 %v3766, 7
        %v3768 = vsub.s32 %v3765, %v3767
        %v3769 = vrot.slane %v3762, %v3768
        %v3770 = vcombine.low %v3761, %v3769
        %v3771 = vcombine.high %v3761, %v3769
        %v3772 = vcombine.low %v3677, %v3685
        %v3774 = vunpack.c.l.s4 1983009808
        %v3775 = vunpack.c.0.s8 %v3774
        %v3776 = vlaneseq
        %v3777 = vshrl.u32 %v3776, 7
        %v3778 = vsub.s32 %v3775, %v3777
        %v3779 = vrot.slane %v3772, %v3778
        %v3780 = vcombine.low %v3681, %v3689
        %v3782 = vunpack.c.l.s4 1983009808
        %v3783 = vunpack.c.0.s8 %v3782
        %v3784 = vlaneseq
        %v3785 = vshrl.u32 %v3784, 7
        %v3786 = vsub.s32 %v3783, %v3785
        %v3787 = vrot.slane %v3780, %v3786
        %v3788 = vcombine.low %v3693, %v3701
        %v3790 = vunpack.c.l.s4 1983009808
        %v3791 = vunpack.c.0.s8 %v3790
        %v3792 = vlaneseq
        %v3793 = vshrl.u32 %v3792, 7
        %v3794 = vsub.s32 %v3791, %v3793
        %v3795 = vrot.slane %v3788, %v3794
        %v3796 = vcombine.low %v3697, %v3705
        %v3798 = vunpack.c.l.s4 1983009808
        %v3799 = vunpack.c.0.s8 %v3798
        %v3800 = vlaneseq
        %v3801 = vshrl.u32 %v3800, 7
        %v3802 = vsub.s32 %v3799, %v3801
        %v3803 = vrot.slane %v3796, %v3802
        %v3804 = vcombine.low %v3779, %v3787
        %v3806 = vunpack.c.l.s4 1934713408
        %v3807 = vunpack.c.0.s8 %v3806
        %v3808 = vlaneseq
        %v3809 = vshrl.u32 %v3808, 7
        %v3810 = vsub.s32 %v3807, %v3809
        %v3811 = vrot.slane %v3804, %v3810
        %v3812 = vcombine.low %v3795, %v3803
        %v3814 = vunpack.c.l.s4 1934713408
        %v3815 = vunpack.c.0.s8 %v3814
        %v3816 = vlaneseq
        %v3817 = vshrl.u32 %v3816, 7
        %v3818 = vsub.s32 %v3815, %v3817
        %v3819 = vrot.slane %v3812, %v3818
        %v3820 = vcombine.low %v3811, %v3819
        %v3821 = vcombine.high %v3811, %v3819
        %v3824 = vpack.i.b16 %v3820, %v3770
        %v3825 = vshrl.u32 %v3770, 16
        %v3826 = vshrl.u32 %v3820, 16
        %v3827 = vpack.i.b16 %v3826, %v3825
        %v3830 = vpack.i.b16 %v3821, %v3771
        %v3831 = vshrl.u32 %v3771, 16
        %v3832 = vshrl.u32 %v3821, 16
        %v3833 = vpack.i.b16 %v3832, %v3831
        %3834 = vrot.lane.b32.xlu0 %v3827, 4
        %v3835 = vpop.permute.xlu0 %3834
        %3836 = vrot.lane.b32.xlu0 %v3830, 8
        %v3837 = vpop.permute.xlu0 %3836
        %3838 = vrot.lane.b32.xlu0 %v3833, 12
        %v3839 = vpop.permute.xlu0 %3838
        %v3842 = vsel %vm967, %v3824, %v3835
        %v3844 = vsel %vm971, %v3842, %v3837
        %v3846 = vsel %vm974, %v3844, %v3839
        %3848 = vrot.lane.b32.xlu0 %v3516, 126
        %v3849 = vpop.permute.xlu0 %3848
        %3850 = vrot.lane.b32.xlu0 %v3517, 126
        %v3851 = vpop.permute.xlu0 %3850
        %3852 = vrot.lane.b32.xlu0 %v3518, 126
        %v3853 = vpop.permute.xlu0 %3852
        %3854 = vrot.lane.b32.xlu0 %v3519, 126
        %v3855 = vpop.permute.xlu0 %3854
        %3856 = vrot.lane.b32.xlu0 %v3520, 126
        %v3857 = vpop.permute.xlu0 %3856
        %3858 = vrot.lane.b32.xlu0 %v3521, 126
        %v3859 = vpop.permute.xlu0 %3858
        %3860 = vrot.lane.b32.xlu0 %v3522, 126
        %v3861 = vpop.permute.xlu0 %3860
        %3862 = vrot.lane.b32.xlu0 %v3523, 126
        %v3863 = vpop.permute.xlu0 %3862
        %3864 = vrot.lane.b32.xlu0 %v3524, 126
        %v3865 = vpop.permute.xlu0 %3864
        %3866 = vrot.lane.b32.xlu0 %v3525, 126
        %v3867 = vpop.permute.xlu0 %3866
        %3868 = vrot.lane.b32.xlu0 %v3526, 126
        %v3869 = vpop.permute.xlu0 %3868
        %3870 = vrot.lane.b32.xlu0 %v3527, 126
        %v3871 = vpop.permute.xlu0 %3870
        %3872 = vrot.lane.b32.xlu0 %v3528, 126
        %v3873 = vpop.permute.xlu0 %3872
        %3874 = vrot.lane.b32.xlu0 %v3529, 126
        %v3875 = vpop.permute.xlu0 %3874
        %3876 = vrot.lane.b32.xlu0 %v3530, 126
        %v3877 = vpop.permute.xlu0 %3876
        %3878 = vrot.lane.b32.xlu0 %v3531, 126
        %v3879 = vpop.permute.xlu0 %3878
        %v3896 = vcombine.low %v3849, %v3857
        %v3898 = vunpack.c.l.s4 1983009808
        %v3899 = vunpack.c.0.s8 %v3898
        %v3900 = vlaneseq
        %v3901 = vshrl.u32 %v3900, 7
        %v3902 = vsub.s32 %v3899, %v3901
        %v3903 = vrot.slane %v3896, %v3902
        %v3904 = vcombine.low %v3853, %v3861
        %v3906 = vunpack.c.l.s4 1983009808
        %v3907 = vunpack.c.0.s8 %v3906
        %v3908 = vlaneseq
        %v3909 = vshrl.u32 %v3908, 7
        %v3910 = vsub.s32 %v3907, %v3909
        %v3911 = vrot.slane %v3904, %v3910
        %v3912 = vcombine.low %v3865, %v3873
        %v3914 = vunpack.c.l.s4 1983009808
        %v3915 = vunpack.c.0.s8 %v3914
        %v3916 = vlaneseq
        %v3917 = vshrl.u32 %v3916, 7
        %v3918 = vsub.s32 %v3915, %v3917
        %v3919 = vrot.slane %v3912, %v3918
        %v3920 = vcombine.low %v3869, %v3877
        %v3922 = vunpack.c.l.s4 1983009808
        %v3923 = vunpack.c.0.s8 %v3922
        %v3924 = vlaneseq
        %v3925 = vshrl.u32 %v3924, 7
        %v3926 = vsub.s32 %v3923, %v3925
        %v3927 = vrot.slane %v3920, %v3926
        %v3928 = vcombine.low %v3903, %v3911
        %v3930 = vunpack.c.l.s4 1934713408
        %v3931 = vunpack.c.0.s8 %v3930
        %v3932 = vlaneseq
        %v3933 = vshrl.u32 %v3932, 7
        %v3934 = vsub.s32 %v3931, %v3933
        %v3935 = vrot.slane %v3928, %v3934
        %v3936 = vcombine.low %v3919, %v3927
        %v3938 = vunpack.c.l.s4 1934713408
        %v3939 = vunpack.c.0.s8 %v3938
        %v3940 = vlaneseq
        %v3941 = vshrl.u32 %v3940, 7
        %v3942 = vsub.s32 %v3939, %v3941
        %v3943 = vrot.slane %v3936, %v3942
        %v3944 = vcombine.low %v3935, %v3943
        %v3945 = vcombine.high %v3935, %v3943
        %v3946 = vcombine.low %v3851, %v3859
        %v3948 = vunpack.c.l.s4 1983009808
        %v3949 = vunpack.c.0.s8 %v3948
        %v3950 = vlaneseq
        %v3951 = vshrl.u32 %v3950, 7
        %v3952 = vsub.s32 %v3949, %v3951
        %v3953 = vrot.slane %v3946, %v3952
        %v3954 = vcombine.low %v3855, %v3863
        %v3956 = vunpack.c.l.s4 1983009808
        %v3957 = vunpack.c.0.s8 %v3956
        %v3958 = vlaneseq
        %v3959 = vshrl.u32 %v3958, 7
        %v3960 = vsub.s32 %v3957, %v3959
        %v3961 = vrot.slane %v3954, %v3960
        %v3962 = vcombine.low %v3867, %v3875
        %v3964 = vunpack.c.l.s4 1983009808
        %v3965 = vunpack.c.0.s8 %v3964
        %v3966 = vlaneseq
        %v3967 = vshrl.u32 %v3966, 7
        %v3968 = vsub.s32 %v3965, %v3967
        %v3969 = vrot.slane %v3962, %v3968
        %v3970 = vcombine.low %v3871, %v3879
        %v3972 = vunpack.c.l.s4 1983009808
        %v3973 = vunpack.c.0.s8 %v3972
        %v3974 = vlaneseq
        %v3975 = vshrl.u32 %v3974, 7
        %v3976 = vsub.s32 %v3973, %v3975
        %v3977 = vrot.slane %v3970, %v3976
        %v3978 = vcombine.low %v3953, %v3961
        %v3980 = vunpack.c.l.s4 1934713408
        %v3981 = vunpack.c.0.s8 %v3980
        %v3982 = vlaneseq
        %v3983 = vshrl.u32 %v3982, 7
        %v3984 = vsub.s32 %v3981, %v3983
        %v3985 = vrot.slane %v3978, %v3984
        %v3986 = vcombine.low %v3969, %v3977
        %v3988 = vunpack.c.l.s4 1934713408
        %v3989 = vunpack.c.0.s8 %v3988
        %v3990 = vlaneseq
        %v3991 = vshrl.u32 %v3990, 7
        %v3992 = vsub.s32 %v3989, %v3991
        %v3993 = vrot.slane %v3986, %v3992
        %v3994 = vcombine.low %v3985, %v3993
        %v3995 = vcombine.high %v3985, %v3993
        %v3998 = vpack.i.b16 %v3994, %v3944
        %v3999 = vshrl.u32 %v3944, 16
        %v4000 = vshrl.u32 %v3994, 16
        %v4001 = vpack.i.b16 %v4000, %v3999
        %v4004 = vpack.i.b16 %v3995, %v3945
        %v4005 = vshrl.u32 %v3945, 16
        %v4006 = vshrl.u32 %v3995, 16
        %v4007 = vpack.i.b16 %v4006, %v4005
        %4008 = vrot.lane.b32.xlu0 %v4001, 4
        %v4009 = vpop.permute.xlu0 %4008
        %4010 = vrot.lane.b32.xlu0 %v4004, 8
        %v4011 = vpop.permute.xlu0 %4010
        %4012 = vrot.lane.b32.xlu0 %v4007, 12
        %v4013 = vpop.permute.xlu0 %4012
        %v4016 = vsel %vm967, %v3998, %v4009
        %v4018 = vsel %vm971, %v4016, %v4011
        %v4020 = vsel %vm974, %v4018, %v4013
        %v4022 = vld [vmem:[%s5] sm:$0xff]
        %v4023 = vld [vmem:[%s6] sm:$0xff]
        %4025 = vset.pattern.permute.xlu0 0
        %4026 = vperm.xlu0 %4025, %v4023
        %v4027 = vpop.permute.xlu0 %4026
        %v4030 = vunpack.c.l.b16 %v4022
        %v4031 = vunpack.c.h.b16 %v4022
        %v4032 = vpack.c.b16 %v4030, %v4030
        %v4033 = vpack.c.b16 %v4031, %v4031
        %vm4035 = vcmask 130048
        %v4037 = vsel %vm4035, %v4033, 0
        %4039 = vmatprep.subr.bf16.mxu0 0
        %4040 = vmatpush1.bf16.msra.mxu0 %v2564
        %4041 = vmatprep.subr.bf16.mxu0 0
        %4042 = vmatpush1.bf16.msra.mxu0 %v2754
        %4043 = vmatprep.subr.bf16.mxu0 0
        %4044 = vmatpush1.bf16.msra.mxu0 %v2928
        %4045 = vmatprep.subr.bf16.mxu0 0
        %4046 = vmatpush1.bf16.msra.mxu0 %v3166
        %4047 = vmatprep.subr.bf16.mxu0 0
        %4048 = vmatpush1.bf16.msra.mxu0 %v3340
        %4049 = vmatprep.subr.bf16.mxu0 0
        %4050 = vmatpush1.bf16.msra.mxu0 %v3514
        %4051 = vmatprep.subr.bf16.mxu0 0
        %4052 = vmatpush1.bf16.msra.mxu0 %v3672
        %4053 = vmatprep.subr.bf16.mxu0 0
        %4054 = vmatpush1.bf16.msra.mxu0 %v3846
        %4055 = vmatprep.subr.bf16.mxu0 0
        %4056 = vmatpush1.bf16.msra.mxu0 %v4020
        %4057 = vmatprep.subr.bf16.mxu0 0
        %4058 = vmatpush1.bf16.msra.mxu0 0
        %4059 = vmatprep.subr.bf16.mxu0 0
        %4060 = vmatpush1.bf16.msra.mxu0 0
        %4061 = vmatprep.subr.bf16.mxu0 0
        %4062 = vmatpush1.bf16.msra.mxu0 0
        %4063 = vmatprep.subr.bf16.mxu0 0
        %4064 = vmatpush1.bf16.msra.mxu0 0
        %4065 = vmatprep.subr.bf16.mxu0 0
        %4066 = vmatpush1.bf16.msra.mxu0 0
        %4067 = vmatprep.subr.bf16.mxu0 0
        %4068 = vmatpush1.bf16.msra.mxu0 0
        %4069 = vmatprep.subr.bf16.mxu0 0
        %4070 = vmatpush1.bf16.msra.mxu0 0
        %4071 = vmatprep.mubr.bf16.mxu0 %v4037
        %4072 = vmatmul.mubr.bf16.gmra.mrb[0].mxu0 %v4032
        %v4073 = vpop.f32.mrb[0].mxu0
        %v4074 = vadd.f32 %v4027, %v4073
        %v4075 = vpop.f32.mrb[0].mxu0
        %v4076 = vpop.f32.mrb[0].mxu0
        %v4077 = vpop.f32.mrb[0].mxu0
        %4078 = vdwg.mxu0
        %v4079 = vpack.c.bf16 %v4074, %v4074
        %4081 = vrot.lane.b32.xlu0 %v4079, 124
        %v4082 = vpop.permute.xlu0 %4081
        %4083 = vrot.lane.b32.xlu0 %v4079, 120
        %v4084 = vpop.permute.xlu0 %4083
        %4085 = vrot.lane.b32.xlu0 %v4079, 116
        %v4086 = vpop.permute.xlu0 %4085
        %v4088 = vunpack.c.l.s4 1983009808
        %v4089 = vunpack.c.0.s8 %v4088
        %v4090 = vlaneseq
        %v4091 = vshrl.u32 %v4090, 7
        %v4092 = vsub.s32 %v4089, %v4091
        %v4093 = vrot.slane %v4079, %v4092
        %v4096 = vunpack.c.l.s4 1983009808
        %v4097 = vunpack.c.0.s8 %v4096
        %v4098 = vlaneseq
        %v4099 = vshrl.u32 %v4098, 7
        %v4100 = vsub.s32 %v4097, %v4099
        %v4101 = vrot.slane %v4084, %v4100
        %v4102 = vcombine.low %v4093, %v4101
        %v4103 = vcombine.high %v4093, %v4101
        %v4105 = vunpack.c.l.s4 1934713408
        %v4106 = vunpack.c.0.s8 %v4105
        %v4107 = vlaneseq
        %v4108 = vshrl.u32 %v4107, 7
        %v4109 = vsub.s32 %v4106, %v4108
        %v4110 = vrot.slane %v4102, %v4109
        %v4112 = vunpack.c.l.s4 1934713408
        %v4113 = vunpack.c.0.s8 %v4112
        %v4114 = vlaneseq
        %v4115 = vshrl.u32 %v4114, 7
        %v4116 = vsub.s32 %v4113, %v4115
        %v4117 = vrot.slane %v4103, %v4116
        %v4118 = vcombine.high %v4110, 0
        %v4119 = vcombine.high %v4117, 0
        %v4122 = vunpack.c.l.s4 1983009808
        %v4123 = vunpack.c.0.s8 %v4122
        %v4124 = vlaneseq
        %v4125 = vshrl.u32 %v4124, 7
        %v4126 = vsub.s32 %v4123, %v4125
        %v4127 = vrot.slane %v4082, %v4126
        %v4130 = vunpack.c.l.s4 1983009808
        %v4131 = vunpack.c.0.s8 %v4130
        %v4132 = vlaneseq
        %v4133 = vshrl.u32 %v4132, 7
        %v4134 = vsub.s32 %v4131, %v4133
        %v4135 = vrot.slane %v4086, %v4134
        %v4136 = vcombine.low %v4127, %v4135
        %v4137 = vcombine.high %v4127, %v4135
        %v4139 = vunpack.c.l.s4 1934713408
        %v4140 = vunpack.c.0.s8 %v4139
        %v4141 = vlaneseq
        %v4142 = vshrl.u32 %v4141, 7
        %v4143 = vsub.s32 %v4140, %v4142
        %v4144 = vrot.slane %v4136, %v4143
        %v4146 = vunpack.c.l.s4 1934713408
        %v4147 = vunpack.c.0.s8 %v4146
        %v4148 = vlaneseq
        %v4149 = vshrl.u32 %v4148, 7
        %v4150 = vsub.s32 %v4147, %v4149
        %v4151 = vrot.slane %v4137, %v4150
        %v4152 = vcombine.high %v4144, 0
        %v4153 = vcombine.high %v4151, 0
        %v4156 = vpack.i.b16 %v4144, %v4110
        %v4157 = vshrl.u32 %v4110, 16
        %v4158 = vshrl.u32 %v4144, 16
        %v4159 = vpack.i.b16 %v4158, %v4157
        %v4162 = vpack.i.b16 %v4152, %v4118
        %v4163 = vshrl.u32 %v4118, 16
        %v4164 = vshrl.u32 %v4152, 16
        %v4165 = vpack.i.b16 %v4164, %v4163
        %v4168 = vpack.i.b16 %v4151, %v4117
        %v4169 = vshrl.u32 %v4117, 16
        %v4170 = vshrl.u32 %v4151, 16
        %v4171 = vpack.i.b16 %v4170, %v4169
        %v4174 = vpack.i.b16 %v4153, %v4119
        %v4175 = vshrl.u32 %v4119, 16
        %v4176 = vshrl.u32 %v4153, 16
        %v4177 = vpack.i.b16 %v4176, %v4175
        %v4178 = vld [vmem:[%s7] sm:$0xf]
        %v4179 = vld [vmem:[%s7 + $0x4] sm:$0xf]
        %v4182 = vunpack.c.l.b16 %v4178
        %v4183 = vunpack.c.l.b16 %v4179
        %v4184 = vpack.c.b16 %v4183, %v4182
        %v4186 = vsel %vm967, %v4184, 0
        %vm4188 = vcmask 1041408
        %v4190 = vsel %vm4188, %v4156, 0
        %4192 = vmatprep.subr.bf16.mxu0 0
        %4193 = vmatpush1.bf16.msra.mxu0 %v4190
        %4194 = vmatprep.subr.bf16.mxu0 0
        %4195 = vmatpush1.bf16.msra.mxu0 0
        %4196 = vmatprep.subr.bf16.mxu0 0
        %4197 = vmatpush1.bf16.msra.mxu0 0
        %4198 = vmatprep.subr.bf16.mxu0 0
        %4199 = vmatpush1.bf16.msra.mxu0 0
        %4200 = vmatprep.subr.bf16.mxu0 0
        %4201 = vmatpush1.bf16.msra.mxu0 0
        %4202 = vmatprep.subr.bf16.mxu0 0
        %4203 = vmatpush1.bf16.msra.mxu0 0
        %4204 = vmatprep.subr.bf16.mxu0 0
        %4205 = vmatpush1.bf16.msra.mxu0 0
        %4206 = vmatprep.subr.bf16.mxu0 0
        %4207 = vmatpush1.bf16.msra.mxu0 0
        %4208 = vmatprep.subr.bf16.mxu0 0
        %4209 = vmatpush1.bf16.msra.mxu0 0
        %4210 = vmatprep.subr.bf16.mxu0 0
        %4211 = vmatpush1.bf16.msra.mxu0 0
        %4212 = vmatprep.subr.bf16.mxu0 0
        %4213 = vmatpush1.bf16.msra.mxu0 0
        %4214 = vmatprep.subr.bf16.mxu0 0
        %4215 = vmatpush1.bf16.msra.mxu0 0
        %4216 = vmatprep.subr.bf16.mxu0 0
        %4217 = vmatpush1.bf16.msra.mxu0 0
        %4218 = vmatprep.subr.bf16.mxu0 0
        %4219 = vmatpush1.bf16.msra.mxu0 0
        %4220 = vmatprep.subr.bf16.mxu0 0
        %4221 = vmatpush1.bf16.msra.mxu0 0
        %4222 = vmatprep.subr.bf16.mxu0 0
        %4223 = vmatpush1.bf16.msra.mxu0 0
        %4224 = vmatprep.mubr.bf16.mxu0 0
        %4225 = vmatmul.mubr.bf16.gmra.mrb[0].mxu0 %v4186
        %v4226 = vpop.f32.mrb[0].mxu0
        %v4227 = vadd.f32 0.0, %v4226
        %v4228 = vpop.f32.mrb[0].mxu0
        %v4229 = vpop.f32.mrb[0].mxu0
        %v4230 = vadd.f32 0.0, %v4229
        %v4231 = vpop.f32.mrb[0].mxu0
        %4232 = vdwg.mxu0
        %v4234 = vsel %vm4188, %v4159, 0
        %4236 = vmatprep.subr.bf16.mxu0 0
        %4237 = vmatpush1.bf16.msra.mxu0 %v4234
        %4238 = vmatprep.subr.bf16.mxu0 0
        %4239 = vmatpush1.bf16.msra.mxu0 0
        %4240 = vmatprep.subr.bf16.mxu0 0
        %4241 = vmatpush1.bf16.msra.mxu0 0
        %4242 = vmatprep.subr.bf16.mxu0 0
        %4243 = vmatpush1.bf16.msra.mxu0 0
        %4244 = vmatprep.subr.bf16.mxu0 0
        %4245 = vmatpush1.bf16.msra.mxu0 0
        %4246 = vmatprep.subr.bf16.mxu0 0
        %4247 = vmatpush1.bf16.msra.mxu0 0
        %4248 = vmatprep.subr.bf16.mxu0 0
        %4249 = vmatpush1.bf16.msra.mxu0 0
        %4250 = vmatprep.subr.bf16.mxu0 0
        %4251 = vmatpush1.bf16.msra.mxu0 0
        %4252 = vmatprep.subr.bf16.mxu0 0
        %4253 = vmatpush1.bf16.msra.mxu0 0
        %4254 = vmatprep.subr.bf16.mxu0 0
        %4255 = vmatpush1.bf16.msra.mxu0 0
        %4256 = vmatprep.subr.bf16.mxu0 0
        %4257 = vmatpush1.bf16.msra.mxu0 0
        %4258 = vmatprep.subr.bf16.mxu0 0
        %4259 = vmatpush1.bf16.msra.mxu0 0
        %4260 = vmatprep.subr.bf16.mxu0 0
        %4261 = vmatpush1.bf16.msra.mxu0 0
        %4262 = vmatprep.subr.bf16.mxu0 0
        %4263 = vmatpush1.bf16.msra.mxu0 0
        %4264 = vmatprep.subr.bf16.mxu0 0
        %4265 = vmatpush1.bf16.msra.mxu0 0
        %4266 = vmatprep.subr.bf16.mxu0 0
        %4267 = vmatpush1.bf16.msra.mxu0 0
        %4268 = vmatprep.mubr.bf16.mxu0 0
        %4269 = vmatmul.mubr.bf16.gmra.mrb[0].mxu0 %v4186
        %v4270 = vpop.f32.mrb[0].mxu0
        %v4271 = vadd.f32 0.0, %v4270
        %v4272 = vpop.f32.mrb[0].mxu0
        %v4273 = vpop.f32.mrb[0].mxu0
        %v4274 = vadd.f32 0.0, %v4273
        %v4275 = vpop.f32.mrb[0].mxu0
        %4276 = vdwg.mxu0
        %v4278 = vsel %vm4188, %v4162, 0
        %4280 = vmatprep.subr.bf16.mxu0 0
        %4281 = vmatpush1.bf16.msra.mxu0 %v4278
        %4282 = vmatprep.subr.bf16.mxu0 0
        %4283 = vmatpush1.bf16.msra.mxu0 0
        %4284 = vmatprep.subr.bf16.mxu0 0
        %4285 = vmatpush1.bf16.msra.mxu0 0
        %4286 = vmatprep.subr.bf16.mxu0 0
        %4287 = vmatpush1.bf16.msra.mxu0 0
        %4288 = vmatprep.subr.bf16.mxu0 0
        %4289 = vmatpush1.bf16.msra.mxu0 0
        %4290 = vmatprep.subr.bf16.mxu0 0
        %4291 = vmatpush1.bf16.msra.mxu0 0
        %4292 = vmatprep.subr.bf16.mxu0 0
        %4293 = vmatpush1.bf16.msra.mxu0 0
        %4294 = vmatprep.subr.bf16.mxu0 0
        %4295 = vmatpush1.bf16.msra.mxu0 0
        %4296 = vmatprep.subr.bf16.mxu0 0
        %4297 = vmatpush1.bf16.msra.mxu0 0
        %4298 = vmatprep.subr.bf16.mxu0 0
        %4299 = vmatpush1.bf16.msra.mxu0 0
        %4300 = vmatprep.subr.bf16.mxu0 0
        %4301 = vmatpush1.bf16.msra.mxu0 0
        %4302 = vmatprep.subr.bf16.mxu0 0
        %4303 = vmatpush1.bf16.msra.mxu0 0
        %4304 = vmatprep.subr.bf16.mxu0 0
        %4305 = vmatpush1.bf16.msra.mxu0 0
        %4306 = vmatprep.subr.bf16.mxu0 0
        %4307 = vmatpush1.bf16.msra.mxu0 0
        %4308 = vmatprep.subr.bf16.mxu0 0
        %4309 = vmatpush1.bf16.msra.mxu0 0
        %4310 = vmatprep.subr.bf16.mxu0 0
        %4311 = vmatpush1.bf16.msra.mxu0 0
        %4312 = vmatprep.mubr.bf16.mxu0 0
        %4313 = vmatmul.mubr.bf16.gmra.mrb[0].mxu0 %v4186
        %v4314 = vpop.f32.mrb[0].mxu0
        %v4315 = vadd.f32 0.0, %v4314
        %v4316 = vpop.f32.mrb[0].mxu0
        %v4317 = vpop.f32.mrb[0].mxu0
        %v4318 = vadd.f32 0.0, %v4317
        %v4319 = vpop.f32.mrb[0].mxu0
        %4320 = vdwg.mxu0
        %v4322 = vsel %vm4188, %v4165, 0
        %4324 = vmatprep.subr.bf16.mxu0 0
        %4325 = vmatpush1.bf16.msra.mxu0 %v4322
        %4326 = vmatprep.subr.bf16.mxu0 0
        %4327 = vmatpush1.bf16.msra.mxu0 0
        %4328 = vmatprep.subr.bf16.mxu0 0
        %4329 = vmatpush1.bf16.msra.mxu0 0
        %4330 = vmatprep.subr.bf16.mxu0 0
        %4331 = vmatpush1.bf16.msra.mxu0 0
        %4332 = vmatprep.subr.bf16.mxu0 0
        %4333 = vmatpush1.bf16.msra.mxu0 0
        %4334 = vmatprep.subr.bf16.mxu0 0
        %4335 = vmatpush1.bf16.msra.mxu0 0
        %4336 = vmatprep.subr.bf16.mxu0 0
        %4337 = vmatpush1.bf16.msra.mxu0 0
        %4338 = vmatprep.subr.bf16.mxu0 0
        %4339 = vmatpush1.bf16.msra.mxu0 0
        %4340 = vmatprep.subr.bf16.mxu0 0
        %4341 = vmatpush1.bf16.msra.mxu0 0
        %4342 = vmatprep.subr.bf16.mxu0 0
        %4343 = vmatpush1.bf16.msra.mxu0 0
        %4344 = vmatprep.subr.bf16.mxu0 0
        %4345 = vmatpush1.bf16.msra.mxu0 0
        %4346 = vmatprep.subr.bf16.mxu0 0
        %4347 = vmatpush1.bf16.msra.mxu0 0
        %4348 = vmatprep.subr.bf16.mxu0 0
        %4349 = vmatpush1.bf16.msra.mxu0 0
        %4350 = vmatprep.subr.bf16.mxu0 0
        %4351 = vmatpush1.bf16.msra.mxu0 0
        %4352 = vmatprep.subr.bf16.mxu0 0
        %4353 = vmatpush1.bf16.msra.mxu0 0
        %4354 = vmatprep.subr.bf16.mxu0 0
        %4355 = vmatpush1.bf16.msra.mxu0 0
        %4356 = vmatprep.mubr.bf16.mxu0 0
        %4357 = vmatmul.mubr.bf16.gmra.mrb[0].mxu0 %v4186
        %v4358 = vpop.f32.mrb[0].mxu0
        %v4359 = vadd.f32 0.0, %v4358
        %v4360 = vpop.f32.mrb[0].mxu0
        %v4361 = vpop.f32.mrb[0].mxu0
        %v4362 = vadd.f32 0.0, %v4361
        %v4363 = vpop.f32.mrb[0].mxu0
        %4364 = vdwg.mxu0
        %v4366 = vsel %vm4188, %v4168, 0
        %4368 = vmatprep.subr.bf16.mxu0 0
        %4369 = vmatpush1.bf16.msra.mxu0 %v4366
        %4370 = vmatprep.subr.bf16.mxu0 0
        %4371 = vmatpush1.bf16.msra.mxu0 0
        %4372 = vmatprep.subr.bf16.mxu0 0
        %4373 = vmatpush1.bf16.msra.mxu0 0
        %4374 = vmatprep.subr.bf16.mxu0 0
        %4375 = vmatpush1.bf16.msra.mxu0 0
        %4376 = vmatprep.subr.bf16.mxu0 0
        %4377 = vmatpush1.bf16.msra.mxu0 0
        %4378 = vmatprep.subr.bf16.mxu0 0
        %4379 = vmatpush1.bf16.msra.mxu0 0
        %4380 = vmatprep.subr.bf16.mxu0 0
        %4381 = vmatpush1.bf16.msra.mxu0 0
        %4382 = vmatprep.subr.bf16.mxu0 0
        %4383 = vmatpush1.bf16.msra.mxu0 0
        %4384 = vmatprep.subr.bf16.mxu0 0
        %4385 = vmatpush1.bf16.msra.mxu0 0
        %4386 = vmatprep.subr.bf16.mxu0 0
        %4387 = vmatpush1.bf16.msra.mxu0 0
        %4388 = vmatprep.subr.bf16.mxu0 0
        %4389 = vmatpush1.bf16.msra.mxu0 0
        %4390 = vmatprep.subr.bf16.mxu0 0
        %4391 = vmatpush1.bf16.msra.mxu0 0
        %4392 = vmatprep.subr.bf16.mxu0 0
        %4393 = vmatpush1.bf16.msra.mxu0 0
        %4394 = vmatprep.subr.bf16.mxu0 0
        %4395 = vmatpush1.bf16.msra.mxu0 0
        %4396 = vmatprep.subr.bf16.mxu0 0
        %4397 = vmatpush1.bf16.msra.mxu0 0
        %4398 = vmatprep.subr.bf16.mxu0 0
        %4399 = vmatpush1.bf16.msra.mxu0 0
        %4400 = vmatprep.mubr.bf16.mxu0 0
        %4401 = vmatmul.mubr.bf16.gmra.mrb[0].mxu0 %v4186
        %v4402 = vpop.f32.mrb[0].mxu0
        %v4403 = vadd.f32 0.0, %v4402
        %v4404 = vpop.f32.mrb[0].mxu0
        %v4405 = vpop.f32.mrb[0].mxu0
        %v4406 = vadd.f32 0.0, %v4405
        %v4407 = vpop.f32.mrb[0].mxu0
        %4408 = vdwg.mxu0
        %v4410 = vsel %vm4188, %v4171, 0
        %4412 = vmatprep.subr.bf16.mxu0 0
        %4413 = vmatpush1.bf16.msra.mxu0 %v4410
        %4414 = vmatprep.subr.bf16.mxu0 0
        %4415 = vmatpush1.bf16.msra.mxu0 0
        %4416 = vmatprep.subr.bf16.mxu0 0
        %4417 = vmatpush1.bf16.msra.mxu0 0
        %4418 = vmatprep.subr.bf16.mxu0 0
        %4419 = vmatpush1.bf16.msra.mxu0 0
        %4420 = vmatprep.subr.bf16.mxu0 0
        %4421 = vmatpush1.bf16.msra.mxu0 0
        %4422 = vmatprep.subr.bf16.mxu0 0
        %4423 = vmatpush1.bf16.msra.mxu0 0
        %4424 = vmatprep.subr.bf16.mxu0 0
        %4425 = vmatpush1.bf16.msra.mxu0 0
        %4426 = vmatprep.subr.bf16.mxu0 0
        %4427 = vmatpush1.bf16.msra.mxu0 0
        %4428 = vmatprep.subr.bf16.mxu0 0
        %4429 = vmatpush1.bf16.msra.mxu0 0
        %4430 = vmatprep.subr.bf16.mxu0 0
        %4431 = vmatpush1.bf16.msra.mxu0 0
        %4432 = vmatprep.subr.bf16.mxu0 0
        %4433 = vmatpush1.bf16.msra.mxu0 0
        %4434 = vmatprep.subr.bf16.mxu0 0
        %4435 = vmatpush1.bf16.msra.mxu0 0
        %4436 = vmatprep.subr.bf16.mxu0 0
        %4437 = vmatpush1.bf16.msra.mxu0 0
        %4438 = vmatprep.subr.bf16.mxu0 0
        %4439 = vmatpush1.bf16.msra.mxu0 0
        %4440 = vmatprep.subr.bf16.mxu0 0
        %4441 = vmatpush1.bf16.msra.mxu0 0
        %4442 = vmatprep.subr.bf16.mxu0 0
        %4443 = vmatpush1.bf16.msra.mxu0 0
        %4444 = vmatprep.mubr.bf16.mxu0 0
        %4445 = vmatmul.mubr.bf16.gmra.mrb[0].mxu0 %v4186
        %v4446 = vpop.f32.mrb[0].mxu0
        %v4447 = vadd.f32 0.0, %v4446
        %v4448 = vpop.f32.mrb[0].mxu0
        %v4449 = vpop.f32.mrb[0].mxu0
        %v4450 = vadd.f32 0.0, %v4449
        %v4451 = vpop.f32.mrb[0].mxu0
        %4452 = vdwg.mxu0
        %v4454 = vsel %vm4188, %v4174, 0
        %4456 = vmatprep.subr.bf16.mxu0 0
        %4457 = vmatpush1.bf16.msra.mxu0 %v4454
        %4458 = vmatprep.subr.bf16.mxu0 0
        %4459 = vmatpush1.bf16.msra.mxu0 0
        %4460 = vmatprep.subr.bf16.mxu0 0
        %4461 = vmatpush1.bf16.msra.mxu0 0
        %4462 = vmatprep.subr.bf16.mxu0 0
        %4463 = vmatpush1.bf16.msra.mxu0 0
        %4464 = vmatprep.subr.bf16.mxu0 0
        %4465 = vmatpush1.bf16.msra.mxu0 0
        %4466 = vmatprep.subr.bf16.mxu0 0
        %4467 = vmatpush1.bf16.msra.mxu0 0
        %4468 = vmatprep.subr.bf16.mxu0 0
        %4469 = vmatpush1.bf16.msra.mxu0 0
        %4470 = vmatprep.subr.bf16.mxu0 0
        %4471 = vmatpush1.bf16.msra.mxu0 0
        %4472 = vmatprep.subr.bf16.mxu0 0
        %4473 = vmatpush1.bf16.msra.mxu0 0
        %4474 = vmatprep.subr.bf16.mxu0 0
        %4475 = vmatpush1.bf16.msra.mxu0 0
        %4476 = vmatprep.subr.bf16.mxu0 0
        %4477 = vmatpush1.bf16.msra.mxu0 0
        %4478 = vmatprep.subr.bf16.mxu0 0
        %4479 = vmatpush1.bf16.msra.mxu0 0
        %4480 = vmatprep.subr.bf16.mxu0 0
        %4481 = vmatpush1.bf16.msra.mxu0 0
        %4482 = vmatprep.subr.bf16.mxu0 0
        %4483 = vmatpush1.bf16.msra.mxu0 0
        %4484 = vmatprep.subr.bf16.mxu0 0
        %4485 = vmatpush1.bf16.msra.mxu0 0
        %4486 = vmatprep.subr.bf16.mxu0 0
        %4487 = vmatpush1.bf16.msra.mxu0 0
        %4488 = vmatprep.mubr.bf16.mxu0 0
        %4489 = vmatmul.mubr.bf16.gmra.mrb[0].mxu0 %v4186
        %v4490 = vpop.f32.mrb[0].mxu0
        %v4491 = vadd.f32 0.0, %v4490
        %v4492 = vpop.f32.mrb[0].mxu0
        %v4493 = vpop.f32.mrb[0].mxu0
        %v4494 = vadd.f32 0.0, %v4493
        %v4495 = vpop.f32.mrb[0].mxu0
        %4496 = vdwg.mxu0
        %v4498 = vsel %vm4188, %v4177, 0
        %4500 = vmatprep.subr.bf16.mxu0 0
        %4501 = vmatpush1.bf16.msra.mxu0 %v4498
        %4502 = vmatprep.subr.bf16.mxu0 0
        %4503 = vmatpush1.bf16.msra.mxu0 0
        %4504 = vmatprep.subr.bf16.mxu0 0
        %4505 = vmatpush1.bf16.msra.mxu0 0
        %4506 = vmatprep.subr.bf16.mxu0 0
        %4507 = vmatpush1.bf16.msra.mxu0 0
        %4508 = vmatprep.subr.bf16.mxu0 0
        %4509 = vmatpush1.bf16.msra.mxu0 0
        %4510 = vmatprep.subr.bf16.mxu0 0
        %4511 = vmatpush1.bf16.msra.mxu0 0
        %4512 = vmatprep.subr.bf16.mxu0 0
        %4513 = vmatpush1.bf16.msra.mxu0 0
        %4514 = vmatprep.subr.bf16.mxu0 0
        %4515 = vmatpush1.bf16.msra.mxu0 0
        %4516 = vmatprep.subr.bf16.mxu0 0
        %4517 = vmatpush1.bf16.msra.mxu0 0
        %4518 = vmatprep.subr.bf16.mxu0 0
        %4519 = vmatpush1.bf16.msra.mxu0 0
        %4520 = vmatprep.subr.bf16.mxu0 0
        %4521 = vmatpush1.bf16.msra.mxu0 0
        %4522 = vmatprep.subr.bf16.mxu0 0
        %4523 = vmatpush1.bf16.msra.mxu0 0
        %4524 = vmatprep.subr.bf16.mxu0 0
        %4525 = vmatpush1.bf16.msra.mxu0 0
        %4526 = vmatprep.subr.bf16.mxu0 0
        %4527 = vmatpush1.bf16.msra.mxu0 0
        %4528 = vmatprep.subr.bf16.mxu0 0
        %4529 = vmatpush1.bf16.msra.mxu0 0
        %4530 = vmatprep.subr.bf16.mxu0 0
        %4531 = vmatpush1.bf16.msra.mxu0 0
        %4532 = vmatprep.mubr.bf16.mxu0 0
        %4533 = vmatmul.mubr.bf16.gmra.mrb[0].mxu0 %v4186
        %v4534 = vpop.f32.mrb[0].mxu0
        %v4535 = vadd.f32 0.0, %v4534
        %v4536 = vpop.f32.mrb[0].mxu0
        %v4537 = vpop.f32.mrb[0].mxu0
        %v4538 = vadd.f32 0.0, %v4537
        %v4539 = vpop.f32.mrb[0].mxu0
        %4540 = vdwg.mxu0
        %v4541 = vld [vmem:[%s8] sm:$0xf]
        %v4542 = vld [vmem:[%s8 + $0x4] sm:$0xf]
        %v4543 = vpack.c.bf16 %v4230, %v4227
        %v4544 = vpack.c.bf16 %v4274, %v4271
        %v4545 = vpack.c.bf16 %v4318, %v4315
        %v4546 = vpack.c.bf16 %v4362, %v4359
        %v4547 = vpack.c.bf16 %v4406, %v4403
        %v4548 = vpack.c.bf16 %v4450, %v4447
        %v4549 = vpack.c.bf16 %v4494, %v4491
        %v4550 = vpack.c.bf16 %v4538, %v4535
        %v4553 = vunpack.c.l.b16 %v4541
        %v4554 = vunpack.c.l.b16 %v4542
        %v4555 = vpack.c.b16 %v4554, %v4553
        %v4557 = vsel %vm967, %v4543, 0
        %v4560 = vsel %vm967, %v4555, 0
        %4562 = vmatprep.subr.bf16.mxu0 0
        %4563 = vmatpush1.bf16.xpose.msra.mxu0 %v4560
        %4564 = vmatprep.subr.bf16.mxu0 0
        %4565 = vmatpush1.bf16.xpose.msra.mxu0 0
        %4566 = vmatprep.subr.bf16.mxu0 0
        %4567 = vmatpush1.bf16.xpose.msra.mxu0 0
        %4568 = vmatprep.subr.bf16.mxu0 0
        %4569 = vmatpush1.bf16.xpose.msra.mxu0 0
        %4570 = vmatprep.subr.bf16.mxu0 0
        %4571 = vmatpush1.bf16.xpose.msra.mxu0 0
        %4572 = vmatprep.subr.bf16.mxu0 0
        %4573 = vmatpush1.bf16.xpose.msra.mxu0 0
        %4574 = vmatprep.subr.bf16.mxu0 0
        %4575 = vmatpush1.bf16.xpose.msra.mxu0 0
        %4576 = vmatprep.subr.bf16.mxu0 0
        %4577 = vmatpush1.bf16.xpose.msra.mxu0 0
        %4578 = vmatprep.subr.bf16.mxu0 0
        %4579 = vmatpush1.bf16.xpose.msra.mxu0 0
        %4580 = vmatprep.subr.bf16.mxu0 0
        %4581 = vmatpush1.bf16.xpose.msra.mxu0 0
        %4582 = vmatprep.subr.bf16.mxu0 0
        %4583 = vmatpush1.bf16.xpose.msra.mxu0 0
        %4584 = vmatprep.subr.bf16.mxu0 0
        %4585 = vmatpush1.bf16.xpose.msra.mxu0 0
        %4586 = vmatprep.subr.bf16.mxu0 0
        %4587 = vmatpush1.bf16.xpose.msra.mxu0 0
        %4588 = vmatprep.subr.bf16.mxu0 0
        %4589 = vmatpush1.bf16.xpose.msra.mxu0 0
        %4590 = vmatprep.subr.bf16.mxu0 0
        %4591 = vmatpush1.bf16.xpose.msra.mxu0 0
        %4592 = vmatprep.subr.bf16.mxu0 0
        %4593 = vmatpush1.bf16.xpose.msra.mxu0 0
        %4594 = vmatprep.mubr.bf16.mxu0 0
        %4595 = vmatmul.mubr.bf16.gmra.mrb[0].mxu0 %v4557
        %v4596 = vpop.f32.mrb[0].mxu0
        %v4597 = vadd.f32 0.0, %v4596
        %v4598 = vpop.f32.mrb[0].mxu0
        %v4599 = vpop.f32.mrb[0].mxu0
        %v4600 = vadd.f32 0.0, %v4599
        %v4601 = vpop.f32.mrb[0].mxu0
        %4602 = vdwg.mxu0
        %v4604 = vsel %vm967, %v4544, 0
        %4606 = vmatprep.subr.bf16.mxu0 0
        %4607 = vmatpush1.bf16.xpose.msra.mxu0 %v4560
        %4608 = vmatprep.subr.bf16.mxu0 0
        %4609 = vmatpush1.bf16.xpose.msra.mxu0 0
        %4610 = vmatprep.subr.bf16.mxu0 0
        %4611 = vmatpush1.bf16.xpose.msra.mxu0 0
        %4612 = vmatprep.subr.bf16.mxu0 0
        %4613 = vmatpush1.bf16.xpose.msra.mxu0 0
        %4614 = vmatprep.subr.bf16.mxu0 0
        %4615 = vmatpush1.bf16.xpose.msra.mxu0 0
        %4616 = vmatprep.subr.bf16.mxu0 0
        %4617 = vmatpush1.bf16.xpose.msra.mxu0 0
        %4618 = vmatprep.subr.bf16.mxu0 0
        %4619 = vmatpush1.bf16.xpose.msra.mxu0 0
        %4620 = vmatprep.subr.bf16.mxu0 0
        %4621 = vmatpush1.bf16.xpose.msra.mxu0 0
        %4622 = vmatprep.subr.bf16.mxu0 0
        %4623 = vmatpush1.bf16.xpose.msra.mxu0 0
        %4624 = vmatprep.subr.bf16.mxu0 0
        %4625 = vmatpush1.bf16.xpose.msra.mxu0 0
        %4626 = vmatprep.subr.bf16.mxu0 0
        %4627 = vmatpush1.bf16.xpose.msra.mxu0 0
        %4628 = vmatprep.subr.bf16.mxu0 0
        %4629 = vmatpush1.bf16.xpose.msra.mxu0 0
        %4630 = vmatprep.subr.bf16.mxu0 0
        %4631 = vmatpush1.bf16.xpose.msra.mxu0 0
        %4632 = vmatprep.subr.bf16.mxu0 0
        %4633 = vmatpush1.bf16.xpose.msra.mxu0 0
        %4634 = vmatprep.subr.bf16.mxu0 0
        %4635 = vmatpush1.bf16.xpose.msra.mxu0 0
        %4636 = vmatprep.subr.bf16.mxu0 0
        %4637 = vmatpush1.bf16.xpose.msra.mxu0 0
        %4638 = vmatprep.mubr.bf16.mxu0 0
        %4639 = vmatmul.mubr.bf16.gmra.mrb[0].mxu0 %v4604
        %v4640 = vpop.f32.mrb[0].mxu0
        %v4641 = vadd.f32 0.0, %v4640
        %v4642 = vpop.f32.mrb[0].mxu0
        %v4643 = vpop.f32.mrb[0].mxu0
        %v4644 = vadd.f32 0.0, %v4643
        %v4645 = vpop.f32.mrb[0].mxu0
        %4646 = vdwg.mxu0
        %v4648 = vsel %vm967, %v4545, 0
        %4650 = vmatprep.subr.bf16.mxu0 0
        %4651 = vmatpush1.bf16.xpose.msra.mxu0 %v4560
        %4652 = vmatprep.subr.bf16.mxu0 0
        %4653 = vmatpush1.bf16.xpose.msra.mxu0 0
        %4654 = vmatprep.subr.bf16.mxu0 0
        %4655 = vmatpush1.bf16.xpose.msra.mxu0 0
        %4656 = vmatprep.subr.bf16.mxu0 0
        %4657 = vmatpush1.bf16.xpose.msra.mxu0 0
        %4658 = vmatprep.subr.bf16.mxu0 0
        %4659 = vmatpush1.bf16.xpose.msra.mxu0 0
        %4660 = vmatprep.subr.bf16.mxu0 0
        %4661 = vmatpush1.bf16.xpose.msra.mxu0 0
        %4662 = vmatprep.subr.bf16.mxu0 0
        %4663 = vmatpush1.bf16.xpose.msra.mxu0 0
        %4664 = vmatprep.subr.bf16.mxu0 0
        %4665 = vmatpush1.bf16.xpose.msra.mxu0 0
        %4666 = vmatprep.subr.bf16.mxu0 0
        %4667 = vmatpush1.bf16.xpose.msra.mxu0 0
        %4668 = vmatprep.subr.bf16.mxu0 0
        %4669 = vmatpush1.bf16.xpose.msra.mxu0 0
        %4670 = vmatprep.subr.bf16.mxu0 0
        %4671 = vmatpush1.bf16.xpose.msra.mxu0 0
        %4672 = vmatprep.subr.bf16.mxu0 0
        %4673 = vmatpush1.bf16.xpose.msra.mxu0 0
        %4674 = vmatprep.subr.bf16.mxu0 0
        %4675 = vmatpush1.bf16.xpose.msra.mxu0 0
        %4676 = vmatprep.subr.bf16.mxu0 0
        %4677 = vmatpush1.bf16.xpose.msra.mxu0 0
        %4678 = vmatprep.subr.bf16.mxu0 0
        %4679 = vmatpush1.bf16.xpose.msra.mxu0 0
        %4680 = vmatprep.subr.bf16.mxu0 0
        %4681 = vmatpush1.bf16.xpose.msra.mxu0 0
        %4682 = vmatprep.mubr.bf16.mxu0 0
        %4683 = vmatmul.mubr.bf16.gmra.mrb[0].mxu0 %v4648
        %v4684 = vpop.f32.mrb[0].mxu0
        %v4685 = vadd.f32 0.0, %v4684
        %v4686 = vpop.f32.mrb[0].mxu0
        %v4687 = vpop.f32.mrb[0].mxu0
        %v4688 = vadd.f32 0.0, %v4687
        %v4689 = vpop.f32.mrb[0].mxu0
        %4690 = vdwg.mxu0
        %v4692 = vsel %vm967, %v4546, 0
        %4694 = vmatprep.subr.bf16.mxu0 0
        %4695 = vmatpush1.bf16.xpose.msra.mxu0 %v4560
        %4696 = vmatprep.subr.bf16.mxu0 0
        %4697 = vmatpush1.bf16.xpose.msra.mxu0 0
        %4698 = vmatprep.subr.bf16.mxu0 0
        %4699 = vmatpush1.bf16.xpose.msra.mxu0 0
        %4700 = vmatprep.subr.bf16.mxu0 0
        %4701 = vmatpush1.bf16.xpose.msra.mxu0 0
        %4702 = vmatprep.subr.bf16.mxu0 0
        %4703 = vmatpush1.bf16.xpose.msra.mxu0 0
        %4704 = vmatprep.subr.bf16.mxu0 0
        %4705 = vmatpush1.bf16.xpose.msra.mxu0 0
        %4706 = vmatprep.subr.bf16.mxu0 0
        %4707 = vmatpush1.bf16.xpose.msra.mxu0 0
        %4708 = vmatprep.subr.bf16.mxu0 0
        %4709 = vmatpush1.bf16.xpose.msra.mxu0 0
        %4710 = vmatprep.subr.bf16.mxu0 0
        %4711 = vmatpush1.bf16.xpose.msra.mxu0 0
        %4712 = vmatprep.subr.bf16.mxu0 0
        %4713 = vmatpush1.bf16.xpose.msra.mxu0 0
        %4714 = vmatprep.subr.bf16.mxu0 0
        %4715 = vmatpush1.bf16.xpose.msra.mxu0 0
        %4716 = vmatprep.subr.bf16.mxu0 0
        %4717 = vmatpush1.bf16.xpose.msra.mxu0 0
        %4718 = vmatprep.subr.bf16.mxu0 0
        %4719 = vmatpush1.bf16.xpose.msra.mxu0 0
        %4720 = vmatprep.subr.bf16.mxu0 0
        %4721 = vmatpush1.bf16.xpose.msra.mxu0 0
        %4722 = vmatprep.subr.bf16.mxu0 0
        %4723 = vmatpush1.bf16.xpose.msra.mxu0 0
        %4724 = vmatprep.subr.bf16.mxu0 0
        %4725 = vmatpush1.bf16.xpose.msra.mxu0 0
        %4726 = vmatprep.mubr.bf16.mxu0 0
        %4727 = vmatmul.mubr.bf16.gmra.mrb[0].mxu0 %v4692
        %v4728 = vpop.f32.mrb[0].mxu0
        %v4729 = vadd.f32 0.0, %v4728
        %v4730 = vpop.f32.mrb[0].mxu0
        %v4731 = vpop.f32.mrb[0].mxu0
        %v4732 = vadd.f32 0.0, %v4731
        %v4733 = vpop.f32.mrb[0].mxu0
        %4734 = vdwg.mxu0
        %v4736 = vsel %vm967, %v4547, 0
        %4738 = vmatprep.subr.bf16.mxu0 0
        %4739 = vmatpush1.bf16.xpose.msra.mxu0 %v4560
        %4740 = vmatprep.subr.bf16.mxu0 0
        %4741 = vmatpush1.bf16.xpose.msra.mxu0 0
        %4742 = vmatprep.subr.bf16.mxu0 0
        %4743 = vmatpush1.bf16.xpose.msra.mxu0 0
        %4744 = vmatprep.subr.bf16.mxu0 0
        %4745 = vmatpush1.bf16.xpose.msra.mxu0 0
        %4746 = vmatprep.subr.bf16.mxu0 0
        %4747 = vmatpush1.bf16.xpose.msra.mxu0 0
        %4748 = vmatprep.subr.bf16.mxu0 0
        %4749 = vmatpush1.bf16.xpose.msra.mxu0 0
        %4750 = vmatprep.subr.bf16.mxu0 0
        %4751 = vmatpush1.bf16.xpose.msra.mxu0 0
        %4752 = vmatprep.subr.bf16.mxu0 0
        %4753 = vmatpush1.bf16.xpose.msra.mxu0 0
        %4754 = vmatprep.subr.bf16.mxu0 0
        %4755 = vmatpush1.bf16.xpose.msra.mxu0 0
        %4756 = vmatprep.subr.bf16.mxu0 0
        %4757 = vmatpush1.bf16.xpose.msra.mxu0 0
        %4758 = vmatprep.subr.bf16.mxu0 0
        %4759 = vmatpush1.bf16.xpose.msra.mxu0 0
        %4760 = vmatprep.subr.bf16.mxu0 0
        %4761 = vmatpush1.bf16.xpose.msra.mxu0 0
        %4762 = vmatprep.subr.bf16.mxu0 0
        %4763 = vmatpush1.bf16.xpose.msra.mxu0 0
        %4764 = vmatprep.subr.bf16.mxu0 0
        %4765 = vmatpush1.bf16.xpose.msra.mxu0 0
        %4766 = vmatprep.subr.bf16.mxu0 0
        %4767 = vmatpush1.bf16.xpose.msra.mxu0 0
        %4768 = vmatprep.subr.bf16.mxu0 0
        %4769 = vmatpush1.bf16.xpose.msra.mxu0 0
        %4770 = vmatprep.mubr.bf16.mxu0 0
        %4771 = vmatmul.mubr.bf16.gmra.mrb[0].mxu0 %v4736
        %v4772 = vpop.f32.mrb[0].mxu0
        %v4773 = vadd.f32 0.0, %v4772
        %v4774 = vpop.f32.mrb[0].mxu0
        %v4775 = vpop.f32.mrb[0].mxu0
        %v4776 = vadd.f32 0.0, %v4775
        %v4777 = vpop.f32.mrb[0].mxu0
        %4778 = vdwg.mxu0
        %v4780 = vsel %vm967, %v4548, 0
        %4782 = vmatprep.subr.bf16.mxu0 0
        %4783 = vmatpush1.bf16.xpose.msra.mxu0 %v4560
        %4784 = vmatprep.subr.bf16.mxu0 0
        %4785 = vmatpush1.bf16.xpose.msra.mxu0 0
        %4786 = vmatprep.subr.bf16.mxu0 0
        %4787 = vmatpush1.bf16.xpose.msra.mxu0 0
        %4788 = vmatprep.subr.bf16.mxu0 0
        %4789 = vmatpush1.bf16.xpose.msra.mxu0 0
        %4790 = vmatprep.subr.bf16.mxu0 0
        %4791 = vmatpush1.bf16.xpose.msra.mxu0 0
        %4792 = vmatprep.subr.bf16.mxu0 0
        %4793 = vmatpush1.bf16.xpose.msra.mxu0 0
        %4794 = vmatprep.subr.bf16.mxu0 0
        %4795 = vmatpush1.bf16.xpose.msra.mxu0 0
        %4796 = vmatprep.subr.bf16.mxu0 0
        %4797 = vmatpush1.bf16.xpose.msra.mxu0 0
        %4798 = vmatprep.subr.bf16.mxu0 0
        %4799 = vmatpush1.bf16.xpose.msra.mxu0 0
        %4800 = vmatprep.subr.bf16.mxu0 0
        %4801 = vmatpush1.bf16.xpose.msra.mxu0 0
        %4802 = vmatprep.subr.bf16.mxu0 0
        %4803 = vmatpush1.bf16.xpose.msra.mxu0 0
        %4804 = vmatprep.subr.bf16.mxu0 0
        %4805 = vmatpush1.bf16.xpose.msra.mxu0 0
        %4806 = vmatprep.subr.bf16.mxu0 0
        %4807 = vmatpush1.bf16.xpose.msra.mxu0 0
        %4808 = vmatprep.subr.bf16.mxu0 0
        %4809 = vmatpush1.bf16.xpose.msra.mxu0 0
        %4810 = vmatprep.subr.bf16.mxu0 0
        %4811 = vmatpush1.bf16.xpose.msra.mxu0 0
        %4812 = vmatprep.subr.bf16.mxu0 0
        %4813 = vmatpush1.bf16.xpose.msra.mxu0 0
        %4814 = vmatprep.mubr.bf16.mxu0 0
        %4815 = vmatmul.mubr.bf16.gmra.mrb[0].mxu0 %v4780
        %v4816 = vpop.f32.mrb[0].mxu0
        %v4817 = vadd.f32 0.0, %v4816
        %v4818 = vpop.f32.mrb[0].mxu0
        %v4819 = vpop.f32.mrb[0].mxu0
        %v4820 = vadd.f32 0.0, %v4819
        %v4821 = vpop.f32.mrb[0].mxu0
        %4822 = vdwg.mxu0
        %v4824 = vsel %vm967, %v4549, 0
        %4826 = vmatprep.subr.bf16.mxu0 0
        %4827 = vmatpush1.bf16.xpose.msra.mxu0 %v4560
        %4828 = vmatprep.subr.bf16.mxu0 0
        %4829 = vmatpush1.bf16.xpose.msra.mxu0 0
        %4830 = vmatprep.subr.bf16.mxu0 0
        %4831 = vmatpush1.bf16.xpose.msra.mxu0 0
        %4832 = vmatprep.subr.bf16.mxu0 0
        %4833 = vmatpush1.bf16.xpose.msra.mxu0 0
        %4834 = vmatprep.subr.bf16.mxu0 0
        %4835 = vmatpush1.bf16.xpose.msra.mxu0 0
        %4836 = vmatprep.subr.bf16.mxu0 0
        %4837 = vmatpush1.bf16.xpose.msra.mxu0 0
        %4838 = vmatprep.subr.bf16.mxu0 0
        %4839 = vmatpush1.bf16.xpose.msra.mxu0 0
        %4840 = vmatprep.subr.bf16.mxu0 0
        %4841 = vmatpush1.bf16.xpose.msra.mxu0 0
        %4842 = vmatprep.subr.bf16.mxu0 0
        %4843 = vmatpush1.bf16.xpose.msra.mxu0 0
        %4844 = vmatprep.subr.bf16.mxu0 0
        %4845 = vmatpush1.bf16.xpose.msra.mxu0 0
        %4846 = vmatprep.subr.bf16.mxu0 0
        %4847 = vmatpush1.bf16.xpose.msra.mxu0 0
        %4848 = vmatprep.subr.bf16.mxu0 0
        %4849 = vmatpush1.bf16.xpose.msra.mxu0 0
        %4850 = vmatprep.subr.bf16.mxu0 0
        %4851 = vmatpush1.bf16.xpose.msra.mxu0 0
        %4852 = vmatprep.subr.bf16.mxu0 0
        %4853 = vmatpush1.bf16.xpose.msra.mxu0 0
        %4854 = vmatprep.subr.bf16.mxu0 0
        %4855 = vmatpush1.bf16.xpose.msra.mxu0 0
        %4856 = vmatprep.subr.bf16.mxu0 0
        %4857 = vmatpush1.bf16.xpose.msra.mxu0 0
        %4858 = vmatprep.mubr.bf16.mxu0 0
        %4859 = vmatmul.mubr.bf16.gmra.mrb[0].mxu0 %v4824
        %v4860 = vpop.f32.mrb[0].mxu0
        %v4861 = vadd.f32 0.0, %v4860
        %v4862 = vpop.f32.mrb[0].mxu0
        %v4863 = vpop.f32.mrb[0].mxu0
        %v4864 = vadd.f32 0.0, %v4863
        %v4865 = vpop.f32.mrb[0].mxu0
        %4866 = vdwg.mxu0
        %v4868 = vsel %vm967, %v4550, 0
        %4870 = vmatprep.subr.bf16.mxu0 0
        %4871 = vmatpush1.bf16.xpose.msra.mxu0 %v4560
        %4872 = vmatprep.subr.bf16.mxu0 0
        %4873 = vmatpush1.bf16.xpose.msra.mxu0 0
        %4874 = vmatprep.subr.bf16.mxu0 0
        %4875 = vmatpush1.bf16.xpose.msra.mxu0 0
        %4876 = vmatprep.subr.bf16.mxu0 0
        %4877 = vmatpush1.bf16.xpose.msra.mxu0 0
        %4878 = vmatprep.subr.bf16.mxu0 0
        %4879 = vmatpush1.bf16.xpose.msra.mxu0 0
        %4880 = vmatprep.subr.bf16.mxu0 0
        %4881 = vmatpush1.bf16.xpose.msra.mxu0 0
        %4882 = vmatprep.subr.bf16.mxu0 0
        %4883 = vmatpush1.bf16.xpose.msra.mxu0 0
        %4884 = vmatprep.subr.bf16.mxu0 0
        %4885 = vmatpush1.bf16.xpose.msra.mxu0 0
        %4886 = vmatprep.subr.bf16.mxu0 0
        %4887 = vmatpush1.bf16.xpose.msra.mxu0 0
        %4888 = vmatprep.subr.bf16.mxu0 0
        %4889 = vmatpush1.bf16.xpose.msra.mxu0 0
        %4890 = vmatprep.subr.bf16.mxu0 0
        %4891 = vmatpush1.bf16.xpose.msra.mxu0 0
        %4892 = vmatprep.subr.bf16.mxu0 0
        %4893 = vmatpush1.bf16.xpose.msra.mxu0 0
        %4894 = vmatprep.subr.bf16.mxu0 0
        %4895 = vmatpush1.bf16.xpose.msra.mxu0 0
        %4896 = vmatprep.subr.bf16.mxu0 0
        %4897 = vmatpush1.bf16.xpose.msra.mxu0 0
        %4898 = vmatprep.subr.bf16.mxu0 0
        %4899 = vmatpush1.bf16.xpose.msra.mxu0 0
        %4900 = vmatprep.subr.bf16.mxu0 0
        %4901 = vmatpush1.bf16.xpose.msra.mxu0 0
        %4902 = vmatprep.mubr.bf16.mxu0 0
        %4903 = vmatmul.mubr.bf16.gmra.mrb[0].mxu0 %v4868
        %v4904 = vpop.f32.mrb[0].mxu0
        %v4905 = vadd.f32 0.0, %v4904
        %v4906 = vpop.f32.mrb[0].mxu0
        %v4907 = vpop.f32.mrb[0].mxu0
        %v4908 = vadd.f32 0.0, %v4907
        %v4909 = vpop.f32.mrb[0].mxu0
        %4910 = vdwg.mxu0
        %v4911 = vcombine.low %v4597, %v4685
        %v4912 = vcombine.high %v4597, %v4685
        %v4914 = vunpack.c.l.s4 1983009808
        %v4915 = vunpack.c.0.s8 %v4914
        %v4916 = vlaneseq
        %v4917 = vshrl.u32 %v4916, 7
        %v4918 = vsub.s32 %v4915, %v4917
        %v4919 = vrot.slane %v4911, %v4918
        %v4921 = vunpack.c.l.s4 1983009808
        %v4922 = vunpack.c.0.s8 %v4921
        %v4923 = vlaneseq
        %v4924 = vshrl.u32 %v4923, 7
        %v4925 = vsub.s32 %v4922, %v4924
        %v4926 = vrot.slane %v4912, %v4925
        %v4927 = vcombine.low %v4641, %v4729
        %v4928 = vcombine.high %v4641, %v4729
        %v4930 = vunpack.c.l.s4 1983009808
        %v4931 = vunpack.c.0.s8 %v4930
        %v4932 = vlaneseq
        %v4933 = vshrl.u32 %v4932, 7
        %v4934 = vsub.s32 %v4931, %v4933
        %v4935 = vrot.slane %v4927, %v4934
        %v4937 = vunpack.c.l.s4 1983009808
        %v4938 = vunpack.c.0.s8 %v4937
        %v4939 = vlaneseq
        %v4940 = vshrl.u32 %v4939, 7
        %v4941 = vsub.s32 %v4938, %v4940
        %v4942 = vrot.slane %v4928, %v4941
        %v4943 = vcombine.low %v4773, %v4861
        %v4944 = vcombine.high %v4773, %v4861
        %v4946 = vunpack.c.l.s4 1983009808
        %v4947 = vunpack.c.0.s8 %v4946
        %v4948 = vlaneseq
        %v4949 = vshrl.u32 %v4948, 7
        %v4950 = vsub.s32 %v4947, %v4949
        %v4951 = vrot.slane %v4943, %v4950
        %v4953 = vunpack.c.l.s4 1983009808
        %v4954 = vunpack.c.0.s8 %v4953
        %v4955 = vlaneseq
        %v4956 = vshrl.u32 %v4955, 7
        %v4957 = vsub.s32 %v4954, %v4956
        %v4958 = vrot.slane %v4944, %v4957
        %v4959 = vcombine.low %v4817, %v4905
        %v4960 = vcombine.high %v4817, %v4905
        %v4962 = vunpack.c.l.s4 1983009808
        %v4963 = vunpack.c.0.s8 %v4962
        %v4964 = vlaneseq
        %v4965 = vshrl.u32 %v4964, 7
        %v4966 = vsub.s32 %v4963, %v4965
        %v4967 = vrot.slane %v4959, %v4966
        %v4969 = vunpack.c.l.s4 1983009808
        %v4970 = vunpack.c.0.s8 %v4969
        %v4971 = vlaneseq
        %v4972 = vshrl.u32 %v4971, 7
        %v4973 = vsub.s32 %v4970, %v4972
        %v4974 = vrot.slane %v4960, %v4973
        %v4975 = vcombine.low %v4919, %v4935
        %v4976 = vcombine.high %v4919, %v4935
        %v4978 = vunpack.c.l.s4 1934713408
        %v4979 = vunpack.c.0.s8 %v4978
        %v4980 = vlaneseq
        %v4981 = vshrl.u32 %v4980, 7
        %v4982 = vsub.s32 %v4979, %v4981
        %v4983 = vrot.slane %v4975, %v4982
        %v4985 = vunpack.c.l.s4 1934713408
        %v4986 = vunpack.c.0.s8 %v4985
        %v4987 = vlaneseq
        %v4988 = vshrl.u32 %v4987, 7
        %v4989 = vsub.s32 %v4986, %v4988
        %v4990 = vrot.slane %v4976, %v4989
        %v4991 = vcombine.low %v4926, %v4942
        %v4992 = vcombine.high %v4926, %v4942
        %v4994 = vunpack.c.l.s4 1934713408
        %v4995 = vunpack.c.0.s8 %v4994
        %v4996 = vlaneseq
        %v4997 = vshrl.u32 %v4996, 7
        %v4998 = vsub.s32 %v4995, %v4997
        %v4999 = vrot.slane %v4991, %v4998
        %v5001 = vunpack.c.l.s4 1934713408
        %v5002 = vunpack.c.0.s8 %v5001
        %v5003 = vlaneseq
        %v5004 = vshrl.u32 %v5003, 7
        %v5005 = vsub.s32 %v5002, %v5004
        %v5006 = vrot.slane %v4992, %v5005
        %v5007 = vcombine.low %v4951, %v4967
        %v5008 = vcombine.high %v4951, %v4967
        %v5010 = vunpack.c.l.s4 1934713408
        %v5011 = vunpack.c.0.s8 %v5010
        %v5012 = vlaneseq
        %v5013 = vshrl.u32 %v5012, 7
        %v5014 = vsub.s32 %v5011, %v5013
        %v5015 = vrot.slane %v5007, %v5014
        %v5017 = vunpack.c.l.s4 1934713408
        %v5018 = vunpack.c.0.s8 %v5017
        %v5019 = vlaneseq
        %v5020 = vshrl.u32 %v5019, 7
        %v5021 = vsub.s32 %v5018, %v5020
        %v5022 = vrot.slane %v5008, %v5021
        %v5023 = vcombine.low %v4958, %v4974
        %v5024 = vcombine.high %v4958, %v4974
        %v5026 = vunpack.c.l.s4 1934713408
        %v5027 = vunpack.c.0.s8 %v5026
        %v5028 = vlaneseq
        %v5029 = vshrl.u32 %v5028, 7
        %v5030 = vsub.s32 %v5027, %v5029
        %v5031 = vrot.slane %v5023, %v5030
        %v5033 = vunpack.c.l.s4 1934713408
        %v5034 = vunpack.c.0.s8 %v5033
        %v5035 = vlaneseq
        %v5036 = vshrl.u32 %v5035, 7
        %v5037 = vsub.s32 %v5034, %v5036
        %v5038 = vrot.slane %v5024, %v5037
        %v5039 = vcombine.low %v4983, %v5015
        %v5040 = vcombine.high %v4983, %v5015
        %v5041 = vcombine.low %v4990, %v5022
        %v5042 = vcombine.high %v4990, %v5022
        %v5043 = vcombine.low %v4999, %v5031
        %v5044 = vcombine.high %v4999, %v5031
        %v5045 = vcombine.low %v5006, %v5038
        %v5046 = vcombine.high %v5006, %v5038
        %v5047 = vcombine.low %v4600, %v4688
        %v5048 = vcombine.high %v4600, %v4688
        %v5050 = vunpack.c.l.s4 1983009808
        %v5051 = vunpack.c.0.s8 %v5050
        %v5052 = vlaneseq
        %v5053 = vshrl.u32 %v5052, 7
        %v5054 = vsub.s32 %v5051, %v5053
        %v5055 = vrot.slane %v5047, %v5054
        %v5057 = vunpack.c.l.s4 1983009808
        %v5058 = vunpack.c.0.s8 %v5057
        %v5059 = vlaneseq
        %v5060 = vshrl.u32 %v5059, 7
        %v5061 = vsub.s32 %v5058, %v5060
        %v5062 = vrot.slane %v5048, %v5061
        %v5063 = vcombine.low %v4644, %v4732
        %v5064 = vcombine.high %v4644, %v4732
        %v5066 = vunpack.c.l.s4 1983009808
        %v5067 = vunpack.c.0.s8 %v5066
        %v5068 = vlaneseq
        %v5069 = vshrl.u32 %v5068, 7
        %v5070 = vsub.s32 %v5067, %v5069
        %v5071 = vrot.slane %v5063, %v5070
        %v5073 = vunpack.c.l.s4 1983009808
        %v5074 = vunpack.c.0.s8 %v5073
        %v5075 = vlaneseq
        %v5076 = vshrl.u32 %v5075, 7
        %v5077 = vsub.s32 %v5074, %v5076
        %v5078 = vrot.slane %v5064, %v5077
        %v5079 = vcombine.low %v4776, %v4864
        %v5080 = vcombine.high %v4776, %v4864
        %v5082 = vunpack.c.l.s4 1983009808
        %v5083 = vunpack.c.0.s8 %v5082
        %v5084 = vlaneseq
        %v5085 = vshrl.u32 %v5084, 7
        %v5086 = vsub.s32 %v5083, %v5085
        %v5087 = vrot.slane %v5079, %v5086
        %v5089 = vunpack.c.l.s4 1983009808
        %v5090 = vunpack.c.0.s8 %v5089
        %v5091 = vlaneseq
        %v5092 = vshrl.u32 %v5091, 7
        %v5093 = vsub.s32 %v5090, %v5092
        %v5094 = vrot.slane %v5080, %v5093
        %v5095 = vcombine.low %v4820, %v4908
        %v5096 = vcombine.high %v4820, %v4908
        %v5098 = vunpack.c.l.s4 1983009808
        %v5099 = vunpack.c.0.s8 %v5098
        %v5100 = vlaneseq
        %v5101 = vshrl.u32 %v5100, 7
        %v5102 = vsub.s32 %v5099, %v5101
        %v5103 = vrot.slane %v5095, %v5102
        %v5105 = vunpack.c.l.s4 1983009808
        %v5106 = vunpack.c.0.s8 %v5105
        %v5107 = vlaneseq
        %v5108 = vshrl.u32 %v5107, 7
        %v5109 = vsub.s32 %v5106, %v5108
        %v5110 = vrot.slane %v5096, %v5109
        %v5111 = vcombine.low %v5055, %v5071
        %v5112 = vcombine.high %v5055, %v5071
        %v5114 = vunpack.c.l.s4 1934713408
        %v5115 = vunpack.c.0.s8 %v5114
        %v5116 = vlaneseq
        %v5117 = vshrl.u32 %v5116, 7
        %v5118 = vsub.s32 %v5115, %v5117
        %v5119 = vrot.slane %v5111, %v5118
        %v5121 = vunpack.c.l.s4 1934713408
        %v5122 = vunpack.c.0.s8 %v5121
        %v5123 = vlaneseq
        %v5124 = vshrl.u32 %v5123, 7
        %v5125 = vsub.s32 %v5122, %v5124
        %v5126 = vrot.slane %v5112, %v5125
        %v5127 = vcombine.low %v5062, %v5078
        %v5128 = vcombine.high %v5062, %v5078
        %v5130 = vunpack.c.l.s4 1934713408
        %v5131 = vunpack.c.0.s8 %v5130
        %v5132 = vlaneseq
        %v5133 = vshrl.u32 %v5132, 7
        %v5134 = vsub.s32 %v5131, %v5133
        %v5135 = vrot.slane %v5127, %v5134
        %v5137 = vunpack.c.l.s4 1934713408
        %v5138 = vunpack.c.0.s8 %v5137
        %v5139 = vlaneseq
        %v5140 = vshrl.u32 %v5139, 7
        %v5141 = vsub.s32 %v5138, %v5140
        %v5142 = vrot.slane %v5128, %v5141
        %v5143 = vcombine.low %v5087, %v5103
        %v5144 = vcombine.high %v5087, %v5103
        %v5146 = vunpack.c.l.s4 1934713408
        %v5147 = vunpack.c.0.s8 %v5146
        %v5148 = vlaneseq
        %v5149 = vshrl.u32 %v5148, 7
        %v5150 = vsub.s32 %v5147, %v5149
        %v5151 = vrot.slane %v5143, %v5150
        %v5153 = vunpack.c.l.s4 1934713408
        %v5154 = vunpack.c.0.s8 %v5153
        %v5155 = vlaneseq
        %v5156 = vshrl.u32 %v5155, 7
        %v5157 = vsub.s32 %v5154, %v5156
        %v5158 = vrot.slane %v5144, %v5157
        %v5159 = vcombine.low %v5094, %v5110
        %v5160 = vcombine.high %v5094, %v5110
        %v5162 = vunpack.c.l.s4 1934713408
        %v5163 = vunpack.c.0.s8 %v5162
        %v5164 = vlaneseq
        %v5165 = vshrl.u32 %v5164, 7
        %v5166 = vsub.s32 %v5163, %v5165
        %v5167 = vrot.slane %v5159, %v5166
        %v5169 = vunpack.c.l.s4 1934713408
        %v5170 = vunpack.c.0.s8 %v5169
        %v5171 = vlaneseq
        %v5172 = vshrl.u32 %v5171, 7
        %v5173 = vsub.s32 %v5170, %v5172
        %v5174 = vrot.slane %v5160, %v5173
        %v5175 = vcombine.low %v5119, %v5151
        %v5176 = vcombine.high %v5119, %v5151
        %v5177 = vcombine.low %v5126, %v5158
        %v5178 = vcombine.high %v5126, %v5158
        %v5179 = vcombine.low %v5135, %v5167
        %v5180 = vcombine.high %v5135, %v5167
        %v5181 = vcombine.low %v5142, %v5174
        %v5182 = vcombine.high %v5142, %v5174
        %5184 = vrot.lane.b32.xlu0 %v5040, 16
        %v5185 = vpop.permute.xlu0 %5184
        %5188 = vrot.lane.b32.xlu0 %v5041, 32
        %v5189 = vpop.permute.xlu0 %5188
        %5192 = vrot.lane.b32.xlu0 %v5042, 48
        %v5193 = vpop.permute.xlu0 %5192
        %5196 = vrot.lane.b32.xlu0 %v5043, 64
        %v5197 = vpop.permute.xlu0 %5196
        %5200 = vrot.lane.b32.xlu0 %v5044, 80
        %v5201 = vpop.permute.xlu0 %5200
        %5204 = vrot.lane.b32.xlu0 %v5045, 96
        %v5205 = vpop.permute.xlu0 %5204
        %5208 = vrot.lane.b32.xlu0 %v5046, 112
        %v5209 = vpop.permute.xlu0 %5208
        %5212 = vrot.lane.b32.xlu0 %v5176, 16
        %v5213 = vpop.permute.xlu0 %5212
        %5216 = vrot.lane.b32.xlu0 %v5177, 32
        %v5217 = vpop.permute.xlu0 %5216
        %5220 = vrot.lane.b32.xlu0 %v5178, 48
        %v5221 = vpop.permute.xlu0 %5220
        %5224 = vrot.lane.b32.xlu0 %v5179, 64
        %v5225 = vpop.permute.xlu0 %5224
        %5228 = vrot.lane.b32.xlu0 %v5180, 80
        %v5229 = vpop.permute.xlu0 %5228
        %5232 = vrot.lane.b32.xlu0 %v5181, 96
        %v5233 = vpop.permute.xlu0 %5232
        %5236 = vrot.lane.b32.xlu0 %v5182, 112
        %v5237 = vpop.permute.xlu0 %5236
        %v5239 = vsel %vm4035, %v5039, %v5185
        %vm5240 = vcmask 261120
        %v5241 = vsel %vm5240, %v5239, %v5189
        %vm5242 = vcmask 392192
        %v5243 = vsel %vm5242, %v5241, %v5193
        %vm5244 = vcmask 523264
        %v5245 = vsel %vm5244, %v5243, %v5197
        %vm5246 = vcmask 654336
        %v5247 = vsel %vm5246, %v5245, %v5201
        %vm5248 = vcmask 785408
        %v5249 = vsel %vm5248, %v5247, %v5205
        %vm5250 = vcmask 916480
        %v5251 = vsel %vm5250, %v5249, %v5209
        %v5252 = vsel %vm4035, %v5175, %v5213
        %v5253 = vsel %vm5240, %v5252, %v5217
        %v5254 = vsel %vm5242, %v5253, %v5221
        %v5255 = vsel %vm5244, %v5254, %v5225
        %v5256 = vsel %vm5246, %v5255, %v5229
        %v5257 = vsel %vm5248, %v5256, %v5233
        %v5258 = vsel %vm5250, %v5257, %v5237
        %5259 = vst [vmem:[%s831] sm:$0xff] %v5251
        %5260 = vst [vmem:[%s831 + $0x8] sm:$0xff] %v5258
        %v5261 = vld [vmem:[%s772] sm:$0xf]
        %v5262 = vld [vmem:[%s772 + $0x4] sm:$0x1]
        %v5263 = vld [vmem:[%s772 + $0x8] sm:$0xf]
        %v5264 = vld [vmem:[%s772 + $0xc] sm:$0x1]
        %v5265 = vld [vmem:[%s772 + $0x10] sm:$0xf]
        %v5266 = vld [vmem:[%s772 + $0x14] sm:$0x1]
        %v5267 = vld [vmem:[%s772 + $0x18] sm:$0xf]
        %v5268 = vld [vmem:[%s772 + $0x1c] sm:$0x1]
        %v5269 = vld [vmem:[%s772 + $0x20] sm:$0xf]
        %v5270 = vld [vmem:[%s772 + $0x24] sm:$0x1]
        %v5271 = vld [vmem:[%s772 + $0x28] sm:$0xf]
        %v5272 = vld [vmem:[%s772 + $0x2c] sm:$0x1]
        %v5273 = vld [vmem:[%s772 + $0x30] sm:$0xf]
        %v5274 = vld [vmem:[%s772 + $0x34] sm:$0x1]
        %v5275 = vld [vmem:[%s772 + $0x38] sm:$0xf]
        %v5276 = vld [vmem:[%s772 + $0x3c] sm:$0x1]
        %v5277 = vld [vmem:[%s772 + $0x40] sm:$0xf]
        %v5278 = vld [vmem:[%s772 + $0x44] sm:$0x1]
        %v5279 = vld [vmem:[%s772 + $0x48] sm:$0xf]
        %v5280 = vld [vmem:[%s772 + $0x4c] sm:$0x1]
        %v5281 = vld [vmem:[%s772 + $0x50] sm:$0xf]
        %v5282 = vld [vmem:[%s772 + $0x54] sm:$0x1]
        %v5283 = vld [vmem:[%s772 + $0x58] sm:$0xf]
        %v5284 = vld [vmem:[%s772 + $0x5c] sm:$0x1]
        %v5285 = vld [vmem:[%s772 + $0x60] sm:$0xf]
        %v5286 = vld [vmem:[%s772 + $0x64] sm:$0x1]
        %v5287 = vld [vmem:[%s772 + $0x68] sm:$0xf]
        %v5288 = vld [vmem:[%s772 + $0x6c] sm:$0x1]
        %v5289 = vld [vmem:[%s772 + $0x70] sm:$0xf]
        %v5290 = vld [vmem:[%s772 + $0x74] sm:$0x1]
        %v5291 = vld [vmem:[%s772 + $0x78] sm:$0xf]
        %v5292 = vld [vmem:[%s772 + $0x7c] sm:$0x1]
        %v5293 = vcombine.low %v5261, %v5269
        %v5295 = vunpack.c.l.s4 1983009808
        %v5296 = vunpack.c.0.s8 %v5295
        %v5297 = vlaneseq
        %v5298 = vshrl.u32 %v5297, 7
        %v5299 = vsub.s32 %v5296, %v5298
        %v5300 = vrot.slane %v5293, %v5299
        %v5301 = vcombine.low %v5265, %v5273
        %v5303 = vunpack.c.l.s4 1983009808
        %v5304 = vunpack.c.0.s8 %v5303
        %v5305 = vlaneseq
        %v5306 = vshrl.u32 %v5305, 7
        %v5307 = vsub.s32 %v5304, %v5306
        %v5308 = vrot.slane %v5301, %v5307
        %v5309 = vcombine.low %v5300, %v5308
        %v5310 = vcombine.high %v5300, %v5308
        %v5312 = vunpack.c.l.s4 1934713408
        %v5313 = vunpack.c.0.s8 %v5312
        %v5314 = vlaneseq
        %v5315 = vshrl.u32 %v5314, 7
        %v5316 = vsub.s32 %v5313, %v5315
        %v5317 = vrot.slane %v5309, %v5316
        %v5319 = vunpack.c.l.s4 1934713408
        %v5320 = vunpack.c.0.s8 %v5319
        %v5321 = vlaneseq
        %v5322 = vshrl.u32 %v5321, 7
        %v5323 = vsub.s32 %v5320, %v5322
        %v5324 = vrot.slane %v5310, %v5323
        %v5325 = vcombine.high %v5317, 0
        %v5326 = vcombine.high %v5324, 0
        %v5327 = vcombine.low %v5263, %v5271
        %v5329 = vunpack.c.l.s4 1983009808
        %v5330 = vunpack.c.0.s8 %v5329
        %v5331 = vlaneseq
        %v5332 = vshrl.u32 %v5331, 7
        %v5333 = vsub.s32 %v5330, %v5332
        %v5334 = vrot.slane %v5327, %v5333
        %v5335 = vcombine.low %v5267, %v5275
        %v5337 = vunpack.c.l.s4 1983009808
        %v5338 = vunpack.c.0.s8 %v5337
        %v5339 = vlaneseq
        %v5340 = vshrl.u32 %v5339, 7
        %v5341 = vsub.s32 %v5338, %v5340
        %v5342 = vrot.slane %v5335, %v5341
        %v5343 = vcombine.low %v5334, %v5342
        %v5344 = vcombine.high %v5334, %v5342
        %v5346 = vunpack.c.l.s4 1934713408
        %v5347 = vunpack.c.0.s8 %v5346
        %v5348 = vlaneseq
        %v5349 = vshrl.u32 %v5348, 7
        %v5350 = vsub.s32 %v5347, %v5349
        %v5351 = vrot.slane %v5343, %v5350
        %v5353 = vunpack.c.l.s4 1934713408
        %v5354 = vunpack.c.0.s8 %v5353
        %v5355 = vlaneseq
        %v5356 = vshrl.u32 %v5355, 7
        %v5357 = vsub.s32 %v5354, %v5356
        %v5358 = vrot.slane %v5344, %v5357
        %v5359 = vcombine.high %v5351, 0
        %v5360 = vcombine.high %v5358, 0
        %v5361 = vcombine.low %v5277, %v5285
        %v5363 = vunpack.c.l.s4 1983009808
        %v5364 = vunpack.c.0.s8 %v5363
        %v5365 = vlaneseq
        %v5366 = vshrl.u32 %v5365, 7
        %v5367 = vsub.s32 %v5364, %v5366
        %v5368 = vrot.slane %v5361, %v5367
        %v5369 = vcombine.low %v5281, %v5289
        %v5371 = vunpack.c.l.s4 1983009808
        %v5372 = vunpack.c.0.s8 %v5371
        %v5373 = vlaneseq
        %v5374 = vshrl.u32 %v5373, 7
        %v5375 = vsub.s32 %v5372, %v5374
        %v5376 = vrot.slane %v5369, %v5375
        %v5377 = vcombine.low %v5368, %v5376
        %v5378 = vcombine.high %v5368, %v5376
        %v5380 = vunpack.c.l.s4 1934713408
        %v5381 = vunpack.c.0.s8 %v5380
        %v5382 = vlaneseq
        %v5383 = vshrl.u32 %v5382, 7
        %v5384 = vsub.s32 %v5381, %v5383
        %v5385 = vrot.slane %v5377, %v5384
        %v5387 = vunpack.c.l.s4 1934713408
        %v5388 = vunpack.c.0.s8 %v5387
        %v5389 = vlaneseq
        %v5390 = vshrl.u32 %v5389, 7
        %v5391 = vsub.s32 %v5388, %v5390
        %v5392 = vrot.slane %v5378, %v5391
        %v5393 = vcombine.high %v5385, 0
        %v5394 = vcombine.high %v5392, 0
        %v5395 = vcombine.low %v5279, %v5287
        %v5397 = vunpack.c.l.s4 1983009808
        %v5398 = vunpack.c.0.s8 %v5397
        %v5399 = vlaneseq
        %v5400 = vshrl.u32 %v5399, 7
        %v5401 = vsub.s32 %v5398, %v5400
        %v5402 = vrot.slane %v5395, %v5401
        %v5403 = vcombine.low %v5283, %v5291
        %v5405 = vunpack.c.l.s4 1983009808
        %v5406 = vunpack.c.0.s8 %v5405
        %v5407 = vlaneseq
        %v5408 = vshrl.u32 %v5407, 7
        %v5409 = vsub.s32 %v5406, %v5408
        %v5410 = vrot.slane %v5403, %v5409
        %v5411 = vcombine.low %v5402, %v5410
        %v5412 = vcombine.high %v5402, %v5410
        %v5414 = vunpack.c.l.s4 1934713408
        %v5415 = vunpack.c.0.s8 %v5414
        %v5416 = vlaneseq
        %v5417 = vshrl.u32 %v5416, 7
        %v5418 = vsub.s32 %v5415, %v5417
        %v5419 = vrot.slane %v5411, %v5418
        %v5421 = vunpack.c.l.s4 1934713408
        %v5422 = vunpack.c.0.s8 %v5421
        %v5423 = vlaneseq
        %v5424 = vshrl.u32 %v5423, 7
        %v5425 = vsub.s32 %v5422, %v5424
        %v5426 = vrot.slane %v5412, %v5425
        %v5427 = vcombine.high %v5419, 0
        %v5428 = vcombine.high %v5426, 0
        %v5431 = vpack.i.b16 %v5351, %v5317
        %v5432 = vshrl.u32 %v5317, 16
        %v5433 = vshrl.u32 %v5351, 16
        %v5434 = vpack.i.b16 %v5433, %v5432
        %v5437 = vpack.i.b16 %v5359, %v5325
        %v5438 = vshrl.u32 %v5325, 16
        %v5439 = vshrl.u32 %v5359, 16
        %v5440 = vpack.i.b16 %v5439, %v5438
        %v5443 = vpack.i.b16 %v5358, %v5324
        %v5444 = vshrl.u32 %v5324, 16
        %v5445 = vshrl.u32 %v5358, 16
        %v5446 = vpack.i.b16 %v5445, %v5444
        %v5449 = vpack.i.b16 %v5360, %v5326
        %v5450 = vshrl.u32 %v5326, 16
        %v5451 = vshrl.u32 %v5360, 16
        %v5452 = vpack.i.b16 %v5451, %v5450
        %v5455 = vpack.i.b16 %v5419, %v5385
        %v5456 = vshrl.u32 %v5385, 16
        %v5457 = vshrl.u32 %v5419, 16
        %v5458 = vpack.i.b16 %v5457, %v5456
        %v5461 = vpack.i.b16 %v5427, %v5393
        %v5462 = vshrl.u32 %v5393, 16
        %v5463 = vshrl.u32 %v5427, 16
        %v5464 = vpack.i.b16 %v5463, %v5462
        %v5467 = vpack.i.b16 %v5426, %v5392
        %v5468 = vshrl.u32 %v5392, 16
        %v5469 = vshrl.u32 %v5426, 16
        %v5470 = vpack.i.b16 %v5469, %v5468
        %v5473 = vpack.i.b16 %v5428, %v5394
        %v5474 = vshrl.u32 %v5394, 16
        %v5475 = vshrl.u32 %v5428, 16
        %v5476 = vpack.i.b16 %v5475, %v5474
        %v5477 = vunpack.c.l.b16 %v5431
        %v5478 = vunpack.c.l.b16 %v5455
        %v5479 = vpack.c.b16 %v5478, %v5477
        %v5480 = vunpack.c.l.b16 %v5434
        %v5481 = vunpack.c.l.b16 %v5458
        %v5482 = vpack.c.b16 %v5481, %v5480
        %5483 = vrot.lane.b32.xlu0 %v5482, 8
        %v5484 = vpop.permute.xlu0 %5483
        %v5485 = vunpack.c.l.b16 %v5437
        %v5486 = vunpack.c.l.b16 %v5461
        %v5487 = vpack.c.b16 %v5486, %v5485
        %5488 = vrot.lane.b32.xlu0 %v5487, 16
        %v5489 = vpop.permute.xlu0 %5488
        %v5490 = vunpack.c.l.b16 %v5440
        %v5491 = vunpack.c.l.b16 %v5464
        %v5492 = vpack.c.b16 %v5491, %v5490
        %5493 = vrot.lane.b32.xlu0 %v5492, 24
        %v5494 = vpop.permute.xlu0 %5493
        %v5495 = vunpack.c.l.b16 %v5443
        %v5496 = vunpack.c.l.b16 %v5467
        %v5497 = vpack.c.b16 %v5496, %v5495
        %5498 = vrot.lane.b32.xlu0 %v5497, 32
        %v5499 = vpop.permute.xlu0 %5498
        %v5500 = vunpack.c.l.b16 %v5446
        %v5501 = vunpack.c.l.b16 %v5470
        %v5502 = vpack.c.b16 %v5501, %v5500
        %5503 = vrot.lane.b32.xlu0 %v5502, 40
        %v5504 = vpop.permute.xlu0 %5503
        %v5505 = vunpack.c.l.b16 %v5449
        %v5506 = vunpack.c.l.b16 %v5473
        %v5507 = vpack.c.b16 %v5506, %v5505
        %5508 = vrot.lane.b32.xlu0 %v5507, 48
        %v5509 = vpop.permute.xlu0 %5508
        %v5510 = vunpack.c.l.b16 %v5452
        %v5511 = vunpack.c.l.b16 %v5476
        %v5512 = vpack.c.b16 %v5511, %v5510
        %5513 = vrot.lane.b32.xlu0 %v5512, 56
        %v5514 = vpop.permute.xlu0 %5513
        %v5517 = vsel %vm971, %v5479, %v5484
        %v5519 = vsel %vm4035, %v5517, %v5489
        %vm5520 = vcmask 195584
        %v5522 = vsel %vm5520, %v5519, %v5494
        %v5524 = vsel %vm5240, %v5522, %v5499
        %vm5525 = vcmask 326656
        %v5527 = vsel %vm5525, %v5524, %v5504
        %v5529 = vsel %vm5242, %v5527, %v5509
        %vm5530 = vcmask 457728
        %v5532 = vsel %vm5530, %v5529, %v5514
        %5550 = vrot.lane.b32.xlu0 %v5261, 127
        %v5551 = vpop.permute.xlu0 %5550
        %5552 = vrot.lane.b32.xlu0 %v5263, 127
        %v5553 = vpop.permute.xlu0 %5552
        %5554 = vrot.lane.b32.xlu0 %v5265, 127
        %v5555 = vpop.permute.xlu0 %5554
        %5556 = vrot.lane.b32.xlu0 %v5267, 127
        %v5557 = vpop.permute.xlu0 %5556
        %5558 = vrot.lane.b32.xlu0 %v5269, 127
        %v5559 = vpop.permute.xlu0 %5558
        %5560 = vrot.lane.b32.xlu0 %v5271, 127
        %v5561 = vpop.permute.xlu0 %5560
        %5562 = vrot.lane.b32.xlu0 %v5273, 127
        %v5563 = vpop.permute.xlu0 %5562
        %5564 = vrot.lane.b32.xlu0 %v5275, 127
        %v5565 = vpop.permute.xlu0 %5564
        %5566 = vrot.lane.b32.xlu0 %v5277, 127
        %v5567 = vpop.permute.xlu0 %5566
        %5568 = vrot.lane.b32.xlu0 %v5279, 127
        %v5569 = vpop.permute.xlu0 %5568
        %5570 = vrot.lane.b32.xlu0 %v5281, 127
        %v5571 = vpop.permute.xlu0 %5570
        %5572 = vrot.lane.b32.xlu0 %v5283, 127
        %v5573 = vpop.permute.xlu0 %5572
        %5574 = vrot.lane.b32.xlu0 %v5285, 127
        %v5575 = vpop.permute.xlu0 %5574
        %5576 = vrot.lane.b32.xlu0 %v5287, 127
        %v5577 = vpop.permute.xlu0 %5576
        %5578 = vrot.lane.b32.xlu0 %v5289, 127
        %v5579 = vpop.permute.xlu0 %5578
        %5580 = vrot.lane.b32.xlu0 %v5291, 127
        %v5581 = vpop.permute.xlu0 %5580
        %v5598 = vcombine.low %v5551, %v5559
        %v5600 = vunpack.c.l.s4 1983009808
        %v5601 = vunpack.c.0.s8 %v5600
        %v5602 = vlaneseq
        %v5603 = vshrl.u32 %v5602, 7
        %v5604 = vsub.s32 %v5601, %v5603
        %v5605 = vrot.slane %v5598, %v5604
        %v5606 = vcombine.low %v5555, %v5563
        %v5608 = vunpack.c.l.s4 1983009808
        %v5609 = vunpack.c.0.s8 %v5608
        %v5610 = vlaneseq
        %v5611 = vshrl.u32 %v5610, 7
        %v5612 = vsub.s32 %v5609, %v5611
        %v5613 = vrot.slane %v5606, %v5612
        %v5614 = vcombine.low %v5605, %v5613
        %v5615 = vcombine.high %v5605, %v5613
        %v5617 = vunpack.c.l.s4 1934713408
        %v5618 = vunpack.c.0.s8 %v5617
        %v5619 = vlaneseq
        %v5620 = vshrl.u32 %v5619, 7
        %v5621 = vsub.s32 %v5618, %v5620
        %v5622 = vrot.slane %v5614, %v5621
        %v5624 = vunpack.c.l.s4 1934713408
        %v5625 = vunpack.c.0.s8 %v5624
        %v5626 = vlaneseq
        %v5627 = vshrl.u32 %v5626, 7
        %v5628 = vsub.s32 %v5625, %v5627
        %v5629 = vrot.slane %v5615, %v5628
        %v5630 = vcombine.high %v5622, 0
        %v5631 = vcombine.high %v5629, 0
        %v5632 = vcombine.low %v5553, %v5561
        %v5634 = vunpack.c.l.s4 1983009808
        %v5635 = vunpack.c.0.s8 %v5634
        %v5636 = vlaneseq
        %v5637 = vshrl.u32 %v5636, 7
        %v5638 = vsub.s32 %v5635, %v5637
        %v5639 = vrot.slane %v5632, %v5638
        %v5640 = vcombine.low %v5557, %v5565
        %v5642 = vunpack.c.l.s4 1983009808
        %v5643 = vunpack.c.0.s8 %v5642
        %v5644 = vlaneseq
        %v5645 = vshrl.u32 %v5644, 7
        %v5646 = vsub.s32 %v5643, %v5645
        %v5647 = vrot.slane %v5640, %v5646
        %v5648 = vcombine.low %v5639, %v5647
        %v5649 = vcombine.high %v5639, %v5647
        %v5651 = vunpack.c.l.s4 1934713408
        %v5652 = vunpack.c.0.s8 %v5651
        %v5653 = vlaneseq
        %v5654 = vshrl.u32 %v5653, 7
        %v5655 = vsub.s32 %v5652, %v5654
        %v5656 = vrot.slane %v5648, %v5655
        %v5658 = vunpack.c.l.s4 1934713408
        %v5659 = vunpack.c.0.s8 %v5658
        %v5660 = vlaneseq
        %v5661 = vshrl.u32 %v5660, 7
        %v5662 = vsub.s32 %v5659, %v5661
        %v5663 = vrot.slane %v5649, %v5662
        %v5664 = vcombine.high %v5656, 0
        %v5665 = vcombine.high %v5663, 0
        %v5666 = vcombine.low %v5567, %v5575
        %v5668 = vunpack.c.l.s4 1983009808
        %v5669 = vunpack.c.0.s8 %v5668
        %v5670 = vlaneseq
        %v5671 = vshrl.u32 %v5670, 7
        %v5672 = vsub.s32 %v5669, %v5671
        %v5673 = vrot.slane %v5666, %v5672
        %v5674 = vcombine.low %v5571, %v5579
        %v5676 = vunpack.c.l.s4 1983009808
        %v5677 = vunpack.c.0.s8 %v5676
        %v5678 = vlaneseq
        %v5679 = vshrl.u32 %v5678, 7
        %v5680 = vsub.s32 %v5677, %v5679
        %v5681 = vrot.slane %v5674, %v5680
        %v5682 = vcombine.low %v5673, %v5681
        %v5683 = vcombine.high %v5673, %v5681
        %v5685 = vunpack.c.l.s4 1934713408
        %v5686 = vunpack.c.0.s8 %v5685
        %v5687 = vlaneseq
        %v5688 = vshrl.u32 %v5687, 7
        %v5689 = vsub.s32 %v5686, %v5688
        %v5690 = vrot.slane %v5682, %v5689
        %v5692 = vunpack.c.l.s4 1934713408
        %v5693 = vunpack.c.0.s8 %v5692
        %v5694 = vlaneseq
        %v5695 = vshrl.u32 %v5694, 7
        %v5696 = vsub.s32 %v5693, %v5695
        %v5697 = vrot.slane %v5683, %v5696
        %v5698 = vcombine.high %v5690, 0
        %v5699 = vcombine.high %v5697, 0
        %v5700 = vcombine.low %v5569, %v5577
        %v5702 = vunpack.c.l.s4 1983009808
        %v5703 = vunpack.c.0.s8 %v5702
        %v5704 = vlaneseq
        %v5705 = vshrl.u32 %v5704, 7
        %v5706 = vsub.s32 %v5703, %v5705
        %v5707 = vrot.slane %v5700, %v5706
        %v5708 = vcombine.low %v5573, %v5581
        %v5710 = vunpack.c.l.s4 1983009808
        %v5711 = vunpack.c.0.s8 %v5710
        %v5712 = vlaneseq
        %v5713 = vshrl.u32 %v5712, 7
        %v5714 = vsub.s32 %v5711, %v5713
        %v5715 = vrot.slane %v5708, %v5714
        %v5716 = vcombine.low %v5707, %v5715
        %v5717 = vcombine.high %v5707, %v5715
        %v5719 = vunpack.c.l.s4 1934713408
        %v5720 = vunpack.c.0.s8 %v5719
        %v5721 = vlaneseq
        %v5722 = vshrl.u32 %v5721, 7
        %v5723 = vsub.s32 %v5720, %v5722
        %v5724 = vrot.slane %v5716, %v5723
        %v5726 = vunpack.c.l.s4 1934713408
        %v5727 = vunpack.c.0.s8 %v5726
        %v5728 = vlaneseq
        %v5729 = vshrl.u32 %v5728, 7
        %v5730 = vsub.s32 %v5727, %v5729
        %v5731 = vrot.slane %v5717, %v5730
        %v5732 = vcombine.high %v5724, 0
        %v5733 = vcombine.high %v5731, 0
        %v5736 = vpack.i.b16 %v5656, %v5622
        %v5737 = vshrl.u32 %v5622, 16
        %v5738 = vshrl.u32 %v5656, 16
        %v5739 = vpack.i.b16 %v5738, %v5737
        %v5742 = vpack.i.b16 %v5664, %v5630
        %v5743 = vshrl.u32 %v5630, 16
        %v5744 = vshrl.u32 %v5664, 16
        %v5745 = vpack.i.b16 %v5744, %v5743
        %v5748 = vpack.i.b16 %v5663, %v5629
        %v5749 = vshrl.u32 %v5629, 16
        %v5750 = vshrl.u32 %v5663, 16
        %v5751 = vpack.i.b16 %v5750, %v5749
        %v5754 = vpack.i.b16 %v5665, %v5631
        %v5755 = vshrl.u32 %v5631, 16
        %v5756 = vshrl.u32 %v5665, 16
        %v5757 = vpack.i.b16 %v5756, %v5755
        %v5760 = vpack.i.b16 %v5724, %v5690
        %v5761 = vshrl.u32 %v5690, 16
        %v5762 = vshrl.u32 %v5724, 16
        %v5763 = vpack.i.b16 %v5762, %v5761
        %v5766 = vpack.i.b16 %v5732, %v5698
        %v5767 = vshrl.u32 %v5698, 16
        %v5768 = vshrl.u32 %v5732, 16
        %v5769 = vpack.i.b16 %v5768, %v5767
        %v5772 = vpack.i.b16 %v5731, %v5697
        %v5773 = vshrl.u32 %v5697, 16
        %v5774 = vshrl.u32 %v5731, 16
        %v5775 = vpack.i.b16 %v5774, %v5773
        %v5778 = vpack.i.b16 %v5733, %v5699
        %v5779 = vshrl.u32 %v5699, 16
        %v5780 = vshrl.u32 %v5733, 16
        %v5781 = vpack.i.b16 %v5780, %v5779
        %v5782 = vunpack.c.l.b16 %v5736
        %v5783 = vunpack.c.l.b16 %v5760
        %v5784 = vpack.c.b16 %v5783, %v5782
        %v5785 = vunpack.c.l.b16 %v5739
        %v5786 = vunpack.c.l.b16 %v5763
        %v5787 = vpack.c.b16 %v5786, %v5785
        %5788 = vrot.lane.b32.xlu0 %v5787, 8
        %v5789 = vpop.permute.xlu0 %5788
        %v5790 = vunpack.c.l.b16 %v5742
        %v5791 = vunpack.c.l.b16 %v5766
        %v5792 = vpack.c.b16 %v5791, %v5790
        %5793 = vrot.lane.b32.xlu0 %v5792, 16
        %v5794 = vpop.permute.xlu0 %5793
        %v5795 = vunpack.c.l.b16 %v5745
        %v5796 = vunpack.c.l.b16 %v5769
        %v5797 = vpack.c.b16 %v5796, %v5795
        %5798 = vrot.lane.b32.xlu0 %v5797, 24
        %v5799 = vpop.permute.xlu0 %5798
        %v5800 = vunpack.c.l.b16 %v5748
        %v5801 = vunpack.c.l.b16 %v5772
        %v5802 = vpack.c.b16 %v5801, %v5800
        %5803 = vrot.lane.b32.xlu0 %v5802, 32
        %v5804 = vpop.permute.xlu0 %5803
        %v5805 = vunpack.c.l.b16 %v5751
        %v5806 = vunpack.c.l.b16 %v5775
        %v5807 = vpack.c.b16 %v5806, %v5805
        %5808 = vrot.lane.b32.xlu0 %v5807, 40
        %v5809 = vpop.permute.xlu0 %5808
        %v5810 = vunpack.c.l.b16 %v5754
        %v5811 = vunpack.c.l.b16 %v5778
        %v5812 = vpack.c.b16 %v5811, %v5810
        %5813 = vrot.lane.b32.xlu0 %v5812, 48
        %v5814 = vpop.permute.xlu0 %5813
        %v5815 = vunpack.c.l.b16 %v5757
        %v5816 = vunpack.c.l.b16 %v5781
        %v5817 = vpack.c.b16 %v5816, %v5815
        %5818 = vrot.lane.b32.xlu0 %v5817, 56
        %v5819 = vpop.permute.xlu0 %5818
        %v5822 = vsel %vm971, %v5784, %v5789
        %v5824 = vsel %vm4035, %v5822, %v5794
        %v5826 = vsel %vm5520, %v5824, %v5799
        %v5828 = vsel %vm5240, %v5826, %v5804
        %v5830 = vsel %vm5525, %v5828, %v5809
        %v5832 = vsel %vm5242, %v5830, %v5814
        %v5834 = vsel %vm5530, %v5832, %v5819
        %5836 = vrot.lane.b32.xlu0 %v5261, 126
        %v5837 = vpop.permute.xlu0 %5836
        %5838 = vrot.lane.b32.xlu0 %v5263, 126
        %v5839 = vpop.permute.xlu0 %5838
        %5840 = vrot.lane.b32.xlu0 %v5265, 126
        %v5841 = vpop.permute.xlu0 %5840
        %5842 = vrot.lane.b32.xlu0 %v5267, 126
        %v5843 = vpop.permute.xlu0 %5842
        %5844 = vrot.lane.b32.xlu0 %v5269, 126
        %v5845 = vpop.permute.xlu0 %5844
        %5846 = vrot.lane.b32.xlu0 %v5271, 126
        %v5847 = vpop.permute.xlu0 %5846
        %5848 = vrot.lane.b32.xlu0 %v5273, 126
        %v5849 = vpop.permute.xlu0 %5848
        %5850 = vrot.lane.b32.xlu0 %v5275, 126
        %v5851 = vpop.permute.xlu0 %5850
        %5852 = vrot.lane.b32.xlu0 %v5277, 126
        %v5853 = vpop.permute.xlu0 %5852
        %5854 = vrot.lane.b32.xlu0 %v5279, 126
        %v5855 = vpop.permute.xlu0 %5854
        %5856 = vrot.lane.b32.xlu0 %v5281, 126
        %v5857 = vpop.permute.xlu0 %5856
        %5858 = vrot.lane.b32.xlu0 %v5283, 126
        %v5859 = vpop.permute.xlu0 %5858
        %5860 = vrot.lane.b32.xlu0 %v5285, 126
        %v5861 = vpop.permute.xlu0 %5860
        %5862 = vrot.lane.b32.xlu0 %v5287, 126
        %v5863 = vpop.permute.xlu0 %5862
        %5864 = vrot.lane.b32.xlu0 %v5289, 126
        %v5865 = vpop.permute.xlu0 %5864
        %5866 = vrot.lane.b32.xlu0 %v5291, 126
        %v5867 = vpop.permute.xlu0 %5866
        %v5884 = vcombine.low %v5837, %v5845
        %v5886 = vunpack.c.l.s4 1983009808
        %v5887 = vunpack.c.0.s8 %v5886
        %v5888 = vlaneseq
        %v5889 = vshrl.u32 %v5888, 7
        %v5890 = vsub.s32 %v5887, %v5889
        %v5891 = vrot.slane %v5884, %v5890
        %v5892 = vcombine.low %v5841, %v5849
        %v5894 = vunpack.c.l.s4 1983009808
        %v5895 = vunpack.c.0.s8 %v5894
        %v5896 = vlaneseq
        %v5897 = vshrl.u32 %v5896, 7
        %v5898 = vsub.s32 %v5895, %v5897
        %v5899 = vrot.slane %v5892, %v5898
        %v5900 = vcombine.low %v5891, %v5899
        %v5901 = vcombine.high %v5891, %v5899
        %v5903 = vunpack.c.l.s4 1934713408
        %v5904 = vunpack.c.0.s8 %v5903
        %v5905 = vlaneseq
        %v5906 = vshrl.u32 %v5905, 7
        %v5907 = vsub.s32 %v5904, %v5906
        %v5908 = vrot.slane %v5900, %v5907
        %v5910 = vunpack.c.l.s4 1934713408
        %v5911 = vunpack.c.0.s8 %v5910
        %v5912 = vlaneseq
        %v5913 = vshrl.u32 %v5912, 7
        %v5914 = vsub.s32 %v5911, %v5913
        %v5915 = vrot.slane %v5901, %v5914
        %v5916 = vcombine.high %v5908, 0
        %v5917 = vcombine.high %v5915, 0
        %v5918 = vcombine.low %v5839, %v5847
        %v5920 = vunpack.c.l.s4 1983009808
        %v5921 = vunpack.c.0.s8 %v5920
        %v5922 = vlaneseq
        %v5923 = vshrl.u32 %v5922, 7
        %v5924 = vsub.s32 %v5921, %v5923
        %v5925 = vrot.slane %v5918, %v5924
        %v5926 = vcombine.low %v5843, %v5851
        %v5928 = vunpack.c.l.s4 1983009808
        %v5929 = vunpack.c.0.s8 %v5928
        %v5930 = vlaneseq
        %v5931 = vshrl.u32 %v5930, 7
        %v5932 = vsub.s32 %v5929, %v5931
        %v5933 = vrot.slane %v5926, %v5932
        %v5934 = vcombine.low %v5925, %v5933
        %v5935 = vcombine.high %v5925, %v5933
        %v5937 = vunpack.c.l.s4 1934713408
        %v5938 = vunpack.c.0.s8 %v5937
        %v5939 = vlaneseq
        %v5940 = vshrl.u32 %v5939, 7
        %v5941 = vsub.s32 %v5938, %v5940
        %v5942 = vrot.slane %v5934, %v5941
        %v5944 = vunpack.c.l.s4 1934713408
        %v5945 = vunpack.c.0.s8 %v5944
        %v5946 = vlaneseq
        %v5947 = vshrl.u32 %v5946, 7
        %v5948 = vsub.s32 %v5945, %v5947
        %v5949 = vrot.slane %v5935, %v5948
        %v5950 = vcombine.high %v5942, 0
        %v5951 = vcombine.high %v5949, 0
        %v5952 = vcombine.low %v5853, %v5861
        %v5954 = vunpack.c.l.s4 1983009808
        %v5955 = vunpack.c.0.s8 %v5954
        %v5956 = vlaneseq
        %v5957 = vshrl.u32 %v5956, 7
        %v5958 = vsub.s32 %v5955, %v5957
        %v5959 = vrot.slane %v5952, %v5958
        %v5960 = vcombine.low %v5857, %v5865
        %v5962 = vunpack.c.l.s4 1983009808
        %v5963 = vunpack.c.0.s8 %v5962
        %v5964 = vlaneseq
        %v5965 = vshrl.u32 %v5964, 7
        %v5966 = vsub.s32 %v5963, %v5965
        %v5967 = vrot.slane %v5960, %v5966
        %v5968 = vcombine.low %v5959, %v5967
        %v5969 = vcombine.high %v5959, %v5967
        %v5971 = vunpack.c.l.s4 1934713408
        %v5972 = vunpack.c.0.s8 %v5971
        %v5973 = vlaneseq
        %v5974 = vshrl.u32 %v5973, 7
        %v5975 = vsub.s32 %v5972, %v5974
        %v5976 = vrot.slane %v5968, %v5975
        %v5978 = vunpack.c.l.s4 1934713408
        %v5979 = vunpack.c.0.s8 %v5978
        %v5980 = vlaneseq
        %v5981 = vshrl.u32 %v5980, 7
        %v5982 = vsub.s32 %v5979, %v5981
        %v5983 = vrot.slane %v5969, %v5982
        %v5984 = vcombine.high %v5976, 0
        %v5985 = vcombine.high %v5983, 0
        %v5986 = vcombine.low %v5855, %v5863
        %v5988 = vunpack.c.l.s4 1983009808
        %v5989 = vunpack.c.0.s8 %v5988
        %v5990 = vlaneseq
        %v5991 = vshrl.u32 %v5990, 7
        %v5992 = vsub.s32 %v5989, %v5991
        %v5993 = vrot.slane %v5986, %v5992
        %v5994 = vcombine.low %v5859, %v5867
        %v5996 = vunpack.c.l.s4 1983009808
        %v5997 = vunpack.c.0.s8 %v5996
        %v5998 = vlaneseq
        %v5999 = vshrl.u32 %v5998, 7
        %v6000 = vsub.s32 %v5997, %v5999
        %v6001 = vrot.slane %v5994, %v6000
        %v6002 = vcombine.low %v5993, %v6001
        %v6003 = vcombine.high %v5993, %v6001
        %v6005 = vunpack.c.l.s4 1934713408
        %v6006 = vunpack.c.0.s8 %v6005
        %v6007 = vlaneseq
        %v6008 = vshrl.u32 %v6007, 7
        %v6009 = vsub.s32 %v6006, %v6008
        %v6010 = vrot.slane %v6002, %v6009
        %v6012 = vunpack.c.l.s4 1934713408
        %v6013 = vunpack.c.0.s8 %v6012
        %v6014 = vlaneseq
        %v6015 = vshrl.u32 %v6014, 7
        %v6016 = vsub.s32 %v6013, %v6015
        %v6017 = vrot.slane %v6003, %v6016
        %v6018 = vcombine.high %v6010, 0
        %v6019 = vcombine.high %v6017, 0
        %v6022 = vpack.i.b16 %v5942, %v5908
        %v6023 = vshrl.u32 %v5908, 16
        %v6024 = vshrl.u32 %v5942, 16
        %v6025 = vpack.i.b16 %v6024, %v6023
        %v6028 = vpack.i.b16 %v5950, %v5916
        %v6029 = vshrl.u32 %v5916, 16
        %v6030 = vshrl.u32 %v5950, 16
        %v6031 = vpack.i.b16 %v6030, %v6029
        %v6034 = vpack.i.b16 %v5949, %v5915
        %v6035 = vshrl.u32 %v5915, 16
        %v6036 = vshrl.u32 %v5949, 16
        %v6037 = vpack.i.b16 %v6036, %v6035
        %v6040 = vpack.i.b16 %v5951, %v5917
        %v6041 = vshrl.u32 %v5917, 16
        %v6042 = vshrl.u32 %v5951, 16
        %v6043 = vpack.i.b16 %v6042, %v6041
        %v6046 = vpack.i.b16 %v6010, %v5976
        %v6047 = vshrl.u32 %v5976, 16
        %v6048 = vshrl.u32 %v6010, 16
        %v6049 = vpack.i.b16 %v6048, %v6047
        %v6052 = vpack.i.b16 %v6018, %v5984
        %v6053 = vshrl.u32 %v5984, 16
        %v6054 = vshrl.u32 %v6018, 16
        %v6055 = vpack.i.b16 %v6054, %v6053
        %v6058 = vpack.i.b16 %v6017, %v5983
        %v6059 = vshrl.u32 %v5983, 16
        %v6060 = vshrl.u32 %v6017, 16
        %v6061 = vpack.i.b16 %v6060, %v6059
        %v6064 = vpack.i.b16 %v6019, %v5985
        %v6065 = vshrl.u32 %v5985, 16
        %v6066 = vshrl.u32 %v6019, 16
        %v6067 = vpack.i.b16 %v6066, %v6065
        %v6068 = vunpack.c.l.b16 %v6022
        %v6069 = vunpack.c.l.b16 %v6046
        %v6070 = vpack.c.b16 %v6069, %v6068
        %v6071 = vunpack.c.l.b16 %v6025
        %v6072 = vunpack.c.l.b16 %v6049
        %v6073 = vpack.c.b16 %v6072, %v6071
        %6074 = vrot.lane.b32.xlu0 %v6073, 8
        %v6075 = vpop.permute.xlu0 %6074
        %v6076 = vunpack.c.l.b16 %v6028
        %v6077 = vunpack.c.l.b16 %v6052
        %v6078 = vpack.c.b16 %v6077, %v6076
        %6079 = vrot.lane.b32.xlu0 %v6078, 16
        %v6080 = vpop.permute.xlu0 %6079
        %v6081 = vunpack.c.l.b16 %v6031
        %v6082 = vunpack.c.l.b16 %v6055
        %v6083 = vpack.c.b16 %v6082, %v6081
        %6084 = vrot.lane.b32.xlu0 %v6083, 24
        %v6085 = vpop.permute.xlu0 %6084
        %v6086 = vunpack.c.l.b16 %v6034
        %v6087 = vunpack.c.l.b16 %v6058
        %v6088 = vpack.c.b16 %v6087, %v6086
        %6089 = vrot.lane.b32.xlu0 %v6088, 32
        %v6090 = vpop.permute.xlu0 %6089
        %v6091 = vunpack.c.l.b16 %v6037
        %v6092 = vunpack.c.l.b16 %v6061
        %v6093 = vpack.c.b16 %v6092, %v6091
        %6094 = vrot.lane.b32.xlu0 %v6093, 40
        %v6095 = vpop.permute.xlu0 %6094
        %v6096 = vunpack.c.l.b16 %v6040
        %v6097 = vunpack.c.l.b16 %v6064
        %v6098 = vpack.c.b16 %v6097, %v6096
        %6099 = vrot.lane.b32.xlu0 %v6098, 48
        %v6100 = vpop.permute.xlu0 %6099
        %v6101 = vunpack.c.l.b16 %v6043
        %v6102 = vunpack.c.l.b16 %v6067
        %v6103 = vpack.c.b16 %v6102, %v6101
        %6104 = vrot.lane.b32.xlu0 %v6103, 56
        %v6105 = vpop.permute.xlu0 %6104
        %v6108 = vsel %vm971, %v6070, %v6075
        %v6110 = vsel %vm4035, %v6108, %v6080
        %v6112 = vsel %vm5520, %v6110, %v6085
        %v6114 = vsel %vm5240, %v6112, %v6090
        %v6116 = vsel %vm5525, %v6114, %v6095
        %v6118 = vsel %vm5242, %v6116, %v6100
        %v6120 = vsel %vm5530, %v6118, %v6105
        %vm6122 = vsmask.f32 3328
        %vm6123 = vsmask.f32 7440
        %vm6124 = vmor %vm6122, %vm6123
        %v6126 = vshrl.u32 %v5261, 16
        %v6128 = vrot.slane %v6126, 4
        %v6129 = vshll.u32 %v5261, 16
        %v6131 = vrot.slane %v6129, 5
        %v6132 = vor.u32 %v6128, %v6131
        %v6133 = vrot.slane %v6132, 4
        %v6135 = vshll.u32 %v5262, 16
        %v6137 = vrot.slane %v6135, 5
        %v6138 = vsel %vm6124, %v6133, %v6137
        %v6140 = vshrl.u32 %v5263, 16
        %v6142 = vrot.slane %v6140, 4
        %v6143 = vshll.u32 %v5263, 16
        %v6145 = vrot.slane %v6143, 5
        %v6146 = vor.u32 %v6142, %v6145
        %v6147 = vrot.slane %v6146, 4
        %v6149 = vshll.u32 %v5264, 16
        %v6151 = vrot.slane %v6149, 5
        %v6152 = vsel %vm6124, %v6147, %v6151
        %v6154 = vshrl.u32 %v5265, 16
        %v6156 = vrot.slane %v6154, 4
        %v6157 = vshll.u32 %v5265, 16
        %v6159 = vrot.slane %v6157, 5
        %v6160 = vor.u32 %v6156, %v6159
        %v6161 = vrot.slane %v6160, 4
        %v6163 = vshll.u32 %v5266, 16
        %v6165 = vrot.slane %v6163, 5
        %v6166 = vsel %vm6124, %v6161, %v6165
        %v6168 = vshrl.u32 %v5267, 16
        %v6170 = vrot.slane %v6168, 4
        %v6171 = vshll.u32 %v5267, 16
        %v6173 = vrot.slane %v6171, 5
        %v6174 = vor.u32 %v6170, %v6173
        %v6175 = vrot.slane %v6174, 4
        %v6177 = vshll.u32 %v5268, 16
        %v6179 = vrot.slane %v6177, 5
        %v6180 = vsel %vm6124, %v6175, %v6179
        %v6182 = vshrl.u32 %v5269, 16
        %v6184 = vrot.slane %v6182, 4
        %v6185 = vshll.u32 %v5269, 16
        %v6187 = vrot.slane %v6185, 5
        %v6188 = vor.u32 %v6184, %v6187
        %v6189 = vrot.slane %v6188, 4
        %v6191 = vshll.u32 %v5270, 16
        %v6193 = vrot.slane %v6191, 5
        %v6194 = vsel %vm6124, %v6189, %v6193
        %v6196 = vshrl.u32 %v5271, 16
        %v6198 = vrot.slane %v6196, 4
        %v6199 = vshll.u32 %v5271, 16
        %v6201 = vrot.slane %v6199, 5
        %v6202 = vor.u32 %v6198, %v6201
        %v6203 = vrot.slane %v6202, 4
        %v6205 = vshll.u32 %v5272, 16
        %v6207 = vrot.slane %v6205, 5
        %v6208 = vsel %vm6124, %v6203, %v6207
        %v6210 = vshrl.u32 %v5273, 16
        %v6212 = vrot.slane %v6210, 4
        %v6213 = vshll.u32 %v5273, 16
        %v6215 = vrot.slane %v6213, 5
        %v6216 = vor.u32 %v6212, %v6215
        %v6217 = vrot.slane %v6216, 4
        %v6219 = vshll.u32 %v5274, 16
        %v6221 = vrot.slane %v6219, 5
        %v6222 = vsel %vm6124, %v6217, %v6221
        %v6224 = vshrl.u32 %v5275, 16
        %v6226 = vrot.slane %v6224, 4
        %v6227 = vshll.u32 %v5275, 16
        %v6229 = vrot.slane %v6227, 5
        %v6230 = vor.u32 %v6226, %v6229
        %v6231 = vrot.slane %v6230, 4
        %v6233 = vshll.u32 %v5276, 16
        %v6235 = vrot.slane %v6233, 5
        %v6236 = vsel %vm6124, %v6231, %v6235
        %v6238 = vshrl.u32 %v5277, 16
        %v6240 = vrot.slane %v6238, 4
        %v6241 = vshll.u32 %v5277, 16
        %v6243 = vrot.slane %v6241, 5
        %v6244 = vor.u32 %v6240, %v6243
        %v6245 = vrot.slane %v6244, 4
        %v6247 = vshll.u32 %v5278, 16
        %v6249 = vrot.slane %v6247, 5
        %v6250 = vsel %vm6124, %v6245, %v6249
        %v6252 = vshrl.u32 %v5279, 16
        %v6254 = vrot.slane %v6252, 4
        %v6255 = vshll.u32 %v5279, 16
        %v6257 = vrot.slane %v6255, 5
        %v6258 = vor.u32 %v6254, %v6257
        %v6259 = vrot.slane %v6258, 4
        %v6261 = vshll.u32 %v5280, 16
        %v6263 = vrot.slane %v6261, 5
        %v6264 = vsel %vm6124, %v6259, %v6263
        %v6266 = vshrl.u32 %v5281, 16
        %v6268 = vrot.slane %v6266, 4
        %v6269 = vshll.u32 %v5281, 16
        %v6271 = vrot.slane %v6269, 5
        %v6272 = vor.u32 %v6268, %v6271
        %v6273 = vrot.slane %v6272, 4
        %v6275 = vshll.u32 %v5282, 16
        %v6277 = vrot.slane %v6275, 5
        %v6278 = vsel %vm6124, %v6273, %v6277
        %v6280 = vshrl.u32 %v5283, 16
        %v6282 = vrot.slane %v6280, 4
        %v6283 = vshll.u32 %v5283, 16
        %v6285 = vrot.slane %v6283, 5
        %v6286 = vor.u32 %v6282, %v6285
        %v6287 = vrot.slane %v6286, 4
        %v6289 = vshll.u32 %v5284, 16
        %v6291 = vrot.slane %v6289, 5
        %v6292 = vsel %vm6124, %v6287, %v6291
        %v6294 = vshrl.u32 %v5285, 16
        %v6296 = vrot.slane %v6294, 4
        %v6297 = vshll.u32 %v5285, 16
        %v6299 = vrot.slane %v6297, 5
        %v6300 = vor.u32 %v6296, %v6299
        %v6301 = vrot.slane %v6300, 4
        %v6303 = vshll.u32 %v5286, 16
        %v6305 = vrot.slane %v6303, 5
        %v6306 = vsel %vm6124, %v6301, %v6305
        %v6308 = vshrl.u32 %v5287, 16
        %v6310 = vrot.slane %v6308, 4
        %v6311 = vshll.u32 %v5287, 16
        %v6313 = vrot.slane %v6311, 5
        %v6314 = vor.u32 %v6310, %v6313
        %v6315 = vrot.slane %v6314, 4
        %v6317 = vshll.u32 %v5288, 16
        %v6319 = vrot.slane %v6317, 5
        %v6320 = vsel %vm6124, %v6315, %v6319
        %v6322 = vshrl.u32 %v5289, 16
        %v6324 = vrot.slane %v6322, 4
        %v6325 = vshll.u32 %v5289, 16
        %v6327 = vrot.slane %v6325, 5
        %v6328 = vor.u32 %v6324, %v6327
        %v6329 = vrot.slane %v6328, 4
        %v6331 = vshll.u32 %v5290, 16
        %v6333 = vrot.slane %v6331, 5
        %v6334 = vsel %vm6124, %v6329, %v6333
        %v6336 = vshrl.u32 %v5291, 16
        %v6338 = vrot.slane %v6336, 4
        %v6339 = vshll.u32 %v5291, 16
        %v6341 = vrot.slane %v6339, 5
        %v6342 = vor.u32 %v6338, %v6341
        %v6343 = vrot.slane %v6342, 4
        %v6345 = vshll.u32 %v5292, 16
        %v6347 = vrot.slane %v6345, 5
        %v6348 = vsel %vm6124, %v6343, %v6347
        %v6365 = vcombine.low %v6138, %v6194
        %v6367 = vunpack.c.l.s4 1983009808
        %v6368 = vunpack.c.0.s8 %v6367
        %v6369 = vlaneseq
        %v6370 = vshrl.u32 %v6369, 7
        %v6371 = vsub.s32 %v6368, %v6370
        %v6372 = vrot.slane %v6365, %v6371
        %v6373 = vcombine.low %v6166, %v6222
        %v6375 = vunpack.c.l.s4 1983009808
        %v6376 = vunpack.c.0.s8 %v6375
        %v6377 = vlaneseq
        %v6378 = vshrl.u32 %v6377, 7
        %v6379 = vsub.s32 %v6376, %v6378
        %v6380 = vrot.slane %v6373, %v6379
        %v6381 = vcombine.low %v6372, %v6380
        %v6382 = vcombine.high %v6372, %v6380
        %v6384 = vunpack.c.l.s4 1934713408
        %v6385 = vunpack.c.0.s8 %v6384
        %v6386 = vlaneseq
        %v6387 = vshrl.u32 %v6386, 7
        %v6388 = vsub.s32 %v6385, %v6387
        %v6389 = vrot.slane %v6381, %v6388
        %v6391 = vunpack.c.l.s4 1934713408
        %v6392 = vunpack.c.0.s8 %v6391
        %v6393 = vlaneseq
        %v6394 = vshrl.u32 %v6393, 7
        %v6395 = vsub.s32 %v6392, %v6394
        %v6396 = vrot.slane %v6382, %v6395
        %v6397 = vcombine.high %v6389, 0
        %v6398 = vcombine.high %v6396, 0
        %v6399 = vcombine.low %v6152, %v6208
        %v6401 = vunpack.c.l.s4 1983009808
        %v6402 = vunpack.c.0.s8 %v6401
        %v6403 = vlaneseq
        %v6404 = vshrl.u32 %v6403, 7
        %v6405 = vsub.s32 %v6402, %v6404
        %v6406 = vrot.slane %v6399, %v6405
        %v6407 = vcombine.low %v6180, %v6236
        %v6409 = vunpack.c.l.s4 1983009808
        %v6410 = vunpack.c.0.s8 %v6409
        %v6411 = vlaneseq
        %v6412 = vshrl.u32 %v6411, 7
        %v6413 = vsub.s32 %v6410, %v6412
        %v6414 = vrot.slane %v6407, %v6413
        %v6415 = vcombine.low %v6406, %v6414
        %v6416 = vcombine.high %v6406, %v6414
        %v6418 = vunpack.c.l.s4 1934713408
        %v6419 = vunpack.c.0.s8 %v6418
        %v6420 = vlaneseq
        %v6421 = vshrl.u32 %v6420, 7
        %v6422 = vsub.s32 %v6419, %v6421
        %v6423 = vrot.slane %v6415, %v6422
        %v6425 = vunpack.c.l.s4 1934713408
        %v6426 = vunpack.c.0.s8 %v6425
        %v6427 = vlaneseq
        %v6428 = vshrl.u32 %v6427, 7
        %v6429 = vsub.s32 %v6426, %v6428
        %v6430 = vrot.slane %v6416, %v6429
        %v6431 = vcombine.high %v6423, 0
        %v6432 = vcombine.high %v6430, 0
        %v6433 = vcombine.low %v6250, %v6306
        %v6435 = vunpack.c.l.s4 1983009808
        %v6436 = vunpack.c.0.s8 %v6435
        %v6437 = vlaneseq
        %v6438 = vshrl.u32 %v6437, 7
        %v6439 = vsub.s32 %v6436, %v6438
        %v6440 = vrot.slane %v6433, %v6439
        %v6441 = vcombine.low %v6278, %v6334
        %v6443 = vunpack.c.l.s4 1983009808
        %v6444 = vunpack.c.0.s8 %v6443
        %v6445 = vlaneseq
        %v6446 = vshrl.u32 %v6445, 7
        %v6447 = vsub.s32 %v6444, %v6446
        %v6448 = vrot.slane %v6441, %v6447
        %v6449 = vcombine.low %v6440, %v6448
        %v6450 = vcombine.high %v6440, %v6448
        %v6452 = vunpack.c.l.s4 1934713408
        %v6453 = vunpack.c.0.s8 %v6452
        %v6454 = vlaneseq
        %v6455 = vshrl.u32 %v6454, 7
        %v6456 = vsub.s32 %v6453, %v6455
        %v6457 = vrot.slane %v6449, %v6456
        %v6459 = vunpack.c.l.s4 1934713408
        %v6460 = vunpack.c.0.s8 %v6459
        %v6461 = vlaneseq
        %v6462 = vshrl.u32 %v6461, 7
        %v6463 = vsub.s32 %v6460, %v6462
        %v6464 = vrot.slane %v6450, %v6463
        %v6465 = vcombine.high %v6457, 0
        %v6466 = vcombine.high %v6464, 0
        %v6467 = vcombine.low %v6264, %v6320
        %v6469 = vunpack.c.l.s4 1983009808
        %v6470 = vunpack.c.0.s8 %v6469
        %v6471 = vlaneseq
        %v6472 = vshrl.u32 %v6471, 7
        %v6473 = vsub.s32 %v6470, %v6472
        %v6474 = vrot.slane %v6467, %v6473
        %v6475 = vcombine.low %v6292, %v6348
        %v6477 = vunpack.c.l.s4 1983009808
        %v6478 = vunpack.c.0.s8 %v6477
        %v6479 = vlaneseq
        %v6480 = vshrl.u32 %v6479, 7
        %v6481 = vsub.s32 %v6478, %v6480
        %v6482 = vrot.slane %v6475, %v6481
        %v6483 = vcombine.low %v6474, %v6482
        %v6484 = vcombine.high %v6474, %v6482
        %v6486 = vunpack.c.l.s4 1934713408
        %v6487 = vunpack.c.0.s8 %v6486
        %v6488 = vlaneseq
        %v6489 = vshrl.u32 %v6488, 7
        %v6490 = vsub.s32 %v6487, %v6489
        %v6491 = vrot.slane %v6483, %v6490
        %v6493 = vunpack.c.l.s4 1934713408
        %v6494 = vunpack.c.0.s8 %v6493
        %v6495 = vlaneseq
        %v6496 = vshrl.u32 %v6495, 7
        %v6497 = vsub.s32 %v6494, %v6496
        %v6498 = vrot.slane %v6484, %v6497
        %v6499 = vcombine.high %v6491, 0
        %v6500 = vcombine.high %v6498, 0
        %v6503 = vpack.i.b16 %v6423, %v6389
        %v6504 = vshrl.u32 %v6389, 16
        %v6505 = vshrl.u32 %v6423, 16
        %v6506 = vpack.i.b16 %v6505, %v6504
        %v6509 = vpack.i.b16 %v6431, %v6397
        %v6510 = vshrl.u32 %v6397, 16
        %v6511 = vshrl.u32 %v6431, 16
        %v6512 = vpack.i.b16 %v6511, %v6510
        %v6515 = vpack.i.b16 %v6430, %v6396
        %v6516 = vshrl.u32 %v6396, 16
        %v6517 = vshrl.u32 %v6430, 16
        %v6518 = vpack.i.b16 %v6517, %v6516
        %v6521 = vpack.i.b16 %v6432, %v6398
        %v6522 = vshrl.u32 %v6398, 16
        %v6523 = vshrl.u32 %v6432, 16
        %v6524 = vpack.i.b16 %v6523, %v6522
        %v6527 = vpack.i.b16 %v6491, %v6457
        %v6528 = vshrl.u32 %v6457, 16
        %v6529 = vshrl.u32 %v6491, 16
        %v6530 = vpack.i.b16 %v6529, %v6528
        %v6533 = vpack.i.b16 %v6499, %v6465
        %v6534 = vshrl.u32 %v6465, 16
        %v6535 = vshrl.u32 %v6499, 16
        %v6536 = vpack.i.b16 %v6535, %v6534
        %v6539 = vpack.i.b16 %v6498, %v6464
        %v6540 = vshrl.u32 %v6464, 16
        %v6541 = vshrl.u32 %v6498, 16
        %v6542 = vpack.i.b16 %v6541, %v6540
        %v6545 = vpack.i.b16 %v6500, %v6466
        %v6546 = vshrl.u32 %v6466, 16
        %v6547 = vshrl.u32 %v6500, 16
        %v6548 = vpack.i.b16 %v6547, %v6546
        %v6549 = vunpack.c.l.b16 %v6503
        %v6550 = vunpack.c.l.b16 %v6527
        %v6551 = vpack.c.b16 %v6550, %v6549
        %v6552 = vunpack.c.l.b16 %v6506
        %v6553 = vunpack.c.l.b16 %v6530
        %v6554 = vpack.c.b16 %v6553, %v6552
        %6555 = vrot.lane.b32.xlu0 %v6554, 8
        %v6556 = vpop.permute.xlu0 %6555
        %v6557 = vunpack.c.l.b16 %v6509
        %v6558 = vunpack.c.l.b16 %v6533
        %v6559 = vpack.c.b16 %v6558, %v6557
        %6560 = vrot.lane.b32.xlu0 %v6559, 16
        %v6561 = vpop.permute.xlu0 %6560
        %v6562 = vunpack.c.l.b16 %v6512
        %v6563 = vunpack.c.l.b16 %v6536
        %v6564 = vpack.c.b16 %v6563, %v6562
        %6565 = vrot.lane.b32.xlu0 %v6564, 24
        %v6566 = vpop.permute.xlu0 %6565
        %v6567 = vunpack.c.l.b16 %v6515
        %v6568 = vunpack.c.l.b16 %v6539
        %v6569 = vpack.c.b16 %v6568, %v6567
        %6570 = vrot.lane.b32.xlu0 %v6569, 32
        %v6571 = vpop.permute.xlu0 %6570
        %v6572 = vunpack.c.l.b16 %v6518
        %v6573 = vunpack.c.l.b16 %v6542
        %v6574 = vpack.c.b16 %v6573, %v6572
        %6575 = vrot.lane.b32.xlu0 %v6574, 40
        %v6576 = vpop.permute.xlu0 %6575
        %v6577 = vunpack.c.l.b16 %v6521
        %v6578 = vunpack.c.l.b16 %v6545
        %v6579 = vpack.c.b16 %v6578, %v6577
        %6580 = vrot.lane.b32.xlu0 %v6579, 48
        %v6581 = vpop.permute.xlu0 %6580
        %v6582 = vunpack.c.l.b16 %v6524
        %v6583 = vunpack.c.l.b16 %v6548
        %v6584 = vpack.c.b16 %v6583, %v6582
        %6585 = vrot.lane.b32.xlu0 %v6584, 56
        %v6586 = vpop.permute.xlu0 %6585
        %v6589 = vsel %vm971, %v6551, %v6556
        %v6591 = vsel %vm4035, %v6589, %v6561
        %v6593 = vsel %vm5520, %v6591, %v6566
        %v6595 = vsel %vm5240, %v6593, %v6571
        %v6597 = vsel %vm5525, %v6595, %v6576
        %v6599 = vsel %vm5242, %v6597, %v6581
        %v6601 = vsel %vm5530, %v6599, %v6586
        %6603 = vrot.lane.b32.xlu0 %v6138, 127
        %v6604 = vpop.permute.xlu0 %6603
        %6605 = vrot.lane.b32.xlu0 %v6152, 127
        %v6606 = vpop.permute.xlu0 %6605
        %6607 = vrot.lane.b32.xlu0 %v6166, 127
        %v6608 = vpop.permute.xlu0 %6607
        %6609 = vrot.lane.b32.xlu0 %v6180, 127
        %v6610 = vpop.permute.xlu0 %6609
        %6611 = vrot.lane.b32.xlu0 %v6194, 127
        %v6612 = vpop.permute.xlu0 %6611
        %6613 = vrot.lane.b32.xlu0 %v6208, 127
        %v6614 = vpop.permute.xlu0 %6613
        %6615 = vrot.lane.b32.xlu0 %v6222, 127
        %v6616 = vpop.permute.xlu0 %6615
        %6617 = vrot.lane.b32.xlu0 %v6236, 127
        %v6618 = vpop.permute.xlu0 %6617
        %6619 = vrot.lane.b32.xlu0 %v6250, 127
        %v6620 = vpop.permute.xlu0 %6619
        %6621 = vrot.lane.b32.xlu0 %v6264, 127
        %v6622 = vpop.permute.xlu0 %6621
        %6623 = vrot.lane.b32.xlu0 %v6278, 127
        %v6624 = vpop.permute.xlu0 %6623
        %6625 = vrot.lane.b32.xlu0 %v6292, 127
        %v6626 = vpop.permute.xlu0 %6625
        %6627 = vrot.lane.b32.xlu0 %v6306, 127
        %v6628 = vpop.permute.xlu0 %6627
        %6629 = vrot.lane.b32.xlu0 %v6320, 127
        %v6630 = vpop.permute.xlu0 %6629
        %6631 = vrot.lane.b32.xlu0 %v6334, 127
        %v6632 = vpop.permute.xlu0 %6631
        %6633 = vrot.lane.b32.xlu0 %v6348, 127
        %v6634 = vpop.permute.xlu0 %6633
        %v6651 = vcombine.low %v6604, %v6612
        %v6653 = vunpack.c.l.s4 1983009808
        %v6654 = vunpack.c.0.s8 %v6653
        %v6655 = vlaneseq
        %v6656 = vshrl.u32 %v6655, 7
        %v6657 = vsub.s32 %v6654, %v6656
        %v6658 = vrot.slane %v6651, %v6657
        %v6659 = vcombine.low %v6608, %v6616
        %v6661 = vunpack.c.l.s4 1983009808
        %v6662 = vunpack.c.0.s8 %v6661
        %v6663 = vlaneseq
        %v6664 = vshrl.u32 %v6663, 7
        %v6665 = vsub.s32 %v6662, %v6664
        %v6666 = vrot.slane %v6659, %v6665
        %v6667 = vcombine.low %v6658, %v6666
        %v6668 = vcombine.high %v6658, %v6666
        %v6670 = vunpack.c.l.s4 1934713408
        %v6671 = vunpack.c.0.s8 %v6670
        %v6672 = vlaneseq
        %v6673 = vshrl.u32 %v6672, 7
        %v6674 = vsub.s32 %v6671, %v6673
        %v6675 = vrot.slane %v6667, %v6674
        %v6677 = vunpack.c.l.s4 1934713408
        %v6678 = vunpack.c.0.s8 %v6677
        %v6679 = vlaneseq
        %v6680 = vshrl.u32 %v6679, 7
        %v6681 = vsub.s32 %v6678, %v6680
        %v6682 = vrot.slane %v6668, %v6681
        %v6683 = vcombine.high %v6675, 0
        %v6684 = vcombine.high %v6682, 0
        %v6685 = vcombine.low %v6606, %v6614
        %v6687 = vunpack.c.l.s4 1983009808
        %v6688 = vunpack.c.0.s8 %v6687
        %v6689 = vlaneseq
        %v6690 = vshrl.u32 %v6689, 7
        %v6691 = vsub.s32 %v6688, %v6690
        %v6692 = vrot.slane %v6685, %v6691
        %v6693 = vcombine.low %v6610, %v6618
        %v6695 = vunpack.c.l.s4 1983009808
        %v6696 = vunpack.c.0.s8 %v6695
        %v6697 = vlaneseq
        %v6698 = vshrl.u32 %v6697, 7
        %v6699 = vsub.s32 %v6696, %v6698
        %v6700 = vrot.slane %v6693, %v6699
        %v6701 = vcombine.low %v6692, %v6700
        %v6702 = vcombine.high %v6692, %v6700
        %v6704 = vunpack.c.l.s4 1934713408
        %v6705 = vunpack.c.0.s8 %v6704
        %v6706 = vlaneseq
        %v6707 = vshrl.u32 %v6706, 7
        %v6708 = vsub.s32 %v6705, %v6707
        %v6709 = vrot.slane %v6701, %v6708
        %v6711 = vunpack.c.l.s4 1934713408
        %v6712 = vunpack.c.0.s8 %v6711
        %v6713 = vlaneseq
        %v6714 = vshrl.u32 %v6713, 7
        %v6715 = vsub.s32 %v6712, %v6714
        %v6716 = vrot.slane %v6702, %v6715
        %v6717 = vcombine.high %v6709, 0
        %v6718 = vcombine.high %v6716, 0
        %v6719 = vcombine.low %v6620, %v6628
        %v6721 = vunpack.c.l.s4 1983009808
        %v6722 = vunpack.c.0.s8 %v6721
        %v6723 = vlaneseq
        %v6724 = vshrl.u32 %v6723, 7
        %v6725 = vsub.s32 %v6722, %v6724
        %v6726 = vrot.slane %v6719, %v6725
        %v6727 = vcombine.low %v6624, %v6632
        %v6729 = vunpack.c.l.s4 1983009808
        %v6730 = vunpack.c.0.s8 %v6729
        %v6731 = vlaneseq
        %v6732 = vshrl.u32 %v6731, 7
        %v6733 = vsub.s32 %v6730, %v6732
        %v6734 = vrot.slane %v6727, %v6733
        %v6735 = vcombine.low %v6726, %v6734
        %v6736 = vcombine.high %v6726, %v6734
        %v6738 = vunpack.c.l.s4 1934713408
        %v6739 = vunpack.c.0.s8 %v6738
        %v6740 = vlaneseq
        %v6741 = vshrl.u32 %v6740, 7
        %v6742 = vsub.s32 %v6739, %v6741
        %v6743 = vrot.slane %v6735, %v6742
        %v6745 = vunpack.c.l.s4 1934713408
        %v6746 = vunpack.c.0.s8 %v6745
        %v6747 = vlaneseq
        %v6748 = vshrl.u32 %v6747, 7
        %v6749 = vsub.s32 %v6746, %v6748
        %v6750 = vrot.slane %v6736, %v6749
        %v6751 = vcombine.high %v6743, 0
        %v6752 = vcombine.high %v6750, 0
        %v6753 = vcombine.low %v6622, %v6630
        %v6755 = vunpack.c.l.s4 1983009808
        %v6756 = vunpack.c.0.s8 %v6755
        %v6757 = vlaneseq
        %v6758 = vshrl.u32 %v6757, 7
        %v6759 = vsub.s32 %v6756, %v6758
        %v6760 = vrot.slane %v6753, %v6759
        %v6761 = vcombine.low %v6626, %v6634
        %v6763 = vunpack.c.l.s4 1983009808
        %v6764 = vunpack.c.0.s8 %v6763
        %v6765 = vlaneseq
        %v6766 = vshrl.u32 %v6765, 7
        %v6767 = vsub.s32 %v6764, %v6766
        %v6768 = vrot.slane %v6761, %v6767
        %v6769 = vcombine.low %v6760, %v6768
        %v6770 = vcombine.high %v6760, %v6768
        %v6772 = vunpack.c.l.s4 1934713408
        %v6773 = vunpack.c.0.s8 %v6772
        %v6774 = vlaneseq
        %v6775 = vshrl.u32 %v6774, 7
        %v6776 = vsub.s32 %v6773, %v6775
        %v6777 = vrot.slane %v6769, %v6776
        %v6779 = vunpack.c.l.s4 1934713408
        %v6780 = vunpack.c.0.s8 %v6779
        %v6781 = vlaneseq
        %v6782 = vshrl.u32 %v6781, 7
        %v6783 = vsub.s32 %v6780, %v6782
        %v6784 = vrot.slane %v6770, %v6783
        %v6785 = vcombine.high %v6777, 0
        %v6786 = vcombine.high %v6784, 0
        %v6789 = vpack.i.b16 %v6709, %v6675
        %v6790 = vshrl.u32 %v6675, 16
        %v6791 = vshrl.u32 %v6709, 16
        %v6792 = vpack.i.b16 %v6791, %v6790
        %v6795 = vpack.i.b16 %v6717, %v6683
        %v6796 = vshrl.u32 %v6683, 16
        %v6797 = vshrl.u32 %v6717, 16
        %v6798 = vpack.i.b16 %v6797, %v6796
        %v6801 = vpack.i.b16 %v6716, %v6682
        %v6802 = vshrl.u32 %v6682, 16
        %v6803 = vshrl.u32 %v6716, 16
        %v6804 = vpack.i.b16 %v6803, %v6802
        %v6807 = vpack.i.b16 %v6718, %v6684
        %v6808 = vshrl.u32 %v6684, 16
        %v6809 = vshrl.u32 %v6718, 16
        %v6810 = vpack.i.b16 %v6809, %v6808
        %v6813 = vpack.i.b16 %v6777, %v6743
        %v6814 = vshrl.u32 %v6743, 16
        %v6815 = vshrl.u32 %v6777, 16
        %v6816 = vpack.i.b16 %v6815, %v6814
        %v6819 = vpack.i.b16 %v6785, %v6751
        %v6820 = vshrl.u32 %v6751, 16
        %v6821 = vshrl.u32 %v6785, 16
        %v6822 = vpack.i.b16 %v6821, %v6820
        %v6825 = vpack.i.b16 %v6784, %v6750
        %v6826 = vshrl.u32 %v6750, 16
        %v6827 = vshrl.u32 %v6784, 16
        %v6828 = vpack.i.b16 %v6827, %v6826
        %v6831 = vpack.i.b16 %v6786, %v6752
        %v6832 = vshrl.u32 %v6752, 16
        %v6833 = vshrl.u32 %v6786, 16
        %v6834 = vpack.i.b16 %v6833, %v6832
        %v6835 = vunpack.c.l.b16 %v6789
        %v6836 = vunpack.c.l.b16 %v6813
        %v6837 = vpack.c.b16 %v6836, %v6835
        %v6838 = vunpack.c.l.b16 %v6792
        %v6839 = vunpack.c.l.b16 %v6816
        %v6840 = vpack.c.b16 %v6839, %v6838
        %6841 = vrot.lane.b32.xlu0 %v6840, 8
        %v6842 = vpop.permute.xlu0 %6841
        %v6843 = vunpack.c.l.b16 %v6795
        %v6844 = vunpack.c.l.b16 %v6819
        %v6845 = vpack.c.b16 %v6844, %v6843
        %6846 = vrot.lane.b32.xlu0 %v6845, 16
        %v6847 = vpop.permute.xlu0 %6846
        %v6848 = vunpack.c.l.b16 %v6798
        %v6849 = vunpack.c.l.b16 %v6822
        %v6850 = vpack.c.b16 %v6849, %v6848
        %6851 = vrot.lane.b32.xlu0 %v6850, 24
        %v6852 = vpop.permute.xlu0 %6851
        %v6853 = vunpack.c.l.b16 %v6801
        %v6854 = vunpack.c.l.b16 %v6825
        %v6855 = vpack.c.b16 %v6854, %v6853
        %6856 = vrot.lane.b32.xlu0 %v6855, 32
        %v6857 = vpop.permute.xlu0 %6856
        %v6858 = vunpack.c.l.b16 %v6804
        %v6859 = vunpack.c.l.b16 %v6828
        %v6860 = vpack.c.b16 %v6859, %v6858
        %6861 = vrot.lane.b32.xlu0 %v6860, 40
        %v6862 = vpop.permute.xlu0 %6861
        %v6863 = vunpack.c.l.b16 %v6807
        %v6864 = vunpack.c.l.b16 %v6831
        %v6865 = vpack.c.b16 %v6864, %v6863
        %6866 = vrot.lane.b32.xlu0 %v6865, 48
        %v6867 = vpop.permute.xlu0 %6866
        %v6868 = vunpack.c.l.b16 %v6810
        %v6869 = vunpack.c.l.b16 %v6834
        %v6870 = vpack.c.b16 %v6869, %v6868
        %6871 = vrot.lane.b32.xlu0 %v6870, 56
        %v6872 = vpop.permute.xlu0 %6871
        %v6875 = vsel %vm971, %v6837, %v6842
        %v6877 = vsel %vm4035, %v6875, %v6847
        %v6879 = vsel %vm5520, %v6877, %v6852
        %v6881 = vsel %vm5240, %v6879, %v6857
        %v6883 = vsel %vm5525, %v6881, %v6862
        %v6885 = vsel %vm5242, %v6883, %v6867
        %v6887 = vsel %vm5530, %v6885, %v6872
        %6889 = vrot.lane.b32.xlu0 %v6138, 126
        %v6890 = vpop.permute.xlu0 %6889
        %6891 = vrot.lane.b32.xlu0 %v6152, 126
        %v6892 = vpop.permute.xlu0 %6891
        %6893 = vrot.lane.b32.xlu0 %v6166, 126
        %v6894 = vpop.permute.xlu0 %6893
        %6895 = vrot.lane.b32.xlu0 %v6180, 126
        %v6896 = vpop.permute.xlu0 %6895
        %6897 = vrot.lane.b32.xlu0 %v6194, 126
        %v6898 = vpop.permute.xlu0 %6897
        %6899 = vrot.lane.b32.xlu0 %v6208, 126
        %v6900 = vpop.permute.xlu0 %6899
        %6901 = vrot.lane.b32.xlu0 %v6222, 126
        %v6902 = vpop.permute.xlu0 %6901
        %6903 = vrot.lane.b32.xlu0 %v6236, 126
        %v6904 = vpop.permute.xlu0 %6903
        %6905 = vrot.lane.b32.xlu0 %v6250, 126
        %v6906 = vpop.permute.xlu0 %6905
        %6907 = vrot.lane.b32.xlu0 %v6264, 126
        %v6908 = vpop.permute.xlu0 %6907
        %6909 = vrot.lane.b32.xlu0 %v6278, 126
        %v6910 = vpop.permute.xlu0 %6909
        %6911 = vrot.lane.b32.xlu0 %v6292, 126
        %v6912 = vpop.permute.xlu0 %6911
        %6913 = vrot.lane.b32.xlu0 %v6306, 126
        %v6914 = vpop.permute.xlu0 %6913
        %6915 = vrot.lane.b32.xlu0 %v6320, 126
        %v6916 = vpop.permute.xlu0 %6915
        %6917 = vrot.lane.b32.xlu0 %v6334, 126
        %v6918 = vpop.permute.xlu0 %6917
        %6919 = vrot.lane.b32.xlu0 %v6348, 126
        %v6920 = vpop.permute.xlu0 %6919
        %v6937 = vcombine.low %v6890, %v6898
        %v6939 = vunpack.c.l.s4 1983009808
        %v6940 = vunpack.c.0.s8 %v6939
        %v6941 = vlaneseq
        %v6942 = vshrl.u32 %v6941, 7
        %v6943 = vsub.s32 %v6940, %v6942
        %v6944 = vrot.slane %v6937, %v6943
        %v6945 = vcombine.low %v6894, %v6902
        %v6947 = vunpack.c.l.s4 1983009808
        %v6948 = vunpack.c.0.s8 %v6947
        %v6949 = vlaneseq
        %v6950 = vshrl.u32 %v6949, 7
        %v6951 = vsub.s32 %v6948, %v6950
        %v6952 = vrot.slane %v6945, %v6951
        %v6953 = vcombine.low %v6944, %v6952
        %v6954 = vcombine.high %v6944, %v6952
        %v6956 = vunpack.c.l.s4 1934713408
        %v6957 = vunpack.c.0.s8 %v6956
        %v6958 = vlaneseq
        %v6959 = vshrl.u32 %v6958, 7
        %v6960 = vsub.s32 %v6957, %v6959
        %v6961 = vrot.slane %v6953, %v6960
        %v6963 = vunpack.c.l.s4 1934713408
        %v6964 = vunpack.c.0.s8 %v6963
        %v6965 = vlaneseq
        %v6966 = vshrl.u32 %v6965, 7
        %v6967 = vsub.s32 %v6964, %v6966
        %v6968 = vrot.slane %v6954, %v6967
        %v6969 = vcombine.high %v6961, 0
        %v6970 = vcombine.high %v6968, 0
        %v6971 = vcombine.low %v6892, %v6900
        %v6973 = vunpack.c.l.s4 1983009808
        %v6974 = vunpack.c.0.s8 %v6973
        %v6975 = vlaneseq
        %v6976 = vshrl.u32 %v6975, 7
        %v6977 = vsub.s32 %v6974, %v6976
        %v6978 = vrot.slane %v6971, %v6977
        %v6979 = vcombine.low %v6896, %v6904
        %v6981 = vunpack.c.l.s4 1983009808
        %v6982 = vunpack.c.0.s8 %v6981
        %v6983 = vlaneseq
        %v6984 = vshrl.u32 %v6983, 7
        %v6985 = vsub.s32 %v6982, %v6984
        %v6986 = vrot.slane %v6979, %v6985
        %v6987 = vcombine.low %v6978, %v6986
        %v6988 = vcombine.high %v6978, %v6986
        %v6990 = vunpack.c.l.s4 1934713408
        %v6991 = vunpack.c.0.s8 %v6990
        %v6992 = vlaneseq
        %v6993 = vshrl.u32 %v6992, 7
        %v6994 = vsub.s32 %v6991, %v6993
        %v6995 = vrot.slane %v6987, %v6994
        %v6997 = vunpack.c.l.s4 1934713408
        %v6998 = vunpack.c.0.s8 %v6997
        %v6999 = vlaneseq
        %v7000 = vshrl.u32 %v6999, 7
        %v7001 = vsub.s32 %v6998, %v7000
        %v7002 = vrot.slane %v6988, %v7001
        %v7003 = vcombine.high %v6995, 0
        %v7004 = vcombine.high %v7002, 0
        %v7005 = vcombine.low %v6906, %v6914
        %v7007 = vunpack.c.l.s4 1983009808
        %v7008 = vunpack.c.0.s8 %v7007
        %v7009 = vlaneseq
        %v7010 = vshrl.u32 %v7009, 7
        %v7011 = vsub.s32 %v7008, %v7010
        %v7012 = vrot.slane %v7005, %v7011
        %v7013 = vcombine.low %v6910, %v6918
        %v7015 = vunpack.c.l.s4 1983009808
        %v7016 = vunpack.c.0.s8 %v7015
        %v7017 = vlaneseq
        %v7018 = vshrl.u32 %v7017, 7
        %v7019 = vsub.s32 %v7016, %v7018
        %v7020 = vrot.slane %v7013, %v7019
        %v7021 = vcombine.low %v7012, %v7020
        %v7022 = vcombine.high %v7012, %v7020
        %v7024 = vunpack.c.l.s4 1934713408
        %v7025 = vunpack.c.0.s8 %v7024
        %v7026 = vlaneseq
        %v7027 = vshrl.u32 %v7026, 7
        %v7028 = vsub.s32 %v7025, %v7027
        %v7029 = vrot.slane %v7021, %v7028
        %v7031 = vunpack.c.l.s4 1934713408
        %v7032 = vunpack.c.0.s8 %v7031
        %v7033 = vlaneseq
        %v7034 = vshrl.u32 %v7033, 7
        %v7035 = vsub.s32 %v7032, %v7034
        %v7036 = vrot.slane %v7022, %v7035
        %v7037 = vcombine.high %v7029, 0
        %v7038 = vcombine.high %v7036, 0
        %v7039 = vcombine.low %v6908, %v6916
        %v7041 = vunpack.c.l.s4 1983009808
        %v7042 = vunpack.c.0.s8 %v7041
        %v7043 = vlaneseq
        %v7044 = vshrl.u32 %v7043, 7
        %v7045 = vsub.s32 %v7042, %v7044
        %v7046 = vrot.slane %v7039, %v7045
        %v7047 = vcombine.low %v6912, %v6920
        %v7049 = vunpack.c.l.s4 1983009808
        %v7050 = vunpack.c.0.s8 %v7049
        %v7051 = vlaneseq
        %v7052 = vshrl.u32 %v7051, 7
        %v7053 = vsub.s32 %v7050, %v7052
        %v7054 = vrot.slane %v7047, %v7053
        %v7055 = vcombine.low %v7046, %v7054
        %v7056 = vcombine.high %v7046, %v7054
        %v7058 = vunpack.c.l.s4 1934713408
        %v7059 = vunpack.c.0.s8 %v7058
        %v7060 = vlaneseq
        %v7061 = vshrl.u32 %v7060, 7
        %v7062 = vsub.s32 %v7059, %v7061
        %v7063 = vrot.slane %v7055, %v7062
        %v7065 = vunpack.c.l.s4 1934713408
        %v7066 = vunpack.c.0.s8 %v7065
        %v7067 = vlaneseq
        %v7068 = vshrl.u32 %v7067, 7
        %v7069 = vsub.s32 %v7066, %v7068
        %v7070 = vrot.slane %v7056, %v7069
        %v7071 = vcombine.high %v7063, 0
        %v7072 = vcombine.high %v7070, 0
        %v7075 = vpack.i.b16 %v6995, %v6961
        %v7076 = vshrl.u32 %v6961, 16
        %v7077 = vshrl.u32 %v6995, 16
        %v7078 = vpack.i.b16 %v7077, %v7076
        %v7081 = vpack.i.b16 %v7003, %v6969
        %v7082 = vshrl.u32 %v6969, 16
        %v7083 = vshrl.u32 %v7003, 16
        %v7084 = vpack.i.b16 %v7083, %v7082
        %v7087 = vpack.i.b16 %v7002, %v6968
        %v7088 = vshrl.u32 %v6968, 16
        %v7089 = vshrl.u32 %v7002, 16
        %v7090 = vpack.i.b16 %v7089, %v7088
        %v7093 = vpack.i.b16 %v7004, %v6970
        %v7094 = vshrl.u32 %v6970, 16
        %v7095 = vshrl.u32 %v7004, 16
        %v7096 = vpack.i.b16 %v7095, %v7094
        %v7099 = vpack.i.b16 %v7063, %v7029
        %v7100 = vshrl.u32 %v7029, 16
        %v7101 = vshrl.u32 %v7063, 16
        %v7102 = vpack.i.b16 %v7101, %v7100
        %v7105 = vpack.i.b16 %v7071, %v7037
        %v7106 = vshrl.u32 %v7037, 16
        %v7107 = vshrl.u32 %v7071, 16
        %v7108 = vpack.i.b16 %v7107, %v7106
        %v7111 = vpack.i.b16 %v7070, %v7036
        %v7112 = vshrl.u32 %v7036, 16
        %v7113 = vshrl.u32 %v7070, 16
        %v7114 = vpack.i.b16 %v7113, %v7112
        %v7117 = vpack.i.b16 %v7072, %v7038
        %v7118 = vshrl.u32 %v7038, 16
        %v7119 = vshrl.u32 %v7072, 16
        %v7120 = vpack.i.b16 %v7119, %v7118
        %v7121 = vunpack.c.l.b16 %v7075
        %v7122 = vunpack.c.l.b16 %v7099
        %v7123 = vpack.c.b16 %v7122, %v7121
        %v7124 = vunpack.c.l.b16 %v7078
        %v7125 = vunpack.c.l.b16 %v7102
        %v7126 = vpack.c.b16 %v7125, %v7124
        %7127 = vrot.lane.b32.xlu0 %v7126, 8
        %v7128 = vpop.permute.xlu0 %7127
        %v7129 = vunpack.c.l.b16 %v7081
        %v7130 = vunpack.c.l.b16 %v7105
        %v7131 = vpack.c.b16 %v7130, %v7129
        %7132 = vrot.lane.b32.xlu0 %v7131, 16
        %v7133 = vpop.permute.xlu0 %7132
        %v7134 = vunpack.c.l.b16 %v7084
        %v7135 = vunpack.c.l.b16 %v7108
        %v7136 = vpack.c.b16 %v7135, %v7134
        %7137 = vrot.lane.b32.xlu0 %v7136, 24
        %v7138 = vpop.permute.xlu0 %7137
        %v7139 = vunpack.c.l.b16 %v7087
        %v7140 = vunpack.c.l.b16 %v7111
        %v7141 = vpack.c.b16 %v7140, %v7139
        %7142 = vrot.lane.b32.xlu0 %v7141, 32
        %v7143 = vpop.permute.xlu0 %7142
        %v7144 = vunpack.c.l.b16 %v7090
        %v7145 = vunpack.c.l.b16 %v7114
        %v7146 = vpack.c.b16 %v7145, %v7144
        %7147 = vrot.lane.b32.xlu0 %v7146, 40
        %v7148 = vpop.permute.xlu0 %7147
        %v7149 = vunpack.c.l.b16 %v7093
        %v7150 = vunpack.c.l.b16 %v7117
        %v7151 = vpack.c.b16 %v7150, %v7149
        %7152 = vrot.lane.b32.xlu0 %v7151, 48
        %v7153 = vpop.permute.xlu0 %7152
        %v7154 = vunpack.c.l.b16 %v7096
        %v7155 = vunpack.c.l.b16 %v7120
        %v7156 = vpack.c.b16 %v7155, %v7154
        %7157 = vrot.lane.b32.xlu0 %v7156, 56
        %v7158 = vpop.permute.xlu0 %7157
        %v7161 = vsel %vm971, %v7123, %v7128
        %v7163 = vsel %vm4035, %v7161, %v7133
        %v7165 = vsel %vm5520, %v7163, %v7138
        %v7167 = vsel %vm5240, %v7165, %v7143
        %v7169 = vsel %vm5525, %v7167, %v7148
        %v7171 = vsel %vm5242, %v7169, %v7153
        %v7173 = vsel %vm5530, %v7171, %v7158
        %vm7191 = vcmask 1046532
        %vm7192 = vmor %vm2307, %vm7191
        %v7193 = vrot.slane %v5261, 5
        %v7194 = vrot.slane %v7193, 4
        %v7195 = vrot.slane %v5262, 5
        %v7196 = vsel %vm7192, %v7194, %v7195
        %v7197 = vrot.slane %v5263, 5
        %v7198 = vrot.slane %v7197, 4
        %v7199 = vrot.slane %v5264, 5
        %v7200 = vsel %vm7192, %v7198, %v7199
        %v7201 = vrot.slane %v5265, 5
        %v7202 = vrot.slane %v7201, 4
        %v7203 = vrot.slane %v5266, 5
        %v7204 = vsel %vm7192, %v7202, %v7203
        %v7205 = vrot.slane %v5267, 5
        %v7206 = vrot.slane %v7205, 4
        %v7207 = vrot.slane %v5268, 5
        %v7208 = vsel %vm7192, %v7206, %v7207
        %v7209 = vrot.slane %v5269, 5
        %v7210 = vrot.slane %v7209, 4
        %v7211 = vrot.slane %v5270, 5
        %v7212 = vsel %vm7192, %v7210, %v7211
        %v7213 = vrot.slane %v5271, 5
        %v7214 = vrot.slane %v7213, 4
        %v7215 = vrot.slane %v5272, 5
        %v7216 = vsel %vm7192, %v7214, %v7215
        %v7217 = vrot.slane %v5273, 5
        %v7218 = vrot.slane %v7217, 4
        %v7219 = vrot.slane %v5274, 5
        %v7220 = vsel %vm7192, %v7218, %v7219
        %v7221 = vrot.slane %v5275, 5
        %v7222 = vrot.slane %v7221, 4
        %v7223 = vrot.slane %v5276, 5
        %v7224 = vsel %vm7192, %v7222, %v7223
        %v7225 = vrot.slane %v5277, 5
        %v7226 = vrot.slane %v7225, 4
        %v7227 = vrot.slane %v5278, 5
        %v7228 = vsel %vm7192, %v7226, %v7227
        %v7229 = vrot.slane %v5279, 5
        %v7230 = vrot.slane %v7229, 4
        %v7231 = vrot.slane %v5280, 5
        %v7232 = vsel %vm7192, %v7230, %v7231
        %v7233 = vrot.slane %v5281, 5
        %v7234 = vrot.slane %v7233, 4
        %v7235 = vrot.slane %v5282, 5
        %v7236 = vsel %vm7192, %v7234, %v7235
        %v7237 = vrot.slane %v5283, 5
        %v7238 = vrot.slane %v7237, 4
        %v7239 = vrot.slane %v5284, 5
        %v7240 = vsel %vm7192, %v7238, %v7239
        %v7241 = vrot.slane %v5285, 5
        %v7242 = vrot.slane %v7241, 4
        %v7243 = vrot.slane %v5286, 5
        %v7244 = vsel %vm7192, %v7242, %v7243
        %v7245 = vrot.slane %v5287, 5
        %v7246 = vrot.slane %v7245, 4
        %v7247 = vrot.slane %v5288, 5
        %v7248 = vsel %vm7192, %v7246, %v7247
        %v7249 = vrot.slane %v5289, 5
        %v7250 = vrot.slane %v7249, 4
        %v7251 = vrot.slane %v5290, 5
        %v7252 = vsel %vm7192, %v7250, %v7251
        %v7253 = vrot.slane %v5291, 5
        %v7254 = vrot.slane %v7253, 4
        %v7255 = vrot.slane %v5292, 5
        %v7256 = vsel %vm7192, %v7254, %v7255
        %v7273 = vcombine.low %v7196, %v7212
        %v7275 = vunpack.c.l.s4 1983009808
        %v7276 = vunpack.c.0.s8 %v7275
        %v7277 = vlaneseq
        %v7278 = vshrl.u32 %v7277, 7
        %v7279 = vsub.s32 %v7276, %v7278
        %v7280 = vrot.slane %v7273, %v7279
        %v7281 = vcombine.low %v7204, %v7220
        %v7283 = vunpack.c.l.s4 1983009808
        %v7284 = vunpack.c.0.s8 %v7283
        %v7285 = vlaneseq
        %v7286 = vshrl.u32 %v7285, 7
        %v7287 = vsub.s32 %v7284, %v7286
        %v7288 = vrot.slane %v7281, %v7287
        %v7289 = vcombine.low %v7280, %v7288
        %v7290 = vcombine.high %v7280, %v7288
        %v7292 = vunpack.c.l.s4 1934713408
        %v7293 = vunpack.c.0.s8 %v7292
        %v7294 = vlaneseq
        %v7295 = vshrl.u32 %v7294, 7
        %v7296 = vsub.s32 %v7293, %v7295
        %v7297 = vrot.slane %v7289, %v7296
        %v7299 = vunpack.c.l.s4 1934713408
        %v7300 = vunpack.c.0.s8 %v7299
        %v7301 = vlaneseq
        %v7302 = vshrl.u32 %v7301, 7
        %v7303 = vsub.s32 %v7300, %v7302
        %v7304 = vrot.slane %v7290, %v7303
        %v7305 = vcombine.high %v7297, 0
        %v7306 = vcombine.high %v7304, 0
        %v7307 = vcombine.low %v7200, %v7216
        %v7309 = vunpack.c.l.s4 1983009808
        %v7310 = vunpack.c.0.s8 %v7309
        %v7311 = vlaneseq
        %v7312 = vshrl.u32 %v7311, 7
        %v7313 = vsub.s32 %v7310, %v7312
        %v7314 = vrot.slane %v7307, %v7313
        %v7315 = vcombine.low %v7208, %v7224
        %v7317 = vunpack.c.l.s4 1983009808
        %v7318 = vunpack.c.0.s8 %v7317
        %v7319 = vlaneseq
        %v7320 = vshrl.u32 %v7319, 7
        %v7321 = vsub.s32 %v7318, %v7320
        %v7322 = vrot.slane %v7315, %v7321
        %v7323 = vcombine.low %v7314, %v7322
        %v7324 = vcombine.high %v7314, %v7322
        %v7326 = vunpack.c.l.s4 1934713408
        %v7327 = vunpack.c.0.s8 %v7326
        %v7328 = vlaneseq
        %v7329 = vshrl.u32 %v7328, 7
        %v7330 = vsub.s32 %v7327, %v7329
        %v7331 = vrot.slane %v7323, %v7330
        %v7333 = vunpack.c.l.s4 1934713408
        %v7334 = vunpack.c.0.s8 %v7333
        %v7335 = vlaneseq
        %v7336 = vshrl.u32 %v7335, 7
        %v7337 = vsub.s32 %v7334, %v7336
        %v7338 = vrot.slane %v7324, %v7337
        %v7339 = vcombine.high %v7331, 0
        %v7340 = vcombine.high %v7338, 0
        %v7341 = vcombine.low %v7228, %v7244
        %v7343 = vunpack.c.l.s4 1983009808
        %v7344 = vunpack.c.0.s8 %v7343
        %v7345 = vlaneseq
        %v7346 = vshrl.u32 %v7345, 7
        %v7347 = vsub.s32 %v7344, %v7346
        %v7348 = vrot.slane %v7341, %v7347
        %v7349 = vcombine.low %v7236, %v7252
        %v7351 = vunpack.c.l.s4 1983009808
        %v7352 = vunpack.c.0.s8 %v7351
        %v7353 = vlaneseq
        %v7354 = vshrl.u32 %v7353, 7
        %v7355 = vsub.s32 %v7352, %v7354
        %v7356 = vrot.slane %v7349, %v7355
        %v7357 = vcombine.low %v7348, %v7356
        %v7358 = vcombine.high %v7348, %v7356
        %v7360 = vunpack.c.l.s4 1934713408
        %v7361 = vunpack.c.0.s8 %v7360
        %v7362 = vlaneseq
        %v7363 = vshrl.u32 %v7362, 7
        %v7364 = vsub.s32 %v7361, %v7363
        %v7365 = vrot.slane %v7357, %v7364
        %v7367 = vunpack.c.l.s4 1934713408
        %v7368 = vunpack.c.0.s8 %v7367
        %v7369 = vlaneseq
        %v7370 = vshrl.u32 %v7369, 7
        %v7371 = vsub.s32 %v7368, %v7370
        %v7372 = vrot.slane %v7358, %v7371
        %v7373 = vcombine.high %v7365, 0
        %v7374 = vcombine.high %v7372, 0
        %v7375 = vcombine.low %v7232, %v7248
        %v7377 = vunpack.c.l.s4 1983009808
        %v7378 = vunpack.c.0.s8 %v7377
        %v7379 = vlaneseq
        %v7380 = vshrl.u32 %v7379, 7
        %v7381 = vsub.s32 %v7378, %v7380
        %v7382 = vrot.slane %v7375, %v7381
        %v7383 = vcombine.low %v7240, %v7256
        %v7385 = vunpack.c.l.s4 1983009808
        %v7386 = vunpack.c.0.s8 %v7385
        %v7387 = vlaneseq
        %v7388 = vshrl.u32 %v7387, 7
        %v7389 = vsub.s32 %v7386, %v7388
        %v7390 = vrot.slane %v7383, %v7389
        %v7391 = vcombine.low %v7382, %v7390
        %v7392 = vcombine.high %v7382, %v7390
        %v7394 = vunpack.c.l.s4 1934713408
        %v7395 = vunpack.c.0.s8 %v7394
        %v7396 = vlaneseq
        %v7397 = vshrl.u32 %v7396, 7
        %v7398 = vsub.s32 %v7395, %v7397
        %v7399 = vrot.slane %v7391, %v7398
        %v7401 = vunpack.c.l.s4 1934713408
        %v7402 = vunpack.c.0.s8 %v7401
        %v7403 = vlaneseq
        %v7404 = vshrl.u32 %v7403, 7
        %v7405 = vsub.s32 %v7402, %v7404
        %v7406 = vrot.slane %v7392, %v7405
        %v7407 = vcombine.high %v7399, 0
        %v7408 = vcombine.high %v7406, 0
        %v7411 = vpack.i.b16 %v7331, %v7297
        %v7412 = vshrl.u32 %v7297, 16
        %v7413 = vshrl.u32 %v7331, 16
        %v7414 = vpack.i.b16 %v7413, %v7412
        %v7417 = vpack.i.b16 %v7339, %v7305
        %v7418 = vshrl.u32 %v7305, 16
        %v7419 = vshrl.u32 %v7339, 16
        %v7420 = vpack.i.b16 %v7419, %v7418
        %v7423 = vpack.i.b16 %v7338, %v7304
        %v7424 = vshrl.u32 %v7304, 16
        %v7425 = vshrl.u32 %v7338, 16
        %v7426 = vpack.i.b16 %v7425, %v7424
        %v7429 = vpack.i.b16 %v7340, %v7306
        %v7430 = vshrl.u32 %v7306, 16
        %v7431 = vshrl.u32 %v7340, 16
        %v7432 = vpack.i.b16 %v7431, %v7430
        %v7435 = vpack.i.b16 %v7399, %v7365
        %v7436 = vshrl.u32 %v7365, 16
        %v7437 = vshrl.u32 %v7399, 16
        %v7438 = vpack.i.b16 %v7437, %v7436
        %v7441 = vpack.i.b16 %v7407, %v7373
        %v7442 = vshrl.u32 %v7373, 16
        %v7443 = vshrl.u32 %v7407, 16
        %v7444 = vpack.i.b16 %v7443, %v7442
        %v7447 = vpack.i.b16 %v7406, %v7372
        %v7448 = vshrl.u32 %v7372, 16
        %v7449 = vshrl.u32 %v7406, 16
        %v7450 = vpack.i.b16 %v7449, %v7448
        %v7453 = vpack.i.b16 %v7408, %v7374
        %v7454 = vshrl.u32 %v7374, 16
        %v7455 = vshrl.u32 %v7408, 16
        %v7456 = vpack.i.b16 %v7455, %v7454
        %v7457 = vunpack.c.l.b16 %v7411
        %v7458 = vunpack.c.l.b16 %v7435
        %v7459 = vpack.c.b16 %v7458, %v7457
        %v7460 = vunpack.c.l.b16 %v7414
        %v7461 = vunpack.c.l.b16 %v7438
        %v7462 = vpack.c.b16 %v7461, %v7460
        %7463 = vrot.lane.b32.xlu0 %v7462, 8
        %v7464 = vpop.permute.xlu0 %7463
        %v7465 = vunpack.c.l.b16 %v7417
        %v7466 = vunpack.c.l.b16 %v7441
        %v7467 = vpack.c.b16 %v7466, %v7465
        %7468 = vrot.lane.b32.xlu0 %v7467, 16
        %v7469 = vpop.permute.xlu0 %7468
        %v7470 = vunpack.c.l.b16 %v7420
        %v7471 = vunpack.c.l.b16 %v7444
        %v7472 = vpack.c.b16 %v7471, %v7470
        %7473 = vrot.lane.b32.xlu0 %v7472, 24
        %v7474 = vpop.permute.xlu0 %7473
        %v7475 = vunpack.c.l.b16 %v7423
        %v7476 = vunpack.c.l.b16 %v7447
        %v7477 = vpack.c.b16 %v7476, %v7475
        %7478 = vrot.lane.b32.xlu0 %v7477, 32
        %v7479 = vpop.permute.xlu0 %7478
        %v7480 = vunpack.c.l.b16 %v7426
        %v7481 = vunpack.c.l.b16 %v7450
        %v7482 = vpack.c.b16 %v7481, %v7480
        %7483 = vrot.lane.b32.xlu0 %v7482, 40
        %v7484 = vpop.permute.xlu0 %7483
        %v7485 = vunpack.c.l.b16 %v7429
        %v7486 = vunpack.c.l.b16 %v7453
        %v7487 = vpack.c.b16 %v7486, %v7485
        %7488 = vrot.lane.b32.xlu0 %v7487, 48
        %v7489 = vpop.permute.xlu0 %7488
        %v7490 = vunpack.c.l.b16 %v7432
        %v7491 = vunpack.c.l.b16 %v7456
        %v7492 = vpack.c.b16 %v7491, %v7490
        %7493 = vrot.lane.b32.xlu0 %v7492, 56
        %v7494 = vpop.permute.xlu0 %7493
        %v7497 = vsel %vm971, %v7459, %v7464
        %v7499 = vsel %vm4035, %v7497, %v7469
        %v7501 = vsel %vm5520, %v7499, %v7474
        %v7503 = vsel %vm5240, %v7501, %v7479
        %v7505 = vsel %vm5525, %v7503, %v7484
        %v7507 = vsel %vm5242, %v7505, %v7489
        %v7509 = vsel %vm5530, %v7507, %v7494
        %7511 = vrot.lane.b32.xlu0 %v7196, 127
        %v7512 = vpop.permute.xlu0 %7511
        %7513 = vrot.lane.b32.xlu0 %v7200, 127
        %v7514 = vpop.permute.xlu0 %7513
        %7515 = vrot.lane.b32.xlu0 %v7204, 127
        %v7516 = vpop.permute.xlu0 %7515
        %7517 = vrot.lane.b32.xlu0 %v7208, 127
        %v7518 = vpop.permute.xlu0 %7517
        %7519 = vrot.lane.b32.xlu0 %v7212, 127
        %v7520 = vpop.permute.xlu0 %7519
        %7521 = vrot.lane.b32.xlu0 %v7216, 127
        %v7522 = vpop.permute.xlu0 %7521
        %7523 = vrot.lane.b32.xlu0 %v7220, 127
        %v7524 = vpop.permute.xlu0 %7523
        %7525 = vrot.lane.b32.xlu0 %v7224, 127
        %v7526 = vpop.permute.xlu0 %7525
        %7527 = vrot.lane.b32.xlu0 %v7228, 127
        %v7528 = vpop.permute.xlu0 %7527
        %7529 = vrot.lane.b32.xlu0 %v7232, 127
        %v7530 = vpop.permute.xlu0 %7529
        %7531 = vrot.lane.b32.xlu0 %v7236, 127
        %v7532 = vpop.permute.xlu0 %7531
        %7533 = vrot.lane.b32.xlu0 %v7240, 127
        %v7534 = vpop.permute.xlu0 %7533
        %7535 = vrot.lane.b32.xlu0 %v7244, 127
        %v7536 = vpop.permute.xlu0 %7535
        %7537 = vrot.lane.b32.xlu0 %v7248, 127
        %v7538 = vpop.permute.xlu0 %7537
        %7539 = vrot.lane.b32.xlu0 %v7252, 127
        %v7540 = vpop.permute.xlu0 %7539
        %7541 = vrot.lane.b32.xlu0 %v7256, 127
        %v7542 = vpop.permute.xlu0 %7541
        %v7559 = vcombine.low %v7512, %v7520
        %v7561 = vunpack.c.l.s4 1983009808
        %v7562 = vunpack.c.0.s8 %v7561
        %v7563 = vlaneseq
        %v7564 = vshrl.u32 %v7563, 7
        %v7565 = vsub.s32 %v7562, %v7564
        %v7566 = vrot.slane %v7559, %v7565
        %v7567 = vcombine.low %v7516, %v7524
        %v7569 = vunpack.c.l.s4 1983009808
        %v7570 = vunpack.c.0.s8 %v7569
        %v7571 = vlaneseq
        %v7572 = vshrl.u32 %v7571, 7
        %v7573 = vsub.s32 %v7570, %v7572
        %v7574 = vrot.slane %v7567, %v7573
        %v7575 = vcombine.low %v7566, %v7574
        %v7576 = vcombine.high %v7566, %v7574
        %v7578 = vunpack.c.l.s4 1934713408
        %v7579 = vunpack.c.0.s8 %v7578
        %v7580 = vlaneseq
        %v7581 = vshrl.u32 %v7580, 7
        %v7582 = vsub.s32 %v7579, %v7581
        %v7583 = vrot.slane %v7575, %v7582
        %v7585 = vunpack.c.l.s4 1934713408
        %v7586 = vunpack.c.0.s8 %v7585
        %v7587 = vlaneseq
        %v7588 = vshrl.u32 %v7587, 7
        %v7589 = vsub.s32 %v7586, %v7588
        %v7590 = vrot.slane %v7576, %v7589
        %v7591 = vcombine.high %v7583, 0
        %v7592 = vcombine.high %v7590, 0
        %v7593 = vcombine.low %v7514, %v7522
        %v7595 = vunpack.c.l.s4 1983009808
        %v7596 = vunpack.c.0.s8 %v7595
        %v7597 = vlaneseq
        %v7598 = vshrl.u32 %v7597, 7
        %v7599 = vsub.s32 %v7596, %v7598
        %v7600 = vrot.slane %v7593, %v7599
        %v7601 = vcombine.low %v7518, %v7526
        %v7603 = vunpack.c.l.s4 1983009808
        %v7604 = vunpack.c.0.s8 %v7603
        %v7605 = vlaneseq
        %v7606 = vshrl.u32 %v7605, 7
        %v7607 = vsub.s32 %v7604, %v7606
        %v7608 = vrot.slane %v7601, %v7607
        %v7609 = vcombine.low %v7600, %v7608
        %v7610 = vcombine.high %v7600, %v7608
        %v7612 = vunpack.c.l.s4 1934713408
        %v7613 = vunpack.c.0.s8 %v7612
        %v7614 = vlaneseq
        %v7615 = vshrl.u32 %v7614, 7
        %v7616 = vsub.s32 %v7613, %v7615
        %v7617 = vrot.slane %v7609, %v7616
        %v7619 = vunpack.c.l.s4 1934713408
        %v7620 = vunpack.c.0.s8 %v7619
        %v7621 = vlaneseq
        %v7622 = vshrl.u32 %v7621, 7
        %v7623 = vsub.s32 %v7620, %v7622
        %v7624 = vrot.slane %v7610, %v7623
        %v7625 = vcombine.high %v7617, 0
        %v7626 = vcombine.high %v7624, 0
        %v7627 = vcombine.low %v7528, %v7536
        %v7629 = vunpack.c.l.s4 1983009808
        %v7630 = vunpack.c.0.s8 %v7629
        %v7631 = vlaneseq
        %v7632 = vshrl.u32 %v7631, 7
        %v7633 = vsub.s32 %v7630, %v7632
        %v7634 = vrot.slane %v7627, %v7633
        %v7635 = vcombine.low %v7532, %v7540
        %v7637 = vunpack.c.l.s4 1983009808
        %v7638 = vunpack.c.0.s8 %v7637
        %v7639 = vlaneseq
        %v7640 = vshrl.u32 %v7639, 7
        %v7641 = vsub.s32 %v7638, %v7640
        %v7642 = vrot.slane %v7635, %v7641
        %v7643 = vcombine.low %v7634, %v7642
        %v7644 = vcombine.high %v7634, %v7642
        %v7646 = vunpack.c.l.s4 1934713408
        %v7647 = vunpack.c.0.s8 %v7646
        %v7648 = vlaneseq
        %v7649 = vshrl.u32 %v7648, 7
        %v7650 = vsub.s32 %v7647, %v7649
        %v7651 = vrot.slane %v7643, %v7650
        %v7653 = vunpack.c.l.s4 1934713408
        %v7654 = vunpack.c.0.s8 %v7653
        %v7655 = vlaneseq
        %v7656 = vshrl.u32 %v7655, 7
        %v7657 = vsub.s32 %v7654, %v7656
        %v7658 = vrot.slane %v7644, %v7657
        %v7659 = vcombine.high %v7651, 0
        %v7660 = vcombine.high %v7658, 0
        %v7661 = vcombine.low %v7530, %v7538
        %v7663 = vunpack.c.l.s4 1983009808
        %v7664 = vunpack.c.0.s8 %v7663
        %v7665 = vlaneseq
        %v7666 = vshrl.u32 %v7665, 7
        %v7667 = vsub.s32 %v7664, %v7666
        %v7668 = vrot.slane %v7661, %v7667
        %v7669 = vcombine.low %v7534, %v7542
        %v7671 = vunpack.c.l.s4 1983009808
        %v7672 = vunpack.c.0.s8 %v7671
        %v7673 = vlaneseq
        %v7674 = vshrl.u32 %v7673, 7
        %v7675 = vsub.s32 %v7672, %v7674
        %v7676 = vrot.slane %v7669, %v7675
        %v7677 = vcombine.low %v7668, %v7676
        %v7678 = vcombine.high %v7668, %v7676
        %v7680 = vunpack.c.l.s4 1934713408
        %v7681 = vunpack.c.0.s8 %v7680
        %v7682 = vlaneseq
        %v7683 = vshrl.u32 %v7682, 7
        %v7684 = vsub.s32 %v7681, %v7683
        %v7685 = vrot.slane %v7677, %v7684
        %v7687 = vunpack.c.l.s4 1934713408
        %v7688 = vunpack.c.0.s8 %v7687
        %v7689 = vlaneseq
        %v7690 = vshrl.u32 %v7689, 7
        %v7691 = vsub.s32 %v7688, %v7690
        %v7692 = vrot.slane %v7678, %v7691
        %v7693 = vcombine.high %v7685, 0
        %v7694 = vcombine.high %v7692, 0
        %v7697 = vpack.i.b16 %v7617, %v7583
        %v7698 = vshrl.u32 %v7583, 16
        %v7699 = vshrl.u32 %v7617, 16
        %v7700 = vpack.i.b16 %v7699, %v7698
        %v7703 = vpack.i.b16 %v7625, %v7591
        %v7704 = vshrl.u32 %v7591, 16
        %v7705 = vshrl.u32 %v7625, 16
        %v7706 = vpack.i.b16 %v7705, %v7704
        %v7709 = vpack.i.b16 %v7624, %v7590
        %v7710 = vshrl.u32 %v7590, 16
        %v7711 = vshrl.u32 %v7624, 16
        %v7712 = vpack.i.b16 %v7711, %v7710
        %v7715 = vpack.i.b16 %v7626, %v7592
        %v7716 = vshrl.u32 %v7592, 16
        %v7717 = vshrl.u32 %v7626, 16
        %v7718 = vpack.i.b16 %v7717, %v7716
        %v7721 = vpack.i.b16 %v7685, %v7651
        %v7722 = vshrl.u32 %v7651, 16
        %v7723 = vshrl.u32 %v7685, 16
        %v7724 = vpack.i.b16 %v7723, %v7722
        %v7727 = vpack.i.b16 %v7693, %v7659
        %v7728 = vshrl.u32 %v7659, 16
        %v7729 = vshrl.u32 %v7693, 16
        %v7730 = vpack.i.b16 %v7729, %v7728
        %v7733 = vpack.i.b16 %v7692, %v7658
        %v7734 = vshrl.u32 %v7658, 16
        %v7735 = vshrl.u32 %v7692, 16
        %v7736 = vpack.i.b16 %v7735, %v7734
        %v7739 = vpack.i.b16 %v7694, %v7660
        %v7740 = vshrl.u32 %v7660, 16
        %v7741 = vshrl.u32 %v7694, 16
        %v7742 = vpack.i.b16 %v7741, %v7740
        %v7743 = vunpack.c.l.b16 %v7697
        %v7744 = vunpack.c.l.b16 %v7721
        %v7745 = vpack.c.b16 %v7744, %v7743
        %v7746 = vunpack.c.l.b16 %v7700
        %v7747 = vunpack.c.l.b16 %v7724
        %v7748 = vpack.c.b16 %v7747, %v7746
        %7749 = vrot.lane.b32.xlu0 %v7748, 8
        %v7750 = vpop.permute.xlu0 %7749
        %v7751 = vunpack.c.l.b16 %v7703
        %v7752 = vunpack.c.l.b16 %v7727
        %v7753 = vpack.c.b16 %v7752, %v7751
        %7754 = vrot.lane.b32.xlu0 %v7753, 16
        %v7755 = vpop.permute.xlu0 %7754
        %v7756 = vunpack.c.l.b16 %v7706
        %v7757 = vunpack.c.l.b16 %v7730
        %v7758 = vpack.c.b16 %v7757, %v7756
        %7759 = vrot.lane.b32.xlu0 %v7758, 24
        %v7760 = vpop.permute.xlu0 %7759
        %v7761 = vunpack.c.l.b16 %v7709
        %v7762 = vunpack.c.l.b16 %v7733
        %v7763 = vpack.c.b16 %v7762, %v7761
        %7764 = vrot.lane.b32.xlu0 %v7763, 32
        %v7765 = vpop.permute.xlu0 %7764
        %v7766 = vunpack.c.l.b16 %v7712
        %v7767 = vunpack.c.l.b16 %v7736
        %v7768 = vpack.c.b16 %v7767, %v7766
        %7769 = vrot.lane.b32.xlu0 %v7768, 40
        %v7770 = vpop.permute.xlu0 %7769
        %v7771 = vunpack.c.l.b16 %v7715
        %v7772 = vunpack.c.l.b16 %v7739
        %v7773 = vpack.c.b16 %v7772, %v7771
        %7774 = vrot.lane.b32.xlu0 %v7773, 48
        %v7775 = vpop.permute.xlu0 %7774
        %v7776 = vunpack.c.l.b16 %v7718
        %v7777 = vunpack.c.l.b16 %v7742
        %v7778 = vpack.c.b16 %v7777, %v7776
        %7779 = vrot.lane.b32.xlu0 %v7778, 56
        %v7780 = vpop.permute.xlu0 %7779
        %v7783 = vsel %vm971, %v7745, %v7750
        %v7785 = vsel %vm4035, %v7783, %v7755
        %v7787 = vsel %vm5520, %v7785, %v7760
        %v7789 = vsel %vm5240, %v7787, %v7765
        %v7791 = vsel %vm5525, %v7789, %v7770
        %v7793 = vsel %vm5242, %v7791, %v7775
        %v7795 = vsel %vm5530, %v7793, %v7780
        %7797 = vrot.lane.b32.xlu0 %v7196, 126
        %v7798 = vpop.permute.xlu0 %7797
        %7799 = vrot.lane.b32.xlu0 %v7200, 126
        %v7800 = vpop.permute.xlu0 %7799
        %7801 = vrot.lane.b32.xlu0 %v7204, 126
        %v7802 = vpop.permute.xlu0 %7801
        %7803 = vrot.lane.b32.xlu0 %v7208, 126
        %v7804 = vpop.permute.xlu0 %7803
        %7805 = vrot.lane.b32.xlu0 %v7212, 126
        %v7806 = vpop.permute.xlu0 %7805
        %7807 = vrot.lane.b32.xlu0 %v7216, 126
        %v7808 = vpop.permute.xlu0 %7807
        %7809 = vrot.lane.b32.xlu0 %v7220, 126
        %v7810 = vpop.permute.xlu0 %7809
        %7811 = vrot.lane.b32.xlu0 %v7224, 126
        %v7812 = vpop.permute.xlu0 %7811
        %7813 = vrot.lane.b32.xlu0 %v7228, 126
        %v7814 = vpop.permute.xlu0 %7813
        %7815 = vrot.lane.b32.xlu0 %v7232, 126
        %v7816 = vpop.permute.xlu0 %7815
        %7817 = vrot.lane.b32.xlu0 %v7236, 126
        %v7818 = vpop.permute.xlu0 %7817
        %7819 = vrot.lane.b32.xlu0 %v7240, 126
        %v7820 = vpop.permute.xlu0 %7819
        %7821 = vrot.lane.b32.xlu0 %v7244, 126
        %v7822 = vpop.permute.xlu0 %7821
        %7823 = vrot.lane.b32.xlu0 %v7248, 126
        %v7824 = vpop.permute.xlu0 %7823
        %7825 = vrot.lane.b32.xlu0 %v7252, 126
        %v7826 = vpop.permute.xlu0 %7825
        %7827 = vrot.lane.b32.xlu0 %v7256, 126
        %v7828 = vpop.permute.xlu0 %7827
        %v7845 = vcombine.low %v7798, %v7806
        %v7847 = vunpack.c.l.s4 1983009808
        %v7848 = vunpack.c.0.s8 %v7847
        %v7849 = vlaneseq
        %v7850 = vshrl.u32 %v7849, 7
        %v7851 = vsub.s32 %v7848, %v7850
        %v7852 = vrot.slane %v7845, %v7851
        %v7853 = vcombine.low %v7802, %v7810
        %v7855 = vunpack.c.l.s4 1983009808
        %v7856 = vunpack.c.0.s8 %v7855
        %v7857 = vlaneseq
        %v7858 = vshrl.u32 %v7857, 7
        %v7859 = vsub.s32 %v7856, %v7858
        %v7860 = vrot.slane %v7853, %v7859
        %v7861 = vcombine.low %v7852, %v7860
        %v7862 = vcombine.high %v7852, %v7860
        %v7864 = vunpack.c.l.s4 1934713408
        %v7865 = vunpack.c.0.s8 %v7864
        %v7866 = vlaneseq
        %v7867 = vshrl.u32 %v7866, 7
        %v7868 = vsub.s32 %v7865, %v7867
        %v7869 = vrot.slane %v7861, %v7868
        %v7871 = vunpack.c.l.s4 1934713408
        %v7872 = vunpack.c.0.s8 %v7871
        %v7873 = vlaneseq
        %v7874 = vshrl.u32 %v7873, 7
        %v7875 = vsub.s32 %v7872, %v7874
        %v7876 = vrot.slane %v7862, %v7875
        %v7877 = vcombine.high %v7869, 0
        %v7878 = vcombine.high %v7876, 0
        %v7879 = vcombine.low %v7800, %v7808
        %v7881 = vunpack.c.l.s4 1983009808
        %v7882 = vunpack.c.0.s8 %v7881
        %v7883 = vlaneseq
        %v7884 = vshrl.u32 %v7883, 7
        %v7885 = vsub.s32 %v7882, %v7884
        %v7886 = vrot.slane %v7879, %v7885
        %v7887 = vcombine.low %v7804, %v7812
        %v7889 = vunpack.c.l.s4 1983009808
        %v7890 = vunpack.c.0.s8 %v7889
        %v7891 = vlaneseq
        %v7892 = vshrl.u32 %v7891, 7
        %v7893 = vsub.s32 %v7890, %v7892
        %v7894 = vrot.slane %v7887, %v7893
        %v7895 = vcombine.low %v7886, %v7894
        %v7896 = vcombine.high %v7886, %v7894
        %v7898 = vunpack.c.l.s4 1934713408
        %v7899 = vunpack.c.0.s8 %v7898
        %v7900 = vlaneseq
        %v7901 = vshrl.u32 %v7900, 7
        %v7902 = vsub.s32 %v7899, %v7901
        %v7903 = vrot.slane %v7895, %v7902
        %v7905 = vunpack.c.l.s4 1934713408
        %v7906 = vunpack.c.0.s8 %v7905
        %v7907 = vlaneseq
        %v7908 = vshrl.u32 %v7907, 7
        %v7909 = vsub.s32 %v7906, %v7908
        %v7910 = vrot.slane %v7896, %v7909
        %v7911 = vcombine.high %v7903, 0
        %v7912 = vcombine.high %v7910, 0
        %v7913 = vcombine.low %v7814, %v7822
        %v7915 = vunpack.c.l.s4 1983009808
        %v7916 = vunpack.c.0.s8 %v7915
        %v7917 = vlaneseq
        %v7918 = vshrl.u32 %v7917, 7
        %v7919 = vsub.s32 %v7916, %v7918
        %v7920 = vrot.slane %v7913, %v7919
        %v7921 = vcombine.low %v7818, %v7826
        %v7923 = vunpack.c.l.s4 1983009808
        %v7924 = vunpack.c.0.s8 %v7923
        %v7925 = vlaneseq
        %v7926 = vshrl.u32 %v7925, 7
        %v7927 = vsub.s32 %v7924, %v7926
        %v7928 = vrot.slane %v7921, %v7927
        %v7929 = vcombine.low %v7920, %v7928
        %v7930 = vcombine.high %v7920, %v7928
        %v7932 = vunpack.c.l.s4 1934713408
        %v7933 = vunpack.c.0.s8 %v7932
        %v7934 = vlaneseq
        %v7935 = vshrl.u32 %v7934, 7
        %v7936 = vsub.s32 %v7933, %v7935
        %v7937 = vrot.slane %v7929, %v7936
        %v7939 = vunpack.c.l.s4 1934713408
        %v7940 = vunpack.c.0.s8 %v7939
        %v7941 = vlaneseq
        %v7942 = vshrl.u32 %v7941, 7
        %v7943 = vsub.s32 %v7940, %v7942
        %v7944 = vrot.slane %v7930, %v7943
        %v7945 = vcombine.high %v7937, 0
        %v7946 = vcombine.high %v7944, 0
        %v7947 = vcombine.low %v7816, %v7824
        %v7949 = vunpack.c.l.s4 1983009808
        %v7950 = vunpack.c.0.s8 %v7949
        %v7951 = vlaneseq
        %v7952 = vshrl.u32 %v7951, 7
        %v7953 = vsub.s32 %v7950, %v7952
        %v7954 = vrot.slane %v7947, %v7953
        %v7955 = vcombine.low %v7820, %v7828
        %v7957 = vunpack.c.l.s4 1983009808
        %v7958 = vunpack.c.0.s8 %v7957
        %v7959 = vlaneseq
        %v7960 = vshrl.u32 %v7959, 7
        %v7961 = vsub.s32 %v7958, %v7960
        %v7962 = vrot.slane %v7955, %v7961
        %v7963 = vcombine.low %v7954, %v7962
        %v7964 = vcombine.high %v7954, %v7962
        %v7966 = vunpack.c.l.s4 1934713408
        %v7967 = vunpack.c.0.s8 %v7966
        %v7968 = vlaneseq
        %v7969 = vshrl.u32 %v7968, 7
        %v7970 = vsub.s32 %v7967, %v7969
        %v7971 = vrot.slane %v7963, %v7970
        %v7973 = vunpack.c.l.s4 1934713408
        %v7974 = vunpack.c.0.s8 %v7973
        %v7975 = vlaneseq
        %v7976 = vshrl.u32 %v7975, 7
        %v7977 = vsub.s32 %v7974, %v7976
        %v7978 = vrot.slane %v7964, %v7977
        %v7979 = vcombine.high %v7971, 0
        %v7980 = vcombine.high %v7978, 0
        %v7983 = vpack.i.b16 %v7903, %v7869
        %v7984 = vshrl.u32 %v7869, 16
        %v7985 = vshrl.u32 %v7903, 16
        %v7986 = vpack.i.b16 %v7985, %v7984
        %v7989 = vpack.i.b16 %v7911, %v7877
        %v7990 = vshrl.u32 %v7877, 16
        %v7991 = vshrl.u32 %v7911, 16
        %v7992 = vpack.i.b16 %v7991, %v7990
        %v7995 = vpack.i.b16 %v7910, %v7876
        %v7996 = vshrl.u32 %v7876, 16
        %v7997 = vshrl.u32 %v7910, 16
        %v7998 = vpack.i.b16 %v7997, %v7996
        %v8001 = vpack.i.b16 %v7912, %v7878
        %v8002 = vshrl.u32 %v7878, 16
        %v8003 = vshrl.u32 %v7912, 16
        %v8004 = vpack.i.b16 %v8003, %v8002
        %v8007 = vpack.i.b16 %v7971, %v7937
        %v8008 = vshrl.u32 %v7937, 16
        %v8009 = vshrl.u32 %v7971, 16
        %v8010 = vpack.i.b16 %v8009, %v8008
        %v8013 = vpack.i.b16 %v7979, %v7945
        %v8014 = vshrl.u32 %v7945, 16
        %v8015 = vshrl.u32 %v7979, 16
        %v8016 = vpack.i.b16 %v8015, %v8014
        %v8019 = vpack.i.b16 %v7978, %v7944
        %v8020 = vshrl.u32 %v7944, 16
        %v8021 = vshrl.u32 %v7978, 16
        %v8022 = vpack.i.b16 %v8021, %v8020
        %v8025 = vpack.i.b16 %v7980, %v7946
        %v8026 = vshrl.u32 %v7946, 16
        %v8027 = vshrl.u32 %v7980, 16
        %v8028 = vpack.i.b16 %v8027, %v8026
        %v8029 = vunpack.c.l.b16 %v7983
        %v8030 = vunpack.c.l.b16 %v8007
        %v8031 = vpack.c.b16 %v8030, %v8029
        %v8032 = vunpack.c.l.b16 %v7986
        %v8033 = vunpack.c.l.b16 %v8010
        %v8034 = vpack.c.b16 %v8033, %v8032
        %8035 = vrot.lane.b32.xlu0 %v8034, 8
        %v8036 = vpop.permute.xlu0 %8035
        %v8037 = vunpack.c.l.b16 %v7989
        %v8038 = vunpack.c.l.b16 %v8013
        %v8039 = vpack.c.b16 %v8038, %v8037
        %8040 = vrot.lane.b32.xlu0 %v8039, 16
        %v8041 = vpop.permute.xlu0 %8040
        %v8042 = vunpack.c.l.b16 %v7992
        %v8043 = vunpack.c.l.b16 %v8016
        %v8044 = vpack.c.b16 %v8043, %v8042
        %8045 = vrot.lane.b32.xlu0 %v8044, 24
        %v8046 = vpop.permute.xlu0 %8045
        %v8047 = vunpack.c.l.b16 %v7995
        %v8048 = vunpack.c.l.b16 %v8019
        %v8049 = vpack.c.b16 %v8048, %v8047
        %8050 = vrot.lane.b32.xlu0 %v8049, 32
        %v8051 = vpop.permute.xlu0 %8050
        %v8052 = vunpack.c.l.b16 %v7998
        %v8053 = vunpack.c.l.b16 %v8022
        %v8054 = vpack.c.b16 %v8053, %v8052
        %8055 = vrot.lane.b32.xlu0 %v8054, 40
        %v8056 = vpop.permute.xlu0 %8055
        %v8057 = vunpack.c.l.b16 %v8001
        %v8058 = vunpack.c.l.b16 %v8025
        %v8059 = vpack.c.b16 %v8058, %v8057
        %8060 = vrot.lane.b32.xlu0 %v8059, 48
        %v8061 = vpop.permute.xlu0 %8060
        %v8062 = vunpack.c.l.b16 %v8004
        %v8063 = vunpack.c.l.b16 %v8028
        %v8064 = vpack.c.b16 %v8063, %v8062
        %8065 = vrot.lane.b32.xlu0 %v8064, 56
        %v8066 = vpop.permute.xlu0 %8065
        %v8069 = vsel %vm971, %v8031, %v8036
        %v8071 = vsel %vm4035, %v8069, %v8041
        %v8073 = vsel %vm5520, %v8071, %v8046
        %v8075 = vsel %vm5240, %v8073, %v8051
        %v8077 = vsel %vm5525, %v8075, %v8056
        %v8079 = vsel %vm5242, %v8077, %v8061
        %v8081 = vsel %vm5530, %v8079, %v8066
        %v8083 = vld [vmem:[%s10] sm:$0xff]
        %v8084 = vld [vmem:[%s10 + $0x8] sm:$0xff]
        %v8085 = vld [vmem:[%s11] sm:$0xff]
        %v8086 = vld [vmem:[%s11 + $0x8] sm:$0xff]
        %8088 = vset.pattern.permute.xlu0 0
        %8089 = vperm.xlu0 %8088, %v8085
        %v8090 = vpop.permute.xlu0 %8089
        %8093 = vset.pattern.permute.xlu0 0
        %8094 = vperm.xlu0 %8093, %v8086
        %v8095 = vpop.permute.xlu0 %8094
        %v8099 = vunpack.c.l.b16 %v8083
        %v8100 = vunpack.c.h.b16 %v8083
        %v8101 = vunpack.c.l.b16 %v8084
        %v8102 = vunpack.c.h.b16 %v8084
        %v8103 = vpack.c.b16 %v8101, %v8099
        %v8104 = vpack.c.b16 %v8102, %v8100
        %v8107 = vsel %vm4035, %v8104, 0
        %8109 = vmatprep.subr.bf16.mxu0 0
        %8110 = vmatpush1.bf16.msra.mxu0 %v5532
        %8111 = vmatprep.subr.bf16.mxu0 0
        %8112 = vmatpush1.bf16.msra.mxu0 %v5834
        %8113 = vmatprep.subr.bf16.mxu0 0
        %8114 = vmatpush1.bf16.msra.mxu0 %v6120
        %8115 = vmatprep.subr.bf16.mxu0 0
        %8116 = vmatpush1.bf16.msra.mxu0 %v6601
        %8117 = vmatprep.subr.bf16.mxu0 0
        %8118 = vmatpush1.bf16.msra.mxu0 %v6887
        %8119 = vmatprep.subr.bf16.mxu0 0
        %8120 = vmatpush1.bf16.msra.mxu0 %v7173
        %8121 = vmatprep.subr.bf16.mxu0 0
        %8122 = vmatpush1.bf16.msra.mxu0 %v7509
        %8123 = vmatprep.subr.bf16.mxu0 0
        %8124 = vmatpush1.bf16.msra.mxu0 %v7795
        %8125 = vmatprep.subr.bf16.mxu0 0
        %8126 = vmatpush1.bf16.msra.mxu0 %v8081
        %8127 = vmatprep.subr.bf16.mxu0 0
        %8128 = vmatpush1.bf16.msra.mxu0 0
        %8129 = vmatprep.subr.bf16.mxu0 0
        %8130 = vmatpush1.bf16.msra.mxu0 0
        %8131 = vmatprep.subr.bf16.mxu0 0
        %8132 = vmatpush1.bf16.msra.mxu0 0
        %8133 = vmatprep.subr.bf16.mxu0 0
        %8134 = vmatpush1.bf16.msra.mxu0 0
        %8135 = vmatprep.subr.bf16.mxu0 0
        %8136 = vmatpush1.bf16.msra.mxu0 0
        %8137 = vmatprep.subr.bf16.mxu0 0
        %8138 = vmatpush1.bf16.msra.mxu0 0
        %8139 = vmatprep.subr.bf16.mxu0 0
        %8140 = vmatpush1.bf16.msra.mxu0 0
        %8141 = vmatprep.mubr.bf16.mxu0 %v8107
        %8142 = vmatmul.mubr.bf16.gmra.mrb[0].mxu0 %v8103
        %v8143 = vpop.f32.mrb[0].mxu0
        %v8144 = vadd.f32 %v8090, %v8143
        %v8145 = vpop.f32.mrb[0].mxu0
        %v8146 = vpop.f32.mrb[0].mxu0
        %v8147 = vadd.f32 %v8095, %v8146
        %v8148 = vpop.f32.mrb[0].mxu0
        %8149 = vdwg.mxu0
        %v8150 = vmax.f32 %v8144, 0.0
        %v8151 = vmax.f32 %v8147, 0.0
        %v8152 = vld [vmem:[%s12] sm:$0xff]
        %v8153 = vld [vmem:[%s12 + $0x8] sm:$0xff]
        %8155 = vset.pattern.permute.xlu0 0
        %8156 = vperm.xlu0 %8155, %v8152
        %v8157 = vpop.permute.xlu0 %8156
        %8160 = vset.pattern.permute.xlu0 0
        %8161 = vperm.xlu0 %8160, %v8153
        %v8162 = vpop.permute.xlu0 %8161
        %v8164 = vmul.f32 %v8150, %v8157
        %v8165 = vmul.f32 %v8151, %v8162
        %v8166 = vld [vmem:[%s13] sm:$0xff]
        %v8167 = vld [vmem:[%s13 + $0x8] sm:$0xff]
        %8169 = vset.pattern.permute.xlu0 0
        %8170 = vperm.xlu0 %8169, %v8166
        %v8171 = vpop.permute.xlu0 %8170
        %8174 = vset.pattern.permute.xlu0 0
        %8175 = vperm.xlu0 %8174, %v8167
        %v8176 = vpop.permute.xlu0 %8175
        %v8178 = vadd.f32 %v8164, %v8171
        %v8179 = vadd.f32 %v8165, %v8176
        %v8180 = vpack.c.bf16 %v8179, %v8178
        %8182 = vrot.lane.b32.xlu0 %v8180, 120
        %v8183 = vpop.permute.xlu0 %8182
        %8184 = vrot.lane.b32.xlu0 %v8180, 112
        %v8185 = vpop.permute.xlu0 %8184
        %8186 = vrot.lane.b32.xlu0 %v8180, 104
        %v8187 = vpop.permute.xlu0 %8186
        %8188 = vrot.lane.b32.xlu0 %v8180, 96
        %v8189 = vpop.permute.xlu0 %8188
        %8190 = vrot.lane.b32.xlu0 %v8180, 88
        %v8191 = vpop.permute.xlu0 %8190
        %8192 = vrot.lane.b32.xlu0 %v8180, 80
        %v8193 = vpop.permute.xlu0 %8192
        %8194 = vrot.lane.b32.xlu0 %v8180, 72
        %v8195 = vpop.permute.xlu0 %8194
        %v8198 = vpack.i.b16 %v8183, %v8180
        %v8200 = vshrl.u32 %v8180, 16
        %v8201 = vshrl.u32 %v8183, 16
        %v8202 = vpack.i.b16 %v8201, %v8200
        %v8206 = vpack.i.b16 %v8187, %v8185
        %v8208 = vshrl.u32 %v8185, 16
        %v8209 = vshrl.u32 %v8187, 16
        %v8210 = vpack.i.b16 %v8209, %v8208
        %v8214 = vpack.i.b16 %v8191, %v8189
        %v8216 = vshrl.u32 %v8189, 16
        %v8217 = vshrl.u32 %v8191, 16
        %v8218 = vpack.i.b16 %v8217, %v8216
        %v8222 = vpack.i.b16 %v8195, %v8193
        %v8224 = vshrl.u32 %v8193, 16
        %v8225 = vshrl.u32 %v8195, 16
        %v8226 = vpack.i.b16 %v8225, %v8224
        %v8228 = vcombine.low %v8198, %v8214
        %v8229 = vcombine.high %v8198, %v8214
        %v8231 = vunpack.c.l.s4 1983009808
        %v8232 = vunpack.c.0.s8 %v8231
        %v8233 = vlaneseq
        %v8234 = vshrl.u32 %v8233, 7
        %v8235 = vsub.s32 %v8232, %v8234
        %v8236 = vrot.slane %v8228, %v8235
        %v8238 = vunpack.c.l.s4 1983009808
        %v8239 = vunpack.c.0.s8 %v8238
        %v8240 = vlaneseq
        %v8241 = vshrl.u32 %v8240, 7
        %v8242 = vsub.s32 %v8239, %v8241
        %v8243 = vrot.slane %v8229, %v8242
        %v8244 = vcombine.low %v8206, %v8222
        %v8245 = vcombine.high %v8206, %v8222
        %v8247 = vunpack.c.l.s4 1983009808
        %v8248 = vunpack.c.0.s8 %v8247
        %v8249 = vlaneseq
        %v8250 = vshrl.u32 %v8249, 7
        %v8251 = vsub.s32 %v8248, %v8250
        %v8252 = vrot.slane %v8244, %v8251
        %v8254 = vunpack.c.l.s4 1983009808
        %v8255 = vunpack.c.0.s8 %v8254
        %v8256 = vlaneseq
        %v8257 = vshrl.u32 %v8256, 7
        %v8258 = vsub.s32 %v8255, %v8257
        %v8259 = vrot.slane %v8245, %v8258
        %v8260 = vcombine.low %v8236, %v8252
        %v8261 = vcombine.high %v8236, %v8252
        %v8263 = vunpack.c.l.s4 1934713408
        %v8264 = vunpack.c.0.s8 %v8263
        %v8265 = vlaneseq
        %v8266 = vshrl.u32 %v8265, 7
        %v8267 = vsub.s32 %v8264, %v8266
        %v8268 = vrot.slane %v8260, %v8267
        %v8270 = vunpack.c.l.s4 1934713408
        %v8271 = vunpack.c.0.s8 %v8270
        %v8272 = vlaneseq
        %v8273 = vshrl.u32 %v8272, 7
        %v8274 = vsub.s32 %v8271, %v8273
        %v8275 = vrot.slane %v8261, %v8274
        %v8276 = vcombine.low %v8243, %v8259
        %v8277 = vcombine.high %v8243, %v8259
        %v8279 = vunpack.c.l.s4 1934713408
        %v8280 = vunpack.c.0.s8 %v8279
        %v8281 = vlaneseq
        %v8282 = vshrl.u32 %v8281, 7
        %v8283 = vsub.s32 %v8280, %v8282
        %v8284 = vrot.slane %v8276, %v8283
        %v8286 = vunpack.c.l.s4 1934713408
        %v8287 = vunpack.c.0.s8 %v8286
        %v8288 = vlaneseq
        %v8289 = vshrl.u32 %v8288, 7
        %v8290 = vsub.s32 %v8287, %v8289
        %v8291 = vrot.slane %v8277, %v8290
        %v8292 = vcombine.high %v8268, 0
        %v8293 = vcombine.high %v8275, 0
        %v8294 = vcombine.high %v8284, 0
        %v8295 = vcombine.high %v8291, 0
        %v8296 = vcombine.low %v8202, %v8218
        %v8297 = vcombine.high %v8202, %v8218
        %v8299 = vunpack.c.l.s4 1983009808
        %v8300 = vunpack.c.0.s8 %v8299
        %v8301 = vlaneseq
        %v8302 = vshrl.u32 %v8301, 7
        %v8303 = vsub.s32 %v8300, %v8302
        %v8304 = vrot.slane %v8296, %v8303
        %v8306 = vunpack.c.l.s4 1983009808
        %v8307 = vunpack.c.0.s8 %v8306
        %v8308 = vlaneseq
        %v8309 = vshrl.u32 %v8308, 7
        %v8310 = vsub.s32 %v8307, %v8309
        %v8311 = vrot.slane %v8297, %v8310
        %v8312 = vcombine.low %v8210, %v8226
        %v8313 = vcombine.high %v8210, %v8226
        %v8315 = vunpack.c.l.s4 1983009808
        %v8316 = vunpack.c.0.s8 %v8315
        %v8317 = vlaneseq
        %v8318 = vshrl.u32 %v8317, 7
        %v8319 = vsub.s32 %v8316, %v8318
        %v8320 = vrot.slane %v8312, %v8319
        %v8322 = vunpack.c.l.s4 1983009808
        %v8323 = vunpack.c.0.s8 %v8322
        %v8324 = vlaneseq
        %v8325 = vshrl.u32 %v8324, 7
        %v8326 = vsub.s32 %v8323, %v8325
        %v8327 = vrot.slane %v8313, %v8326
        %v8328 = vcombine.low %v8304, %v8320
        %v8329 = vcombine.high %v8304, %v8320
        %v8331 = vunpack.c.l.s4 1934713408
        %v8332 = vunpack.c.0.s8 %v8331
        %v8333 = vlaneseq
        %v8334 = vshrl.u32 %v8333, 7
        %v8335 = vsub.s32 %v8332, %v8334
        %v8336 = vrot.slane %v8328, %v8335
        %v8338 = vunpack.c.l.s4 1934713408
        %v8339 = vunpack.c.0.s8 %v8338
        %v8340 = vlaneseq
        %v8341 = vshrl.u32 %v8340, 7
        %v8342 = vsub.s32 %v8339, %v8341
        %v8343 = vrot.slane %v8329, %v8342
        %v8344 = vcombine.low %v8311, %v8327
        %v8345 = vcombine.high %v8311, %v8327
        %v8347 = vunpack.c.l.s4 1934713408
        %v8348 = vunpack.c.0.s8 %v8347
        %v8349 = vlaneseq
        %v8350 = vshrl.u32 %v8349, 7
        %v8351 = vsub.s32 %v8348, %v8350
        %v8352 = vrot.slane %v8344, %v8351
        %v8354 = vunpack.c.l.s4 1934713408
        %v8355 = vunpack.c.0.s8 %v8354
        %v8356 = vlaneseq
        %v8357 = vshrl.u32 %v8356, 7
        %v8358 = vsub.s32 %v8355, %v8357
        %v8359 = vrot.slane %v8345, %v8358
        %v8360 = vcombine.high %v8336, 0
        %v8361 = vcombine.high %v8343, 0
        %v8362 = vcombine.high %v8352, 0
        %v8363 = vcombine.high %v8359, 0
        %v8365 = vshrl.u32 %v8268, 16
        %v8367 = vrot.slane %v8365, 7
        %v8368 = vshll.u32 %v8268, 16
        %v8370 = vor.u32 %v8367, %v8368
        %v8372 = vshrl.u32 %v8336, 16
        %v8374 = vrot.slane %v8372, 7
        %v8375 = vshll.u32 %v8336, 16
        %v8377 = vor.u32 %v8374, %v8375
        %v8379 = vshrl.u32 %v8292, 16
        %v8381 = vrot.slane %v8379, 7
        %v8382 = vshll.u32 %v8292, 16
        %v8384 = vor.u32 %v8381, %v8382
        %v8386 = vshrl.u32 %v8360, 16
        %v8388 = vrot.slane %v8386, 7
        %v8389 = vshll.u32 %v8360, 16
        %v8391 = vor.u32 %v8388, %v8389
        %v8393 = vshrl.u32 %v8275, 16
        %v8395 = vrot.slane %v8393, 7
        %v8396 = vshll.u32 %v8275, 16
        %v8398 = vor.u32 %v8395, %v8396
        %v8400 = vshrl.u32 %v8343, 16
        %v8402 = vrot.slane %v8400, 7
        %v8403 = vshll.u32 %v8343, 16
        %v8405 = vor.u32 %v8402, %v8403
        %v8407 = vshrl.u32 %v8293, 16
        %v8409 = vrot.slane %v8407, 7
        %v8410 = vshll.u32 %v8293, 16
        %v8412 = vor.u32 %v8409, %v8410
        %v8414 = vshrl.u32 %v8361, 16
        %v8416 = vrot.slane %v8414, 7
        %v8417 = vshll.u32 %v8361, 16
        %v8419 = vor.u32 %v8416, %v8417
        %v8421 = vshrl.u32 %v8284, 16
        %v8423 = vrot.slane %v8421, 7
        %v8424 = vshll.u32 %v8284, 16
        %v8426 = vor.u32 %v8423, %v8424
        %v8428 = vshrl.u32 %v8352, 16
        %v8430 = vrot.slane %v8428, 7
        %v8431 = vshll.u32 %v8352, 16
        %v8433 = vor.u32 %v8430, %v8431
        %v8435 = vshrl.u32 %v8294, 16
        %v8437 = vrot.slane %v8435, 7
        %v8438 = vshll.u32 %v8294, 16
        %v8440 = vor.u32 %v8437, %v8438
        %v8442 = vshrl.u32 %v8362, 16
        %v8444 = vrot.slane %v8442, 7
        %v8445 = vshll.u32 %v8362, 16
        %v8447 = vor.u32 %v8444, %v8445
        %v8449 = vshrl.u32 %v8291, 16
        %v8451 = vrot.slane %v8449, 7
        %v8452 = vshll.u32 %v8291, 16
        %v8454 = vor.u32 %v8451, %v8452
        %v8456 = vshrl.u32 %v8359, 16
        %v8458 = vrot.slane %v8456, 7
        %v8459 = vshll.u32 %v8359, 16
        %v8461 = vor.u32 %v8458, %v8459
        %v8463 = vshrl.u32 %v8295, 16
        %v8465 = vrot.slane %v8463, 7
        %v8466 = vshll.u32 %v8295, 16
        %v8468 = vor.u32 %v8465, %v8466
        %v8470 = vshrl.u32 %v8363, 16
        %v8472 = vrot.slane %v8470, 7
        %v8473 = vshll.u32 %v8363, 16
        %v8475 = vor.u32 %v8472, %v8473
        %v8492 = vsel %vm2290, 0, %v8370
        %v8493 = vsel %vm2290, 0, %v8377
        %v8494 = vsel %vm2290, 0, %v8384
        %v8495 = vsel %vm2290, 0, %v8391
        %v8496 = vsel %vm2290, 0, %v8398
        %v8497 = vsel %vm2290, 0, %v8405
        %v8498 = vsel %vm2290, 0, %v8412
        %v8499 = vsel %vm2290, 0, %v8419
        %v8500 = vsel %vm2290, 0, %v8426
        %v8501 = vsel %vm2290, 0, %v8433
        %v8502 = vsel %vm2290, 0, %v8440
        %v8503 = vsel %vm2290, 0, %v8447
        %v8504 = vsel %vm2290, 0, %v8454
        %v8505 = vsel %vm2290, 0, %v8461
        %v8506 = vsel %vm2290, 0, %v8468
        %v8507 = vsel %vm2290, 0, %v8475
        %vm8508 = vcmask 1044480
        %vm8509 = vsmask.f32 4352
        %vm8510 = vmand %vm8508, %vm8509
        %v8511 = vsel %vm8510, %v8492, 0
        %v8512 = vsel %vm8510, %v8493, 0
        %v8513 = vsel %vm8510, %v8494, 0
        %v8514 = vsel %vm8510, %v8495, 0
        %v8515 = vsel %vm8510, %v8496, 0
        %v8516 = vsel %vm8510, %v8497, 0
        %v8517 = vsel %vm8510, %v8498, 0
        %v8518 = vsel %vm8510, %v8499, 0
        %v8519 = vsel %vm8510, %v8500, 0
        %v8520 = vsel %vm8510, %v8501, 0
        %v8521 = vsel %vm8510, %v8502, 0
        %v8522 = vsel %vm8510, %v8503, 0
        %v8523 = vsel %vm8510, %v8504, 0
        %v8524 = vsel %vm8510, %v8505, 0
        %v8525 = vsel %vm8510, %v8506, 0
        %v8526 = vsel %vm8510, %v8507, 0
        %8543 = vrot.lane.b32.xlu0 %v8511, 1
        %v8544 = vpop.permute.xlu0 %8543
        %8545 = vrot.lane.b32.xlu0 %v8512, 1
        %v8546 = vpop.permute.xlu0 %8545
        %8547 = vrot.lane.b32.xlu0 %v8513, 1
        %v8548 = vpop.permute.xlu0 %8547
        %8549 = vrot.lane.b32.xlu0 %v8514, 1
        %v8550 = vpop.permute.xlu0 %8549
        %8551 = vrot.lane.b32.xlu0 %v8515, 1
        %v8552 = vpop.permute.xlu0 %8551
        %8553 = vrot.lane.b32.xlu0 %v8516, 1
        %v8554 = vpop.permute.xlu0 %8553
        %8555 = vrot.lane.b32.xlu0 %v8517, 1
        %v8556 = vpop.permute.xlu0 %8555
        %8557 = vrot.lane.b32.xlu0 %v8518, 1
        %v8558 = vpop.permute.xlu0 %8557
        %8559 = vrot.lane.b32.xlu0 %v8519, 1
        %v8560 = vpop.permute.xlu0 %8559
        %8561 = vrot.lane.b32.xlu0 %v8520, 1
        %v8562 = vpop.permute.xlu0 %8561
        %8563 = vrot.lane.b32.xlu0 %v8521, 1
        %v8564 = vpop.permute.xlu0 %8563
        %8565 = vrot.lane.b32.xlu0 %v8522, 1
        %v8566 = vpop.permute.xlu0 %8565
        %8567 = vrot.lane.b32.xlu0 %v8523, 1
        %v8568 = vpop.permute.xlu0 %8567
        %8569 = vrot.lane.b32.xlu0 %v8524, 1
        %v8570 = vpop.permute.xlu0 %8569
        %8571 = vrot.lane.b32.xlu0 %v8525, 1
        %v8572 = vpop.permute.xlu0 %8571
        %8573 = vrot.lane.b32.xlu0 %v8526, 1
        %v8574 = vpop.permute.xlu0 %8573
        %v8576 = vsel %vm2374, 0, %v8544
        %v8578 = vsel %vm2374, 0, %v8546
        %v8580 = vsel %vm2374, 0, %v8548
        %v8582 = vsel %vm2374, 0, %v8550
        %v8584 = vsel %vm2374, 0, %v8552
        %v8586 = vsel %vm2374, 0, %v8554
        %v8588 = vsel %vm2374, 0, %v8556
        %v8590 = vsel %vm2374, 0, %v8558
        %v8592 = vsel %vm2374, 0, %v8560
        %v8594 = vsel %vm2374, 0, %v8562
        %v8596 = vsel %vm2374, 0, %v8564
        %v8598 = vsel %vm2374, 0, %v8566
        %v8600 = vsel %vm2374, 0, %v8568
        %v8602 = vsel %vm2374, 0, %v8570
        %v8604 = vsel %vm2374, 0, %v8572
        %v8606 = vsel %vm2374, 0, %v8574
        %vm8607 = vcmask 72704
        %v8608 = vsel %vm8607, %v8576, 0
        %v8610 = vsel %vm8607, %v8578, 0
        %v8612 = vsel %vm8607, %v8580, 0
        %v8614 = vsel %vm8607, %v8582, 0
        %v8616 = vsel %vm8607, %v8584, 0
        %v8618 = vsel %vm8607, %v8586, 0
        %v8620 = vsel %vm8607, %v8588, 0
        %v8622 = vsel %vm8607, %v8590, 0
        %v8624 = vsel %vm8607, %v8592, 0
        %v8626 = vsel %vm8607, %v8594, 0
        %v8628 = vsel %vm8607, %v8596, 0
        %v8630 = vsel %vm8607, %v8598, 0
        %v8632 = vsel %vm8607, %v8600, 0
        %v8634 = vsel %vm8607, %v8602, 0
        %v8636 = vsel %vm8607, %v8604, 0
        %v8638 = vsel %vm8607, %v8606, 0
        %v8640 = vcombine.low %v8608, %v8616
        %v8642 = vunpack.c.l.s4 1983009808
        %v8643 = vunpack.c.0.s8 %v8642
        %v8644 = vlaneseq
        %v8645 = vshrl.u32 %v8644, 7
        %v8646 = vsub.s32 %v8643, %v8645
        %v8647 = vrot.slane %v8640, %v8646
        %v8648 = vcombine.low %v8612, %v8620
        %v8650 = vunpack.c.l.s4 1983009808
        %v8651 = vunpack.c.0.s8 %v8650
        %v8652 = vlaneseq
        %v8653 = vshrl.u32 %v8652, 7
        %v8654 = vsub.s32 %v8651, %v8653
        %v8655 = vrot.slane %v8648, %v8654
        %v8656 = vcombine.low %v8624, %v8632
        %v8658 = vunpack.c.l.s4 1983009808
        %v8659 = vunpack.c.0.s8 %v8658
        %v8660 = vlaneseq
        %v8661 = vshrl.u32 %v8660, 7
        %v8662 = vsub.s32 %v8659, %v8661
        %v8663 = vrot.slane %v8656, %v8662
        %v8664 = vcombine.low %v8628, %v8636
        %v8666 = vunpack.c.l.s4 1983009808
        %v8667 = vunpack.c.0.s8 %v8666
        %v8668 = vlaneseq
        %v8669 = vshrl.u32 %v8668, 7
        %v8670 = vsub.s32 %v8667, %v8669
        %v8671 = vrot.slane %v8664, %v8670
        %v8672 = vcombine.low %v8647, %v8655
        %v8673 = vcombine.high %v8647, %v8655
        %v8675 = vunpack.c.l.s4 1934713408
        %v8676 = vunpack.c.0.s8 %v8675
        %v8677 = vlaneseq
        %v8678 = vshrl.u32 %v8677, 7
        %v8679 = vsub.s32 %v8676, %v8678
        %v8680 = vrot.slane %v8672, %v8679
        %v8682 = vunpack.c.l.s4 1934713408
        %v8683 = vunpack.c.0.s8 %v8682
        %v8684 = vlaneseq
        %v8685 = vshrl.u32 %v8684, 7
        %v8686 = vsub.s32 %v8683, %v8685
        %v8687 = vrot.slane %v8673, %v8686
        %v8688 = vcombine.low %v8663, %v8671
        %v8689 = vcombine.high %v8663, %v8671
        %v8691 = vunpack.c.l.s4 1934713408
        %v8692 = vunpack.c.0.s8 %v8691
        %v8693 = vlaneseq
        %v8694 = vshrl.u32 %v8693, 7
        %v8695 = vsub.s32 %v8692, %v8694
        %v8696 = vrot.slane %v8688, %v8695
        %v8698 = vunpack.c.l.s4 1934713408
        %v8699 = vunpack.c.0.s8 %v8698
        %v8700 = vlaneseq
        %v8701 = vshrl.u32 %v8700, 7
        %v8702 = vsub.s32 %v8699, %v8701
        %v8703 = vrot.slane %v8689, %v8702
        %v8704 = vcombine.low %v8680, %v8696
        %v8705 = vcombine.high %v8680, %v8696
        %v8706 = vcombine.low %v8687, %v8703
        %v8707 = vcombine.high %v8687, %v8703
        %v8708 = vcombine.low %v8610, %v8618
        %v8710 = vunpack.c.l.s4 1983009808
        %v8711 = vunpack.c.0.s8 %v8710
        %v8712 = vlaneseq
        %v8713 = vshrl.u32 %v8712, 7
        %v8714 = vsub.s32 %v8711, %v8713
        %v8715 = vrot.slane %v8708, %v8714
        %v8716 = vcombine.low %v8614, %v8622
        %v8718 = vunpack.c.l.s4 1983009808
        %v8719 = vunpack.c.0.s8 %v8718
        %v8720 = vlaneseq
        %v8721 = vshrl.u32 %v8720, 7
        %v8722 = vsub.s32 %v8719, %v8721
        %v8723 = vrot.slane %v8716, %v8722
        %v8724 = vcombine.low %v8626, %v8634
        %v8726 = vunpack.c.l.s4 1983009808
        %v8727 = vunpack.c.0.s8 %v8726
        %v8728 = vlaneseq
        %v8729 = vshrl.u32 %v8728, 7
        %v8730 = vsub.s32 %v8727, %v8729
        %v8731 = vrot.slane %v8724, %v8730
        %v8732 = vcombine.low %v8630, %v8638
        %v8734 = vunpack.c.l.s4 1983009808
        %v8735 = vunpack.c.0.s8 %v8734
        %v8736 = vlaneseq
        %v8737 = vshrl.u32 %v8736, 7
        %v8738 = vsub.s32 %v8735, %v8737
        %v8739 = vrot.slane %v8732, %v8738
        %v8740 = vcombine.low %v8715, %v8723
        %v8741 = vcombine.high %v8715, %v8723
        %v8743 = vunpack.c.l.s4 1934713408
        %v8744 = vunpack.c.0.s8 %v8743
        %v8745 = vlaneseq
        %v8746 = vshrl.u32 %v8745, 7
        %v8747 = vsub.s32 %v8744, %v8746
        %v8748 = vrot.slane %v8740, %v8747
        %v8750 = vunpack.c.l.s4 1934713408
        %v8751 = vunpack.c.0.s8 %v8750
        %v8752 = vlaneseq
        %v8753 = vshrl.u32 %v8752, 7
        %v8754 = vsub.s32 %v8751, %v8753
        %v8755 = vrot.slane %v8741, %v8754
        %v8756 = vcombine.low %v8731, %v8739
        %v8757 = vcombine.high %v8731, %v8739
        %v8759 = vunpack.c.l.s4 1934713408
        %v8760 = vunpack.c.0.s8 %v8759
        %v8761 = vlaneseq
        %v8762 = vshrl.u32 %v8761, 7
        %v8763 = vsub.s32 %v8760, %v8762
        %v8764 = vrot.slane %v8756, %v8763
        %v8766 = vunpack.c.l.s4 1934713408
        %v8767 = vunpack.c.0.s8 %v8766
        %v8768 = vlaneseq
        %v8769 = vshrl.u32 %v8768, 7
        %v8770 = vsub.s32 %v8767, %v8769
        %v8771 = vrot.slane %v8757, %v8770
        %v8772 = vcombine.low %v8748, %v8764
        %v8773 = vcombine.high %v8748, %v8764
        %v8774 = vcombine.low %v8755, %v8771
        %v8775 = vcombine.high %v8755, %v8771
        %v8778 = vpack.i.b16 %v8772, %v8704
        %v8779 = vshrl.u32 %v8704, 16
        %v8780 = vshrl.u32 %v8772, 16
        %v8781 = vpack.i.b16 %v8780, %v8779
        %v8784 = vpack.i.b16 %v8773, %v8705
        %v8785 = vshrl.u32 %v8705, 16
        %v8786 = vshrl.u32 %v8773, 16
        %v8787 = vpack.i.b16 %v8786, %v8785
        %v8790 = vpack.i.b16 %v8774, %v8706
        %v8791 = vshrl.u32 %v8706, 16
        %v8792 = vshrl.u32 %v8774, 16
        %v8793 = vpack.i.b16 %v8792, %v8791
        %v8796 = vpack.i.b16 %v8775, %v8707
        %v8797 = vshrl.u32 %v8707, 16
        %v8798 = vshrl.u32 %v8775, 16
        %v8799 = vpack.i.b16 %v8798, %v8797
        %8800 = vrot.lane.b32.xlu0 %v8781, 8
        %v8801 = vpop.permute.xlu0 %8800
        %8802 = vrot.lane.b32.xlu0 %v8784, 16
        %v8803 = vpop.permute.xlu0 %8802
        %8804 = vrot.lane.b32.xlu0 %v8787, 24
        %v8805 = vpop.permute.xlu0 %8804
        %8806 = vrot.lane.b32.xlu0 %v8790, 32
        %v8807 = vpop.permute.xlu0 %8806
        %8808 = vrot.lane.b32.xlu0 %v8793, 40
        %v8809 = vpop.permute.xlu0 %8808
        %8810 = vrot.lane.b32.xlu0 %v8796, 48
        %v8811 = vpop.permute.xlu0 %8810
        %8812 = vrot.lane.b32.xlu0 %v8799, 56
        %v8813 = vpop.permute.xlu0 %8812
        %v8816 = vsel %vm971, %v8778, %v8801
        %v8818 = vsel %vm4035, %v8816, %v8803
        %v8820 = vsel %vm5520, %v8818, %v8805
        %v8822 = vsel %vm5240, %v8820, %v8807
        %v8824 = vsel %vm5525, %v8822, %v8809
        %v8826 = vsel %vm5242, %v8824, %v8811
        %v8828 = vsel %vm5530, %v8826, %v8813
        %8846 = vrot.lane.b32.xlu0 %v8608, 127
        %v8847 = vpop.permute.xlu0 %8846
        %8848 = vrot.lane.b32.xlu0 %v8610, 127
        %v8849 = vpop.permute.xlu0 %8848
        %8850 = vrot.lane.b32.xlu0 %v8612, 127
        %v8851 = vpop.permute.xlu0 %8850
        %8852 = vrot.lane.b32.xlu0 %v8614, 127
        %v8853 = vpop.permute.xlu0 %8852
        %8854 = vrot.lane.b32.xlu0 %v8616, 127
        %v8855 = vpop.permute.xlu0 %8854
        %8856 = vrot.lane.b32.xlu0 %v8618, 127
        %v8857 = vpop.permute.xlu0 %8856
        %8858 = vrot.lane.b32.xlu0 %v8620, 127
        %v8859 = vpop.permute.xlu0 %8858
        %8860 = vrot.lane.b32.xlu0 %v8622, 127
        %v8861 = vpop.permute.xlu0 %8860
        %8862 = vrot.lane.b32.xlu0 %v8624, 127
        %v8863 = vpop.permute.xlu0 %8862
        %8864 = vrot.lane.b32.xlu0 %v8626, 127
        %v8865 = vpop.permute.xlu0 %8864
        %8866 = vrot.lane.b32.xlu0 %v8628, 127
        %v8867 = vpop.permute.xlu0 %8866
        %8868 = vrot.lane.b32.xlu0 %v8630, 127
        %v8869 = vpop.permute.xlu0 %8868
        %8870 = vrot.lane.b32.xlu0 %v8632, 127
        %v8871 = vpop.permute.xlu0 %8870
        %8872 = vrot.lane.b32.xlu0 %v8634, 127
        %v8873 = vpop.permute.xlu0 %8872
        %8874 = vrot.lane.b32.xlu0 %v8636, 127
        %v8875 = vpop.permute.xlu0 %8874
        %8876 = vrot.lane.b32.xlu0 %v8638, 127
        %v8877 = vpop.permute.xlu0 %8876
        %v8894 = vcombine.low %v8847, %v8855
        %v8896 = vunpack.c.l.s4 1983009808
        %v8897 = vunpack.c.0.s8 %v8896
        %v8898 = vlaneseq
        %v8899 = vshrl.u32 %v8898, 7
        %v8900 = vsub.s32 %v8897, %v8899
        %v8901 = vrot.slane %v8894, %v8900
        %v8902 = vcombine.low %v8851, %v8859
        %v8904 = vunpack.c.l.s4 1983009808
        %v8905 = vunpack.c.0.s8 %v8904
        %v8906 = vlaneseq
        %v8907 = vshrl.u32 %v8906, 7
        %v8908 = vsub.s32 %v8905, %v8907
        %v8909 = vrot.slane %v8902, %v8908
        %v8910 = vcombine.low %v8863, %v8871
        %v8912 = vunpack.c.l.s4 1983009808
        %v8913 = vunpack.c.0.s8 %v8912
        %v8914 = vlaneseq
        %v8915 = vshrl.u32 %v8914, 7
        %v8916 = vsub.s32 %v8913, %v8915
        %v8917 = vrot.slane %v8910, %v8916
        %v8918 = vcombine.low %v8867, %v8875
        %v8920 = vunpack.c.l.s4 1983009808
        %v8921 = vunpack.c.0.s8 %v8920
        %v8922 = vlaneseq
        %v8923 = vshrl.u32 %v8922, 7
        %v8924 = vsub.s32 %v8921, %v8923
        %v8925 = vrot.slane %v8918, %v8924
        %v8926 = vcombine.low %v8901, %v8909
        %v8927 = vcombine.high %v8901, %v8909
        %v8929 = vunpack.c.l.s4 1934713408
        %v8930 = vunpack.c.0.s8 %v8929
        %v8931 = vlaneseq
        %v8932 = vshrl.u32 %v8931, 7
        %v8933 = vsub.s32 %v8930, %v8932
        %v8934 = vrot.slane %v8926, %v8933
        %v8936 = vunpack.c.l.s4 1934713408
        %v8937 = vunpack.c.0.s8 %v8936
        %v8938 = vlaneseq
        %v8939 = vshrl.u32 %v8938, 7
        %v8940 = vsub.s32 %v8937, %v8939
        %v8941 = vrot.slane %v8927, %v8940
        %v8942 = vcombine.low %v8917, %v8925
        %v8943 = vcombine.high %v8917, %v8925
        %v8945 = vunpack.c.l.s4 1934713408
        %v8946 = vunpack.c.0.s8 %v8945
        %v8947 = vlaneseq
        %v8948 = vshrl.u32 %v8947, 7
        %v8949 = vsub.s32 %v8946, %v8948
        %v8950 = vrot.slane %v8942, %v8949
        %v8952 = vunpack.c.l.s4 1934713408
        %v8953 = vunpack.c.0.s8 %v8952
        %v8954 = vlaneseq
        %v8955 = vshrl.u32 %v8954, 7
        %v8956 = vsub.s32 %v8953, %v8955
        %v8957 = vrot.slane %v8943, %v8956
        %v8958 = vcombine.low %v8934, %v8950
        %v8959 = vcombine.high %v8934, %v8950
        %v8960 = vcombine.low %v8941, %v8957
        %v8961 = vcombine.high %v8941, %v8957
        %v8962 = vcombine.low %v8849, %v8857
        %v8964 = vunpack.c.l.s4 1983009808
        %v8965 = vunpack.c.0.s8 %v8964
        %v8966 = vlaneseq
        %v8967 = vshrl.u32 %v8966, 7
        %v8968 = vsub.s32 %v8965, %v8967
        %v8969 = vrot.slane %v8962, %v8968
        %v8970 = vcombine.low %v8853, %v8861
        %v8972 = vunpack.c.l.s4 1983009808
        %v8973 = vunpack.c.0.s8 %v8972
        %v8974 = vlaneseq
        %v8975 = vshrl.u32 %v8974, 7
        %v8976 = vsub.s32 %v8973, %v8975
        %v8977 = vrot.slane %v8970, %v8976
        %v8978 = vcombine.low %v8865, %v8873
        %v8980 = vunpack.c.l.s4 1983009808
        %v8981 = vunpack.c.0.s8 %v8980
        %v8982 = vlaneseq
        %v8983 = vshrl.u32 %v8982, 7
        %v8984 = vsub.s32 %v8981, %v8983
        %v8985 = vrot.slane %v8978, %v8984
        %v8986 = vcombine.low %v8869, %v8877
        %v8988 = vunpack.c.l.s4 1983009808
        %v8989 = vunpack.c.0.s8 %v8988
        %v8990 = vlaneseq
        %v8991 = vshrl.u32 %v8990, 7
        %v8992 = vsub.s32 %v8989, %v8991
        %v8993 = vrot.slane %v8986, %v8992
        %v8994 = vcombine.low %v8969, %v8977
        %v8995 = vcombine.high %v8969, %v8977
        %v8997 = vunpack.c.l.s4 1934713408
        %v8998 = vunpack.c.0.s8 %v8997
        %v8999 = vlaneseq
        %v9000 = vshrl.u32 %v8999, 7
        %v9001 = vsub.s32 %v8998, %v9000
        %v9002 = vrot.slane %v8994, %v9001
        %v9004 = vunpack.c.l.s4 1934713408
        %v9005 = vunpack.c.0.s8 %v9004
        %v9006 = vlaneseq
        %v9007 = vshrl.u32 %v9006, 7
        %v9008 = vsub.s32 %v9005, %v9007
        %v9009 = vrot.slane %v8995, %v9008
        %v9010 = vcombine.low %v8985, %v8993
        %v9011 = vcombine.high %v8985, %v8993
        %v9013 = vunpack.c.l.s4 1934713408
        %v9014 = vunpack.c.0.s8 %v9013
        %v9015 = vlaneseq
        %v9016 = vshrl.u32 %v9015, 7
        %v9017 = vsub.s32 %v9014, %v9016
        %v9018 = vrot.slane %v9010, %v9017
        %v9020 = vunpack.c.l.s4 1934713408
        %v9021 = vunpack.c.0.s8 %v9020
        %v9022 = vlaneseq
        %v9023 = vshrl.u32 %v9022, 7
        %v9024 = vsub.s32 %v9021, %v9023
        %v9025 = vrot.slane %v9011, %v9024
        %v9026 = vcombine.low %v9002, %v9018
        %v9027 = vcombine.high %v9002, %v9018
        %v9028 = vcombine.low %v9009, %v9025
        %v9029 = vcombine.high %v9009, %v9025
        %v9032 = vpack.i.b16 %v9026, %v8958
        %v9033 = vshrl.u32 %v8958, 16
        %v9034 = vshrl.u32 %v9026, 16
        %v9035 = vpack.i.b16 %v9034, %v9033
        %v9038 = vpack.i.b16 %v9027, %v8959
        %v9039 = vshrl.u32 %v8959, 16
        %v9040 = vshrl.u32 %v9027, 16
        %v9041 = vpack.i.b16 %v9040, %v9039
        %v9044 = vpack.i.b16 %v9028, %v8960
        %v9045 = vshrl.u32 %v8960, 16
        %v9046 = vshrl.u32 %v9028, 16
        %v9047 = vpack.i.b16 %v9046, %v9045
        %v9050 = vpack.i.b16 %v9029, %v8961
        %v9051 = vshrl.u32 %v8961, 16
        %v9052 = vshrl.u32 %v9029, 16
        %v9053 = vpack.i.b16 %v9052, %v9051
        %9054 = vrot.lane.b32.xlu0 %v9035, 8
        %v9055 = vpop.permute.xlu0 %9054
        %9056 = vrot.lane.b32.xlu0 %v9038, 16
        %v9057 = vpop.permute.xlu0 %9056
        %9058 = vrot.lane.b32.xlu0 %v9041, 24
        %v9059 = vpop.permute.xlu0 %9058
        %9060 = vrot.lane.b32.xlu0 %v9044, 32
        %v9061 = vpop.permute.xlu0 %9060
        %9062 = vrot.lane.b32.xlu0 %v9047, 40
        %v9063 = vpop.permute.xlu0 %9062
        %9064 = vrot.lane.b32.xlu0 %v9050, 48
        %v9065 = vpop.permute.xlu0 %9064
        %9066 = vrot.lane.b32.xlu0 %v9053, 56
        %v9067 = vpop.permute.xlu0 %9066
        %v9070 = vsel %vm971, %v9032, %v9055
        %v9072 = vsel %vm4035, %v9070, %v9057
        %v9074 = vsel %vm5520, %v9072, %v9059
        %v9076 = vsel %vm5240, %v9074, %v9061
        %v9078 = vsel %vm5525, %v9076, %v9063
        %v9080 = vsel %vm5242, %v9078, %v9065
        %v9082 = vsel %vm5530, %v9080, %v9067
        %9084 = vrot.lane.b32.xlu0 %v8608, 126
        %v9085 = vpop.permute.xlu0 %9084
        %9086 = vrot.lane.b32.xlu0 %v8610, 126
        %v9087 = vpop.permute.xlu0 %9086
        %9088 = vrot.lane.b32.xlu0 %v8612, 126
        %v9089 = vpop.permute.xlu0 %9088
        %9090 = vrot.lane.b32.xlu0 %v8614, 126
        %v9091 = vpop.permute.xlu0 %9090
        %9092 = vrot.lane.b32.xlu0 %v8616, 126
        %v9093 = vpop.permute.xlu0 %9092
        %9094 = vrot.lane.b32.xlu0 %v8618, 126
        %v9095 = vpop.permute.xlu0 %9094
        %9096 = vrot.lane.b32.xlu0 %v8620, 126
        %v9097 = vpop.permute.xlu0 %9096
        %9098 = vrot.lane.b32.xlu0 %v8622, 126
        %v9099 = vpop.permute.xlu0 %9098
        %9100 = vrot.lane.b32.xlu0 %v8624, 126
        %v9101 = vpop.permute.xlu0 %9100
        %9102 = vrot.lane.b32.xlu0 %v8626, 126
        %v9103 = vpop.permute.xlu0 %9102
        %9104 = vrot.lane.b32.xlu0 %v8628, 126
        %v9105 = vpop.permute.xlu0 %9104
        %9106 = vrot.lane.b32.xlu0 %v8630, 126
        %v9107 = vpop.permute.xlu0 %9106
        %9108 = vrot.lane.b32.xlu0 %v8632, 126
        %v9109 = vpop.permute.xlu0 %9108
        %9110 = vrot.lane.b32.xlu0 %v8634, 126
        %v9111 = vpop.permute.xlu0 %9110
        %9112 = vrot.lane.b32.xlu0 %v8636, 126
        %v9113 = vpop.permute.xlu0 %9112
        %9114 = vrot.lane.b32.xlu0 %v8638, 126
        %v9115 = vpop.permute.xlu0 %9114
        %v9132 = vcombine.low %v9085, %v9093
        %v9134 = vunpack.c.l.s4 1983009808
        %v9135 = vunpack.c.0.s8 %v9134
        %v9136 = vlaneseq
        %v9137 = vshrl.u32 %v9136, 7
        %v9138 = vsub.s32 %v9135, %v9137
        %v9139 = vrot.slane %v9132, %v9138
        %v9140 = vcombine.low %v9089, %v9097
        %v9142 = vunpack.c.l.s4 1983009808
        %v9143 = vunpack.c.0.s8 %v9142
        %v9144 = vlaneseq
        %v9145 = vshrl.u32 %v9144, 7
        %v9146 = vsub.s32 %v9143, %v9145
        %v9147 = vrot.slane %v9140, %v9146
        %v9148 = vcombine.low %v9101, %v9109
        %v9150 = vunpack.c.l.s4 1983009808
        %v9151 = vunpack.c.0.s8 %v9150
        %v9152 = vlaneseq
        %v9153 = vshrl.u32 %v9152, 7
        %v9154 = vsub.s32 %v9151, %v9153
        %v9155 = vrot.slane %v9148, %v9154
        %v9156 = vcombine.low %v9105, %v9113
        %v9158 = vunpack.c.l.s4 1983009808
        %v9159 = vunpack.c.0.s8 %v9158
        %v9160 = vlaneseq
        %v9161 = vshrl.u32 %v9160, 7
        %v9162 = vsub.s32 %v9159, %v9161
        %v9163 = vrot.slane %v9156, %v9162
        %v9164 = vcombine.low %v9139, %v9147
        %v9165 = vcombine.high %v9139, %v9147
        %v9167 = vunpack.c.l.s4 1934713408
        %v9168 = vunpack.c.0.s8 %v9167
        %v9169 = vlaneseq
        %v9170 = vshrl.u32 %v9169, 7
        %v9171 = vsub.s32 %v9168, %v9170
        %v9172 = vrot.slane %v9164, %v9171
        %v9174 = vunpack.c.l.s4 1934713408
        %v9175 = vunpack.c.0.s8 %v9174
        %v9176 = vlaneseq
        %v9177 = vshrl.u32 %v9176, 7
        %v9178 = vsub.s32 %v9175, %v9177
        %v9179 = vrot.slane %v9165, %v9178
        %v9180 = vcombine.low %v9155, %v9163
        %v9181 = vcombine.high %v9155, %v9163
        %v9183 = vunpack.c.l.s4 1934713408
        %v9184 = vunpack.c.0.s8 %v9183
        %v9185 = vlaneseq
        %v9186 = vshrl.u32 %v9185, 7
        %v9187 = vsub.s32 %v9184, %v9186
        %v9188 = vrot.slane %v9180, %v9187
        %v9190 = vunpack.c.l.s4 1934713408
        %v9191 = vunpack.c.0.s8 %v9190
        %v9192 = vlaneseq
        %v9193 = vshrl.u32 %v9192, 7
        %v9194 = vsub.s32 %v9191, %v9193
        %v9195 = vrot.slane %v9181, %v9194
        %v9196 = vcombine.low %v9172, %v9188
        %v9197 = vcombine.high %v9172, %v9188
        %v9198 = vcombine.low %v9179, %v9195
        %v9199 = vcombine.high %v9179, %v9195
        %v9200 = vcombine.low %v9087, %v9095
        %v9202 = vunpack.c.l.s4 1983009808
        %v9203 = vunpack.c.0.s8 %v9202
        %v9204 = vlaneseq
        %v9205 = vshrl.u32 %v9204, 7
        %v9206 = vsub.s32 %v9203, %v9205
        %v9207 = vrot.slane %v9200, %v9206
        %v9208 = vcombine.low %v9091, %v9099
        %v9210 = vunpack.c.l.s4 1983009808
        %v9211 = vunpack.c.0.s8 %v9210
        %v9212 = vlaneseq
        %v9213 = vshrl.u32 %v9212, 7
        %v9214 = vsub.s32 %v9211, %v9213
        %v9215 = vrot.slane %v9208, %v9214
        %v9216 = vcombine.low %v9103, %v9111
        %v9218 = vunpack.c.l.s4 1983009808
        %v9219 = vunpack.c.0.s8 %v9218
        %v9220 = vlaneseq
        %v9221 = vshrl.u32 %v9220, 7
        %v9222 = vsub.s32 %v9219, %v9221
        %v9223 = vrot.slane %v9216, %v9222
        %v9224 = vcombine.low %v9107, %v9115
        %v9226 = vunpack.c.l.s4 1983009808
        %v9227 = vunpack.c.0.s8 %v9226
        %v9228 = vlaneseq
        %v9229 = vshrl.u32 %v9228, 7
        %v9230 = vsub.s32 %v9227, %v9229
        %v9231 = vrot.slane %v9224, %v9230
        %v9232 = vcombine.low %v9207, %v9215
        %v9233 = vcombine.high %v9207, %v9215
        %v9235 = vunpack.c.l.s4 1934713408
        %v9236 = vunpack.c.0.s8 %v9235
        %v9237 = vlaneseq
        %v9238 = vshrl.u32 %v9237, 7
        %v9239 = vsub.s32 %v9236, %v9238
        %v9240 = vrot.slane %v9232, %v9239
        %v9242 = vunpack.c.l.s4 1934713408
        %v9243 = vunpack.c.0.s8 %v9242
        %v9244 = vlaneseq
        %v9245 = vshrl.u32 %v9244, 7
        %v9246 = vsub.s32 %v9243, %v9245
        %v9247 = vrot.slane %v9233, %v9246
        %v9248 = vcombine.low %v9223, %v9231
        %v9249 = vcombine.high %v9223, %v9231
        %v9251 = vunpack.c.l.s4 1934713408
        %v9252 = vunpack.c.0.s8 %v9251
        %v9253 = vlaneseq
        %v9254 = vshrl.u32 %v9253, 7
        %v9255 = vsub.s32 %v9252, %v9254
        %v9256 = vrot.slane %v9248, %v9255
        %v9258 = vunpack.c.l.s4 1934713408
        %v9259 = vunpack.c.0.s8 %v9258
        %v9260 = vlaneseq
        %v9261 = vshrl.u32 %v9260, 7
        %v9262 = vsub.s32 %v9259, %v9261
        %v9263 = vrot.slane %v9249, %v9262
        %v9264 = vcombine.low %v9240, %v9256
        %v9265 = vcombine.high %v9240, %v9256
        %v9266 = vcombine.low %v9247, %v9263
        %v9267 = vcombine.high %v9247, %v9263
        %v9270 = vpack.i.b16 %v9264, %v9196
        %v9271 = vshrl.u32 %v9196, 16
        %v9272 = vshrl.u32 %v9264, 16
        %v9273 = vpack.i.b16 %v9272, %v9271
        %v9276 = vpack.i.b16 %v9265, %v9197
        %v9277 = vshrl.u32 %v9197, 16
        %v9278 = vshrl.u32 %v9265, 16
        %v9279 = vpack.i.b16 %v9278, %v9277
        %v9282 = vpack.i.b16 %v9266, %v9198
        %v9283 = vshrl.u32 %v9198, 16
        %v9284 = vshrl.u32 %v9266, 16
        %v9285 = vpack.i.b16 %v9284, %v9283
        %v9288 = vpack.i.b16 %v9267, %v9199
        %v9289 = vshrl.u32 %v9199, 16
        %v9290 = vshrl.u32 %v9267, 16
        %v9291 = vpack.i.b16 %v9290, %v9289
        %9292 = vrot.lane.b32.xlu0 %v9273, 8
        %v9293 = vpop.permute.xlu0 %9292
        %9294 = vrot.lane.b32.xlu0 %v9276, 16
        %v9295 = vpop.permute.xlu0 %9294
        %9296 = vrot.lane.b32.xlu0 %v9279, 24
        %v9297 = vpop.permute.xlu0 %9296
        %9298 = vrot.lane.b32.xlu0 %v9282, 32
        %v9299 = vpop.permute.xlu0 %9298
        %9300 = vrot.lane.b32.xlu0 %v9285, 40
        %v9301 = vpop.permute.xlu0 %9300
        %9302 = vrot.lane.b32.xlu0 %v9288, 48
        %v9303 = vpop.permute.xlu0 %9302
        %9304 = vrot.lane.b32.xlu0 %v9291, 56
        %v9305 = vpop.permute.xlu0 %9304
        %v9308 = vsel %vm971, %v9270, %v9293
        %v9310 = vsel %vm4035, %v9308, %v9295
        %v9312 = vsel %vm5520, %v9310, %v9297
        %v9314 = vsel %vm5240, %v9312, %v9299
        %v9316 = vsel %vm5525, %v9314, %v9301
        %v9318 = vsel %vm5242, %v9316, %v9303
        %v9320 = vsel %vm5530, %v9318, %v9305
        %v9322 = vshrl.u32 %v8608, 16
        %v9324 = vshll.u32 %v8608, 16
        %v9326 = vrot.slane %v9324, 1
        %v9327 = vor.u32 %v9322, %v9326
        %v9328 = vshrl.u32 %v8610, 16
        %v9330 = vshll.u32 %v8610, 16
        %v9332 = vrot.slane %v9330, 1
        %v9333 = vor.u32 %v9328, %v9332
        %v9334 = vshrl.u32 %v8612, 16
        %v9336 = vshll.u32 %v8612, 16
        %v9338 = vrot.slane %v9336, 1
        %v9339 = vor.u32 %v9334, %v9338
        %v9340 = vshrl.u32 %v8614, 16
        %v9342 = vshll.u32 %v8614, 16
        %v9344 = vrot.slane %v9342, 1
        %v9345 = vor.u32 %v9340, %v9344
        %v9346 = vshrl.u32 %v8616, 16
        %v9348 = vshll.u32 %v8616, 16
        %v9350 = vrot.slane %v9348, 1
        %v9351 = vor.u32 %v9346, %v9350
        %v9352 = vshrl.u32 %v8618, 16
        %v9354 = vshll.u32 %v8618, 16
        %v9356 = vrot.slane %v9354, 1
        %v9357 = vor.u32 %v9352, %v9356
        %v9358 = vshrl.u32 %v8620, 16
        %v9360 = vshll.u32 %v8620, 16
        %v9362 = vrot.slane %v9360, 1
        %v9363 = vor.u32 %v9358, %v9362
        %v9364 = vshrl.u32 %v8622, 16
        %v9366 = vshll.u32 %v8622, 16
        %v9368 = vrot.slane %v9366, 1
        %v9369 = vor.u32 %v9364, %v9368
        %v9370 = vshrl.u32 %v8624, 16
        %v9372 = vshll.u32 %v8624, 16
        %v9374 = vrot.slane %v9372, 1
        %v9375 = vor.u32 %v9370, %v9374
        %v9376 = vshrl.u32 %v8626, 16
        %v9378 = vshll.u32 %v8626, 16
        %v9380 = vrot.slane %v9378, 1
        %v9381 = vor.u32 %v9376, %v9380
        %v9382 = vshrl.u32 %v8628, 16
        %v9384 = vshll.u32 %v8628, 16
        %v9386 = vrot.slane %v9384, 1
        %v9387 = vor.u32 %v9382, %v9386
        %v9388 = vshrl.u32 %v8630, 16
        %v9390 = vshll.u32 %v8630, 16
        %v9392 = vrot.slane %v9390, 1
        %v9393 = vor.u32 %v9388, %v9392
        %v9394 = vshrl.u32 %v8632, 16
        %v9396 = vshll.u32 %v8632, 16
        %v9398 = vrot.slane %v9396, 1
        %v9399 = vor.u32 %v9394, %v9398
        %v9400 = vshrl.u32 %v8634, 16
        %v9402 = vshll.u32 %v8634, 16
        %v9404 = vrot.slane %v9402, 1
        %v9405 = vor.u32 %v9400, %v9404
        %v9406 = vshrl.u32 %v8636, 16
        %v9408 = vshll.u32 %v8636, 16
        %v9410 = vrot.slane %v9408, 1
        %v9411 = vor.u32 %v9406, %v9410
        %v9412 = vshrl.u32 %v8638, 16
        %v9414 = vshll.u32 %v8638, 16
        %v9416 = vrot.slane %v9414, 1
        %v9417 = vor.u32 %v9412, %v9416
        %v9434 = vcombine.low %v9327, %v9351
        %v9436 = vunpack.c.l.s4 1983009808
        %v9437 = vunpack.c.0.s8 %v9436
        %v9438 = vlaneseq
        %v9439 = vshrl.u32 %v9438, 7
        %v9440 = vsub.s32 %v9437, %v9439
        %v9441 = vrot.slane %v9434, %v9440
        %v9442 = vcombine.low %v9339, %v9363
        %v9444 = vunpack.c.l.s4 1983009808
        %v9445 = vunpack.c.0.s8 %v9444
        %v9446 = vlaneseq
        %v9447 = vshrl.u32 %v9446, 7
        %v9448 = vsub.s32 %v9445, %v9447
        %v9449 = vrot.slane %v9442, %v9448
        %v9450 = vcombine.low %v9375, %v9399
        %v9452 = vunpack.c.l.s4 1983009808
        %v9453 = vunpack.c.0.s8 %v9452
        %v9454 = vlaneseq
        %v9455 = vshrl.u32 %v9454, 7
        %v9456 = vsub.s32 %v9453, %v9455
        %v9457 = vrot.slane %v9450, %v9456
        %v9458 = vcombine.low %v9387, %v9411
        %v9460 = vunpack.c.l.s4 1983009808
        %v9461 = vunpack.c.0.s8 %v9460
        %v9462 = vlaneseq
        %v9463 = vshrl.u32 %v9462, 7
        %v9464 = vsub.s32 %v9461, %v9463
        %v9465 = vrot.slane %v9458, %v9464
        %v9466 = vcombine.low %v9441, %v9449
        %v9467 = vcombine.high %v9441, %v9449
        %v9469 = vunpack.c.l.s4 1934713408
        %v9470 = vunpack.c.0.s8 %v9469
        %v9471 = vlaneseq
        %v9472 = vshrl.u32 %v9471, 7
        %v9473 = vsub.s32 %v9470, %v9472
        %v9474 = vrot.slane %v9466, %v9473
        %v9476 = vunpack.c.l.s4 1934713408
        %v9477 = vunpack.c.0.s8 %v9476
        %v9478 = vlaneseq
        %v9479 = vshrl.u32 %v9478, 7
        %v9480 = vsub.s32 %v9477, %v9479
        %v9481 = vrot.slane %v9467, %v9480
        %v9482 = vcombine.low %v9457, %v9465
        %v9483 = vcombine.high %v9457, %v9465
        %v9485 = vunpack.c.l.s4 1934713408
        %v9486 = vunpack.c.0.s8 %v9485
        %v9487 = vlaneseq
        %v9488 = vshrl.u32 %v9487, 7
        %v9489 = vsub.s32 %v9486, %v9488
        %v9490 = vrot.slane %v9482, %v9489
        %v9492 = vunpack.c.l.s4 1934713408
        %v9493 = vunpack.c.0.s8 %v9492
        %v9494 = vlaneseq
        %v9495 = vshrl.u32 %v9494, 7
        %v9496 = vsub.s32 %v9493, %v9495
        %v9497 = vrot.slane %v9483, %v9496
        %v9498 = vcombine.low %v9474, %v9490
        %v9499 = vcombine.high %v9474, %v9490
        %v9500 = vcombine.low %v9481, %v9497
        %v9501 = vcombine.high %v9481, %v9497
        %v9502 = vcombine.low %v9333, %v9357
        %v9504 = vunpack.c.l.s4 1983009808
        %v9505 = vunpack.c.0.s8 %v9504
        %v9506 = vlaneseq
        %v9507 = vshrl.u32 %v9506, 7
        %v9508 = vsub.s32 %v9505, %v9507
        %v9509 = vrot.slane %v9502, %v9508
        %v9510 = vcombine.low %v9345, %v9369
        %v9512 = vunpack.c.l.s4 1983009808
        %v9513 = vunpack.c.0.s8 %v9512
        %v9514 = vlaneseq
        %v9515 = vshrl.u32 %v9514, 7
        %v9516 = vsub.s32 %v9513, %v9515
        %v9517 = vrot.slane %v9510, %v9516
        %v9518 = vcombine.low %v9381, %v9405
        %v9520 = vunpack.c.l.s4 1983009808
        %v9521 = vunpack.c.0.s8 %v9520
        %v9522 = vlaneseq
        %v9523 = vshrl.u32 %v9522, 7
        %v9524 = vsub.s32 %v9521, %v9523
        %v9525 = vrot.slane %v9518, %v9524
        %v9526 = vcombine.low %v9393, %v9417
        %v9528 = vunpack.c.l.s4 1983009808
        %v9529 = vunpack.c.0.s8 %v9528
        %v9530 = vlaneseq
        %v9531 = vshrl.u32 %v9530, 7
        %v9532 = vsub.s32 %v9529, %v9531
        %v9533 = vrot.slane %v9526, %v9532
        %v9534 = vcombine.low %v9509, %v9517
        %v9535 = vcombine.high %v9509, %v9517
        %v9537 = vunpack.c.l.s4 1934713408
        %v9538 = vunpack.c.0.s8 %v9537
        %v9539 = vlaneseq
        %v9540 = vshrl.u32 %v9539, 7
        %v9541 = vsub.s32 %v9538, %v9540
        %v9542 = vrot.slane %v9534, %v9541
        %v9544 = vunpack.c.l.s4 1934713408
        %v9545 = vunpack.c.0.s8 %v9544
        %v9546 = vlaneseq
        %v9547 = vshrl.u32 %v9546, 7
        %v9548 = vsub.s32 %v9545, %v9547
        %v9549 = vrot.slane %v9535, %v9548
        %v9550 = vcombine.low %v9525, %v9533
        %v9551 = vcombine.high %v9525, %v9533
        %v9553 = vunpack.c.l.s4 1934713408
        %v9554 = vunpack.c.0.s8 %v9553
        %v9555 = vlaneseq
        %v9556 = vshrl.u32 %v9555, 7
        %v9557 = vsub.s32 %v9554, %v9556
        %v9558 = vrot.slane %v9550, %v9557
        %v9560 = vunpack.c.l.s4 1934713408
        %v9561 = vunpack.c.0.s8 %v9560
        %v9562 = vlaneseq
        %v9563 = vshrl.u32 %v9562, 7
        %v9564 = vsub.s32 %v9561, %v9563
        %v9565 = vrot.slane %v9551, %v9564
        %v9566 = vcombine.low %v9542, %v9558
        %v9567 = vcombine.high %v9542, %v9558
        %v9568 = vcombine.low %v9549, %v9565
        %v9569 = vcombine.high %v9549, %v9565
        %v9572 = vpack.i.b16 %v9566, %v9498
        %v9573 = vshrl.u32 %v9498, 16
        %v9574 = vshrl.u32 %v9566, 16
        %v9575 = vpack.i.b16 %v9574, %v9573
        %v9578 = vpack.i.b16 %v9567, %v9499
        %v9579 = vshrl.u32 %v9499, 16
        %v9580 = vshrl.u32 %v9567, 16
        %v9581 = vpack.i.b16 %v9580, %v9579
        %v9584 = vpack.i.b16 %v9568, %v9500
        %v9585 = vshrl.u32 %v9500, 16
        %v9586 = vshrl.u32 %v9568, 16
        %v9587 = vpack.i.b16 %v9586, %v9585
        %v9590 = vpack.i.b16 %v9569, %v9501
        %v9591 = vshrl.u32 %v9501, 16
        %v9592 = vshrl.u32 %v9569, 16
        %v9593 = vpack.i.b16 %v9592, %v9591
        %9594 = vrot.lane.b32.xlu0 %v9575, 8
        %v9595 = vpop.permute.xlu0 %9594
        %9596 = vrot.lane.b32.xlu0 %v9578, 16
        %v9597 = vpop.permute.xlu0 %9596
        %9598 = vrot.lane.b32.xlu0 %v9581, 24
        %v9599 = vpop.permute.xlu0 %9598
        %9600 = vrot.lane.b32.xlu0 %v9584, 32
        %v9601 = vpop.permute.xlu0 %9600
        %9602 = vrot.lane.b32.xlu0 %v9587, 40
        %v9603 = vpop.permute.xlu0 %9602
        %9604 = vrot.lane.b32.xlu0 %v9590, 48
        %v9605 = vpop.permute.xlu0 %9604
        %9606 = vrot.lane.b32.xlu0 %v9593, 56
        %v9607 = vpop.permute.xlu0 %9606
        %v9610 = vsel %vm971, %v9572, %v9595
        %v9612 = vsel %vm4035, %v9610, %v9597
        %v9614 = vsel %vm5520, %v9612, %v9599
        %v9616 = vsel %vm5240, %v9614, %v9601
        %v9618 = vsel %vm5525, %v9616, %v9603
        %v9620 = vsel %vm5242, %v9618, %v9605
        %v9622 = vsel %vm5530, %v9620, %v9607
        %9624 = vrot.lane.b32.xlu0 %v9327, 127
        %v9625 = vpop.permute.xlu0 %9624
        %9626 = vrot.lane.b32.xlu0 %v9333, 127
        %v9627 = vpop.permute.xlu0 %9626
        %9628 = vrot.lane.b32.xlu0 %v9339, 127
        %v9629 = vpop.permute.xlu0 %9628
        %9630 = vrot.lane.b32.xlu0 %v9345, 127
        %v9631 = vpop.permute.xlu0 %9630
        %9632 = vrot.lane.b32.xlu0 %v9351, 127
        %v9633 = vpop.permute.xlu0 %9632
        %9634 = vrot.lane.b32.xlu0 %v9357, 127
        %v9635 = vpop.permute.xlu0 %9634
        %9636 = vrot.lane.b32.xlu0 %v9363, 127
        %v9637 = vpop.permute.xlu0 %9636
        %9638 = vrot.lane.b32.xlu0 %v9369, 127
        %v9639 = vpop.permute.xlu0 %9638
        %9640 = vrot.lane.b32.xlu0 %v9375, 127
        %v9641 = vpop.permute.xlu0 %9640
        %9642 = vrot.lane.b32.xlu0 %v9381, 127
        %v9643 = vpop.permute.xlu0 %9642
        %9644 = vrot.lane.b32.xlu0 %v9387, 127
        %v9645 = vpop.permute.xlu0 %9644
        %9646 = vrot.lane.b32.xlu0 %v9393, 127
        %v9647 = vpop.permute.xlu0 %9646
        %9648 = vrot.lane.b32.xlu0 %v9399, 127
        %v9649 = vpop.permute.xlu0 %9648
        %9650 = vrot.lane.b32.xlu0 %v9405, 127
        %v9651 = vpop.permute.xlu0 %9650
        %9652 = vrot.lane.b32.xlu0 %v9411, 127
        %v9653 = vpop.permute.xlu0 %9652
        %9654 = vrot.lane.b32.xlu0 %v9417, 127
        %v9655 = vpop.permute.xlu0 %9654
        %v9672 = vcombine.low %v9625, %v9633
        %v9674 = vunpack.c.l.s4 1983009808
        %v9675 = vunpack.c.0.s8 %v9674
        %v9676 = vlaneseq
        %v9677 = vshrl.u32 %v9676, 7
        %v9678 = vsub.s32 %v9675, %v9677
        %v9679 = vrot.slane %v9672, %v9678
        %v9680 = vcombine.low %v9629, %v9637
        %v9682 = vunpack.c.l.s4 1983009808
        %v9683 = vunpack.c.0.s8 %v9682
        %v9684 = vlaneseq
        %v9685 = vshrl.u32 %v9684, 7
        %v9686 = vsub.s32 %v9683, %v9685
        %v9687 = vrot.slane %v9680, %v9686
        %v9688 = vcombine.low %v9641, %v9649
        %v9690 = vunpack.c.l.s4 1983009808
        %v9691 = vunpack.c.0.s8 %v9690
        %v9692 = vlaneseq
        %v9693 = vshrl.u32 %v9692, 7
        %v9694 = vsub.s32 %v9691, %v9693
        %v9695 = vrot.slane %v9688, %v9694
        %v9696 = vcombine.low %v9645, %v9653
        %v9698 = vunpack.c.l.s4 1983009808
        %v9699 = vunpack.c.0.s8 %v9698
        %v9700 = vlaneseq
        %v9701 = vshrl.u32 %v9700, 7
        %v9702 = vsub.s32 %v9699, %v9701
        %v9703 = vrot.slane %v9696, %v9702
        %v9704 = vcombine.low %v9679, %v9687
        %v9705 = vcombine.high %v9679, %v9687
        %v9707 = vunpack.c.l.s4 1934713408
        %v9708 = vunpack.c.0.s8 %v9707
        %v9709 = vlaneseq
        %v9710 = vshrl.u32 %v9709, 7
        %v9711 = vsub.s32 %v9708, %v9710
        %v9712 = vrot.slane %v9704, %v9711
        %v9714 = vunpack.c.l.s4 1934713408
        %v9715 = vunpack.c.0.s8 %v9714
        %v9716 = vlaneseq
        %v9717 = vshrl.u32 %v9716, 7
        %v9718 = vsub.s32 %v9715, %v9717
        %v9719 = vrot.slane %v9705, %v9718
        %v9720 = vcombine.low %v9695, %v9703
        %v9721 = vcombine.high %v9695, %v9703
        %v9723 = vunpack.c.l.s4 1934713408
        %v9724 = vunpack.c.0.s8 %v9723
        %v9725 = vlaneseq
        %v9726 = vshrl.u32 %v9725, 7
        %v9727 = vsub.s32 %v9724, %v9726
        %v9728 = vrot.slane %v9720, %v9727
        %v9730 = vunpack.c.l.s4 1934713408
        %v9731 = vunpack.c.0.s8 %v9730
        %v9732 = vlaneseq
        %v9733 = vshrl.u32 %v9732, 7
        %v9734 = vsub.s32 %v9731, %v9733
        %v9735 = vrot.slane %v9721, %v9734
        %v9736 = vcombine.low %v9712, %v9728
        %v9737 = vcombine.high %v9712, %v9728
        %v9738 = vcombine.low %v9719, %v9735
        %v9739 = vcombine.high %v9719, %v9735
        %v9740 = vcombine.low %v9627, %v9635
        %v9742 = vunpack.c.l.s4 1983009808
        %v9743 = vunpack.c.0.s8 %v9742
        %v9744 = vlaneseq
        %v9745 = vshrl.u32 %v9744, 7
        %v9746 = vsub.s32 %v9743, %v9745
        %v9747 = vrot.slane %v9740, %v9746
        %v9748 = vcombine.low %v9631, %v9639
        %v9750 = vunpack.c.l.s4 1983009808
        %v9751 = vunpack.c.0.s8 %v9750
        %v9752 = vlaneseq
        %v9753 = vshrl.u32 %v9752, 7
        %v9754 = vsub.s32 %v9751, %v9753
        %v9755 = vrot.slane %v9748, %v9754
        %v9756 = vcombine.low %v9643, %v9651
        %v9758 = vunpack.c.l.s4 1983009808
        %v9759 = vunpack.c.0.s8 %v9758
        %v9760 = vlaneseq
        %v9761 = vshrl.u32 %v9760, 7
        %v9762 = vsub.s32 %v9759, %v9761
        %v9763 = vrot.slane %v9756, %v9762
        %v9764 = vcombine.low %v9647, %v9655
        %v9766 = vunpack.c.l.s4 1983009808
        %v9767 = vunpack.c.0.s8 %v9766
        %v9768 = vlaneseq
        %v9769 = vshrl.u32 %v9768, 7
        %v9770 = vsub.s32 %v9767, %v9769
        %v9771 = vrot.slane %v9764, %v9770
        %v9772 = vcombine.low %v9747, %v9755
        %v9773 = vcombine.high %v9747, %v9755
        %v9775 = vunpack.c.l.s4 1934713408
        %v9776 = vunpack.c.0.s8 %v9775
        %v9777 = vlaneseq
        %v9778 = vshrl.u32 %v9777, 7
        %v9779 = vsub.s32 %v9776, %v9778
        %v9780 = vrot.slane %v9772, %v9779
        %v9782 = vunpack.c.l.s4 1934713408
        %v9783 = vunpack.c.0.s8 %v9782
        %v9784 = vlaneseq
        %v9785 = vshrl.u32 %v9784, 7
        %v9786 = vsub.s32 %v9783, %v9785
        %v9787 = vrot.slane %v9773, %v9786
        %v9788 = vcombine.low %v9763, %v9771
        %v9789 = vcombine.high %v9763, %v9771
        %v9791 = vunpack.c.l.s4 1934713408
        %v9792 = vunpack.c.0.s8 %v9791
        %v9793 = vlaneseq
        %v9794 = vshrl.u32 %v9793, 7
        %v9795 = vsub.s32 %v9792, %v9794
        %v9796 = vrot.slane %v9788, %v9795
        %v9798 = vunpack.c.l.s4 1934713408
        %v9799 = vunpack.c.0.s8 %v9798
        %v9800 = vlaneseq
        %v9801 = vshrl.u32 %v9800, 7
        %v9802 = vsub.s32 %v9799, %v9801
        %v9803 = vrot.slane %v9789, %v9802
        %v9804 = vcombine.low %v9780, %v9796
        %v9805 = vcombine.high %v9780, %v9796
        %v9806 = vcombine.low %v9787, %v9803
        %v9807 = vcombine.high %v9787, %v9803
        %v9810 = vpack.i.b16 %v9804, %v9736
        %v9811 = vshrl.u32 %v9736, 16
        %v9812 = vshrl.u32 %v9804, 16
        %v9813 = vpack.i.b16 %v9812, %v9811
        %v9816 = vpack.i.b16 %v9805, %v9737
        %v9817 = vshrl.u32 %v9737, 16
        %v9818 = vshrl.u32 %v9805, 16
        %v9819 = vpack.i.b16 %v9818, %v9817
        %v9822 = vpack.i.b16 %v9806, %v9738
        %v9823 = vshrl.u32 %v9738, 16
        %v9824 = vshrl.u32 %v9806, 16
        %v9825 = vpack.i.b16 %v9824, %v9823
        %v9828 = vpack.i.b16 %v9807, %v9739
        %v9829 = vshrl.u32 %v9739, 16
        %v9830 = vshrl.u32 %v9807, 16
        %v9831 = vpack.i.b16 %v9830, %v9829
        %9832 = vrot.lane.b32.xlu0 %v9813, 8
        %v9833 = vpop.permute.xlu0 %9832
        %9834 = vrot.lane.b32.xlu0 %v9816, 16
        %v9835 = vpop.permute.xlu0 %9834
        %9836 = vrot.lane.b32.xlu0 %v9819, 24
        %v9837 = vpop.permute.xlu0 %9836
        %9838 = vrot.lane.b32.xlu0 %v9822, 32
        %v9839 = vpop.permute.xlu0 %9838
        %9840 = vrot.lane.b32.xlu0 %v9825, 40
        %v9841 = vpop.permute.xlu0 %9840
        %9842 = vrot.lane.b32.xlu0 %v9828, 48
        %v9843 = vpop.permute.xlu0 %9842
        %9844 = vrot.lane.b32.xlu0 %v9831, 56
        %v9845 = vpop.permute.xlu0 %9844
        %v9848 = vsel %vm971, %v9810, %v9833
        %v9850 = vsel %vm4035, %v9848, %v9835
        %v9852 = vsel %vm5520, %v9850, %v9837
        %v9854 = vsel %vm5240, %v9852, %v9839
        %v9856 = vsel %vm5525, %v9854, %v9841
        %v9858 = vsel %vm5242, %v9856, %v9843
        %v9860 = vsel %vm5530, %v9858, %v9845
        %9862 = vrot.lane.b32.xlu0 %v9327, 126
        %v9863 = vpop.permute.xlu0 %9862
        %9864 = vrot.lane.b32.xlu0 %v9333, 126
        %v9865 = vpop.permute.xlu0 %9864
        %9866 = vrot.lane.b32.xlu0 %v9339, 126
        %v9867 = vpop.permute.xlu0 %9866
        %9868 = vrot.lane.b32.xlu0 %v9345, 126
        %v9869 = vpop.permute.xlu0 %9868
        %9870 = vrot.lane.b32.xlu0 %v9351, 126
        %v9871 = vpop.permute.xlu0 %9870
        %9872 = vrot.lane.b32.xlu0 %v9357, 126
        %v9873 = vpop.permute.xlu0 %9872
        %9874 = vrot.lane.b32.xlu0 %v9363, 126
        %v9875 = vpop.permute.xlu0 %9874
        %9876 = vrot.lane.b32.xlu0 %v9369, 126
        %v9877 = vpop.permute.xlu0 %9876
        %9878 = vrot.lane.b32.xlu0 %v9375, 126
        %v9879 = vpop.permute.xlu0 %9878
        %9880 = vrot.lane.b32.xlu0 %v9381, 126
        %v9881 = vpop.permute.xlu0 %9880
        %9882 = vrot.lane.b32.xlu0 %v9387, 126
        %v9883 = vpop.permute.xlu0 %9882
        %9884 = vrot.lane.b32.xlu0 %v9393, 126
        %v9885 = vpop.permute.xlu0 %9884
        %9886 = vrot.lane.b32.xlu0 %v9399, 126
        %v9887 = vpop.permute.xlu0 %9886
        %9888 = vrot.lane.b32.xlu0 %v9405, 126
        %v9889 = vpop.permute.xlu0 %9888
        %9890 = vrot.lane.b32.xlu0 %v9411, 126
        %v9891 = vpop.permute.xlu0 %9890
        %9892 = vrot.lane.b32.xlu0 %v9417, 126
        %v9893 = vpop.permute.xlu0 %9892
        %v9910 = vcombine.low %v9863, %v9871
        %v9912 = vunpack.c.l.s4 1983009808
        %v9913 = vunpack.c.0.s8 %v9912
        %v9914 = vlaneseq
        %v9915 = vshrl.u32 %v9914, 7
        %v9916 = vsub.s32 %v9913, %v9915
        %v9917 = vrot.slane %v9910, %v9916
        %v9918 = vcombine.low %v9867, %v9875
        %v9920 = vunpack.c.l.s4 1983009808
        %v9921 = vunpack.c.0.s8 %v9920
        %v9922 = vlaneseq
        %v9923 = vshrl.u32 %v9922, 7
        %v9924 = vsub.s32 %v9921, %v9923
        %v9925 = vrot.slane %v9918, %v9924
        %v9926 = vcombine.low %v9879, %v9887
        %v9928 = vunpack.c.l.s4 1983009808
        %v9929 = vunpack.c.0.s8 %v9928
        %v9930 = vlaneseq
        %v9931 = vshrl.u32 %v9930, 7
        %v9932 = vsub.s32 %v9929, %v9931
        %v9933 = vrot.slane %v9926, %v9932
        %v9934 = vcombine.low %v9883, %v9891
        %v9936 = vunpack.c.l.s4 1983009808
        %v9937 = vunpack.c.0.s8 %v9936
        %v9938 = vlaneseq
        %v9939 = vshrl.u32 %v9938, 7
        %v9940 = vsub.s32 %v9937, %v9939
        %v9941 = vrot.slane %v9934, %v9940
        %v9942 = vcombine.low %v9917, %v9925
        %v9943 = vcombine.high %v9917, %v9925
        %v9945 = vunpack.c.l.s4 1934713408
        %v9946 = vunpack.c.0.s8 %v9945
        %v9947 = vlaneseq
        %v9948 = vshrl.u32 %v9947, 7
        %v9949 = vsub.s32 %v9946, %v9948
        %v9950 = vrot.slane %v9942, %v9949
        %v9952 = vunpack.c.l.s4 1934713408
        %v9953 = vunpack.c.0.s8 %v9952
        %v9954 = vlaneseq
        %v9955 = vshrl.u32 %v9954, 7
        %v9956 = vsub.s32 %v9953, %v9955
        %v9957 = vrot.slane %v9943, %v9956
        %v9958 = vcombine.low %v9933, %v9941
        %v9959 = vcombine.high %v9933, %v9941
        %v9961 = vunpack.c.l.s4 1934713408
        %v9962 = vunpack.c.0.s8 %v9961
        %v9963 = vlaneseq
        %v9964 = vshrl.u32 %v9963, 7
        %v9965 = vsub.s32 %v9962, %v9964
        %v9966 = vrot.slane %v9958, %v9965
        %v9968 = vunpack.c.l.s4 1934713408
        %v9969 = vunpack.c.0.s8 %v9968
        %v9970 = vlaneseq
        %v9971 = vshrl.u32 %v9970, 7
        %v9972 = vsub.s32 %v9969, %v9971
        %v9973 = vrot.slane %v9959, %v9972
        %v9974 = vcombine.low %v9950, %v9966
        %v9975 = vcombine.high %v9950, %v9966
        %v9976 = vcombine.low %v9957, %v9973
        %v9977 = vcombine.high %v9957, %v9973
        %v9978 = vcombine.low %v9865, %v9873
        %v9980 = vunpack.c.l.s4 1983009808
        %v9981 = vunpack.c.0.s8 %v9980
        %v9982 = vlaneseq
        %v9983 = vshrl.u32 %v9982, 7
        %v9984 = vsub.s32 %v9981, %v9983
        %v9985 = vrot.slane %v9978, %v9984
        %v9986 = vcombine.low %v9869, %v9877
        %v9988 = vunpack.c.l.s4 1983009808
        %v9989 = vunpack.c.0.s8 %v9988
        %v9990 = vlaneseq
        %v9991 = vshrl.u32 %v9990, 7
        %v9992 = vsub.s32 %v9989, %v9991
        %v9993 = vrot.slane %v9986, %v9992
        %v9994 = vcombine.low %v9881, %v9889
        %v9996 = vunpack.c.l.s4 1983009808
        %v9997 = vunpack.c.0.s8 %v9996
        %v9998 = vlaneseq
        %v9999 = vshrl.u32 %v9998, 7
        %v10000 = vsub.s32 %v9997, %v9999
        %v10001 = vrot.slane %v9994, %v10000
        %v10002 = vcombine.low %v9885, %v9893
        %v10004 = vunpack.c.l.s4 1983009808
        %v10005 = vunpack.c.0.s8 %v10004
        %v10006 = vlaneseq
        %v10007 = vshrl.u32 %v10006, 7
        %v10008 = vsub.s32 %v10005, %v10007
        %v10009 = vrot.slane %v10002, %v10008
        %v10010 = vcombine.low %v9985, %v9993
        %v10011 = vcombine.high %v9985, %v9993
        %v10013 = vunpack.c.l.s4 1934713408
        %v10014 = vunpack.c.0.s8 %v10013
        %v10015 = vlaneseq
        %v10016 = vshrl.u32 %v10015, 7
        %v10017 = vsub.s32 %v10014, %v10016
        %v10018 = vrot.slane %v10010, %v10017
        %v10020 = vunpack.c.l.s4 1934713408
        %v10021 = vunpack.c.0.s8 %v10020
        %v10022 = vlaneseq
        %v10023 = vshrl.u32 %v10022, 7
        %v10024 = vsub.s32 %v10021, %v10023
        %v10025 = vrot.slane %v10011, %v10024
        %v10026 = vcombine.low %v10001, %v10009
        %v10027 = vcombine.high %v10001, %v10009
        %v10029 = vunpack.c.l.s4 1934713408
        %v10030 = vunpack.c.0.s8 %v10029
        %v10031 = vlaneseq
        %v10032 = vshrl.u32 %v10031, 7
        %v10033 = vsub.s32 %v10030, %v10032
        %v10034 = vrot.slane %v10026, %v10033
        %v10036 = vunpack.c.l.s4 1934713408
        %v10037 = vunpack.c.0.s8 %v10036
        %v10038 = vlaneseq
        %v10039 = vshrl.u32 %v10038, 7
        %v10040 = vsub.s32 %v10037, %v10039
        %v10041 = vrot.slane %v10027, %v10040
        %v10042 = vcombine.low %v10018, %v10034
        %v10043 = vcombine.high %v10018, %v10034
        %v10044 = vcombine.low %v10025, %v10041
        %v10045 = vcombine.high %v10025, %v10041
        %v10048 = vpack.i.b16 %v10042, %v9974
        %v10049 = vshrl.u32 %v9974, 16
        %v10050 = vshrl.u32 %v10042, 16
        %v10051 = vpack.i.b16 %v10050, %v10049
        %v10054 = vpack.i.b16 %v10043, %v9975
        %v10055 = vshrl.u32 %v9975, 16
        %v10056 = vshrl.u32 %v10043, 16
        %v10057 = vpack.i.b16 %v10056, %v10055
        %v10060 = vpack.i.b16 %v10044, %v9976
        %v10061 = vshrl.u32 %v9976, 16
        %v10062 = vshrl.u32 %v10044, 16
        %v10063 = vpack.i.b16 %v10062, %v10061
        %v10066 = vpack.i.b16 %v10045, %v9977
        %v10067 = vshrl.u32 %v9977, 16
        %v10068 = vshrl.u32 %v10045, 16
        %v10069 = vpack.i.b16 %v10068, %v10067
        %10070 = vrot.lane.b32.xlu0 %v10051, 8
        %v10071 = vpop.permute.xlu0 %10070
        %10072 = vrot.lane.b32.xlu0 %v10054, 16
        %v10073 = vpop.permute.xlu0 %10072
        %10074 = vrot.lane.b32.xlu0 %v10057, 24
        %v10075 = vpop.permute.xlu0 %10074
        %10076 = vrot.lane.b32.xlu0 %v10060, 32
        %v10077 = vpop.permute.xlu0 %10076
        %10078 = vrot.lane.b32.xlu0 %v10063, 40
        %v10079 = vpop.permute.xlu0 %10078
        %10080 = vrot.lane.b32.xlu0 %v10066, 48
        %v10081 = vpop.permute.xlu0 %10080
        %10082 = vrot.lane.b32.xlu0 %v10069, 56
        %v10083 = vpop.permute.xlu0 %10082
        %v10086 = vsel %vm971, %v10048, %v10071
        %v10088 = vsel %vm4035, %v10086, %v10073
        %v10090 = vsel %vm5520, %v10088, %v10075
        %v10092 = vsel %vm5240, %v10090, %v10077
        %v10094 = vsel %vm5525, %v10092, %v10079
        %v10096 = vsel %vm5242, %v10094, %v10081
        %v10098 = vsel %vm5530, %v10096, %v10083
        %v10100 = vrot.slane %v8608, 1
        %v10101 = vrot.slane %v8610, 1
        %v10102 = vrot.slane %v8612, 1
        %v10103 = vrot.slane %v8614, 1
        %v10104 = vrot.slane %v8616, 1
        %v10105 = vrot.slane %v8618, 1
        %v10106 = vrot.slane %v8620, 1
        %v10107 = vrot.slane %v8622, 1
        %v10108 = vrot.slane %v8624, 1
        %v10109 = vrot.slane %v8626, 1
        %v10110 = vrot.slane %v8628, 1
        %v10111 = vrot.slane %v8630, 1
        %v10112 = vrot.slane %v8632, 1
        %v10113 = vrot.slane %v8634, 1
        %v10114 = vrot.slane %v8636, 1
        %v10115 = vrot.slane %v8638, 1
        %v10132 = vcombine.low %v10100, %v10104
        %v10134 = vunpack.c.l.s4 1983009808
        %v10135 = vunpack.c.0.s8 %v10134
        %v10136 = vlaneseq
        %v10137 = vshrl.u32 %v10136, 7
        %v10138 = vsub.s32 %v10135, %v10137
        %v10139 = vrot.slane %v10132, %v10138
        %v10140 = vcombine.low %v10102, %v10106
        %v10142 = vunpack.c.l.s4 1983009808
        %v10143 = vunpack.c.0.s8 %v10142
        %v10144 = vlaneseq
        %v10145 = vshrl.u32 %v10144, 7
        %v10146 = vsub.s32 %v10143, %v10145
        %v10147 = vrot.slane %v10140, %v10146
        %v10148 = vcombine.low %v10108, %v10112
        %v10150 = vunpack.c.l.s4 1983009808
        %v10151 = vunpack.c.0.s8 %v10150
        %v10152 = vlaneseq
        %v10153 = vshrl.u32 %v10152, 7
        %v10154 = vsub.s32 %v10151, %v10153
        %v10155 = vrot.slane %v10148, %v10154
        %v10156 = vcombine.low %v10110, %v10114
        %v10158 = vunpack.c.l.s4 1983009808
        %v10159 = vunpack.c.0.s8 %v10158
        %v10160 = vlaneseq
        %v10161 = vshrl.u32 %v10160, 7
        %v10162 = vsub.s32 %v10159, %v10161
        %v10163 = vrot.slane %v10156, %v10162
        %v10164 = vcombine.low %v10139, %v10147
        %v10165 = vcombine.high %v10139, %v10147
        %v10167 = vunpack.c.l.s4 1934713408
        %v10168 = vunpack.c.0.s8 %v10167
        %v10169 = vlaneseq
        %v10170 = vshrl.u32 %v10169, 7
        %v10171 = vsub.s32 %v10168, %v10170
        %v10172 = vrot.slane %v10164, %v10171
        %v10174 = vunpack.c.l.s4 1934713408
        %v10175 = vunpack.c.0.s8 %v10174
        %v10176 = vlaneseq
        %v10177 = vshrl.u32 %v10176, 7
        %v10178 = vsub.s32 %v10175, %v10177
        %v10179 = vrot.slane %v10165, %v10178
        %v10180 = vcombine.low %v10155, %v10163
        %v10181 = vcombine.high %v10155, %v10163
        %v10183 = vunpack.c.l.s4 1934713408
        %v10184 = vunpack.c.0.s8 %v10183
        %v10185 = vlaneseq
        %v10186 = vshrl.u32 %v10185, 7
        %v10187 = vsub.s32 %v10184, %v10186
        %v10188 = vrot.slane %v10180, %v10187
        %v10190 = vunpack.c.l.s4 1934713408
        %v10191 = vunpack.c.0.s8 %v10190
        %v10192 = vlaneseq
        %v10193 = vshrl.u32 %v10192, 7
        %v10194 = vsub.s32 %v10191, %v10193
        %v10195 = vrot.slane %v10181, %v10194
        %v10196 = vcombine.low %v10172, %v10188
        %v10197 = vcombine.high %v10172, %v10188
        %v10198 = vcombine.low %v10179, %v10195
        %v10199 = vcombine.high %v10179, %v10195
        %v10200 = vcombine.low %v10101, %v10105
        %v10202 = vunpack.c.l.s4 1983009808
        %v10203 = vunpack.c.0.s8 %v10202
        %v10204 = vlaneseq
        %v10205 = vshrl.u32 %v10204, 7
        %v10206 = vsub.s32 %v10203, %v10205
        %v10207 = vrot.slane %v10200, %v10206
        %v10208 = vcombine.low %v10103, %v10107
        %v10210 = vunpack.c.l.s4 1983009808
        %v10211 = vunpack.c.0.s8 %v10210
        %v10212 = vlaneseq
        %v10213 = vshrl.u32 %v10212, 7
        %v10214 = vsub.s32 %v10211, %v10213
        %v10215 = vrot.slane %v10208, %v10214
        %v10216 = vcombine.low %v10109, %v10113
        %v10218 = vunpack.c.l.s4 1983009808
        %v10219 = vunpack.c.0.s8 %v10218
        %v10220 = vlaneseq
        %v10221 = vshrl.u32 %v10220, 7
        %v10222 = vsub.s32 %v10219, %v10221
        %v10223 = vrot.slane %v10216, %v10222
        %v10224 = vcombine.low %v10111, %v10115
        %v10226 = vunpack.c.l.s4 1983009808
        %v10227 = vunpack.c.0.s8 %v10226
        %v10228 = vlaneseq
        %v10229 = vshrl.u32 %v10228, 7
        %v10230 = vsub.s32 %v10227, %v10229
        %v10231 = vrot.slane %v10224, %v10230
        %v10232 = vcombine.low %v10207, %v10215
        %v10233 = vcombine.high %v10207, %v10215
        %v10235 = vunpack.c.l.s4 1934713408
        %v10236 = vunpack.c.0.s8 %v10235
        %v10237 = vlaneseq
        %v10238 = vshrl.u32 %v10237, 7
        %v10239 = vsub.s32 %v10236, %v10238
        %v10240 = vrot.slane %v10232, %v10239
        %v10242 = vunpack.c.l.s4 1934713408
        %v10243 = vunpack.c.0.s8 %v10242
        %v10244 = vlaneseq
        %v10245 = vshrl.u32 %v10244, 7
        %v10246 = vsub.s32 %v10243, %v10245
        %v10247 = vrot.slane %v10233, %v10246
        %v10248 = vcombine.low %v10223, %v10231
        %v10249 = vcombine.high %v10223, %v10231
        %v10251 = vunpack.c.l.s4 1934713408
        %v10252 = vunpack.c.0.s8 %v10251
        %v10253 = vlaneseq
        %v10254 = vshrl.u32 %v10253, 7
        %v10255 = vsub.s32 %v10252, %v10254
        %v10256 = vrot.slane %v10248, %v10255
        %v10258 = vunpack.c.l.s4 1934713408
        %v10259 = vunpack.c.0.s8 %v10258
        %v10260 = vlaneseq
        %v10261 = vshrl.u32 %v10260, 7
        %v10262 = vsub.s32 %v10259, %v10261
        %v10263 = vrot.slane %v10249, %v10262
        %v10264 = vcombine.low %v10240, %v10256
        %v10265 = vcombine.high %v10240, %v10256
        %v10266 = vcombine.low %v10247, %v10263
        %v10267 = vcombine.high %v10247, %v10263
        %v10270 = vpack.i.b16 %v10264, %v10196
        %v10271 = vshrl.u32 %v10196, 16
        %v10272 = vshrl.u32 %v10264, 16
        %v10273 = vpack.i.b16 %v10272, %v10271
        %v10276 = vpack.i.b16 %v10265, %v10197
        %v10277 = vshrl.u32 %v10197, 16
        %v10278 = vshrl.u32 %v10265, 16
        %v10279 = vpack.i.b16 %v10278, %v10277
        %v10282 = vpack.i.b16 %v10266, %v10198
        %v10283 = vshrl.u32 %v10198, 16
        %v10284 = vshrl.u32 %v10266, 16
        %v10285 = vpack.i.b16 %v10284, %v10283
        %v10288 = vpack.i.b16 %v10267, %v10199
        %v10289 = vshrl.u32 %v10199, 16
        %v10290 = vshrl.u32 %v10267, 16
        %v10291 = vpack.i.b16 %v10290, %v10289
        %10292 = vrot.lane.b32.xlu0 %v10273, 8
        %v10293 = vpop.permute.xlu0 %10292
        %10294 = vrot.lane.b32.xlu0 %v10276, 16
        %v10295 = vpop.permute.xlu0 %10294
        %10296 = vrot.lane.b32.xlu0 %v10279, 24
        %v10297 = vpop.permute.xlu0 %10296
        %10298 = vrot.lane.b32.xlu0 %v10282, 32
        %v10299 = vpop.permute.xlu0 %10298
        %10300 = vrot.lane.b32.xlu0 %v10285, 40
        %v10301 = vpop.permute.xlu0 %10300
        %10302 = vrot.lane.b32.xlu0 %v10288, 48
        %v10303 = vpop.permute.xlu0 %10302
        %10304 = vrot.lane.b32.xlu0 %v10291, 56
        %v10305 = vpop.permute.xlu0 %10304
        %v10308 = vsel %vm971, %v10270, %v10293
        %v10310 = vsel %vm4035, %v10308, %v10295
        %v10312 = vsel %vm5520, %v10310, %v10297
        %v10314 = vsel %vm5240, %v10312, %v10299
        %v10316 = vsel %vm5525, %v10314, %v10301
        %v10318 = vsel %vm5242, %v10316, %v10303
        %v10320 = vsel %vm5530, %v10318, %v10305
        %10322 = vrot.lane.b32.xlu0 %v10100, 127
        %v10323 = vpop.permute.xlu0 %10322
        %10324 = vrot.lane.b32.xlu0 %v10101, 127
        %v10325 = vpop.permute.xlu0 %10324
        %10326 = vrot.lane.b32.xlu0 %v10102, 127
        %v10327 = vpop.permute.xlu0 %10326
        %10328 = vrot.lane.b32.xlu0 %v10103, 127
        %v10329 = vpop.permute.xlu0 %10328
        %10330 = vrot.lane.b32.xlu0 %v10104, 127
        %v10331 = vpop.permute.xlu0 %10330
        %10332 = vrot.lane.b32.xlu0 %v10105, 127
        %v10333 = vpop.permute.xlu0 %10332
        %10334 = vrot.lane.b32.xlu0 %v10106, 127
        %v10335 = vpop.permute.xlu0 %10334
        %10336 = vrot.lane.b32.xlu0 %v10107, 127
        %v10337 = vpop.permute.xlu0 %10336
        %10338 = vrot.lane.b32.xlu0 %v10108, 127
        %v10339 = vpop.permute.xlu0 %10338
        %10340 = vrot.lane.b32.xlu0 %v10109, 127
        %v10341 = vpop.permute.xlu0 %10340
        %10342 = vrot.lane.b32.xlu0 %v10110, 127
        %v10343 = vpop.permute.xlu0 %10342
        %10344 = vrot.lane.b32.xlu0 %v10111, 127
        %v10345 = vpop.permute.xlu0 %10344
        %10346 = vrot.lane.b32.xlu0 %v10112, 127
        %v10347 = vpop.permute.xlu0 %10346
        %10348 = vrot.lane.b32.xlu0 %v10113, 127
        %v10349 = vpop.permute.xlu0 %10348
        %10350 = vrot.lane.b32.xlu0 %v10114, 127
        %v10351 = vpop.permute.xlu0 %10350
        %10352 = vrot.lane.b32.xlu0 %v10115, 127
        %v10353 = vpop.permute.xlu0 %10352
        %v10370 = vcombine.low %v10323, %v10331
        %v10372 = vunpack.c.l.s4 1983009808
        %v10373 = vunpack.c.0.s8 %v10372
        %v10374 = vlaneseq
        %v10375 = vshrl.u32 %v10374, 7
        %v10376 = vsub.s32 %v10373, %v10375
        %v10377 = vrot.slane %v10370, %v10376
        %v10378 = vcombine.low %v10327, %v10335
        %v10380 = vunpack.c.l.s4 1983009808
        %v10381 = vunpack.c.0.s8 %v10380
        %v10382 = vlaneseq
        %v10383 = vshrl.u32 %v10382, 7
        %v10384 = vsub.s32 %v10381, %v10383
        %v10385 = vrot.slane %v10378, %v10384
        %v10386 = vcombine.low %v10339, %v10347
        %v10388 = vunpack.c.l.s4 1983009808
        %v10389 = vunpack.c.0.s8 %v10388
        %v10390 = vlaneseq
        %v10391 = vshrl.u32 %v10390, 7
        %v10392 = vsub.s32 %v10389, %v10391
        %v10393 = vrot.slane %v10386, %v10392
        %v10394 = vcombine.low %v10343, %v10351
        %v10396 = vunpack.c.l.s4 1983009808
        %v10397 = vunpack.c.0.s8 %v10396
        %v10398 = vlaneseq
        %v10399 = vshrl.u32 %v10398, 7
        %v10400 = vsub.s32 %v10397, %v10399
        %v10401 = vrot.slane %v10394, %v10400
        %v10402 = vcombine.low %v10377, %v10385
        %v10403 = vcombine.high %v10377, %v10385
        %v10405 = vunpack.c.l.s4 1934713408
        %v10406 = vunpack.c.0.s8 %v10405
        %v10407 = vlaneseq
        %v10408 = vshrl.u32 %v10407, 7
        %v10409 = vsub.s32 %v10406, %v10408
        %v10410 = vrot.slane %v10402, %v10409
        %v10412 = vunpack.c.l.s4 1934713408
        %v10413 = vunpack.c.0.s8 %v10412
        %v10414 = vlaneseq
        %v10415 = vshrl.u32 %v10414, 7
        %v10416 = vsub.s32 %v10413, %v10415
        %v10417 = vrot.slane %v10403, %v10416
        %v10418 = vcombine.low %v10393, %v10401
        %v10419 = vcombine.high %v10393, %v10401
        %v10421 = vunpack.c.l.s4 1934713408
        %v10422 = vunpack.c.0.s8 %v10421
        %v10423 = vlaneseq
        %v10424 = vshrl.u32 %v10423, 7
        %v10425 = vsub.s32 %v10422, %v10424
        %v10426 = vrot.slane %v10418, %v10425
        %v10428 = vunpack.c.l.s4 1934713408
        %v10429 = vunpack.c.0.s8 %v10428
        %v10430 = vlaneseq
        %v10431 = vshrl.u32 %v10430, 7
        %v10432 = vsub.s32 %v10429, %v10431
        %v10433 = vrot.slane %v10419, %v10432
        %v10434 = vcombine.low %v10410, %v10426
        %v10435 = vcombine.high %v10410, %v10426
        %v10436 = vcombine.low %v10417, %v10433
        %v10437 = vcombine.high %v10417, %v10433
        %v10438 = vcombine.low %v10325, %v10333
        %v10440 = vunpack.c.l.s4 1983009808
        %v10441 = vunpack.c.0.s8 %v10440
        %v10442 = vlaneseq
        %v10443 = vshrl.u32 %v10442, 7
        %v10444 = vsub.s32 %v10441, %v10443
        %v10445 = vrot.slane %v10438, %v10444
        %v10446 = vcombine.low %v10329, %v10337
        %v10448 = vunpack.c.l.s4 1983009808
        %v10449 = vunpack.c.0.s8 %v10448
        %v10450 = vlaneseq
        %v10451 = vshrl.u32 %v10450, 7
        %v10452 = vsub.s32 %v10449, %v10451
        %v10453 = vrot.slane %v10446, %v10452
        %v10454 = vcombine.low %v10341, %v10349
        %v10456 = vunpack.c.l.s4 1983009808
        %v10457 = vunpack.c.0.s8 %v10456
        %v10458 = vlaneseq
        %v10459 = vshrl.u32 %v10458, 7
        %v10460 = vsub.s32 %v10457, %v10459
        %v10461 = vrot.slane %v10454, %v10460
        %v10462 = vcombine.low %v10345, %v10353
        %v10464 = vunpack.c.l.s4 1983009808
        %v10465 = vunpack.c.0.s8 %v10464
        %v10466 = vlaneseq
        %v10467 = vshrl.u32 %v10466, 7
        %v10468 = vsub.s32 %v10465, %v10467
        %v10469 = vrot.slane %v10462, %v10468
        %v10470 = vcombine.low %v10445, %v10453
        %v10471 = vcombine.high %v10445, %v10453
        %v10473 = vunpack.c.l.s4 1934713408
        %v10474 = vunpack.c.0.s8 %v10473
        %v10475 = vlaneseq
        %v10476 = vshrl.u32 %v10475, 7
        %v10477 = vsub.s32 %v10474, %v10476
        %v10478 = vrot.slane %v10470, %v10477
        %v10480 = vunpack.c.l.s4 1934713408
        %v10481 = vunpack.c.0.s8 %v10480
        %v10482 = vlaneseq
        %v10483 = vshrl.u32 %v10482, 7
        %v10484 = vsub.s32 %v10481, %v10483
        %v10485 = vrot.slane %v10471, %v10484
        %v10486 = vcombine.low %v10461, %v10469
        %v10487 = vcombine.high %v10461, %v10469
        %v10489 = vunpack.c.l.s4 1934713408
        %v10490 = vunpack.c.0.s8 %v10489
        %v10491 = vlaneseq
        %v10492 = vshrl.u32 %v10491, 7
        %v10493 = vsub.s32 %v10490, %v10492
        %v10494 = vrot.slane %v10486, %v10493
        %v10496 = vunpack.c.l.s4 1934713408
        %v10497 = vunpack.c.0.s8 %v10496
        %v10498 = vlaneseq
        %v10499 = vshrl.u32 %v10498, 7
        %v10500 = vsub.s32 %v10497, %v10499
        %v10501 = vrot.slane %v10487, %v10500
        %v10502 = vcombine.low %v10478, %v10494
        %v10503 = vcombine.high %v10478, %v10494
        %v10504 = vcombine.low %v10485, %v10501
        %v10505 = vcombine.high %v10485, %v10501
        %v10508 = vpack.i.b16 %v10502, %v10434
        %v10509 = vshrl.u32 %v10434, 16
        %v10510 = vshrl.u32 %v10502, 16
        %v10511 = vpack.i.b16 %v10510, %v10509
        %v10514 = vpack.i.b16 %v10503, %v10435
        %v10515 = vshrl.u32 %v10435, 16
        %v10516 = vshrl.u32 %v10503, 16
        %v10517 = vpack.i.b16 %v10516, %v10515
        %v10520 = vpack.i.b16 %v10504, %v10436
        %v10521 = vshrl.u32 %v10436, 16
        %v10522 = vshrl.u32 %v10504, 16
        %v10523 = vpack.i.b16 %v10522, %v10521
        %v10526 = vpack.i.b16 %v10505, %v10437
        %v10527 = vshrl.u32 %v10437, 16
        %v10528 = vshrl.u32 %v10505, 16
        %v10529 = vpack.i.b16 %v10528, %v10527
        %10530 = vrot.lane.b32.xlu0 %v10511, 8
        %v10531 = vpop.permute.xlu0 %10530
        %10532 = vrot.lane.b32.xlu0 %v10514, 16
        %v10533 = vpop.permute.xlu0 %10532
        %10534 = vrot.lane.b32.xlu0 %v10517, 24
        %v10535 = vpop.permute.xlu0 %10534
        %10536 = vrot.lane.b32.xlu0 %v10520, 32
        %v10537 = vpop.permute.xlu0 %10536
        %10538 = vrot.lane.b32.xlu0 %v10523, 40
        %v10539 = vpop.permute.xlu0 %10538
        %10540 = vrot.lane.b32.xlu0 %v10526, 48
        %v10541 = vpop.permute.xlu0 %10540
        %10542 = vrot.lane.b32.xlu0 %v10529, 56
        %v10543 = vpop.permute.xlu0 %10542
        %v10546 = vsel %vm971, %v10508, %v10531
        %v10548 = vsel %vm4035, %v10546, %v10533
        %v10550 = vsel %vm5520, %v10548, %v10535
        %v10552 = vsel %vm5240, %v10550, %v10537
        %v10554 = vsel %vm5525, %v10552, %v10539
        %v10556 = vsel %vm5242, %v10554, %v10541
        %v10558 = vsel %vm5530, %v10556, %v10543
        %10560 = vrot.lane.b32.xlu0 %v10100, 126
        %v10561 = vpop.permute.xlu0 %10560
        %10562 = vrot.lane.b32.xlu0 %v10101, 126
        %v10563 = vpop.permute.xlu0 %10562
        %10564 = vrot.lane.b32.xlu0 %v10102, 126
        %v10565 = vpop.permute.xlu0 %10564
        %10566 = vrot.lane.b32.xlu0 %v10103, 126
        %v10567 = vpop.permute.xlu0 %10566
        %10568 = vrot.lane.b32.xlu0 %v10104, 126
        %v10569 = vpop.permute.xlu0 %10568
        %10570 = vrot.lane.b32.xlu0 %v10105, 126
        %v10571 = vpop.permute.xlu0 %10570
        %10572 = vrot.lane.b32.xlu0 %v10106, 126
        %v10573 = vpop.permute.xlu0 %10572
        %10574 = vrot.lane.b32.xlu0 %v10107, 126
        %v10575 = vpop.permute.xlu0 %10574
        %10576 = vrot.lane.b32.xlu0 %v10108, 126
        %v10577 = vpop.permute.xlu0 %10576
        %10578 = vrot.lane.b32.xlu0 %v10109, 126
        %v10579 = vpop.permute.xlu0 %10578
        %10580 = vrot.lane.b32.xlu0 %v10110, 126
        %v10581 = vpop.permute.xlu0 %10580
        %10582 = vrot.lane.b32.xlu0 %v10111, 126
        %v10583 = vpop.permute.xlu0 %10582
        %10584 = vrot.lane.b32.xlu0 %v10112, 126
        %v10585 = vpop.permute.xlu0 %10584
        %10586 = vrot.lane.b32.xlu0 %v10113, 126
        %v10587 = vpop.permute.xlu0 %10586
        %10588 = vrot.lane.b32.xlu0 %v10114, 126
        %v10589 = vpop.permute.xlu0 %10588
        %10590 = vrot.lane.b32.xlu0 %v10115, 126
        %v10591 = vpop.permute.xlu0 %10590
        %v10608 = vcombine.low %v10561, %v10569
        %v10610 = vunpack.c.l.s4 1983009808
        %v10611 = vunpack.c.0.s8 %v10610
        %v10612 = vlaneseq
        %v10613 = vshrl.u32 %v10612, 7
        %v10614 = vsub.s32 %v10611, %v10613
        %v10615 = vrot.slane %v10608, %v10614
        %v10616 = vcombine.low %v10565, %v10573
        %v10618 = vunpack.c.l.s4 1983009808
        %v10619 = vunpack.c.0.s8 %v10618
        %v10620 = vlaneseq
        %v10621 = vshrl.u32 %v10620, 7
        %v10622 = vsub.s32 %v10619, %v10621
        %v10623 = vrot.slane %v10616, %v10622
        %v10624 = vcombine.low %v10577, %v10585
        %v10626 = vunpack.c.l.s4 1983009808
        %v10627 = vunpack.c.0.s8 %v10626
        %v10628 = vlaneseq
        %v10629 = vshrl.u32 %v10628, 7
        %v10630 = vsub.s32 %v10627, %v10629
        %v10631 = vrot.slane %v10624, %v10630
        %v10632 = vcombine.low %v10581, %v10589
        %v10634 = vunpack.c.l.s4 1983009808
        %v10635 = vunpack.c.0.s8 %v10634
        %v10636 = vlaneseq
        %v10637 = vshrl.u32 %v10636, 7
        %v10638 = vsub.s32 %v10635, %v10637
        %v10639 = vrot.slane %v10632, %v10638
        %v10640 = vcombine.low %v10615, %v10623
        %v10641 = vcombine.high %v10615, %v10623
        %v10643 = vunpack.c.l.s4 1934713408
        %v10644 = vunpack.c.0.s8 %v10643
        %v10645 = vlaneseq
        %v10646 = vshrl.u32 %v10645, 7
        %v10647 = vsub.s32 %v10644, %v10646
        %v10648 = vrot.slane %v10640, %v10647
        %v10650 = vunpack.c.l.s4 1934713408
        %v10651 = vunpack.c.0.s8 %v10650
        %v10652 = vlaneseq
        %v10653 = vshrl.u32 %v10652, 7
        %v10654 = vsub.s32 %v10651, %v10653
        %v10655 = vrot.slane %v10641, %v10654
        %v10656 = vcombine.low %v10631, %v10639
        %v10657 = vcombine.high %v10631, %v10639
        %v10659 = vunpack.c.l.s4 1934713408
        %v10660 = vunpack.c.0.s8 %v10659
        %v10661 = vlaneseq
        %v10662 = vshrl.u32 %v10661, 7
        %v10663 = vsub.s32 %v10660, %v10662
        %v10664 = vrot.slane %v10656, %v10663
        %v10666 = vunpack.c.l.s4 1934713408
        %v10667 = vunpack.c.0.s8 %v10666
        %v10668 = vlaneseq
        %v10669 = vshrl.u32 %v10668, 7
        %v10670 = vsub.s32 %v10667, %v10669
        %v10671 = vrot.slane %v10657, %v10670
        %v10672 = vcombine.low %v10648, %v10664
        %v10673 = vcombine.high %v10648, %v10664
        %v10674 = vcombine.low %v10655, %v10671
        %v10675 = vcombine.high %v10655, %v10671
        %v10676 = vcombine.low %v10563, %v10571
        %v10678 = vunpack.c.l.s4 1983009808
        %v10679 = vunpack.c.0.s8 %v10678
        %v10680 = vlaneseq
        %v10681 = vshrl.u32 %v10680, 7
        %v10682 = vsub.s32 %v10679, %v10681
        %v10683 = vrot.slane %v10676, %v10682
        %v10684 = vcombine.low %v10567, %v10575
        %v10686 = vunpack.c.l.s4 1983009808
        %v10687 = vunpack.c.0.s8 %v10686
        %v10688 = vlaneseq
        %v10689 = vshrl.u32 %v10688, 7
        %v10690 = vsub.s32 %v10687, %v10689
        %v10691 = vrot.slane %v10684, %v10690
        %v10692 = vcombine.low %v10579, %v10587
        %v10694 = vunpack.c.l.s4 1983009808
        %v10695 = vunpack.c.0.s8 %v10694
        %v10696 = vlaneseq
        %v10697 = vshrl.u32 %v10696, 7
        %v10698 = vsub.s32 %v10695, %v10697
        %v10699 = vrot.slane %v10692, %v10698
        %v10700 = vcombine.low %v10583, %v10591
        %v10702 = vunpack.c.l.s4 1983009808
        %v10703 = vunpack.c.0.s8 %v10702
        %v10704 = vlaneseq
        %v10705 = vshrl.u32 %v10704, 7
        %v10706 = vsub.s32 %v10703, %v10705
        %v10707 = vrot.slane %v10700, %v10706
        %v10708 = vcombine.low %v10683, %v10691
        %v10709 = vcombine.high %v10683, %v10691
        %v10711 = vunpack.c.l.s4 1934713408
        %v10712 = vunpack.c.0.s8 %v10711
        %v10713 = vlaneseq
        %v10714 = vshrl.u32 %v10713, 7
        %v10715 = vsub.s32 %v10712, %v10714
        %v10716 = vrot.slane %v10708, %v10715
        %v10718 = vunpack.c.l.s4 1934713408
        %v10719 = vunpack.c.0.s8 %v10718
        %v10720 = vlaneseq
        %v10721 = vshrl.u32 %v10720, 7
        %v10722 = vsub.s32 %v10719, %v10721
        %v10723 = vrot.slane %v10709, %v10722
        %v10724 = vcombine.low %v10699, %v10707
        %v10725 = vcombine.high %v10699, %v10707
        %v10727 = vunpack.c.l.s4 1934713408
        %v10728 = vunpack.c.0.s8 %v10727
        %v10729 = vlaneseq
        %v10730 = vshrl.u32 %v10729, 7
        %v10731 = vsub.s32 %v10728, %v10730
        %v10732 = vrot.slane %v10724, %v10731
        %v10734 = vunpack.c.l.s4 1934713408
        %v10735 = vunpack.c.0.s8 %v10734
        %v10736 = vlaneseq
        %v10737 = vshrl.u32 %v10736, 7
        %v10738 = vsub.s32 %v10735, %v10737
        %v10739 = vrot.slane %v10725, %v10738
        %v10740 = vcombine.low %v10716, %v10732
        %v10741 = vcombine.high %v10716, %v10732
        %v10742 = vcombine.low %v10723, %v10739
        %v10743 = vcombine.high %v10723, %v10739
        %v10746 = vpack.i.b16 %v10740, %v10672
        %v10747 = vshrl.u32 %v10672, 16
        %v10748 = vshrl.u32 %v10740, 16
        %v10749 = vpack.i.b16 %v10748, %v10747
        %v10752 = vpack.i.b16 %v10741, %v10673
        %v10753 = vshrl.u32 %v10673, 16
        %v10754 = vshrl.u32 %v10741, 16
        %v10755 = vpack.i.b16 %v10754, %v10753
        %v10758 = vpack.i.b16 %v10742, %v10674
        %v10759 = vshrl.u32 %v10674, 16
        %v10760 = vshrl.u32 %v10742, 16
        %v10761 = vpack.i.b16 %v10760, %v10759
        %v10764 = vpack.i.b16 %v10743, %v10675
        %v10765 = vshrl.u32 %v10675, 16
        %v10766 = vshrl.u32 %v10743, 16
        %v10767 = vpack.i.b16 %v10766, %v10765
        %10768 = vrot.lane.b32.xlu0 %v10749, 8
        %v10769 = vpop.permute.xlu0 %10768
        %10770 = vrot.lane.b32.xlu0 %v10752, 16
        %v10771 = vpop.permute.xlu0 %10770
        %10772 = vrot.lane.b32.xlu0 %v10755, 24
        %v10773 = vpop.permute.xlu0 %10772
        %10774 = vrot.lane.b32.xlu0 %v10758, 32
        %v10775 = vpop.permute.xlu0 %10774
        %10776 = vrot.lane.b32.xlu0 %v10761, 40
        %v10777 = vpop.permute.xlu0 %10776
        %10778 = vrot.lane.b32.xlu0 %v10764, 48
        %v10779 = vpop.permute.xlu0 %10778
        %10780 = vrot.lane.b32.xlu0 %v10767, 56
        %v10781 = vpop.permute.xlu0 %10780
        %v10784 = vsel %vm971, %v10746, %v10769
        %v10786 = vsel %vm4035, %v10784, %v10771
        %v10788 = vsel %vm5520, %v10786, %v10773
        %v10790 = vsel %vm5240, %v10788, %v10775
        %v10792 = vsel %vm5525, %v10790, %v10777
        %v10794 = vsel %vm5242, %v10792, %v10779
        %v10796 = vsel %vm5530, %v10794, %v10781
        %v10798 = vld [vmem:[%s14] sm:$0xff]
        %v10799 = vld [vmem:[%s15] sm:$0xff]
        %10801 = vset.pattern.permute.xlu0 0
        %10802 = vperm.xlu0 %10801, %v10799
        %v10803 = vpop.permute.xlu0 %10802
        %v10806 = vunpack.c.l.b16 %v10798
        %v10807 = vunpack.c.h.b16 %v10798
        %v10808 = vpack.c.b16 %v10806, %v10806
        %v10809 = vpack.c.b16 %v10807, %v10807
        %v10812 = vsel %vm4035, %v10809, 0
        %10814 = vmatprep.subr.bf16.mxu0 0
        %10815 = vmatpush1.bf16.msra.mxu0 %v8828
        %10816 = vmatprep.subr.bf16.mxu0 0
        %10817 = vmatpush1.bf16.msra.mxu0 %v9082
        %10818 = vmatprep.subr.bf16.mxu0 0
        %10819 = vmatpush1.bf16.msra.mxu0 %v9320
        %10820 = vmatprep.subr.bf16.mxu0 0
        %10821 = vmatpush1.bf16.msra.mxu0 %v9622
        %10822 = vmatprep.subr.bf16.mxu0 0
        %10823 = vmatpush1.bf16.msra.mxu0 %v9860
        %10824 = vmatprep.subr.bf16.mxu0 0
        %10825 = vmatpush1.bf16.msra.mxu0 %v10098
        %10826 = vmatprep.subr.bf16.mxu0 0
        %10827 = vmatpush1.bf16.msra.mxu0 %v10320
        %10828 = vmatprep.subr.bf16.mxu0 0
        %10829 = vmatpush1.bf16.msra.mxu0 %v10558
        %10830 = vmatprep.subr.bf16.mxu0 0
        %10831 = vmatpush1.bf16.msra.mxu0 %v10796
        %10832 = vmatprep.subr.bf16.mxu0 0
        %10833 = vmatpush1.bf16.msra.mxu0 0
        %10834 = vmatprep.subr.bf16.mxu0 0
        %10835 = vmatpush1.bf16.msra.mxu0 0
        %10836 = vmatprep.subr.bf16.mxu0 0
        %10837 = vmatpush1.bf16.msra.mxu0 0
        %10838 = vmatprep.subr.bf16.mxu0 0
        %10839 = vmatpush1.bf16.msra.mxu0 0
        %10840 = vmatprep.subr.bf16.mxu0 0
        %10841 = vmatpush1.bf16.msra.mxu0 0
        %10842 = vmatprep.subr.bf16.mxu0 0
        %10843 = vmatpush1.bf16.msra.mxu0 0
        %10844 = vmatprep.subr.bf16.mxu0 0
        %10845 = vmatpush1.bf16.msra.mxu0 0
        %10846 = vmatprep.mubr.bf16.mxu0 %v10812
        %10847 = vmatmul.mubr.bf16.gmra.mrb[0].mxu0 %v10808
        %v10848 = vpop.f32.mrb[0].mxu0
        %v10849 = vadd.f32 %v10803, %v10848
        %v10850 = vpop.f32.mrb[0].mxu0
        %v10851 = vpop.f32.mrb[0].mxu0
        %v10852 = vpop.f32.mrb[0].mxu0
        %10853 = vdwg.mxu0
        %v10854 = vpack.c.bf16 %v10849, %v10849
        %10856 = vrot.lane.b32.xlu0 %v10854, 120
        %v10857 = vpop.permute.xlu0 %10856
        %10859 = vrot.lane.b32.xlu0 %v10854, 112
        %v10860 = vpop.permute.xlu0 %10859
        %10862 = vrot.lane.b32.xlu0 %v10854, 104
        %v10863 = vpop.permute.xlu0 %10862
        %10865 = vrot.lane.b32.xlu0 %v10854, 96
        %v10866 = vpop.permute.xlu0 %10865
        %10868 = vrot.lane.b32.xlu0 %v10854, 88
        %v10869 = vpop.permute.xlu0 %10868
        %10871 = vrot.lane.b32.xlu0 %v10854, 80
        %v10872 = vpop.permute.xlu0 %10871
        %10874 = vrot.lane.b32.xlu0 %v10854, 72
        %v10875 = vpop.permute.xlu0 %10874
        %v10877 = vcombine.low %v10854, %v10866
        %v10879 = vunpack.c.l.s4 1983009808
        %v10880 = vunpack.c.0.s8 %v10879
        %v10881 = vlaneseq
        %v10882 = vshrl.u32 %v10881, 7
        %v10883 = vsub.s32 %v10880, %v10882
        %v10884 = vrot.slane %v10877, %v10883
        %v10885 = vcombine.low %v10860, %v10872
        %v10887 = vunpack.c.l.s4 1983009808
        %v10888 = vunpack.c.0.s8 %v10887
        %v10889 = vlaneseq
        %v10890 = vshrl.u32 %v10889, 7
        %v10891 = vsub.s32 %v10888, %v10890
        %v10892 = vrot.slane %v10885, %v10891
        %v10893 = vcombine.low %v10884, %v10892
        %v10894 = vcombine.high %v10884, %v10892
        %v10896 = vunpack.c.l.s4 1934713408
        %v10897 = vunpack.c.0.s8 %v10896
        %v10898 = vlaneseq
        %v10899 = vshrl.u32 %v10898, 7
        %v10900 = vsub.s32 %v10897, %v10899
        %v10901 = vrot.slane %v10893, %v10900
        %v10903 = vunpack.c.l.s4 1934713408
        %v10904 = vunpack.c.0.s8 %v10903
        %v10905 = vlaneseq
        %v10906 = vshrl.u32 %v10905, 7
        %v10907 = vsub.s32 %v10904, %v10906
        %v10908 = vrot.slane %v10894, %v10907
        %v10909 = vcombine.high %v10901, 0
        %v10910 = vcombine.high %v10908, 0
        %v10911 = vcombine.low %v10857, %v10869
        %v10913 = vunpack.c.l.s4 1983009808
        %v10914 = vunpack.c.0.s8 %v10913
        %v10915 = vlaneseq
        %v10916 = vshrl.u32 %v10915, 7
        %v10917 = vsub.s32 %v10914, %v10916
        %v10918 = vrot.slane %v10911, %v10917
        %v10919 = vcombine.low %v10863, %v10875
        %v10921 = vunpack.c.l.s4 1983009808
        %v10922 = vunpack.c.0.s8 %v10921
        %v10923 = vlaneseq
        %v10924 = vshrl.u32 %v10923, 7
        %v10925 = vsub.s32 %v10922, %v10924
        %v10926 = vrot.slane %v10919, %v10925
        %v10927 = vcombine.low %v10918, %v10926
        %v10928 = vcombine.high %v10918, %v10926
        %v10930 = vunpack.c.l.s4 1934713408
        %v10931 = vunpack.c.0.s8 %v10930
        %v10932 = vlaneseq
        %v10933 = vshrl.u32 %v10932, 7
        %v10934 = vsub.s32 %v10931, %v10933
        %v10935 = vrot.slane %v10927, %v10934
        %v10937 = vunpack.c.l.s4 1934713408
        %v10938 = vunpack.c.0.s8 %v10937
        %v10939 = vlaneseq
        %v10940 = vshrl.u32 %v10939, 7
        %v10941 = vsub.s32 %v10938, %v10940
        %v10942 = vrot.slane %v10928, %v10941
        %v10943 = vcombine.high %v10935, 0
        %v10944 = vcombine.high %v10942, 0
        %v10947 = vpack.i.b16 %v10935, %v10901
        %v10948 = vshrl.u32 %v10901, 16
        %v10949 = vshrl.u32 %v10935, 16
        %v10950 = vpack.i.b16 %v10949, %v10948
        %v10953 = vpack.i.b16 %v10943, %v10909
        %v10954 = vshrl.u32 %v10909, 16
        %v10955 = vshrl.u32 %v10943, 16
        %v10956 = vpack.i.b16 %v10955, %v10954
        %v10959 = vpack.i.b16 %v10942, %v10908
        %v10960 = vshrl.u32 %v10908, 16
        %v10961 = vshrl.u32 %v10942, 16
        %v10962 = vpack.i.b16 %v10961, %v10960
        %v10965 = vpack.i.b16 %v10944, %v10910
        %v10966 = vshrl.u32 %v10910, 16
        %v10967 = vshrl.u32 %v10944, 16
        %v10968 = vpack.i.b16 %v10967, %v10966
        %v10969 = vld [vmem:[%s16] sm:$0xf]
        %v10970 = vld [vmem:[%s16 + $0x4] sm:$0xf]
        %v10973 = vunpack.c.l.b16 %v10969
        %v10974 = vunpack.c.l.b16 %v10970
        %v10975 = vpack.c.b16 %v10974, %v10973
        %v10977 = vsel %vm971, %v10975, 0
        %v10980 = vsel %vm1889, %v10947, 0
        %10982 = vmatprep.subr.bf16.mxu0 0
        %10983 = vmatpush1.bf16.msra.mxu0 %v10980
        %10984 = vmatprep.subr.bf16.mxu0 0
        %10985 = vmatpush1.bf16.msra.mxu0 0
        %10986 = vmatprep.subr.bf16.mxu0 0
        %10987 = vmatpush1.bf16.msra.mxu0 0
        %10988 = vmatprep.subr.bf16.mxu0 0
        %10989 = vmatpush1.bf16.msra.mxu0 0
        %10990 = vmatprep.subr.bf16.mxu0 0
        %10991 = vmatpush1.bf16.msra.mxu0 0
        %10992 = vmatprep.subr.bf16.mxu0 0
        %10993 = vmatpush1.bf16.msra.mxu0 0
        %10994 = vmatprep.subr.bf16.mxu0 0
        %10995 = vmatpush1.bf16.msra.mxu0 0
        %10996 = vmatprep.subr.bf16.mxu0 0
        %10997 = vmatpush1.bf16.msra.mxu0 0
        %10998 = vmatprep.subr.bf16.mxu0 0
        %10999 = vmatpush1.bf16.msra.mxu0 0
        %11000 = vmatprep.subr.bf16.mxu0 0
        %11001 = vmatpush1.bf16.msra.mxu0 0
        %11002 = vmatprep.subr.bf16.mxu0 0
        %11003 = vmatpush1.bf16.msra.mxu0 0
        %11004 = vmatprep.subr.bf16.mxu0 0
        %11005 = vmatpush1.bf16.msra.mxu0 0
        %11006 = vmatprep.subr.bf16.mxu0 0
        %11007 = vmatpush1.bf16.msra.mxu0 0
        %11008 = vmatprep.subr.bf16.mxu0 0
        %11009 = vmatpush1.bf16.msra.mxu0 0
        %11010 = vmatprep.subr.bf16.mxu0 0
        %11011 = vmatpush1.bf16.msra.mxu0 0
        %11012 = vmatprep.subr.bf16.mxu0 0
        %11013 = vmatpush1.bf16.msra.mxu0 0
        %11014 = vmatprep.mubr.bf16.mxu0 0
        %11015 = vmatmul.mubr.bf16.gmra.mrb[0].mxu0 %v10977
        %v11016 = vpop.f32.mrb[0].mxu0
        %v11017 = vadd.f32 0.0, %v11016
        %v11018 = vpop.f32.mrb[0].mxu0
        %v11019 = vpop.f32.mrb[0].mxu0
        %v11020 = vadd.f32 0.0, %v11019
        %v11021 = vpop.f32.mrb[0].mxu0
        %11022 = vdwg.mxu0
        %v11024 = vsel %vm1889, %v10950, 0
        %11026 = vmatprep.subr.bf16.mxu0 0
        %11027 = vmatpush1.bf16.msra.mxu0 %v11024
        %11028 = vmatprep.subr.bf16.mxu0 0
        %11029 = vmatpush1.bf16.msra.mxu0 0
        %11030 = vmatprep.subr.bf16.mxu0 0
        %11031 = vmatpush1.bf16.msra.mxu0 0
        %11032 = vmatprep.subr.bf16.mxu0 0
        %11033 = vmatpush1.bf16.msra.mxu0 0
        %11034 = vmatprep.subr.bf16.mxu0 0
        %11035 = vmatpush1.bf16.msra.mxu0 0
        %11036 = vmatprep.subr.bf16.mxu0 0
        %11037 = vmatpush1.bf16.msra.mxu0 0
        %11038 = vmatprep.subr.bf16.mxu0 0
        %11039 = vmatpush1.bf16.msra.mxu0 0
        %11040 = vmatprep.subr.bf16.mxu0 0
        %11041 = vmatpush1.bf16.msra.mxu0 0
        %11042 = vmatprep.subr.bf16.mxu0 0
        %11043 = vmatpush1.bf16.msra.mxu0 0
        %11044 = vmatprep.subr.bf16.mxu0 0
        %11045 = vmatpush1.bf16.msra.mxu0 0
        %11046 = vmatprep.subr.bf16.mxu0 0
        %11047 = vmatpush1.bf16.msra.mxu0 0
        %11048 = vmatprep.subr.bf16.mxu0 0
        %11049 = vmatpush1.bf16.msra.mxu0 0
        %11050 = vmatprep.subr.bf16.mxu0 0
        %11051 = vmatpush1.bf16.msra.mxu0 0
        %11052 = vmatprep.subr.bf16.mxu0 0
        %11053 = vmatpush1.bf16.msra.mxu0 0
        %11054 = vmatprep.subr.bf16.mxu0 0
        %11055 = vmatpush1.bf16.msra.mxu0 0
        %11056 = vmatprep.subr.bf16.mxu0 0
        %11057 = vmatpush1.bf16.msra.mxu0 0
        %11058 = vmatprep.mubr.bf16.mxu0 0
        %11059 = vmatmul.mubr.bf16.gmra.mrb[0].mxu0 %v10977
        %v11060 = vpop.f32.mrb[0].mxu0
        %v11061 = vadd.f32 0.0, %v11060
        %v11062 = vpop.f32.mrb[0].mxu0
        %v11063 = vpop.f32.mrb[0].mxu0
        %v11064 = vadd.f32 0.0, %v11063
        %v11065 = vpop.f32.mrb[0].mxu0
        %11066 = vdwg.mxu0
        %v11068 = vsel %vm1889, %v10953, 0
        %11070 = vmatprep.subr.bf16.mxu0 0
        %11071 = vmatpush1.bf16.msra.mxu0 %v11068
        %11072 = vmatprep.subr.bf16.mxu0 0
        %11073 = vmatpush1.bf16.msra.mxu0 0
        %11074 = vmatprep.subr.bf16.mxu0 0
        %11075 = vmatpush1.bf16.msra.mxu0 0
        %11076 = vmatprep.subr.bf16.mxu0 0
        %11077 = vmatpush1.bf16.msra.mxu0 0
        %11078 = vmatprep.subr.bf16.mxu0 0
        %11079 = vmatpush1.bf16.msra.mxu0 0
        %11080 = vmatprep.subr.bf16.mxu0 0
        %11081 = vmatpush1.bf16.msra.mxu0 0
        %11082 = vmatprep.subr.bf16.mxu0 0
        %11083 = vmatpush1.bf16.msra.mxu0 0
        %11084 = vmatprep.subr.bf16.mxu0 0
        %11085 = vmatpush1.bf16.msra.mxu0 0
        %11086 = vmatprep.subr.bf16.mxu0 0
        %11087 = vmatpush1.bf16.msra.mxu0 0
        %11088 = vmatprep.subr.bf16.mxu0 0
        %11089 = vmatpush1.bf16.msra.mxu0 0
        %11090 = vmatprep.subr.bf16.mxu0 0
        %11091 = vmatpush1.bf16.msra.mxu0 0
        %11092 = vmatprep.subr.bf16.mxu0 0
        %11093 = vmatpush1.bf16.msra.mxu0 0
        %11094 = vmatprep.subr.bf16.mxu0 0
        %11095 = vmatpush1.bf16.msra.mxu0 0
        %11096 = vmatprep.subr.bf16.mxu0 0
        %11097 = vmatpush1.bf16.msra.mxu0 0
        %11098 = vmatprep.subr.bf16.mxu0 0
        %11099 = vmatpush1.bf16.msra.mxu0 0
        %11100 = vmatprep.subr.bf16.mxu0 0
        %11101 = vmatpush1.bf16.msra.mxu0 0
        %11102 = vmatprep.mubr.bf16.mxu0 0
        %11103 = vmatmul.mubr.bf16.gmra.mrb[0].mxu0 %v10977
        %v11104 = vpop.f32.mrb[0].mxu0
        %v11105 = vadd.f32 0.0, %v11104
        %v11106 = vpop.f32.mrb[0].mxu0
        %v11107 = vpop.f32.mrb[0].mxu0
        %v11108 = vadd.f32 0.0, %v11107
        %v11109 = vpop.f32.mrb[0].mxu0
        %11110 = vdwg.mxu0
        %v11112 = vsel %vm1889, %v10956, 0
        %11114 = vmatprep.subr.bf16.mxu0 0
        %11115 = vmatpush1.bf16.msra.mxu0 %v11112
        %11116 = vmatprep.subr.bf16.mxu0 0
        %11117 = vmatpush1.bf16.msra.mxu0 0
        %11118 = vmatprep.subr.bf16.mxu0 0
        %11119 = vmatpush1.bf16.msra.mxu0 0
        %11120 = vmatprep.subr.bf16.mxu0 0
        %11121 = vmatpush1.bf16.msra.mxu0 0
        %11122 = vmatprep.subr.bf16.mxu0 0
        %11123 = vmatpush1.bf16.msra.mxu0 0
        %11124 = vmatprep.subr.bf16.mxu0 0
        %11125 = vmatpush1.bf16.msra.mxu0 0
        %11126 = vmatprep.subr.bf16.mxu0 0
        %11127 = vmatpush1.bf16.msra.mxu0 0
        %11128 = vmatprep.subr.bf16.mxu0 0
        %11129 = vmatpush1.bf16.msra.mxu0 0
        %11130 = vmatprep.subr.bf16.mxu0 0
        %11131 = vmatpush1.bf16.msra.mxu0 0
        %11132 = vmatprep.subr.bf16.mxu0 0
        %11133 = vmatpush1.bf16.msra.mxu0 0
        %11134 = vmatprep.subr.bf16.mxu0 0
        %11135 = vmatpush1.bf16.msra.mxu0 0
        %11136 = vmatprep.subr.bf16.mxu0 0
        %11137 = vmatpush1.bf16.msra.mxu0 0
        %11138 = vmatprep.subr.bf16.mxu0 0
        %11139 = vmatpush1.bf16.msra.mxu0 0
        %11140 = vmatprep.subr.bf16.mxu0 0
        %11141 = vmatpush1.bf16.msra.mxu0 0
        %11142 = vmatprep.subr.bf16.mxu0 0
        %11143 = vmatpush1.bf16.msra.mxu0 0
        %11144 = vmatprep.subr.bf16.mxu0 0
        %11145 = vmatpush1.bf16.msra.mxu0 0
        %11146 = vmatprep.mubr.bf16.mxu0 0
        %11147 = vmatmul.mubr.bf16.gmra.mrb[0].mxu0 %v10977
        %v11148 = vpop.f32.mrb[0].mxu0
        %v11149 = vadd.f32 0.0, %v11148
        %v11150 = vpop.f32.mrb[0].mxu0
        %v11151 = vpop.f32.mrb[0].mxu0
        %v11152 = vadd.f32 0.0, %v11151
        %v11153 = vpop.f32.mrb[0].mxu0
        %11154 = vdwg.mxu0
        %v11156 = vsel %vm1889, %v10959, 0
        %11158 = vmatprep.subr.bf16.mxu0 0
        %11159 = vmatpush1.bf16.msra.mxu0 %v11156
        %11160 = vmatprep.subr.bf16.mxu0 0
        %11161 = vmatpush1.bf16.msra.mxu0 0
        %11162 = vmatprep.subr.bf16.mxu0 0
        %11163 = vmatpush1.bf16.msra.mxu0 0
        %11164 = vmatprep.subr.bf16.mxu0 0
        %11165 = vmatpush1.bf16.msra.mxu0 0
        %11166 = vmatprep.subr.bf16.mxu0 0
        %11167 = vmatpush1.bf16.msra.mxu0 0
        %11168 = vmatprep.subr.bf16.mxu0 0
        %11169 = vmatpush1.bf16.msra.mxu0 0
        %11170 = vmatprep.subr.bf16.mxu0 0
        %11171 = vmatpush1.bf16.msra.mxu0 0
        %11172 = vmatprep.subr.bf16.mxu0 0
        %11173 = vmatpush1.bf16.msra.mxu0 0
        %11174 = vmatprep.subr.bf16.mxu0 0
        %11175 = vmatpush1.bf16.msra.mxu0 0
        %11176 = vmatprep.subr.bf16.mxu0 0
        %11177 = vmatpush1.bf16.msra.mxu0 0
        %11178 = vmatprep.subr.bf16.mxu0 0
        %11179 = vmatpush1.bf16.msra.mxu0 0
        %11180 = vmatprep.subr.bf16.mxu0 0
        %11181 = vmatpush1.bf16.msra.mxu0 0
        %11182 = vmatprep.subr.bf16.mxu0 0
        %11183 = vmatpush1.bf16.msra.mxu0 0
        %11184 = vmatprep.subr.bf16.mxu0 0
        %11185 = vmatpush1.bf16.msra.mxu0 0
        %11186 = vmatprep.subr.bf16.mxu0 0
        %11187 = vmatpush1.bf16.msra.mxu0 0
        %11188 = vmatprep.subr.bf16.mxu0 0
        %11189 = vmatpush1.bf16.msra.mxu0 0
        %11190 = vmatprep.mubr.bf16.mxu0 0
        %11191 = vmatmul.mubr.bf16.gmra.mrb[0].mxu0 %v10977
        %v11192 = vpop.f32.mrb[0].mxu0
        %v11193 = vadd.f32 0.0, %v11192
        %v11194 = vpop.f32.mrb[0].mxu0
        %v11195 = vpop.f32.mrb[0].mxu0
        %v11196 = vadd.f32 0.0, %v11195
        %v11197 = vpop.f32.mrb[0].mxu0
        %11198 = vdwg.mxu0
        %v11200 = vsel %vm1889, %v10962, 0
        %11202 = vmatprep.subr.bf16.mxu0 0
        %11203 = vmatpush1.bf16.msra.mxu0 %v11200
        %11204 = vmatprep.subr.bf16.mxu0 0
        %11205 = vmatpush1.bf16.msra.mxu0 0
        %11206 = vmatprep.subr.bf16.mxu0 0
        %11207 = vmatpush1.bf16.msra.mxu0 0
        %11208 = vmatprep.subr.bf16.mxu0 0
        %11209 = vmatpush1.bf16.msra.mxu0 0
        %11210 = vmatprep.subr.bf16.mxu0 0
        %11211 = vmatpush1.bf16.msra.mxu0 0
        %11212 = vmatprep.subr.bf16.mxu0 0
        %11213 = vmatpush1.bf16.msra.mxu0 0
        %11214 = vmatprep.subr.bf16.mxu0 0
        %11215 = vmatpush1.bf16.msra.mxu0 0
        %11216 = vmatprep.subr.bf16.mxu0 0
        %11217 = vmatpush1.bf16.msra.mxu0 0
        %11218 = vmatprep.subr.bf16.mxu0 0
        %11219 = vmatpush1.bf16.msra.mxu0 0
        %11220 = vmatprep.subr.bf16.mxu0 0
        %11221 = vmatpush1.bf16.msra.mxu0 0
        %11222 = vmatprep.subr.bf16.mxu0 0
        %11223 = vmatpush1.bf16.msra.mxu0 0
        %11224 = vmatprep.subr.bf16.mxu0 0
        %11225 = vmatpush1.bf16.msra.mxu0 0
        %11226 = vmatprep.subr.bf16.mxu0 0
        %11227 = vmatpush1.bf16.msra.mxu0 0
        %11228 = vmatprep.subr.bf16.mxu0 0
        %11229 = vmatpush1.bf16.msra.mxu0 0
        %11230 = vmatprep.subr.bf16.mxu0 0
        %11231 = vmatpush1.bf16.msra.mxu0 0
        %11232 = vmatprep.subr.bf16.mxu0 0
        %11233 = vmatpush1.bf16.msra.mxu0 0
        %11234 = vmatprep.mubr.bf16.mxu0 0
        %11235 = vmatmul.mubr.bf16.gmra.mrb[0].mxu0 %v10977
        %v11236 = vpop.f32.mrb[0].mxu0
        %v11237 = vadd.f32 0.0, %v11236
        %v11238 = vpop.f32.mrb[0].mxu0
        %v11239 = vpop.f32.mrb[0].mxu0
        %v11240 = vadd.f32 0.0, %v11239
        %v11241 = vpop.f32.mrb[0].mxu0
        %11242 = vdwg.mxu0
        %v11244 = vsel %vm1889, %v10965, 0
        %11246 = vmatprep.subr.bf16.mxu0 0
        %11247 = vmatpush1.bf16.msra.mxu0 %v11244
        %11248 = vmatprep.subr.bf16.mxu0 0
        %11249 = vmatpush1.bf16.msra.mxu0 0
        %11250 = vmatprep.subr.bf16.mxu0 0
        %11251 = vmatpush1.bf16.msra.mxu0 0
        %11252 = vmatprep.subr.bf16.mxu0 0
        %11253 = vmatpush1.bf16.msra.mxu0 0
        %11254 = vmatprep.subr.bf16.mxu0 0
        %11255 = vmatpush1.bf16.msra.mxu0 0
        %11256 = vmatprep.subr.bf16.mxu0 0
        %11257 = vmatpush1.bf16.msra.mxu0 0
        %11258 = vmatprep.subr.bf16.mxu0 0
        %11259 = vmatpush1.bf16.msra.mxu0 0
        %11260 = vmatprep.subr.bf16.mxu0 0
        %11261 = vmatpush1.bf16.msra.mxu0 0
        %11262 = vmatprep.subr.bf16.mxu0 0
        %11263 = vmatpush1.bf16.msra.mxu0 0
        %11264 = vmatprep.subr.bf16.mxu0 0
        %11265 = vmatpush1.bf16.msra.mxu0 0
        %11266 = vmatprep.subr.bf16.mxu0 0
        %11267 = vmatpush1.bf16.msra.mxu0 0
        %11268 = vmatprep.subr.bf16.mxu0 0
        %11269 = vmatpush1.bf16.msra.mxu0 0
        %11270 = vmatprep.subr.bf16.mxu0 0
        %11271 = vmatpush1.bf16.msra.mxu0 0
        %11272 = vmatprep.subr.bf16.mxu0 0
        %11273 = vmatpush1.bf16.msra.mxu0 0
        %11274 = vmatprep.subr.bf16.mxu0 0
        %11275 = vmatpush1.bf16.msra.mxu0 0
        %11276 = vmatprep.subr.bf16.mxu0 0
        %11277 = vmatpush1.bf16.msra.mxu0 0
        %11278 = vmatprep.mubr.bf16.mxu0 0
        %11279 = vmatmul.mubr.bf16.gmra.mrb[0].mxu0 %v10977
        %v11280 = vpop.f32.mrb[0].mxu0
        %v11281 = vadd.f32 0.0, %v11280
        %v11282 = vpop.f32.mrb[0].mxu0
        %v11283 = vpop.f32.mrb[0].mxu0
        %v11284 = vadd.f32 0.0, %v11283
        %v11285 = vpop.f32.mrb[0].mxu0
        %11286 = vdwg.mxu0
        %v11288 = vsel %vm1889, %v10968, 0
        %11290 = vmatprep.subr.bf16.mxu0 0
        %11291 = vmatpush1.bf16.msra.mxu0 %v11288
        %11292 = vmatprep.subr.bf16.mxu0 0
        %11293 = vmatpush1.bf16.msra.mxu0 0
        %11294 = vmatprep.subr.bf16.mxu0 0
        %11295 = vmatpush1.bf16.msra.mxu0 0
        %11296 = vmatprep.subr.bf16.mxu0 0
        %11297 = vmatpush1.bf16.msra.mxu0 0
        %11298 = vmatprep.subr.bf16.mxu0 0
        %11299 = vmatpush1.bf16.msra.mxu0 0
        %11300 = vmatprep.subr.bf16.mxu0 0
        %11301 = vmatpush1.bf16.msra.mxu0 0
        %11302 = vmatprep.subr.bf16.mxu0 0
        %11303 = vmatpush1.bf16.msra.mxu0 0
        %11304 = vmatprep.subr.bf16.mxu0 0
        %11305 = vmatpush1.bf16.msra.mxu0 0
        %11306 = vmatprep.subr.bf16.mxu0 0
        %11307 = vmatpush1.bf16.msra.mxu0 0
        %11308 = vmatprep.subr.bf16.mxu0 0
        %11309 = vmatpush1.bf16.msra.mxu0 0
        %11310 = vmatprep.subr.bf16.mxu0 0
        %11311 = vmatpush1.bf16.msra.mxu0 0
        %11312 = vmatprep.subr.bf16.mxu0 0
        %11313 = vmatpush1.bf16.msra.mxu0 0
        %11314 = vmatprep.subr.bf16.mxu0 0
        %11315 = vmatpush1.bf16.msra.mxu0 0
        %11316 = vmatprep.subr.bf16.mxu0 0
        %11317 = vmatpush1.bf16.msra.mxu0 0
        %11318 = vmatprep.subr.bf16.mxu0 0
        %11319 = vmatpush1.bf16.msra.mxu0 0
        %11320 = vmatprep.subr.bf16.mxu0 0
        %11321 = vmatpush1.bf16.msra.mxu0 0
        %11322 = vmatprep.mubr.bf16.mxu0 0
        %11323 = vmatmul.mubr.bf16.gmra.mrb[0].mxu0 %v10977
        %v11324 = vpop.f32.mrb[0].mxu0
        %v11325 = vadd.f32 0.0, %v11324
        %v11326 = vpop.f32.mrb[0].mxu0
        %v11327 = vpop.f32.mrb[0].mxu0
        %v11328 = vadd.f32 0.0, %v11327
        %v11329 = vpop.f32.mrb[0].mxu0
        %11330 = vdwg.mxu0
        %v11331 = vld [vmem:[%s17] sm:$0xf]
        %v11332 = vld [vmem:[%s17 + $0x4] sm:$0xf]
        %v11333 = vpack.c.bf16 %v11020, %v11017
        %v11334 = vpack.c.bf16 %v11064, %v11061
        %v11335 = vpack.c.bf16 %v11108, %v11105
        %v11336 = vpack.c.bf16 %v11152, %v11149
        %v11337 = vpack.c.bf16 %v11196, %v11193
        %v11338 = vpack.c.bf16 %v11240, %v11237
        %v11339 = vpack.c.bf16 %v11284, %v11281
        %v11340 = vpack.c.bf16 %v11328, %v11325
        %v11343 = vunpack.c.l.b16 %v11331
        %v11344 = vunpack.c.l.b16 %v11332
        %v11345 = vpack.c.b16 %v11344, %v11343
        %v11347 = vsel %vm971, %v11333, 0
        %v11350 = vsel %vm971, %v11345, 0
        %11352 = vmatprep.subr.bf16.mxu0 0
        %11353 = vmatpush1.bf16.xpose.msra.mxu0 %v11350
        %11354 = vmatprep.subr.bf16.mxu0 0
        %11355 = vmatpush1.bf16.xpose.msra.mxu0 0
        %11356 = vmatprep.subr.bf16.mxu0 0
        %11357 = vmatpush1.bf16.xpose.msra.mxu0 0
        %11358 = vmatprep.subr.bf16.mxu0 0
        %11359 = vmatpush1.bf16.xpose.msra.mxu0 0
        %11360 = vmatprep.subr.bf16.mxu0 0
        %11361 = vmatpush1.bf16.xpose.msra.mxu0 0
        %11362 = vmatprep.subr.bf16.mxu0 0
        %11363 = vmatpush1.bf16.xpose.msra.mxu0 0
        %11364 = vmatprep.subr.bf16.mxu0 0
        %11365 = vmatpush1.bf16.xpose.msra.mxu0 0
        %11366 = vmatprep.subr.bf16.mxu0 0
        %11367 = vmatpush1.bf16.xpose.msra.mxu0 0
        %11368 = vmatprep.subr.bf16.mxu0 0
        %11369 = vmatpush1.bf16.xpose.msra.mxu0 0
        %11370 = vmatprep.subr.bf16.mxu0 0
        %11371 = vmatpush1.bf16.xpose.msra.mxu0 0
        %11372 = vmatprep.subr.bf16.mxu0 0
        %11373 = vmatpush1.bf16.xpose.msra.mxu0 0
        %11374 = vmatprep.subr.bf16.mxu0 0
        %11375 = vmatpush1.bf16.xpose.msra.mxu0 0
        %11376 = vmatprep.subr.bf16.mxu0 0
        %11377 = vmatpush1.bf16.xpose.msra.mxu0 0
        %11378 = vmatprep.subr.bf16.mxu0 0
        %11379 = vmatpush1.bf16.xpose.msra.mxu0 0
        %11380 = vmatprep.subr.bf16.mxu0 0
        %11381 = vmatpush1.bf16.xpose.msra.mxu0 0
        %11382 = vmatprep.subr.bf16.mxu0 0
        %11383 = vmatpush1.bf16.xpose.msra.mxu0 0
        %11384 = vmatprep.mubr.bf16.mxu0 0
        %11385 = vmatmul.mubr.bf16.gmra.mrb[0].mxu0 %v11347
        %v11386 = vpop.f32.mrb[0].mxu0
        %v11387 = vadd.f32 0.0, %v11386
        %v11388 = vpop.f32.mrb[0].mxu0
        %v11389 = vpop.f32.mrb[0].mxu0
        %v11390 = vadd.f32 0.0, %v11389
        %v11391 = vpop.f32.mrb[0].mxu0
        %11392 = vdwg.mxu0
        %v11394 = vsel %vm971, %v11334, 0
        %11396 = vmatprep.subr.bf16.mxu0 0
        %11397 = vmatpush1.bf16.xpose.msra.mxu0 %v11350
        %11398 = vmatprep.subr.bf16.mxu0 0
        %11399 = vmatpush1.bf16.xpose.msra.mxu0 0
        %11400 = vmatprep.subr.bf16.mxu0 0
        %11401 = vmatpush1.bf16.xpose.msra.mxu0 0
        %11402 = vmatprep.subr.bf16.mxu0 0
        %11403 = vmatpush1.bf16.xpose.msra.mxu0 0
        %11404 = vmatprep.subr.bf16.mxu0 0
        %11405 = vmatpush1.bf16.xpose.msra.mxu0 0
        %11406 = vmatprep.subr.bf16.mxu0 0
        %11407 = vmatpush1.bf16.xpose.msra.mxu0 0
        %11408 = vmatprep.subr.bf16.mxu0 0
        %11409 = vmatpush1.bf16.xpose.msra.mxu0 0
        %11410 = vmatprep.subr.bf16.mxu0 0
        %11411 = vmatpush1.bf16.xpose.msra.mxu0 0
        %11412 = vmatprep.subr.bf16.mxu0 0
        %11413 = vmatpush1.bf16.xpose.msra.mxu0 0
        %11414 = vmatprep.subr.bf16.mxu0 0
        %11415 = vmatpush1.bf16.xpose.msra.mxu0 0
        %11416 = vmatprep.subr.bf16.mxu0 0
        %11417 = vmatpush1.bf16.xpose.msra.mxu0 0
        %11418 = vmatprep.subr.bf16.mxu0 0
        %11419 = vmatpush1.bf16.xpose.msra.mxu0 0
        %11420 = vmatprep.subr.bf16.mxu0 0
        %11421 = vmatpush1.bf16.xpose.msra.mxu0 0
        %11422 = vmatprep.subr.bf16.mxu0 0
        %11423 = vmatpush1.bf16.xpose.msra.mxu0 0
        %11424 = vmatprep.subr.bf16.mxu0 0
        %11425 = vmatpush1.bf16.xpose.msra.mxu0 0
        %11426 = vmatprep.subr.bf16.mxu0 0
        %11427 = vmatpush1.bf16.xpose.msra.mxu0 0
        %11428 = vmatprep.mubr.bf16.mxu0 0
        %11429 = vmatmul.mubr.bf16.gmra.mrb[0].mxu0 %v11394
        %v11430 = vpop.f32.mrb[0].mxu0
        %v11431 = vadd.f32 0.0, %v11430
        %v11432 = vpop.f32.mrb[0].mxu0
        %v11433 = vpop.f32.mrb[0].mxu0
        %v11434 = vadd.f32 0.0, %v11433
        %v11435 = vpop.f32.mrb[0].mxu0
        %11436 = vdwg.mxu0
        %v11438 = vsel %vm971, %v11335, 0
        %11440 = vmatprep.subr.bf16.mxu0 0
        %11441 = vmatpush1.bf16.xpose.msra.mxu0 %v11350
        %11442 = vmatprep.subr.bf16.mxu0 0
        %11443 = vmatpush1.bf16.xpose.msra.mxu0 0
        %11444 = vmatprep.subr.bf16.mxu0 0
        %11445 = vmatpush1.bf16.xpose.msra.mxu0 0
        %11446 = vmatprep.subr.bf16.mxu0 0
        %11447 = vmatpush1.bf16.xpose.msra.mxu0 0
        %11448 = vmatprep.subr.bf16.mxu0 0
        %11449 = vmatpush1.bf16.xpose.msra.mxu0 0
        %11450 = vmatprep.subr.bf16.mxu0 0
        %11451 = vmatpush1.bf16.xpose.msra.mxu0 0
        %11452 = vmatprep.subr.bf16.mxu0 0
        %11453 = vmatpush1.bf16.xpose.msra.mxu0 0
        %11454 = vmatprep.subr.bf16.mxu0 0
        %11455 = vmatpush1.bf16.xpose.msra.mxu0 0
        %11456 = vmatprep.subr.bf16.mxu0 0
        %11457 = vmatpush1.bf16.xpose.msra.mxu0 0
        %11458 = vmatprep.subr.bf16.mxu0 0
        %11459 = vmatpush1.bf16.xpose.msra.mxu0 0
        %11460 = vmatprep.subr.bf16.mxu0 0
        %11461 = vmatpush1.bf16.xpose.msra.mxu0 0
        %11462 = vmatprep.subr.bf16.mxu0 0
        %11463 = vmatpush1.bf16.xpose.msra.mxu0 0
        %11464 = vmatprep.subr.bf16.mxu0 0
        %11465 = vmatpush1.bf16.xpose.msra.mxu0 0
        %11466 = vmatprep.subr.bf16.mxu0 0
        %11467 = vmatpush1.bf16.xpose.msra.mxu0 0
        %11468 = vmatprep.subr.bf16.mxu0 0
        %11469 = vmatpush1.bf16.xpose.msra.mxu0 0
        %11470 = vmatprep.subr.bf16.mxu0 0
        %11471 = vmatpush1.bf16.xpose.msra.mxu0 0
        %11472 = vmatprep.mubr.bf16.mxu0 0
        %11473 = vmatmul.mubr.bf16.gmra.mrb[0].mxu0 %v11438
        %v11474 = vpop.f32.mrb[0].mxu0
        %v11475 = vadd.f32 0.0, %v11474
        %v11476 = vpop.f32.mrb[0].mxu0
        %v11477 = vpop.f32.mrb[0].mxu0
        %v11478 = vadd.f32 0.0, %v11477
        %v11479 = vpop.f32.mrb[0].mxu0
        %11480 = vdwg.mxu0
        %v11482 = vsel %vm971, %v11336, 0
        %11484 = vmatprep.subr.bf16.mxu0 0
        %11485 = vmatpush1.bf16.xpose.msra.mxu0 %v11350
        %11486 = vmatprep.subr.bf16.mxu0 0
        %11487 = vmatpush1.bf16.xpose.msra.mxu0 0
        %11488 = vmatprep.subr.bf16.mxu0 0
        %11489 = vmatpush1.bf16.xpose.msra.mxu0 0
        %11490 = vmatprep.subr.bf16.mxu0 0
        %11491 = vmatpush1.bf16.xpose.msra.mxu0 0
        %11492 = vmatprep.subr.bf16.mxu0 0
        %11493 = vmatpush1.bf16.xpose.msra.mxu0 0
        %11494 = vmatprep.subr.bf16.mxu0 0
        %11495 = vmatpush1.bf16.xpose.msra.mxu0 0
        %11496 = vmatprep.subr.bf16.mxu0 0
        %11497 = vmatpush1.bf16.xpose.msra.mxu0 0
        %11498 = vmatprep.subr.bf16.mxu0 0
        %11499 = vmatpush1.bf16.xpose.msra.mxu0 0
        %11500 = vmatprep.subr.bf16.mxu0 0
        %11501 = vmatpush1.bf16.xpose.msra.mxu0 0
        %11502 = vmatprep.subr.bf16.mxu0 0
        %11503 = vmatpush1.bf16.xpose.msra.mxu0 0
        %11504 = vmatprep.subr.bf16.mxu0 0
        %11505 = vmatpush1.bf16.xpose.msra.mxu0 0
        %11506 = vmatprep.subr.bf16.mxu0 0
        %11507 = vmatpush1.bf16.xpose.msra.mxu0 0
        %11508 = vmatprep.subr.bf16.mxu0 0
        %11509 = vmatpush1.bf16.xpose.msra.mxu0 0
        %11510 = vmatprep.subr.bf16.mxu0 0
        %11511 = vmatpush1.bf16.xpose.msra.mxu0 0
        %11512 = vmatprep.subr.bf16.mxu0 0
        %11513 = vmatpush1.bf16.xpose.msra.mxu0 0
        %11514 = vmatprep.subr.bf16.mxu0 0
        %11515 = vmatpush1.bf16.xpose.msra.mxu0 0
        %11516 = vmatprep.mubr.bf16.mxu0 0
        %11517 = vmatmul.mubr.bf16.gmra.mrb[0].mxu0 %v11482
        %v11518 = vpop.f32.mrb[0].mxu0
        %v11519 = vadd.f32 0.0, %v11518
        %v11520 = vpop.f32.mrb[0].mxu0
        %v11521 = vpop.f32.mrb[0].mxu0
        %v11522 = vadd.f32 0.0, %v11521
        %v11523 = vpop.f32.mrb[0].mxu0
        %11524 = vdwg.mxu0
        %v11526 = vsel %vm971, %v11337, 0
        %11528 = vmatprep.subr.bf16.mxu0 0
        %11529 = vmatpush1.bf16.xpose.msra.mxu0 %v11350
        %11530 = vmatprep.subr.bf16.mxu0 0
        %11531 = vmatpush1.bf16.xpose.msra.mxu0 0
        %11532 = vmatprep.subr.bf16.mxu0 0
        %11533 = vmatpush1.bf16.xpose.msra.mxu0 0
        %11534 = vmatprep.subr.bf16.mxu0 0
        %11535 = vmatpush1.bf16.xpose.msra.mxu0 0
        %11536 = vmatprep.subr.bf16.mxu0 0
        %11537 = vmatpush1.bf16.xpose.msra.mxu0 0
        %11538 = vmatprep.subr.bf16.mxu0 0
        %11539 = vmatpush1.bf16.xpose.msra.mxu0 0
        %11540 = vmatprep.subr.bf16.mxu0 0
        %11541 = vmatpush1.bf16.xpose.msra.mxu0 0
        %11542 = vmatprep.subr.bf16.mxu0 0
        %11543 = vmatpush1.bf16.xpose.msra.mxu0 0
        %11544 = vmatprep.subr.bf16.mxu0 0
        %11545 = vmatpush1.bf16.xpose.msra.mxu0 0
        %11546 = vmatprep.subr.bf16.mxu0 0
        %11547 = vmatpush1.bf16.xpose.msra.mxu0 0
        %11548 = vmatprep.subr.bf16.mxu0 0
        %11549 = vmatpush1.bf16.xpose.msra.mxu0 0
        %11550 = vmatprep.subr.bf16.mxu0 0
        %11551 = vmatpush1.bf16.xpose.msra.mxu0 0
        %11552 = vmatprep.subr.bf16.mxu0 0
        %11553 = vmatpush1.bf16.xpose.msra.mxu0 0
        %11554 = vmatprep.subr.bf16.mxu0 0
        %11555 = vmatpush1.bf16.xpose.msra.mxu0 0
        %11556 = vmatprep.subr.bf16.mxu0 0
        %11557 = vmatpush1.bf16.xpose.msra.mxu0 0
        %11558 = vmatprep.subr.bf16.mxu0 0
        %11559 = vmatpush1.bf16.xpose.msra.mxu0 0
        %11560 = vmatprep.mubr.bf16.mxu0 0
        %11561 = vmatmul.mubr.bf16.gmra.mrb[0].mxu0 %v11526
        %v11562 = vpop.f32.mrb[0].mxu0
        %v11563 = vadd.f32 0.0, %v11562
        %v11564 = vpop.f32.mrb[0].mxu0
        %v11565 = vpop.f32.mrb[0].mxu0
        %v11566 = vadd.f32 0.0, %v11565
        %v11567 = vpop.f32.mrb[0].mxu0
        %11568 = vdwg.mxu0
        %v11570 = vsel %vm971, %v11338, 0
        %11572 = vmatprep.subr.bf16.mxu0 0
        %11573 = vmatpush1.bf16.xpose.msra.mxu0 %v11350
        %11574 = vmatprep.subr.bf16.mxu0 0
        %11575 = vmatpush1.bf16.xpose.msra.mxu0 0
        %11576 = vmatprep.subr.bf16.mxu0 0
        %11577 = vmatpush1.bf16.xpose.msra.mxu0 0
        %11578 = vmatprep.subr.bf16.mxu0 0
        %11579 = vmatpush1.bf16.xpose.msra.mxu0 0
        %11580 = vmatprep.subr.bf16.mxu0 0
        %11581 = vmatpush1.bf16.xpose.msra.mxu0 0
        %11582 = vmatprep.subr.bf16.mxu0 0
        %11583 = vmatpush1.bf16.xpose.msra.mxu0 0
        %11584 = vmatprep.subr.bf16.mxu0 0
        %11585 = vmatpush1.bf16.xpose.msra.mxu0 0
        %11586 = vmatprep.subr.bf16.mxu0 0
        %11587 = vmatpush1.bf16.xpose.msra.mxu0 0
        %11588 = vmatprep.subr.bf16.mxu0 0
        %11589 = vmatpush1.bf16.xpose.msra.mxu0 0
        %11590 = vmatprep.subr.bf16.mxu0 0
        %11591 = vmatpush1.bf16.xpose.msra.mxu0 0
        %11592 = vmatprep.subr.bf16.mxu0 0
        %11593 = vmatpush1.bf16.xpose.msra.mxu0 0
        %11594 = vmatprep.subr.bf16.mxu0 0
        %11595 = vmatpush1.bf16.xpose.msra.mxu0 0
        %11596 = vmatprep.subr.bf16.mxu0 0
        %11597 = vmatpush1.bf16.xpose.msra.mxu0 0
        %11598 = vmatprep.subr.bf16.mxu0 0
        %11599 = vmatpush1.bf16.xpose.msra.mxu0 0
        %11600 = vmatprep.subr.bf16.mxu0 0
        %11601 = vmatpush1.bf16.xpose.msra.mxu0 0
        %11602 = vmatprep.subr.bf16.mxu0 0
        %11603 = vmatpush1.bf16.xpose.msra.mxu0 0
        %11604 = vmatprep.mubr.bf16.mxu0 0
        %11605 = vmatmul.mubr.bf16.gmra.mrb[0].mxu0 %v11570
        %v11606 = vpop.f32.mrb[0].mxu0
        %v11607 = vadd.f32 0.0, %v11606
        %v11608 = vpop.f32.mrb[0].mxu0
        %v11609 = vpop.f32.mrb[0].mxu0
        %v11610 = vadd.f32 0.0, %v11609
        %v11611 = vpop.f32.mrb[0].mxu0
        %11612 = vdwg.mxu0
        %v11614 = vsel %vm971, %v11339, 0
        %11616 = vmatprep.subr.bf16.mxu0 0
        %11617 = vmatpush1.bf16.xpose.msra.mxu0 %v11350
        %11618 = vmatprep.subr.bf16.mxu0 0
        %11619 = vmatpush1.bf16.xpose.msra.mxu0 0
        %11620 = vmatprep.subr.bf16.mxu0 0
        %11621 = vmatpush1.bf16.xpose.msra.mxu0 0
        %11622 = vmatprep.subr.bf16.mxu0 0
        %11623 = vmatpush1.bf16.xpose.msra.mxu0 0
        %11624 = vmatprep.subr.bf16.mxu0 0
        %11625 = vmatpush1.bf16.xpose.msra.mxu0 0
        %11626 = vmatprep.subr.bf16.mxu0 0
        %11627 = vmatpush1.bf16.xpose.msra.mxu0 0
        %11628 = vmatprep.subr.bf16.mxu0 0
        %11629 = vmatpush1.bf16.xpose.msra.mxu0 0
        %11630 = vmatprep.subr.bf16.mxu0 0
        %11631 = vmatpush1.bf16.xpose.msra.mxu0 0
        %11632 = vmatprep.subr.bf16.mxu0 0
        %11633 = vmatpush1.bf16.xpose.msra.mxu0 0
        %11634 = vmatprep.subr.bf16.mxu0 0
        %11635 = vmatpush1.bf16.xpose.msra.mxu0 0
        %11636 = vmatprep.subr.bf16.mxu0 0
        %11637 = vmatpush1.bf16.xpose.msra.mxu0 0
        %11638 = vmatprep.subr.bf16.mxu0 0
        %11639 = vmatpush1.bf16.xpose.msra.mxu0 0
        %11640 = vmatprep.subr.bf16.mxu0 0
        %11641 = vmatpush1.bf16.xpose.msra.mxu0 0
        %11642 = vmatprep.subr.bf16.mxu0 0
        %11643 = vmatpush1.bf16.xpose.msra.mxu0 0
        %11644 = vmatprep.subr.bf16.mxu0 0
        %11645 = vmatpush1.bf16.xpose.msra.mxu0 0
        %11646 = vmatprep.subr.bf16.mxu0 0
        %11647 = vmatpush1.bf16.xpose.msra.mxu0 0
        %11648 = vmatprep.mubr.bf16.mxu0 0
        %11649 = vmatmul.mubr.bf16.gmra.mrb[0].mxu0 %v11614
        %v11650 = vpop.f32.mrb[0].mxu0
        %v11651 = vadd.f32 0.0, %v11650
        %v11652 = vpop.f32.mrb[0].mxu0
        %v11653 = vpop.f32.mrb[0].mxu0
        %v11654 = vadd.f32 0.0, %v11653
        %v11655 = vpop.f32.mrb[0].mxu0
        %11656 = vdwg.mxu0
        %v11658 = vsel %vm971, %v11340, 0
        %11660 = vmatprep.subr.bf16.mxu0 0
        %11661 = vmatpush1.bf16.xpose.msra.mxu0 %v11350
        %11662 = vmatprep.subr.bf16.mxu0 0
        %11663 = vmatpush1.bf16.xpose.msra.mxu0 0
        %11664 = vmatprep.subr.bf16.mxu0 0
        %11665 = vmatpush1.bf16.xpose.msra.mxu0 0
        %11666 = vmatprep.subr.bf16.mxu0 0
        %11667 = vmatpush1.bf16.xpose.msra.mxu0 0
        %11668 = vmatprep.subr.bf16.mxu0 0
        %11669 = vmatpush1.bf16.xpose.msra.mxu0 0
        %11670 = vmatprep.subr.bf16.mxu0 0
        %11671 = vmatpush1.bf16.xpose.msra.mxu0 0
        %11672 = vmatprep.subr.bf16.mxu0 0
        %11673 = vmatpush1.bf16.xpose.msra.mxu0 0
        %11674 = vmatprep.subr.bf16.mxu0 0
        %11675 = vmatpush1.bf16.xpose.msra.mxu0 0
        %11676 = vmatprep.subr.bf16.mxu0 0
        %11677 = vmatpush1.bf16.xpose.msra.mxu0 0
        %11678 = vmatprep.subr.bf16.mxu0 0
        %11679 = vmatpush1.bf16.xpose.msra.mxu0 0
        %11680 = vmatprep.subr.bf16.mxu0 0
        %11681 = vmatpush1.bf16.xpose.msra.mxu0 0
        %11682 = vmatprep.subr.bf16.mxu0 0
        %11683 = vmatpush1.bf16.xpose.msra.mxu0 0
        %11684 = vmatprep.subr.bf16.mxu0 0
        %11685 = vmatpush1.bf16.xpose.msra.mxu0 0
        %11686 = vmatprep.subr.bf16.mxu0 0
        %11687 = vmatpush1.bf16.xpose.msra.mxu0 0
        %11688 = vmatprep.subr.bf16.mxu0 0
        %11689 = vmatpush1.bf16.xpose.msra.mxu0 0
        %11690 = vmatprep.subr.bf16.mxu0 0
        %11691 = vmatpush1.bf16.xpose.msra.mxu0 0
        %11692 = vmatprep.mubr.bf16.mxu0 0
        %11693 = vmatmul.mubr.bf16.gmra.mrb[0].mxu0 %v11658
        %v11694 = vpop.f32.mrb[0].mxu0
        %v11695 = vadd.f32 0.0, %v11694
        %v11696 = vpop.f32.mrb[0].mxu0
        %v11697 = vpop.f32.mrb[0].mxu0
        %v11698 = vadd.f32 0.0, %v11697
        %v11699 = vpop.f32.mrb[0].mxu0
        %11700 = vdwg.mxu0
        %v11701 = vcombine.low %v11387, %v11475
        %v11702 = vcombine.high %v11387, %v11475
        %v11704 = vunpack.c.l.s4 1983009808
        %v11705 = vunpack.c.0.s8 %v11704
        %v11706 = vlaneseq
        %v11707 = vshrl.u32 %v11706, 7
        %v11708 = vsub.s32 %v11705, %v11707
        %v11709 = vrot.slane %v11701, %v11708
        %v11711 = vunpack.c.l.s4 1983009808
        %v11712 = vunpack.c.0.s8 %v11711
        %v11713 = vlaneseq
        %v11714 = vshrl.u32 %v11713, 7
        %v11715 = vsub.s32 %v11712, %v11714
        %v11716 = vrot.slane %v11702, %v11715
        %v11717 = vcombine.low %v11431, %v11519
        %v11718 = vcombine.high %v11431, %v11519
        %v11720 = vunpack.c.l.s4 1983009808
        %v11721 = vunpack.c.0.s8 %v11720
        %v11722 = vlaneseq
        %v11723 = vshrl.u32 %v11722, 7
        %v11724 = vsub.s32 %v11721, %v11723
        %v11725 = vrot.slane %v11717, %v11724
        %v11727 = vunpack.c.l.s4 1983009808
        %v11728 = vunpack.c.0.s8 %v11727
        %v11729 = vlaneseq
        %v11730 = vshrl.u32 %v11729, 7
        %v11731 = vsub.s32 %v11728, %v11730
        %v11732 = vrot.slane %v11718, %v11731
        %v11733 = vcombine.low %v11563, %v11651
        %v11734 = vcombine.high %v11563, %v11651
        %v11736 = vunpack.c.l.s4 1983009808
        %v11737 = vunpack.c.0.s8 %v11736
        %v11738 = vlaneseq
        %v11739 = vshrl.u32 %v11738, 7
        %v11740 = vsub.s32 %v11737, %v11739
        %v11741 = vrot.slane %v11733, %v11740
        %v11743 = vunpack.c.l.s4 1983009808
        %v11744 = vunpack.c.0.s8 %v11743
        %v11745 = vlaneseq
        %v11746 = vshrl.u32 %v11745, 7
        %v11747 = vsub.s32 %v11744, %v11746
        %v11748 = vrot.slane %v11734, %v11747
        %v11749 = vcombine.low %v11607, %v11695
        %v11750 = vcombine.high %v11607, %v11695
        %v11752 = vunpack.c.l.s4 1983009808
        %v11753 = vunpack.c.0.s8 %v11752
        %v11754 = vlaneseq
        %v11755 = vshrl.u32 %v11754, 7
        %v11756 = vsub.s32 %v11753, %v11755
        %v11757 = vrot.slane %v11749, %v11756
        %v11759 = vunpack.c.l.s4 1983009808
        %v11760 = vunpack.c.0.s8 %v11759
        %v11761 = vlaneseq
        %v11762 = vshrl.u32 %v11761, 7
        %v11763 = vsub.s32 %v11760, %v11762
        %v11764 = vrot.slane %v11750, %v11763
        %v11765 = vcombine.low %v11709, %v11725
        %v11766 = vcombine.high %v11709, %v11725
        %v11768 = vunpack.c.l.s4 1934713408
        %v11769 = vunpack.c.0.s8 %v11768
        %v11770 = vlaneseq
        %v11771 = vshrl.u32 %v11770, 7
        %v11772 = vsub.s32 %v11769, %v11771
        %v11773 = vrot.slane %v11765, %v11772
        %v11775 = vunpack.c.l.s4 1934713408
        %v11776 = vunpack.c.0.s8 %v11775
        %v11777 = vlaneseq
        %v11778 = vshrl.u32 %v11777, 7
        %v11779 = vsub.s32 %v11776, %v11778
        %v11780 = vrot.slane %v11766, %v11779
        %v11781 = vcombine.low %v11716, %v11732
        %v11782 = vcombine.high %v11716, %v11732
        %v11784 = vunpack.c.l.s4 1934713408
        %v11785 = vunpack.c.0.s8 %v11784
        %v11786 = vlaneseq
        %v11787 = vshrl.u32 %v11786, 7
        %v11788 = vsub.s32 %v11785, %v11787
        %v11789 = vrot.slane %v11781, %v11788
        %v11791 = vunpack.c.l.s4 1934713408
        %v11792 = vunpack.c.0.s8 %v11791
        %v11793 = vlaneseq
        %v11794 = vshrl.u32 %v11793, 7
        %v11795 = vsub.s32 %v11792, %v11794
        %v11796 = vrot.slane %v11782, %v11795
        %v11797 = vcombine.low %v11741, %v11757
        %v11798 = vcombine.high %v11741, %v11757
        %v11800 = vunpack.c.l.s4 1934713408
        %v11801 = vunpack.c.0.s8 %v11800
        %v11802 = vlaneseq
        %v11803 = vshrl.u32 %v11802, 7
        %v11804 = vsub.s32 %v11801, %v11803
        %v11805 = vrot.slane %v11797, %v11804
        %v11807 = vunpack.c.l.s4 1934713408
        %v11808 = vunpack.c.0.s8 %v11807
        %v11809 = vlaneseq
        %v11810 = vshrl.u32 %v11809, 7
        %v11811 = vsub.s32 %v11808, %v11810
        %v11812 = vrot.slane %v11798, %v11811
        %v11813 = vcombine.low %v11748, %v11764
        %v11814 = vcombine.high %v11748, %v11764
        %v11816 = vunpack.c.l.s4 1934713408
        %v11817 = vunpack.c.0.s8 %v11816
        %v11818 = vlaneseq
        %v11819 = vshrl.u32 %v11818, 7
        %v11820 = vsub.s32 %v11817, %v11819
        %v11821 = vrot.slane %v11813, %v11820
        %v11823 = vunpack.c.l.s4 1934713408
        %v11824 = vunpack.c.0.s8 %v11823
        %v11825 = vlaneseq
        %v11826 = vshrl.u32 %v11825, 7
        %v11827 = vsub.s32 %v11824, %v11826
        %v11828 = vrot.slane %v11814, %v11827
        %v11829 = vcombine.low %v11773, %v11805
        %v11830 = vcombine.high %v11773, %v11805
        %v11831 = vcombine.low %v11780, %v11812
        %v11832 = vcombine.high %v11780, %v11812
        %v11833 = vcombine.low %v11789, %v11821
        %v11834 = vcombine.high %v11789, %v11821
        %v11835 = vcombine.low %v11796, %v11828
        %v11836 = vcombine.high %v11796, %v11828
        %v11837 = vcombine.low %v11390, %v11478
        %v11838 = vcombine.high %v11390, %v11478
        %v11840 = vunpack.c.l.s4 1983009808
        %v11841 = vunpack.c.0.s8 %v11840
        %v11842 = vlaneseq
        %v11843 = vshrl.u32 %v11842, 7
        %v11844 = vsub.s32 %v11841, %v11843
        %v11845 = vrot.slane %v11837, %v11844
        %v11847 = vunpack.c.l.s4 1983009808
        %v11848 = vunpack.c.0.s8 %v11847
        %v11849 = vlaneseq
        %v11850 = vshrl.u32 %v11849, 7
        %v11851 = vsub.s32 %v11848, %v11850
        %v11852 = vrot.slane %v11838, %v11851
        %v11853 = vcombine.low %v11434, %v11522
        %v11854 = vcombine.high %v11434, %v11522
        %v11856 = vunpack.c.l.s4 1983009808
        %v11857 = vunpack.c.0.s8 %v11856
        %v11858 = vlaneseq
        %v11859 = vshrl.u32 %v11858, 7
        %v11860 = vsub.s32 %v11857, %v11859
        %v11861 = vrot.slane %v11853, %v11860
        %v11863 = vunpack.c.l.s4 1983009808
        %v11864 = vunpack.c.0.s8 %v11863
        %v11865 = vlaneseq
        %v11866 = vshrl.u32 %v11865, 7
        %v11867 = vsub.s32 %v11864, %v11866
        %v11868 = vrot.slane %v11854, %v11867
        %v11869 = vcombine.low %v11566, %v11654
        %v11870 = vcombine.high %v11566, %v11654
        %v11872 = vunpack.c.l.s4 1983009808
        %v11873 = vunpack.c.0.s8 %v11872
        %v11874 = vlaneseq
        %v11875 = vshrl.u32 %v11874, 7
        %v11876 = vsub.s32 %v11873, %v11875
        %v11877 = vrot.slane %v11869, %v11876
        %v11879 = vunpack.c.l.s4 1983009808
        %v11880 = vunpack.c.0.s8 %v11879
        %v11881 = vlaneseq
        %v11882 = vshrl.u32 %v11881, 7
        %v11883 = vsub.s32 %v11880, %v11882
        %v11884 = vrot.slane %v11870, %v11883
        %v11885 = vcombine.low %v11610, %v11698
        %v11886 = vcombine.high %v11610, %v11698
        %v11888 = vunpack.c.l.s4 1983009808
        %v11889 = vunpack.c.0.s8 %v11888
        %v11890 = vlaneseq
        %v11891 = vshrl.u32 %v11890, 7
        %v11892 = vsub.s32 %v11889, %v11891
        %v11893 = vrot.slane %v11885, %v11892
        %v11895 = vunpack.c.l.s4 1983009808
        %v11896 = vunpack.c.0.s8 %v11895
        %v11897 = vlaneseq
        %v11898 = vshrl.u32 %v11897, 7
        %v11899 = vsub.s32 %v11896, %v11898
        %v11900 = vrot.slane %v11886, %v11899
        %v11901 = vcombine.low %v11845, %v11861
        %v11902 = vcombine.high %v11845, %v11861
        %v11904 = vunpack.c.l.s4 1934713408
        %v11905 = vunpack.c.0.s8 %v11904
        %v11906 = vlaneseq
        %v11907 = vshrl.u32 %v11906, 7
        %v11908 = vsub.s32 %v11905, %v11907
        %v11909 = vrot.slane %v11901, %v11908
        %v11911 = vunpack.c.l.s4 1934713408
        %v11912 = vunpack.c.0.s8 %v11911
        %v11913 = vlaneseq
        %v11914 = vshrl.u32 %v11913, 7
        %v11915 = vsub.s32 %v11912, %v11914
        %v11916 = vrot.slane %v11902, %v11915
        %v11917 = vcombine.low %v11852, %v11868
        %v11918 = vcombine.high %v11852, %v11868
        %v11920 = vunpack.c.l.s4 1934713408
        %v11921 = vunpack.c.0.s8 %v11920
        %v11922 = vlaneseq
        %v11923 = vshrl.u32 %v11922, 7
        %v11924 = vsub.s32 %v11921, %v11923
        %v11925 = vrot.slane %v11917, %v11924
        %v11927 = vunpack.c.l.s4 1934713408
        %v11928 = vunpack.c.0.s8 %v11927
        %v11929 = vlaneseq
        %v11930 = vshrl.u32 %v11929, 7
        %v11931 = vsub.s32 %v11928, %v11930
        %v11932 = vrot.slane %v11918, %v11931
        %v11933 = vcombine.low %v11877, %v11893
        %v11934 = vcombine.high %v11877, %v11893
        %v11936 = vunpack.c.l.s4 1934713408
        %v11937 = vunpack.c.0.s8 %v11936
        %v11938 = vlaneseq
        %v11939 = vshrl.u32 %v11938, 7
        %v11940 = vsub.s32 %v11937, %v11939
        %v11941 = vrot.slane %v11933, %v11940
        %v11943 = vunpack.c.l.s4 1934713408
        %v11944 = vunpack.c.0.s8 %v11943
        %v11945 = vlaneseq
        %v11946 = vshrl.u32 %v11945, 7
        %v11947 = vsub.s32 %v11944, %v11946
        %v11948 = vrot.slane %v11934, %v11947
        %v11949 = vcombine.low %v11884, %v11900
        %v11950 = vcombine.high %v11884, %v11900
        %v11952 = vunpack.c.l.s4 1934713408
        %v11953 = vunpack.c.0.s8 %v11952
        %v11954 = vlaneseq
        %v11955 = vshrl.u32 %v11954, 7
        %v11956 = vsub.s32 %v11953, %v11955
        %v11957 = vrot.slane %v11949, %v11956
        %v11959 = vunpack.c.l.s4 1934713408
        %v11960 = vunpack.c.0.s8 %v11959
        %v11961 = vlaneseq
        %v11962 = vshrl.u32 %v11961, 7
        %v11963 = vsub.s32 %v11960, %v11962
        %v11964 = vrot.slane %v11950, %v11963
        %v11965 = vcombine.low %v11909, %v11941
        %v11966 = vcombine.high %v11909, %v11941
        %v11967 = vcombine.low %v11916, %v11948
        %v11968 = vcombine.high %v11916, %v11948
        %v11969 = vcombine.low %v11925, %v11957
        %v11970 = vcombine.high %v11925, %v11957
        %v11971 = vcombine.low %v11932, %v11964
        %v11972 = vcombine.high %v11932, %v11964
        %11974 = vrot.lane.b32.xlu0 %v11830, 16
        %v11975 = vpop.permute.xlu0 %11974
        %11978 = vrot.lane.b32.xlu0 %v11831, 32
        %v11979 = vpop.permute.xlu0 %11978
        %11982 = vrot.lane.b32.xlu0 %v11832, 48
        %v11983 = vpop.permute.xlu0 %11982
        %11986 = vrot.lane.b32.xlu0 %v11833, 64
        %v11987 = vpop.permute.xlu0 %11986
        %11990 = vrot.lane.b32.xlu0 %v11834, 80
        %v11991 = vpop.permute.xlu0 %11990
        %11994 = vrot.lane.b32.xlu0 %v11835, 96
        %v11995 = vpop.permute.xlu0 %11994
        %11998 = vrot.lane.b32.xlu0 %v11836, 112
        %v11999 = vpop.permute.xlu0 %11998
        %12002 = vrot.lane.b32.xlu0 %v11966, 16
        %v12003 = vpop.permute.xlu0 %12002
        %12006 = vrot.lane.b32.xlu0 %v11967, 32
        %v12007 = vpop.permute.xlu0 %12006
        %12010 = vrot.lane.b32.xlu0 %v11968, 48
        %v12011 = vpop.permute.xlu0 %12010
        %12014 = vrot.lane.b32.xlu0 %v11969, 64
        %v12015 = vpop.permute.xlu0 %12014
        %12018 = vrot.lane.b32.xlu0 %v11970, 80
        %v12019 = vpop.permute.xlu0 %12018
        %12022 = vrot.lane.b32.xlu0 %v11971, 96
        %v12023 = vpop.permute.xlu0 %12022
        %12026 = vrot.lane.b32.xlu0 %v11972, 112
        %v12027 = vpop.permute.xlu0 %12026
        %v12029 = vsel %vm4035, %v11829, %v11975
        %v12030 = vsel %vm5240, %v12029, %v11979
        %v12031 = vsel %vm5242, %v12030, %v11983
        %v12032 = vsel %vm5244, %v12031, %v11987
        %v12033 = vsel %vm5246, %v12032, %v11991
        %v12034 = vsel %vm5248, %v12033, %v11995
        %v12035 = vsel %vm5250, %v12034, %v11999
        %v12036 = vsel %vm4035, %v11965, %v12003
        %v12037 = vsel %vm5240, %v12036, %v12007
        %v12038 = vsel %vm5242, %v12037, %v12011
        %v12039 = vsel %vm5244, %v12038, %v12015
        %v12040 = vsel %vm5246, %v12039, %v12019
        %v12041 = vsel %vm5248, %v12040, %v12023
        %v12042 = vsel %vm5250, %v12041, %v12027
        %12043 = vst [vmem:[%s831 + $0x10] sm:$0xff] %v12035
        %12044 = vst [vmem:[%s831 + $0x18] sm:$0xff] %v12042
        %s12045 = smul.u32 8, 1
        %s12046 = smul.u32 %s12045, 2
        %s12047 = smul.u32 %s12046, 2
        %s12048 = sshll.u32 %s12047, 4
        %12049 = dma.done [#allocation2], %s12048
        %p12050 = scmp.lt.s32.totalorder %s30, 1
        %s12051 = scalar_select %p12050, %s30, 1
        %s12052 = smul.addr %s12051, 8
        %s12053 = smul.addr %s12052, 8
        %s12054 = scalar_lea.vmem %s19, %s12053
        // Predicated region
        $region209: #{fpn_forward.1} parent=165 // pred_check
          %p12055 = pneg %p436
        $region210: #{fpn_forward.1} parent=165 // pred_check_branch
          %12057 = sbr.rel (%p12055) target = $region212
        $region211: #{fpn_forward.1} parent=165 // pred_region
          _
        $region212: #{fpn_forward.1} parent=165 // pred_fallthru
          _
      $region166: #{fpn_forward.1} parent=5 // pred_fallthru
        _
      %p12058 = scmp.le.s32.totalorder 2, %s25
      // Predicated region
      $region213: #{fpn_forward.1} parent=5 // pred_check
        %p12059 = pneg %p12058
      $region214: #{fpn_forward.1} parent=5 // pred_check_branch
        %12061 = sbr.rel (%p12059) target = $region216
      $region215: #{fpn_forward.1} parent=5 // pred_region
        %s12062 = ssub.s32 %s25, 2
        // Predicated region
        $region217: #{fpn_forward.1} parent=215 // pred_check
          %p12063 = pneg %p442
        $region218: #{fpn_forward.1} parent=215 // pred_check_branch
          %12065 = sbr.rel (%p12063) target = $region220
        $region219: #{fpn_forward.1} parent=215 // pred_region
          %p12066 = scmp.lt.s32.totalorder %s31, 1
          %s12067 = scalar_select %p12066, %s31, 1
          %s12068 = smul.addr %s12067, 8
          %s12069 = smul.addr %s12068, 8
          %s12070 = scalar_lea.vmem %s19, %s12069
        $region220: #{fpn_forward.1} parent=215 // pred_fallthru
          _
      $region216: #{fpn_forward.1} parent=5 // pred_fallthru
        _
    $region6: #{fpn_forward.1} parent=1 // loop_footer
      %s29 = sadd.s32 1, %s25
    $region7: #{fpn_forward.1} parent=1 // loop_footer_branch
      %24 = sbr.rel target = $region3
    $region8: #{fpn_forward.1} parent=1 // loop_exit
      _
  %12071 = vsyncmov [#allocation2]
  %s12072 = vpop.sfrf %12071
  %p12073 = scmp.eq.s32.totalorder %s12072, 0
  %p12074 = pneg %p12073
  %12076 = shalt.err (%p12074)

</llo_original>
